<compile_context>
chip_gen: v6e
topology: v6e:2x2x1
jax: 0.10.0
libtpu: 0.0.40
codegen_flags: <defaults>
</compile_context>

<pallas_src>
import functools

import jax
import jax.numpy as jnp
from jax import lax
from jax.experimental import pallas as pl
from jax.experimental.pallas import tpu as pltpu

NUM_HEADS = 4     # nn.MultiheadAttention(num_heads=4)
BATCH_TILE = 8    # batch rows per grid step (fills the 8 f32 sublanes)


# -----------------------------------------------------------------------------
# Fully fused forward kernel (one batch tile per grid step).
#   samp_ref: (B, S, 1) int32 token ids
#   emb_ref:  (V, D)    embedding table
#   wx*_ref:  (Din, 8H) merged, gate-grouped input-proj weights   (bf16)
#   wh*_ref:  (2H, 8H)  merged block-diagonal recurrent weights   (bf16)
#   b*_ref:   (1, 8H)   merged biases (b_ih + b_hh), gate-grouped (f32)
#   wqkv_ref: (E, 3E)   fused QKV proj (Q columns pre-scaled by 1/sqrt(hd))
#   wo_ref:   (E, E)    attention out-proj
#   wl_ref:   (E, out)  head Linear with eval BatchNorm folded in
#   out_ref:  (B, out)
# Merged gate-column layout: [i_f i_b | f_f f_b | g_f g_b | o_f o_b] (each H wide)
# Merged hidden layout:      [h_f | h_b]   (PyTorch LSTM gate order i, f, g, o)
# -----------------------------------------------------------------------------
def _fused_forward_kernel(samp_ref, emb_ref,
                          wx1_ref, wh1_ref, b1_ref,
                          wqkv_ref, bqkv_ref, wo_ref, bo_ref,
                          wx2_ref, wh2_ref, b2_ref,
                          wl_ref, bl_ref,
                          out_ref, *, num_heads, apply_sigmoid):
    B, S, _ = samp_ref.shape
    V, D = emb_ref.shape
    H2 = wh1_ref.shape[0]          # 2H = merged hidden width = attention embed dim
    H = H2 // 2
    E = H2
    G = 4 * H2                     # 8H merged gate-row width
    NH = num_heads
    hd = E // NH
    f32 = jnp.float32
    bf16 = jnp.bfloat16

    # ------------- embedding lookup: one-hot @ table (no gather, no dispatch) ----
    sid = samp_ref[...]                                            # (B, S, 1) int32
    iota_v = lax.broadcasted_iota(jnp.int32, (B, S, V), 2)
    onehot = jnp.where(iota_v == sid, 1.0, 0.0)                    # (B, S, V) f32
    x = jnp.dot(onehot.reshape(B * S, V), emb_ref[...],
                preferred_element_type=f32)                        # (B*S, D) f32

    # Column j of the merged gate row belongs to the FWD direction iff (j mod 2H)<H.
    col = lax.broadcasted_iota(jnp.int32, (1, G), 1)
    if (H2 & (H2 - 1)) == 0:                       # power-of-two fast path
        fwd_col = (col & (H2 - 1)) < H
    else:
        fwd_col = (col % H2) < H

    def bilstm(x_rows, wx, wh, b):
        # Hoisted input projection: one bf16 MXU matmul covers both directions,
        # all timesteps and the bias.
        xw = jnp.dot(x_rows.astype(bf16), wx,
                     preferred_element_type=f32) + b               # (B*S, 8H) f32
        xw = xw.reshape(B, S, G)
        h = jnp.zeros((B, H2), f32)                                # [h_f | h_b]
        c = jnp.zeros((B, H2), f32)
        hs = []
        for s in range(S):                        # static S -> fully unrolled
            tb = S - 1 - s
            # fwd gate columns from time s, bwd gate columns from time S-1-s
            gx = jnp.where(fwd_col, xw[:, s, :], xw[:, tb, :])
            gates = gx + jnp.dot(h.astype(bf16), wh,
                                 preferred_element_type=f32)       # (B, 8H)
            sg = jax.nn.sigmoid(gates)            # one sigmoid over the merged row
            tg = jnp.tanh(gates)                  # one tanh over the merged row
            i = sg[:, 0 * H2:1 * H2]
            f = sg[:, 1 * H2:2 * H2]
            g = tg[:, 2 * H2:3 * H2]
            o = sg[:, 3 * H2:4 * H2]
            c = f * c + i * g                     # single (B, 2H) VPU ops
            h = o * jnp.tanh(c)
            hs.append(h)                          # hs[s] = [h_f(s) | h_b(S-1-s)]
        return hs

    # ------------------------------- BiLSTM 1 ------------------------------------
    hs1 = bilstm(x, wx1_ref[...], wh1_ref[...], b1_ref[...])
    # Temporally-correct (B, S, E): fwd half from hs1[t], bwd half from hs1[S-1-t];
    # fixed with one lane select (no masked per-step scratch stores).
    A = jnp.stack(hs1, axis=1)                                     # (B, S, 2H)
    Ar = jnp.stack(hs1[::-1], axis=1)
    lane = lax.broadcasted_iota(jnp.int32, (1, 1, H2), 2)
    o1 = jnp.where(lane < H, A, Ar)                                # (B, S, E)

    # --------------------- multi-head self-attention (eval) ----------------------
    qkv = jnp.dot(o1.reshape(B * S, E).astype(bf16), wqkv_ref[...],
                  preferred_element_type=f32) + bqkv_ref[...]      # (B*S, 3E)
    q = qkv[:, 0:E].reshape(B, S, E)          # 1/sqrt(hd) already folded into W_q/b_q
    k = qkv[:, E:2 * E].reshape(B, S, E)
    v = qkv[:, 2 * E:3 * E].reshape(B, S, E)

    def heads_to_batch(t):                    # (B, S, E) -> (NH*B, S, hd)
        return jnp.concatenate(
            [t[:, :, h * hd:(h + 1) * hd] for h in range(NH)], axis=0)

    qh, kh, vh = heads_to_batch(q), heads_to_batch(k), heads_to_batch(v)
    sc = jnp.einsum('gsd,gtd->gst', qh, kh,
                    preferred_element_type=f32)                    # (NH*B, S, S)
    m = jnp.max(sc, axis=-1, keepdims=True)
    e = jnp.exp(sc - m)
    attn = e * pl.reciprocal(jnp.sum(e, axis=-1, keepdims=True), approx=True)
    ctx = jnp.einsum('gst,gtd->gsd', attn, vh,
                     preferred_element_type=f32)                   # (NH*B, S, hd)
    ctx = jnp.concatenate([ctx[h * B:(h + 1) * B] for h in range(NH)], axis=-1)
    a = jnp.dot(ctx.reshape(B * S, E).astype(bf16), wo_ref[...],
                preferred_element_type=f32) + bo_ref[...]          # (B*S, E)

    # ------------- BiLSTM 2 (only final fwd / final bwd hidden are needed) -------
    hs2 = bilstm(a, wx2_ref[...], wh2_ref[...], b2_ref[...])
    feats = hs2[-1]        # == torch.cat(o2[:, -1, :H], o2[:, 0, H:]) by construction

    # --------- head: eval BatchNorm folded into Linear, then Sigmoid -------------
    y = jnp.dot(feats, wl_ref[...], preferred_element_type=f32) + bl_ref[...]
    if apply_sigmoid:                          # out_dim == 1 -> Sigmoid branch
        y = jax.nn.sigmoid(y)
    out_ref[...] = y


def _full_spec(shape):
    nd = len(shape)
    return pl.BlockSpec(shape, lambda i, _nd=nd: (0,) * _nd)


# -----------------------------------------------------------------------------
# Parameter construction (deterministic, synthetic weights) + fusion/folding.
# -----------------------------------------------------------------------------
def init_params(key, vocab, in_dim, hidden, out_dim):
    H = hidden
    E = 2 * H
    hd = E // NUM_HEADS
    scale = 1.0 / float(hd) ** 0.5
    ks = jax.random.split(key, 24)

    def nrm(k, shape, s=0.1):
        return s * jax.random.normal(k, shape, dtype=jnp.float32)

    def merge_bilstm(w_ih_f, w_hh_f, b_f, w_ih_b, w_hh_b, b_b):
        # Merged, gate-grouped layout used by the kernel:
        #   gate columns   [i_f i_b | f_f f_b | g_f g_b | o_f o_b]
        #   recurrent rows [h_f ; h_b]  (block-diagonal per direction)
        zeros = jnp.zeros((H, H), jnp.float32)
        wx_cols, wh_cols, b_cols = [], [], []
        for g in range(4):                       # PyTorch gate order i, f, g, o
            sl = slice(g * H, (g + 1) * H)
            wx_cols += [w_ih_f[:, sl], w_ih_b[:, sl]]
            b_cols += [b_f[:, sl], b_b[:, sl]]
            wh_cols += [jnp.concatenate([w_hh_f[:, sl], zeros], axis=0),
                        jnp.concatenate([zeros, w_hh_b[:, sl]], axis=0)]
        wx = jnp.concatenate(wx_cols, axis=1)    # (Din, 8H)
        wh = jnp.concatenate(wh_cols, axis=1)    # (2H, 8H)
        b = jnp.concatenate(b_cols, axis=1)      # (1, 8H) = b_ih + b_hh (merged)
        return wx.astype(jnp.bfloat16), wh.astype(jnp.bfloat16), b

    # BiLSTM1 per-direction weights (pre-transposed: W_ih^T, W_hh^T, b_ih + b_hh)
    w_ih1_f = nrm(ks[1], (in_dim, 4 * H)); w_hh1_f = nrm(ks[2], (H, 4 * H)); b1_f = nrm(ks[3], (1, 4 * H))
    w_ih1_b = nrm(ks[4], (in_dim, 4 * H)); w_hh1_b = nrm(ks[5], (H, 4 * H)); b1_b = nrm(ks[6], (1, 4 * H))
    wx1, wh1, b1 = merge_bilstm(w_ih1_f, w_hh1_f, b1_f, w_ih1_b, w_hh1_b, b1_b)

    # MHA: fused QKV in-projection, 1/sqrt(hd) folded into the Q columns.
    wq = nrm(ks[7], (E, E)); wk = nrm(ks[8], (E, E)); wv = nrm(ks[9], (E, E)); wo = nrm(ks[10], (E, E))
    bq = nrm(ks[11], (1, E)); bk = nrm(ks[12], (1, E)); bv = nrm(ks[13], (1, E)); bo = nrm(ks[14], (1, E))
    wqkv = jnp.concatenate([wq * scale, wk, wv], axis=1).astype(jnp.bfloat16)
    bqkv = jnp.concatenate([bq * scale, bk, bv], axis=1)

    # BiLSTM2
    w_ih2_f = nrm(ks[15], (E, 4 * H)); w_hh2_f = nrm(ks[16], (H, 4 * H)); b2_f = nrm(ks[17], (1, 4 * H))
    w_ih2_b = nrm(ks[18], (E, 4 * H)); w_hh2_b = nrm(ks[19], (H, 4 * H)); b2_b = nrm(ks[20], (1, 4 * H))
    wx2, wh2, b2 = merge_bilstm(w_ih2_f, w_hh2_f, b2_f, w_ih2_b, w_hh2_b, b2_b)

    # Head: eval-mode BatchNorm1d (default running stats) folded into the Linear.
    gamma = jnp.ones((1, E), jnp.float32); beta = jnp.zeros((1, E), jnp.float32)
    mean = jnp.zeros((1, E), jnp.float32); var = jnp.ones((1, E), jnp.float32)
    eps = 1e-5
    w_lin = nrm(ks[21], (E, out_dim))            # xavier_normal_-style
    b_lin = jnp.zeros((1, out_dim), jnp.float32)
    bn_scale = gamma * lax.rsqrt(var + eps)
    bn_shift = beta - mean * bn_scale
    w_head = w_lin * bn_scale.reshape(E, 1)
    b_head = b_lin + bn_shift @ w_lin

    return {
        "emb_table": nrm(ks[0], (vocab, in_dim), 1.0),
        "wx1": wx1, "wh1": wh1, "b1": b1,
        "wqkv": wqkv, "bqkv": bqkv,
        "wo": wo.astype(jnp.bfloat16), "bo": bo,
        "wx2": wx2, "wh2": wh2, "b2": b2,
        "w_head": w_head, "b_head": b_head,
    }


@jax.jit
def attention_model_forward(samples, params):
    B, S = samples.shape
    out_dim = params["w_head"].shape[1]
    bt = BATCH_TILE if (B % BATCH_TILE == 0) else B
    samples3 = samples.astype(jnp.int32).reshape(B, S, 1)

    weight_args = (params["emb_table"],
                   params["wx1"], params["wh1"], params["b1"],
                   params["wqkv"], params["bqkv"], params["wo"], params["bo"],
                   params["wx2"], params["wh2"], params["b2"],
                   params["w_head"], params["b_head"])
    in_specs = ([pl.BlockSpec((bt, S, 1), lambda i: (i, 0, 0))]
                + [_full_spec(w.shape) for w in weight_args])

    kernel = functools.partial(_fused_forward_kernel,
                               num_heads=NUM_HEADS,
                               apply_sigmoid=(out_dim < 2))
    return pl.pallas_call(
        kernel,
        out_shape=jax.ShapeDtypeStruct((B, out_dim), jnp.float32),
        grid=(B // bt,),
        in_specs=in_specs,
        out_specs=pl.BlockSpec((bt, out_dim), lambda i: (i, 0)),
        compiler_params=pltpu.CompilerParams(
            dimension_semantics=("parallel",)),   # batch tiles -> both v7x TCs
    )(samples3, *weight_args)


if __name__ == "__main__":
    B, S = 16, 8                      # batch raised per perf review (2 tiles of 8)
    VOCAB, IN_DIM, HIDDEN, OUT_DIM = 50, 16, 32, 1

    key = jax.random.PRNGKey(0)
    k_samp, k_par = jax.random.split(key)
    samples = jax.random.randint(k_samp, (B, S), 0, VOCAB, dtype=jnp.int32)
    params = init_params(k_par, VOCAB, IN_DIM, HIDDEN, OUT_DIM)

    out = attention_model_forward(samples, params)
    out = jax.block_until_ready(out)
    assert out.shape == (B, OUT_DIM)
    assert bool(jnp.all(jnp.isfinite(out)))
    print("KERNEL_OK")
</pallas_src>

<mosaic_0001>
module attributes {stable_mosaic.version = 11 : i64} {
  func.func @_fused_forward_kernel(%arg0: i32, %arg1: memref<8x8x1xi32, #tpu.memory_space<vmem>>, %arg2: memref<50x16xf32, #tpu.memory_space<vmem>>, %arg3: memref<16x256xbf16, #tpu.memory_space<vmem>>, %arg4: memref<64x256xbf16, #tpu.memory_space<vmem>>, %arg5: memref<1x256xf32, #tpu.memory_space<vmem>>, %arg6: memref<64x192xbf16, #tpu.memory_space<vmem>>, %arg7: memref<1x192xf32, #tpu.memory_space<vmem>>, %arg8: memref<64x64xbf16, #tpu.memory_space<vmem>>, %arg9: memref<1x64xf32, #tpu.memory_space<vmem>>, %arg10: memref<64x256xbf16, #tpu.memory_space<vmem>>, %arg11: memref<64x256xbf16, #tpu.memory_space<vmem>>, %arg12: memref<1x256xf32, #tpu.memory_space<vmem>>, %arg13: memref<64x1xf32, #tpu.memory_space<vmem>>, %arg14: memref<1x1xf32, #tpu.memory_space<vmem>>, %arg15: memref<8x1xf32, #tpu.memory_space<vmem>>) attributes {dimension_semantics = [#tpu.dimension_semantics<parallel>], iteration_bounds = array<i64: 2>, scalar_prefetch = 0 : i64, scratch_operands = 0 : i64, tpu.core_type = #tpu.core_type<tc>, window_params = [{transform_indices = @transform_0, window_bounds = array<i64: 8, 8, 1>}, {pipeline_mode = #tpu.pipeline_mode<synchronous>, transform_indices = @transform_1, window_bounds = array<i64: 50, 16>}, {pipeline_mode = #tpu.pipeline_mode<synchronous>, transform_indices = @transform_2, window_bounds = array<i64: 16, 256>}, {pipeline_mode = #tpu.pipeline_mode<synchronous>, transform_indices = @transform_3, window_bounds = array<i64: 64, 256>}, {pipeline_mode = #tpu.pipeline_mode<synchronous>, transform_indices = @transform_4, window_bounds = array<i64: 1, 256>}, {pipeline_mode = #tpu.pipeline_mode<synchronous>, transform_indices = @transform_5, window_bounds = array<i64: 64, 192>}, {pipeline_mode = #tpu.pipeline_mode<synchronous>, transform_indices = @transform_6, window_bounds = array<i64: 1, 192>}, {pipeline_mode = #tpu.pipeline_mode<synchronous>, transform_indices = @transform_7, window_bounds = array<i64: 64, 64>}, {pipeline_mode = #tpu.pipeline_mode<synchronous>, transform_indices = @transform_8, window_bounds = array<i64: 1, 64>}, {pipeline_mode = #tpu.pipeline_mode<synchronous>, transform_indices = @transform_9, window_bounds = array<i64: 64, 256>}, {pipeline_mode = #tpu.pipeline_mode<synchronous>, transform_indices = @transform_10, window_bounds = array<i64: 64, 256>}, {pipeline_mode = #tpu.pipeline_mode<synchronous>, transform_indices = @transform_11, window_bounds = array<i64: 1, 256>}, {pipeline_mode = #tpu.pipeline_mode<synchronous>, transform_indices = @transform_12, window_bounds = array<i64: 64, 1>}, {pipeline_mode = #tpu.pipeline_mode<synchronous>, transform_indices = @transform_13, window_bounds = array<i64: 1, 1>}, {transform_indices = @transform_14, window_bounds = array<i64: 8, 1>}]} {
    %c0 = arith.constant 0 : index
    %c0_0 = arith.constant 0 : index
    %c0_1 = arith.constant 0 : index
    %0 = vector.load %arg1[%c0, %c0_0, %c0_1] : memref<8x8x1xi32, #tpu.memory_space<vmem>>, vector<8x8x1xi32>
    %1 = tpu.iota {dimensions = array<i32: 2>} : vector<8x8x50xi32>
    %2 = vector.broadcast %0 : vector<8x8x1xi32> to vector<8x8x50xi32>
    %3 = arith.cmpi eq, %1, %2 : vector<8x8x50xi32>
    %cst = arith.constant 1.000000e+00 : f32
    %cst_2 = arith.constant 0.000000e+00 : f32
    %4 = vector.broadcast %cst : f32 to vector<8x8x50xf32>
    %5 = vector.broadcast %cst_2 : f32 to vector<8x8x50xf32>
    %6 = arith.select %3, %4, %5 : vector<8x8x50xi1>, vector<8x8x50xf32>
    %7 = vector.shape_cast %6 : vector<8x8x50xf32> to vector<64x50xf32>
    %c0_3 = arith.constant 0 : index
    %c0_4 = arith.constant 0 : index
    %8 = vector.load %arg2[%c0_3, %c0_4] : memref<50x16xf32, #tpu.memory_space<vmem>>, vector<50x16xf32>
    %cst_5 = arith.constant dense<0.000000e+00> : vector<64x16xf32>
    %9 = tpu.matmul %7, %8, %cst_5 {dimension_numbers = #tpu.dot_dimension_numbers<[1], [0], [0], [1], [0, 0, 1, 1], [], []>} : vector<64x50xf32>, vector<50x16xf32>, vector<64x16xf32> -> vector<64x16xf32>
    %10 = tpu.iota {dimensions = array<i32: 1>} : vector<1x256xi32>
    %c63_i32 = arith.constant 63 : i32
    %11 = vector.broadcast %c63_i32 : i32 to vector<1x256xi32>
    %12 = arith.andi %10, %11 : vector<1x256xi32>
    %c32_i32 = arith.constant 32 : i32
    %13 = vector.broadcast %c32_i32 : i32 to vector<1x256xi32>
    %14 = arith.cmpi slt, %12, %13 : vector<1x256xi32>
    %c0_6 = arith.constant 0 : index
    %c0_7 = arith.constant 0 : index
    %15 = vector.load %arg3[%c0_6, %c0_7] : memref<16x256xbf16, #tpu.memory_space<vmem>>, vector<16x256xbf16>
    %c0_8 = arith.constant 0 : index
    %c0_9 = arith.constant 0 : index
    %16 = vector.load %arg4[%c0_8, %c0_9] : memref<64x256xbf16, #tpu.memory_space<vmem>>, vector<64x256xbf16>
    %c0_10 = arith.constant 0 : index
    %c0_11 = arith.constant 0 : index
    %17 = vector.load %arg5[%c0_10, %c0_11] : memref<1x256xf32, #tpu.memory_space<vmem>>, vector<1x256xf32>
    %18 = arith.truncf %9 : vector<64x16xf32> to vector<64x16xbf16>
    %cst_12 = arith.constant dense<0.000000e+00> : vector<64x256xf32>
    %19 = tpu.matmul %18, %15, %cst_12 {dimension_numbers = #tpu.dot_dimension_numbers<[1], [0], [0], [1], [0, 0, 1, 1], [], []>} : vector<64x16xbf16>, vector<16x256xbf16>, vector<64x256xf32> -> vector<64x256xf32>
    %20 = vector.broadcast %17 : vector<1x256xf32> to vector<64x256xf32>
    %21 = arith.addf %19, %20 : vector<64x256xf32>
    %22 = vector.shape_cast %21 : vector<64x256xf32> to vector<8x8x256xf32>
    %cst_13 = arith.constant 0.000000e+00 : f32
    %23 = vector.broadcast %cst_13 : f32 to vector<8x64xf32>
    %cst_14 = arith.constant 0.000000e+00 : f32
    %24 = vector.broadcast %cst_14 : f32 to vector<8x64xf32>
    %25 = vector.extract_strided_slice %22 {offsets = [0, 0, 0], sizes = [8, 1, 256], strides = [1, 1, 1]} : vector<8x8x256xf32> to vector<8x1x256xf32>
    %26 = vector.shape_cast %25 : vector<8x1x256xf32> to vector<8x256xf32>
    %27 = vector.extract_strided_slice %22 {offsets = [0, 7, 0], sizes = [8, 1, 256], strides = [1, 1, 1]} : vector<8x8x256xf32> to vector<8x1x256xf32>
    %28 = vector.shape_cast %27 : vector<8x1x256xf32> to vector<8x256xf32>
    %29 = vector.shape_cast %14 : vector<1x256xi1> to vector<1x256xi1>
    %30 = vector.broadcast %29 : vector<1x256xi1> to vector<8x256xi1>
    %31 = arith.select %30, %26, %28 : vector<8x256xi1>, vector<8x256xf32>
    %32 = arith.truncf %23 : vector<8x64xf32> to vector<8x64xbf16>
    %cst_15 = arith.constant dense<0.000000e+00> : vector<8x256xf32>
    %33 = tpu.matmul %32, %16, %cst_15 {dimension_numbers = #tpu.dot_dimension_numbers<[1], [0], [0], [1], [0, 0, 1, 1], [], []>} : vector<8x64xbf16>, vector<64x256xbf16>, vector<8x256xf32> -> vector<8x256xf32>
    %34 = arith.addf %31, %33 : vector<8x256xf32>
    %35 = arith.negf %34 : vector<8x256xf32>
    %36 = math.exp %35 : vector<8x256xf32>
    %cst_16 = arith.constant 1.000000e+00 : f32
    %37 = vector.broadcast %cst_16 : f32 to vector<8x256xf32>
    %38 = arith.addf %37, %36 : vector<8x256xf32>
    %39 = arith.divf %37, %38 : vector<8x256xf32>
    %40 = math.tanh %34 : vector<8x256xf32>
    %41 = vector.extract_strided_slice %39 {offsets = [0, 0], sizes = [8, 64], strides = [1, 1]} : vector<8x256xf32> to vector<8x64xf32>
    %42 = vector.extract_strided_slice %39 {offsets = [0, 64], sizes = [8, 64], strides = [1, 1]} : vector<8x256xf32> to vector<8x64xf32>
    %43 = vector.extract_strided_slice %40 {offsets = [0, 128], sizes = [8, 64], strides = [1, 1]} : vector<8x256xf32> to vector<8x64xf32>
    %44 = vector.extract_strided_slice %39 {offsets = [0, 192], sizes = [8, 64], strides = [1, 1]} : vector<8x256xf32> to vector<8x64xf32>
    %45 = arith.mulf %42, %24 : vector<8x64xf32>
    %46 = arith.mulf %41, %43 : vector<8x64xf32>
    %47 = arith.addf %45, %46 : vector<8x64xf32>
    %48 = math.tanh %47 : vector<8x64xf32>
    %49 = arith.mulf %44, %48 : vector<8x64xf32>
    %50 = vector.extract_strided_slice %22 {offsets = [0, 1, 0], sizes = [8, 1, 256], strides = [1, 1, 1]} : vector<8x8x256xf32> to vector<8x1x256xf32>
    %51 = vector.shape_cast %50 : vector<8x1x256xf32> to vector<8x256xf32>
    %52 = vector.extract_strided_slice %22 {offsets = [0, 6, 0], sizes = [8, 1, 256], strides = [1, 1, 1]} : vector<8x8x256xf32> to vector<8x1x256xf32>
    %53 = vector.shape_cast %52 : vector<8x1x256xf32> to vector<8x256xf32>
    %54 = vector.shape_cast %14 : vector<1x256xi1> to vector<1x256xi1>
    %55 = vector.broadcast %54 : vector<1x256xi1> to vector<8x256xi1>
    %56 = arith.select %55, %51, %53 : vector<8x256xi1>, vector<8x256xf32>
    %57 = arith.truncf %49 : vector<8x64xf32> to vector<8x64xbf16>
    %cst_17 = arith.constant dense<0.000000e+00> : vector<8x256xf32>
    %58 = tpu.matmul %57, %16, %cst_17 {dimension_numbers = #tpu.dot_dimension_numbers<[1], [0], [0], [1], [0, 0, 1, 1], [], []>} : vector<8x64xbf16>, vector<64x256xbf16>, vector<8x256xf32> -> vector<8x256xf32>
    %59 = arith.addf %56, %58 : vector<8x256xf32>
    %60 = arith.negf %59 : vector<8x256xf32>
    %61 = math.exp %60 : vector<8x256xf32>
    %cst_18 = arith.constant 1.000000e+00 : f32
    %62 = vector.broadcast %cst_18 : f32 to vector<8x256xf32>
    %63 = arith.addf %62, %61 : vector<8x256xf32>
    %64 = arith.divf %62, %63 : vector<8x256xf32>
    %65 = math.tanh %59 : vector<8x256xf32>
    %66 = vector.extract_strided_slice %64 {offsets = [0, 0], sizes = [8, 64], strides = [1, 1]} : vector<8x256xf32> to vector<8x64xf32>
    %67 = vector.extract_strided_slice %64 {offsets = [0, 64], sizes = [8, 64], strides = [1, 1]} : vector<8x256xf32> to vector<8x64xf32>
    %68 = vector.extract_strided_slice %65 {offsets = [0, 128], sizes = [8, 64], strides = [1, 1]} : vector<8x256xf32> to vector<8x64xf32>
    %69 = vector.extract_strided_slice %64 {offsets = [0, 192], sizes = [8, 64], strides = [1, 1]} : vector<8x256xf32> to vector<8x64xf32>
    %70 = arith.mulf %67, %47 : vector<8x64xf32>
    %71 = arith.mulf %66, %68 : vector<8x64xf32>
    %72 = arith.addf %70, %71 : vector<8x64xf32>
    %73 = math.tanh %72 : vector<8x64xf32>
    %74 = arith.mulf %69, %73 : vector<8x64xf32>
    %75 = vector.extract_strided_slice %22 {offsets = [0, 2, 0], sizes = [8, 1, 256], strides = [1, 1, 1]} : vector<8x8x256xf32> to vector<8x1x256xf32>
    %76 = vector.shape_cast %75 : vector<8x1x256xf32> to vector<8x256xf32>
    %77 = vector.extract_strided_slice %22 {offsets = [0, 5, 0], sizes = [8, 1, 256], strides = [1, 1, 1]} : vector<8x8x256xf32> to vector<8x1x256xf32>
    %78 = vector.shape_cast %77 : vector<8x1x256xf32> to vector<8x256xf32>
    %79 = vector.shape_cast %14 : vector<1x256xi1> to vector<1x256xi1>
    %80 = vector.broadcast %79 : vector<1x256xi1> to vector<8x256xi1>
    %81 = arith.select %80, %76, %78 : vector<8x256xi1>, vector<8x256xf32>
    %82 = arith.truncf %74 : vector<8x64xf32> to vector<8x64xbf16>
    %cst_19 = arith.constant dense<0.000000e+00> : vector<8x256xf32>
    %83 = tpu.matmul %82, %16, %cst_19 {dimension_numbers = #tpu.dot_dimension_numbers<[1], [0], [0], [1], [0, 0, 1, 1], [], []>} : vector<8x64xbf16>, vector<64x256xbf16>, vector<8x256xf32> -> vector<8x256xf32>
    %84 = arith.addf %81, %83 : vector<8x256xf32>
    %85 = arith.negf %84 : vector<8x256xf32>
    %86 = math.exp %85 : vector<8x256xf32>
    %cst_20 = arith.constant 1.000000e+00 : f32
    %87 = vector.broadcast %cst_20 : f32 to vector<8x256xf32>
    %88 = arith.addf %87, %86 : vector<8x256xf32>
    %89 = arith.divf %87, %88 : vector<8x256xf32>
    %90 = math.tanh %84 : vector<8x256xf32>
    %91 = vector.extract_strided_slice %89 {offsets = [0, 0], sizes = [8, 64], strides = [1, 1]} : vector<8x256xf32> to vector<8x64xf32>
    %92 = vector.extract_strided_slice %89 {offsets = [0, 64], sizes = [8, 64], strides = [1, 1]} : vector<8x256xf32> to vector<8x64xf32>
    %93 = vector.extract_strided_slice %90 {offsets = [0, 128], sizes = [8, 64], strides = [1, 1]} : vector<8x256xf32> to vector<8x64xf32>
    %94 = vector.extract_strided_slice %89 {offsets = [0, 192], sizes = [8, 64], strides = [1, 1]} : vector<8x256xf32> to vector<8x64xf32>
    %95 = arith.mulf %92, %72 : vector<8x64xf32>
    %96 = arith.mulf %91, %93 : vector<8x64xf32>
    %97 = arith.addf %95, %96 : vector<8x64xf32>
    %98 = math.tanh %97 : vector<8x64xf32>
    %99 = arith.mulf %94, %98 : vector<8x64xf32>
    %100 = vector.extract_strided_slice %22 {offsets = [0, 3, 0], sizes = [8, 1, 256], strides = [1, 1, 1]} : vector<8x8x256xf32> to vector<8x1x256xf32>
    %101 = vector.shape_cast %100 : vector<8x1x256xf32> to vector<8x256xf32>
    %102 = vector.extract_strided_slice %22 {offsets = [0, 4, 0], sizes = [8, 1, 256], strides = [1, 1, 1]} : vector<8x8x256xf32> to vector<8x1x256xf32>
    %103 = vector.shape_cast %102 : vector<8x1x256xf32> to vector<8x256xf32>
    %104 = vector.shape_cast %14 : vector<1x256xi1> to vector<1x256xi1>
    %105 = vector.broadcast %104 : vector<1x256xi1> to vector<8x256xi1>
    %106 = arith.select %105, %101, %103 : vector<8x256xi1>, vector<8x256xf32>
    %107 = arith.truncf %99 : vector<8x64xf32> to vector<8x64xbf16>
    %cst_21 = arith.constant dense<0.000000e+00> : vector<8x256xf32>
    %108 = tpu.matmul %107, %16, %cst_21 {dimension_numbers = #tpu.dot_dimension_numbers<[1], [0], [0], [1], [0, 0, 1, 1], [], []>} : vector<8x64xbf16>, vector<64x256xbf16>, vector<8x256xf32> -> vector<8x256xf32>
    %109 = arith.addf %106, %108 : vector<8x256xf32>
    %110 = arith.negf %109 : vector<8x256xf32>
    %111 = math.exp %110 : vector<8x256xf32>
    %cst_22 = arith.constant 1.000000e+00 : f32
    %112 = vector.broadcast %cst_22 : f32 to vector<8x256xf32>
    %113 = arith.addf %112, %111 : vector<8x256xf32>
    %114 = arith.divf %112, %113 : vector<8x256xf32>
    %115 = math.tanh %109 : vector<8x256xf32>
    %116 = vector.extract_strided_slice %114 {offsets = [0, 0], sizes = [8, 64], strides = [1, 1]} : vector<8x256xf32> to vector<8x64xf32>
    %117 = vector.extract_strided_slice %114 {offsets = [0, 64], sizes = [8, 64], strides = [1, 1]} : vector<8x256xf32> to vector<8x64xf32>
    %118 = vector.extract_strided_slice %115 {offsets = [0, 128], sizes = [8, 64], strides = [1, 1]} : vector<8x256xf32> to vector<8x64xf32>
    %119 = vector.extract_strided_slice %114 {offsets = [0, 192], sizes = [8, 64], strides = [1, 1]} : vector<8x256xf32> to vector<8x64xf32>
    %120 = arith.mulf %117, %97 : vector<8x64xf32>
    %121 = arith.mulf %116, %118 : vector<8x64xf32>
    %122 = arith.addf %120, %121 : vector<8x64xf32>
    %123 = math.tanh %122 : vector<8x64xf32>
    %124 = arith.mulf %119, %123 : vector<8x64xf32>
    %125 = vector.extract_strided_slice %22 {offsets = [0, 4, 0], sizes = [8, 1, 256], strides = [1, 1, 1]} : vector<8x8x256xf32> to vector<8x1x256xf32>
    %126 = vector.shape_cast %125 : vector<8x1x256xf32> to vector<8x256xf32>
    %127 = vector.extract_strided_slice %22 {offsets = [0, 3, 0], sizes = [8, 1, 256], strides = [1, 1, 1]} : vector<8x8x256xf32> to vector<8x1x256xf32>
    %128 = vector.shape_cast %127 : vector<8x1x256xf32> to vector<8x256xf32>
    %129 = vector.shape_cast %14 : vector<1x256xi1> to vector<1x256xi1>
    %130 = vector.broadcast %129 : vector<1x256xi1> to vector<8x256xi1>
    %131 = arith.select %130, %126, %128 : vector<8x256xi1>, vector<8x256xf32>
    %132 = arith.truncf %124 : vector<8x64xf32> to vector<8x64xbf16>
    %cst_23 = arith.constant dense<0.000000e+00> : vector<8x256xf32>
    %133 = tpu.matmul %132, %16, %cst_23 {dimension_numbers = #tpu.dot_dimension_numbers<[1], [0], [0], [1], [0, 0, 1, 1], [], []>} : vector<8x64xbf16>, vector<64x256xbf16>, vector<8x256xf32> -> vector<8x256xf32>
    %134 = arith.addf %131, %133 : vector<8x256xf32>
    %135 = arith.negf %134 : vector<8x256xf32>
    %136 = math.exp %135 : vector<8x256xf32>
    %cst_24 = arith.constant 1.000000e+00 : f32
    %137 = vector.broadcast %cst_24 : f32 to vector<8x256xf32>
    %138 = arith.addf %137, %136 : vector<8x256xf32>
    %139 = arith.divf %137, %138 : vector<8x256xf32>
    %140 = math.tanh %134 : vector<8x256xf32>
    %141 = vector.extract_strided_slice %139 {offsets = [0, 0], sizes = [8, 64], strides = [1, 1]} : vector<8x256xf32> to vector<8x64xf32>
    %142 = vector.extract_strided_slice %139 {offsets = [0, 64], sizes = [8, 64], strides = [1, 1]} : vector<8x256xf32> to vector<8x64xf32>
    %143 = vector.extract_strided_slice %140 {offsets = [0, 128], sizes = [8, 64], strides = [1, 1]} : vector<8x256xf32> to vector<8x64xf32>
    %144 = vector.extract_strided_slice %139 {offsets = [0, 192], sizes = [8, 64], strides = [1, 1]} : vector<8x256xf32> to vector<8x64xf32>
    %145 = arith.mulf %142, %122 : vector<8x64xf32>
    %146 = arith.mulf %141, %143 : vector<8x64xf32>
    %147 = arith.addf %145, %146 : vector<8x64xf32>
    %148 = math.tanh %147 : vector<8x64xf32>
    %149 = arith.mulf %144, %148 : vector<8x64xf32>
    %150 = vector.extract_strided_slice %22 {offsets = [0, 5, 0], sizes = [8, 1, 256], strides = [1, 1, 1]} : vector<8x8x256xf32> to vector<8x1x256xf32>
    %151 = vector.shape_cast %150 : vector<8x1x256xf32> to vector<8x256xf32>
    %152 = vector.extract_strided_slice %22 {offsets = [0, 2, 0], sizes = [8, 1, 256], strides = [1, 1, 1]} : vector<8x8x256xf32> to vector<8x1x256xf32>
    %153 = vector.shape_cast %152 : vector<8x1x256xf32> to vector<8x256xf32>
    %154 = vector.shape_cast %14 : vector<1x256xi1> to vector<1x256xi1>
    %155 = vector.broadcast %154 : vector<1x256xi1> to vector<8x256xi1>
    %156 = arith.select %155, %151, %153 : vector<8x256xi1>, vector<8x256xf32>
    %157 = arith.truncf %149 : vector<8x64xf32> to vector<8x64xbf16>
    %cst_25 = arith.constant dense<0.000000e+00> : vector<8x256xf32>
    %158 = tpu.matmul %157, %16, %cst_25 {dimension_numbers = #tpu.dot_dimension_numbers<[1], [0], [0], [1], [0, 0, 1, 1], [], []>} : vector<8x64xbf16>, vector<64x256xbf16>, vector<8x256xf32> -> vector<8x256xf32>
    %159 = arith.addf %156, %158 : vector<8x256xf32>
    %160 = arith.negf %159 : vector<8x256xf32>
    %161 = math.exp %160 : vector<8x256xf32>
    %cst_26 = arith.constant 1.000000e+00 : f32
    %162 = vector.broadcast %cst_26 : f32 to vector<8x256xf32>
    %163 = arith.addf %162, %161 : vector<8x256xf32>
    %164 = arith.divf %162, %163 : vector<8x256xf32>
    %165 = math.tanh %159 : vector<8x256xf32>
    %166 = vector.extract_strided_slice %164 {offsets = [0, 0], sizes = [8, 64], strides = [1, 1]} : vector<8x256xf32> to vector<8x64xf32>
    %167 = vector.extract_strided_slice %164 {offsets = [0, 64], sizes = [8, 64], strides = [1, 1]} : vector<8x256xf32> to vector<8x64xf32>
    %168 = vector.extract_strided_slice %165 {offsets = [0, 128], sizes = [8, 64], strides = [1, 1]} : vector<8x256xf32> to vector<8x64xf32>
    %169 = vector.extract_strided_slice %164 {offsets = [0, 192], sizes = [8, 64], strides = [1, 1]} : vector<8x256xf32> to vector<8x64xf32>
    %170 = arith.mulf %167, %147 : vector<8x64xf32>
    %171 = arith.mulf %166, %168 : vector<8x64xf32>
    %172 = arith.addf %170, %171 : vector<8x64xf32>
    %173 = math.tanh %172 : vector<8x64xf32>
    %174 = arith.mulf %169, %173 : vector<8x64xf32>
    %175 = vector.extract_strided_slice %22 {offsets = [0, 6, 0], sizes = [8, 1, 256], strides = [1, 1, 1]} : vector<8x8x256xf32> to vector<8x1x256xf32>
    %176 = vector.shape_cast %175 : vector<8x1x256xf32> to vector<8x256xf32>
    %177 = vector.extract_strided_slice %22 {offsets = [0, 1, 0], sizes = [8, 1, 256], strides = [1, 1, 1]} : vector<8x8x256xf32> to vector<8x1x256xf32>
    %178 = vector.shape_cast %177 : vector<8x1x256xf32> to vector<8x256xf32>
    %179 = vector.shape_cast %14 : vector<1x256xi1> to vector<1x256xi1>
    %180 = vector.broadcast %179 : vector<1x256xi1> to vector<8x256xi1>
    %181 = arith.select %180, %176, %178 : vector<8x256xi1>, vector<8x256xf32>
    %182 = arith.truncf %174 : vector<8x64xf32> to vector<8x64xbf16>
    %cst_27 = arith.constant dense<0.000000e+00> : vector<8x256xf32>
    %183 = tpu.matmul %182, %16, %cst_27 {dimension_numbers = #tpu.dot_dimension_numbers<[1], [0], [0], [1], [0, 0, 1, 1], [], []>} : vector<8x64xbf16>, vector<64x256xbf16>, vector<8x256xf32> -> vector<8x256xf32>
    %184 = arith.addf %181, %183 : vector<8x256xf32>
    %185 = arith.negf %184 : vector<8x256xf32>
    %186 = math.exp %185 : vector<8x256xf32>
    %cst_28 = arith.constant 1.000000e+00 : f32
    %187 = vector.broadcast %cst_28 : f32 to vector<8x256xf32>
    %188 = arith.addf %187, %186 : vector<8x256xf32>
    %189 = arith.divf %187, %188 : vector<8x256xf32>
    %190 = math.tanh %184 : vector<8x256xf32>
    %191 = vector.extract_strided_slice %189 {offsets = [0, 0], sizes = [8, 64], strides = [1, 1]} : vector<8x256xf32> to vector<8x64xf32>
    %192 = vector.extract_strided_slice %189 {offsets = [0, 64], sizes = [8, 64], strides = [1, 1]} : vector<8x256xf32> to vector<8x64xf32>
    %193 = vector.extract_strided_slice %190 {offsets = [0, 128], sizes = [8, 64], strides = [1, 1]} : vector<8x256xf32> to vector<8x64xf32>
    %194 = vector.extract_strided_slice %189 {offsets = [0, 192], sizes = [8, 64], strides = [1, 1]} : vector<8x256xf32> to vector<8x64xf32>
    %195 = arith.mulf %192, %172 : vector<8x64xf32>
    %196 = arith.mulf %191, %193 : vector<8x64xf32>
    %197 = arith.addf %195, %196 : vector<8x64xf32>
    %198 = math.tanh %197 : vector<8x64xf32>
    %199 = arith.mulf %194, %198 : vector<8x64xf32>
    %200 = vector.extract_strided_slice %22 {offsets = [0, 7, 0], sizes = [8, 1, 256], strides = [1, 1, 1]} : vector<8x8x256xf32> to vector<8x1x256xf32>
    %201 = vector.shape_cast %200 : vector<8x1x256xf32> to vector<8x256xf32>
    %202 = vector.extract_strided_slice %22 {offsets = [0, 0, 0], sizes = [8, 1, 256], strides = [1, 1, 1]} : vector<8x8x256xf32> to vector<8x1x256xf32>
    %203 = vector.shape_cast %202 : vector<8x1x256xf32> to vector<8x256xf32>
    %204 = vector.shape_cast %14 : vector<1x256xi1> to vector<1x256xi1>
    %205 = vector.broadcast %204 : vector<1x256xi1> to vector<8x256xi1>
    %206 = arith.select %205, %201, %203 : vector<8x256xi1>, vector<8x256xf32>
    %207 = arith.truncf %199 : vector<8x64xf32> to vector<8x64xbf16>
    %cst_29 = arith.constant dense<0.000000e+00> : vector<8x256xf32>
    %208 = tpu.matmul %207, %16, %cst_29 {dimension_numbers = #tpu.dot_dimension_numbers<[1], [0], [0], [1], [0, 0, 1, 1], [], []>} : vector<8x64xbf16>, vector<64x256xbf16>, vector<8x256xf32> -> vector<8x256xf32>
    %209 = arith.addf %206, %208 : vector<8x256xf32>
    %210 = arith.negf %209 : vector<8x256xf32>
    %211 = math.exp %210 : vector<8x256xf32>
    %cst_30 = arith.constant 1.000000e+00 : f32
    %212 = vector.broadcast %cst_30 : f32 to vector<8x256xf32>
    %213 = arith.addf %212, %211 : vector<8x256xf32>
    %214 = arith.divf %212, %213 : vector<8x256xf32>
    %215 = math.tanh %209 : vector<8x256xf32>
    %216 = vector.extract_strided_slice %214 {offsets = [0, 0], sizes = [8, 64], strides = [1, 1]} : vector<8x256xf32> to vector<8x64xf32>
    %217 = vector.extract_strided_slice %214 {offsets = [0, 64], sizes = [8, 64], strides = [1, 1]} : vector<8x256xf32> to vector<8x64xf32>
    %218 = vector.extract_strided_slice %215 {offsets = [0, 128], sizes = [8, 64], strides = [1, 1]} : vector<8x256xf32> to vector<8x64xf32>
    %219 = vector.extract_strided_slice %214 {offsets = [0, 192], sizes = [8, 64], strides = [1, 1]} : vector<8x256xf32> to vector<8x64xf32>
    %220 = arith.mulf %217, %197 : vector<8x64xf32>
    %221 = arith.mulf %216, %218 : vector<8x64xf32>
    %222 = arith.addf %220, %221 : vector<8x64xf32>
    %223 = math.tanh %222 : vector<8x64xf32>
    %224 = arith.mulf %219, %223 : vector<8x64xf32>
    %225 = vector.shape_cast %49 : vector<8x64xf32> to vector<8x1x64xf32>
    %226 = vector.shape_cast %74 : vector<8x64xf32> to vector<8x1x64xf32>
    %227 = vector.shape_cast %99 : vector<8x64xf32> to vector<8x1x64xf32>
    %228 = vector.shape_cast %124 : vector<8x64xf32> to vector<8x1x64xf32>
    %229 = vector.shape_cast %149 : vector<8x64xf32> to vector<8x1x64xf32>
    %230 = vector.shape_cast %174 : vector<8x64xf32> to vector<8x1x64xf32>
    %231 = vector.shape_cast %199 : vector<8x64xf32> to vector<8x1x64xf32>
    %232 = vector.shape_cast %224 : vector<8x64xf32> to vector<8x1x64xf32>
    %233 = tpu.concatenate %225, %226, %227, %228, %229, %230, %231, %232 in 1 : vector<8x1x64xf32>, vector<8x1x64xf32>, vector<8x1x64xf32>, vector<8x1x64xf32>, vector<8x1x64xf32>, vector<8x1x64xf32>, vector<8x1x64xf32>, vector<8x1x64xf32> -> vector<8x8x64xf32>
    %234 = vector.shape_cast %224 : vector<8x64xf32> to vector<8x1x64xf32>
    %235 = vector.shape_cast %199 : vector<8x64xf32> to vector<8x1x64xf32>
    %236 = vector.shape_cast %174 : vector<8x64xf32> to vector<8x1x64xf32>
    %237 = vector.shape_cast %149 : vector<8x64xf32> to vector<8x1x64xf32>
    %238 = vector.shape_cast %124 : vector<8x64xf32> to vector<8x1x64xf32>
    %239 = vector.shape_cast %99 : vector<8x64xf32> to vector<8x1x64xf32>
    %240 = vector.shape_cast %74 : vector<8x64xf32> to vector<8x1x64xf32>
    %241 = vector.shape_cast %49 : vector<8x64xf32> to vector<8x1x64xf32>
    %242 = tpu.concatenate %234, %235, %236, %237, %238, %239, %240, %241 in 1 : vector<8x1x64xf32>, vector<8x1x64xf32>, vector<8x1x64xf32>, vector<8x1x64xf32>, vector<8x1x64xf32>, vector<8x1x64xf32>, vector<8x1x64xf32>, vector<8x1x64xf32> -> vector<8x8x64xf32>
    %243 = tpu.iota {dimensions = array<i32: 2>} : vector<1x1x64xi32>
    %c32_i32_31 = arith.constant 32 : i32
    %244 = vector.broadcast %c32_i32_31 : i32 to vector<1x1x64xi32>
    %245 = arith.cmpi slt, %243, %244 : vector<1x1x64xi32>
    %246 = vector.shape_cast %245 : vector<1x1x64xi1> to vector<1x1x64xi1>
    %247 = vector.broadcast %246 : vector<1x1x64xi1> to vector<8x8x64xi1>
    %248 = arith.select %247, %233, %242 : vector<8x8x64xi1>, vector<8x8x64xf32>
    %249 = vector.shape_cast %248 : vector<8x8x64xf32> to vector<64x64xf32>
    %250 = arith.truncf %249 : vector<64x64xf32> to vector<64x64xbf16>
    %c0_32 = arith.constant 0 : index
    %c0_33 = arith.constant 0 : index
    %251 = vector.load %arg6[%c0_32, %c0_33] : memref<64x192xbf16, #tpu.memory_space<vmem>>, vector<64x192xbf16>
    %cst_34 = arith.constant dense<0.000000e+00> : vector<64x192xf32>
    %252 = tpu.matmul %250, %251, %cst_34 {dimension_numbers = #tpu.dot_dimension_numbers<[1], [0], [0], [1], [0, 0, 1, 1], [], []>} : vector<64x64xbf16>, vector<64x192xbf16>, vector<64x192xf32> -> vector<64x192xf32>
    %c0_35 = arith.constant 0 : index
    %c0_36 = arith.constant 0 : index
    %253 = vector.load %arg7[%c0_35, %c0_36] : memref<1x192xf32, #tpu.memory_space<vmem>>, vector<1x192xf32>
    %254 = vector.broadcast %253 : vector<1x192xf32> to vector<64x192xf32>
    %255 = arith.addf %252, %254 : vector<64x192xf32>
    %256 = vector.extract_strided_slice %255 {offsets = [0, 0], sizes = [64, 64], strides = [1, 1]} : vector<64x192xf32> to vector<64x64xf32>
    %257 = vector.shape_cast %256 : vector<64x64xf32> to vector<8x8x64xf32>
    %258 = vector.extract_strided_slice %255 {offsets = [0, 64], sizes = [64, 64], strides = [1, 1]} : vector<64x192xf32> to vector<64x64xf32>
    %259 = vector.shape_cast %258 : vector<64x64xf32> to vector<8x8x64xf32>
    %260 = vector.extract_strided_slice %255 {offsets = [0, 128], sizes = [64, 64], strides = [1, 1]} : vector<64x192xf32> to vector<64x64xf32>
    %261 = vector.shape_cast %260 : vector<64x64xf32> to vector<8x8x64xf32>
    %262 = vector.extract_strided_slice %257 {offsets = [0, 0, 0], sizes = [8, 8, 16], strides = [1, 1, 1]} : vector<8x8x64xf32> to vector<8x8x16xf32>
    %263 = vector.extract_strided_slice %257 {offsets = [0, 0, 16], sizes = [8, 8, 16], strides = [1, 1, 1]} : vector<8x8x64xf32> to vector<8x8x16xf32>
    %264 = vector.extract_strided_slice %257 {offsets = [0, 0, 32], sizes = [8, 8, 16], strides = [1, 1, 1]} : vector<8x8x64xf32> to vector<8x8x16xf32>
    %265 = vector.extract_strided_slice %257 {offsets = [0, 0, 48], sizes = [8, 8, 16], strides = [1, 1, 1]} : vector<8x8x64xf32> to vector<8x8x16xf32>
    %266 = tpu.concatenate %262, %263, %264, %265 in 0 : vector<8x8x16xf32>, vector<8x8x16xf32>, vector<8x8x16xf32>, vector<8x8x16xf32> -> vector<32x8x16xf32>
    %267 = vector.extract_strided_slice %259 {offsets = [0, 0, 0], sizes = [8, 8, 16], strides = [1, 1, 1]} : vector<8x8x64xf32> to vector<8x8x16xf32>
    %268 = vector.extract_strided_slice %259 {offsets = [0, 0, 16], sizes = [8, 8, 16], strides = [1, 1, 1]} : vector<8x8x64xf32> to vector<8x8x16xf32>
    %269 = vector.extract_strided_slice %259 {offsets = [0, 0, 32], sizes = [8, 8, 16], strides = [1, 1, 1]} : vector<8x8x64xf32> to vector<8x8x16xf32>
    %270 = vector.extract_strided_slice %259 {offsets = [0, 0, 48], sizes = [8, 8, 16], strides = [1, 1, 1]} : vector<8x8x64xf32> to vector<8x8x16xf32>
    %271 = tpu.concatenate %267, %268, %269, %270 in 0 : vector<8x8x16xf32>, vector<8x8x16xf32>, vector<8x8x16xf32>, vector<8x8x16xf32> -> vector<32x8x16xf32>
    %272 = vector.extract_strided_slice %261 {offsets = [0, 0, 0], sizes = [8, 8, 16], strides = [1, 1, 1]} : vector<8x8x64xf32> to vector<8x8x16xf32>
    %273 = vector.extract_strided_slice %261 {offsets = [0, 0, 16], sizes = [8, 8, 16], strides = [1, 1, 1]} : vector<8x8x64xf32> to vector<8x8x16xf32>
    %274 = vector.extract_strided_slice %261 {offsets = [0, 0, 32], sizes = [8, 8, 16], strides = [1, 1, 1]} : vector<8x8x64xf32> to vector<8x8x16xf32>
    %275 = vector.extract_strided_slice %261 {offsets = [0, 0, 48], sizes = [8, 8, 16], strides = [1, 1, 1]} : vector<8x8x64xf32> to vector<8x8x16xf32>
    %276 = tpu.concatenate %272, %273, %274, %275 in 0 : vector<8x8x16xf32>, vector<8x8x16xf32>, vector<8x8x16xf32>, vector<8x8x16xf32> -> vector<32x8x16xf32>
    "tpu.trace_start"() <{level = 10 : i32, message = "gsd,gtd->gst"}> : () -> ()
    %cst_37 = arith.constant dense<0.000000e+00> : vector<32x8x8xf32>
    %277 = tpu.matmul %266, %271, %cst_37 {dimension_numbers = #tpu.dot_dimension_numbers<[2], [2], [1], [1], [0, 0, 0, 1, 1, 1], [0], [0]>} : vector<32x8x16xf32>, vector<32x8x16xf32>, vector<32x8x8xf32> -> vector<32x8x8xf32>
    "tpu.trace_stop"() : () -> ()
    %cst_38 = arith.constant dense<0xFF800000> : vector<32x8xf32>
    %278 = vector.multi_reduction <maximumf>, %277, %cst_38 [2] : vector<32x8x8xf32> to vector<32x8xf32>
    %279 = vector.shape_cast %278 : vector<32x8xf32> to vector<32x8x1xf32>
    %280 = vector.broadcast %279 : vector<32x8x1xf32> to vector<32x8x8xf32>
    %281 = arith.subf %277, %280 : vector<32x8x8xf32>
    %282 = math.exp %281 : vector<32x8x8xf32>
    %cst_39 = arith.constant dense<0.000000e+00> : vector<32x8xf32>
    %283 = vector.multi_reduction <add>, %282, %cst_39 [2] : vector<32x8x8xf32> to vector<32x8xf32>
    %284 = vector.shape_cast %283 : vector<32x8xf32> to vector<32x8x1xf32>
    %285 = tpu.reciprocal %284 {approx = true} : vector<32x8x1xf32> -> vector<32x8x1xf32>
    %286 = vector.broadcast %285 : vector<32x8x1xf32> to vector<32x8x8xf32>
    %287 = arith.mulf %282, %286 : vector<32x8x8xf32>
    "tpu.trace_start"() <{level = 10 : i32, message = "gst,gtd->gsd"}> : () -> ()
    %cst_40 = arith.constant dense<0.000000e+00> : vector<32x8x16xf32>
    %288 = tpu.matmul %287, %276, %cst_40 {dimension_numbers = #tpu.dot_dimension_numbers<[2], [1], [1], [2], [0, 0, 0, 1, 1, 2], [0], [0]>} : vector<32x8x8xf32>, vector<32x8x16xf32>, vector<32x8x16xf32> -> vector<32x8x16xf32>
    "tpu.trace_stop"() : () -> ()
    %289 = vector.extract_strided_slice %288 {offsets = [0, 0, 0], sizes = [8, 8, 16], strides = [1, 1, 1]} : vector<32x8x16xf32> to vector<8x8x16xf32>
    %290 = vector.extract_strided_slice %288 {offsets = [8, 0, 0], sizes = [8, 8, 16], strides = [1, 1, 1]} : vector<32x8x16xf32> to vector<8x8x16xf32>
    %291 = vector.extract_strided_slice %288 {offsets = [16, 0, 0], sizes = [8, 8, 16], strides = [1, 1, 1]} : vector<32x8x16xf32> to vector<8x8x16xf32>
    %292 = vector.extract_strided_slice %288 {offsets = [24, 0, 0], sizes = [8, 8, 16], strides = [1, 1, 1]} : vector<32x8x16xf32> to vector<8x8x16xf32>
    %293 = tpu.concatenate %289, %290, %291, %292 in 2 : vector<8x8x16xf32>, vector<8x8x16xf32>, vector<8x8x16xf32>, vector<8x8x16xf32> -> vector<8x8x64xf32>
    %294 = vector.shape_cast %293 : vector<8x8x64xf32> to vector<64x64xf32>
    %295 = arith.truncf %294 : vector<64x64xf32> to vector<64x64xbf16>
    %c0_41 = arith.constant 0 : index
    %c0_42 = arith.constant 0 : index
    %296 = vector.load %arg8[%c0_41, %c0_42] : memref<64x64xbf16, #tpu.memory_space<vmem>>, vector<64x64xbf16>
    %cst_43 = arith.constant dense<0.000000e+00> : vector<64x64xf32>
    %297 = tpu.matmul %295, %296, %cst_43 {dimension_numbers = #tpu.dot_dimension_numbers<[1], [0], [0], [1], [0, 0, 1, 1], [], []>} : vector<64x64xbf16>, vector<64x64xbf16>, vector<64x64xf32> -> vector<64x64xf32>
    %c0_44 = arith.constant 0 : index
    %c0_45 = arith.constant 0 : index
    %298 = vector.load %arg9[%c0_44, %c0_45] : memref<1x64xf32, #tpu.memory_space<vmem>>, vector<1x64xf32>
    %299 = vector.broadcast %298 : vector<1x64xf32> to vector<64x64xf32>
    %300 = arith.addf %297, %299 : vector<64x64xf32>
    %c0_46 = arith.constant 0 : index
    %c0_47 = arith.constant 0 : index
    %301 = vector.load %arg10[%c0_46, %c0_47] : memref<64x256xbf16, #tpu.memory_space<vmem>>, vector<64x256xbf16>
    %c0_48 = arith.constant 0 : index
    %c0_49 = arith.constant 0 : index
    %302 = vector.load %arg11[%c0_48, %c0_49] : memref<64x256xbf16, #tpu.memory_space<vmem>>, vector<64x256xbf16>
    %c0_50 = arith.constant 0 : index
    %c0_51 = arith.constant 0 : index
    %303 = vector.load %arg12[%c0_50, %c0_51] : memref<1x256xf32, #tpu.memory_space<vmem>>, vector<1x256xf32>
    %304 = arith.truncf %300 : vector<64x64xf32> to vector<64x64xbf16>
    %cst_52 = arith.constant dense<0.000000e+00> : vector<64x256xf32>
    %305 = tpu.matmul %304, %301, %cst_52 {dimension_numbers = #tpu.dot_dimension_numbers<[1], [0], [0], [1], [0, 0, 1, 1], [], []>} : vector<64x64xbf16>, vector<64x256xbf16>, vector<64x256xf32> -> vector<64x256xf32>
    %306 = vector.broadcast %303 : vector<1x256xf32> to vector<64x256xf32>
    %307 = arith.addf %305, %306 : vector<64x256xf32>
    %308 = vector.shape_cast %307 : vector<64x256xf32> to vector<8x8x256xf32>
    %cst_53 = arith.constant 0.000000e+00 : f32
    %309 = vector.broadcast %cst_53 : f32 to vector<8x64xf32>
    %cst_54 = arith.constant 0.000000e+00 : f32
    %310 = vector.broadcast %cst_54 : f32 to vector<8x64xf32>
    %311 = vector.extract_strided_slice %308 {offsets = [0, 0, 0], sizes = [8, 1, 256], strides = [1, 1, 1]} : vector<8x8x256xf32> to vector<8x1x256xf32>
    %312 = vector.shape_cast %311 : vector<8x1x256xf32> to vector<8x256xf32>
    %313 = vector.extract_strided_slice %308 {offsets = [0, 7, 0], sizes = [8, 1, 256], strides = [1, 1, 1]} : vector<8x8x256xf32> to vector<8x1x256xf32>
    %314 = vector.shape_cast %313 : vector<8x1x256xf32> to vector<8x256xf32>
    %315 = vector.shape_cast %14 : vector<1x256xi1> to vector<1x256xi1>
    %316 = vector.broadcast %315 : vector<1x256xi1> to vector<8x256xi1>
    %317 = arith.select %316, %312, %314 : vector<8x256xi1>, vector<8x256xf32>
    %318 = arith.truncf %309 : vector<8x64xf32> to vector<8x64xbf16>
    %cst_55 = arith.constant dense<0.000000e+00> : vector<8x256xf32>
    %319 = tpu.matmul %318, %302, %cst_55 {dimension_numbers = #tpu.dot_dimension_numbers<[1], [0], [0], [1], [0, 0, 1, 1], [], []>} : vector<8x64xbf16>, vector<64x256xbf16>, vector<8x256xf32> -> vector<8x256xf32>
    %320 = arith.addf %317, %319 : vector<8x256xf32>
    %321 = arith.negf %320 : vector<8x256xf32>
    %322 = math.exp %321 : vector<8x256xf32>
    %cst_56 = arith.constant 1.000000e+00 : f32
    %323 = vector.broadcast %cst_56 : f32 to vector<8x256xf32>
    %324 = arith.addf %323, %322 : vector<8x256xf32>
    %325 = arith.divf %323, %324 : vector<8x256xf32>
    %326 = math.tanh %320 : vector<8x256xf32>
    %327 = vector.extract_strided_slice %325 {offsets = [0, 0], sizes = [8, 64], strides = [1, 1]} : vector<8x256xf32> to vector<8x64xf32>
    %328 = vector.extract_strided_slice %325 {offsets = [0, 64], sizes = [8, 64], strides = [1, 1]} : vector<8x256xf32> to vector<8x64xf32>
    %329 = vector.extract_strided_slice %326 {offsets = [0, 128], sizes = [8, 64], strides = [1, 1]} : vector<8x256xf32> to vector<8x64xf32>
    %330 = vector.extract_strided_slice %325 {offsets = [0, 192], sizes = [8, 64], strides = [1, 1]} : vector<8x256xf32> to vector<8x64xf32>
    %331 = arith.mulf %328, %310 : vector<8x64xf32>
    %332 = arith.mulf %327, %329 : vector<8x64xf32>
    %333 = arith.addf %331, %332 : vector<8x64xf32>
    %334 = math.tanh %333 : vector<8x64xf32>
    %335 = arith.mulf %330, %334 : vector<8x64xf32>
    %336 = vector.extract_strided_slice %308 {offsets = [0, 1, 0], sizes = [8, 1, 256], strides = [1, 1, 1]} : vector<8x8x256xf32> to vector<8x1x256xf32>
    %337 = vector.shape_cast %336 : vector<8x1x256xf32> to vector<8x256xf32>
    %338 = vector.extract_strided_slice %308 {offsets = [0, 6, 0], sizes = [8, 1, 256], strides = [1, 1, 1]} : vector<8x8x256xf32> to vector<8x1x256xf32>
    %339 = vector.shape_cast %338 : vector<8x1x256xf32> to vector<8x256xf32>
    %340 = vector.shape_cast %14 : vector<1x256xi1> to vector<1x256xi1>
    %341 = vector.broadcast %340 : vector<1x256xi1> to vector<8x256xi1>
    %342 = arith.select %341, %337, %339 : vector<8x256xi1>, vector<8x256xf32>
    %343 = arith.truncf %335 : vector<8x64xf32> to vector<8x64xbf16>
    %cst_57 = arith.constant dense<0.000000e+00> : vector<8x256xf32>
    %344 = tpu.matmul %343, %302, %cst_57 {dimension_numbers = #tpu.dot_dimension_numbers<[1], [0], [0], [1], [0, 0, 1, 1], [], []>} : vector<8x64xbf16>, vector<64x256xbf16>, vector<8x256xf32> -> vector<8x256xf32>
    %345 = arith.addf %342, %344 : vector<8x256xf32>
    %346 = arith.negf %345 : vector<8x256xf32>
    %347 = math.exp %346 : vector<8x256xf32>
    %cst_58 = arith.constant 1.000000e+00 : f32
    %348 = vector.broadcast %cst_58 : f32 to vector<8x256xf32>
    %349 = arith.addf %348, %347 : vector<8x256xf32>
    %350 = arith.divf %348, %349 : vector<8x256xf32>
    %351 = math.tanh %345 : vector<8x256xf32>
    %352 = vector.extract_strided_slice %350 {offsets = [0, 0], sizes = [8, 64], strides = [1, 1]} : vector<8x256xf32> to vector<8x64xf32>
    %353 = vector.extract_strided_slice %350 {offsets = [0, 64], sizes = [8, 64], strides = [1, 1]} : vector<8x256xf32> to vector<8x64xf32>
    %354 = vector.extract_strided_slice %351 {offsets = [0, 128], sizes = [8, 64], strides = [1, 1]} : vector<8x256xf32> to vector<8x64xf32>
    %355 = vector.extract_strided_slice %350 {offsets = [0, 192], sizes = [8, 64], strides = [1, 1]} : vector<8x256xf32> to vector<8x64xf32>
    %356 = arith.mulf %353, %333 : vector<8x64xf32>
    %357 = arith.mulf %352, %354 : vector<8x64xf32>
    %358 = arith.addf %356, %357 : vector<8x64xf32>
    %359 = math.tanh %358 : vector<8x64xf32>
    %360 = arith.mulf %355, %359 : vector<8x64xf32>
    %361 = vector.extract_strided_slice %308 {offsets = [0, 2, 0], sizes = [8, 1, 256], strides = [1, 1, 1]} : vector<8x8x256xf32> to vector<8x1x256xf32>
    %362 = vector.shape_cast %361 : vector<8x1x256xf32> to vector<8x256xf32>
    %363 = vector.extract_strided_slice %308 {offsets = [0, 5, 0], sizes = [8, 1, 256], strides = [1, 1, 1]} : vector<8x8x256xf32> to vector<8x1x256xf32>
    %364 = vector.shape_cast %363 : vector<8x1x256xf32> to vector<8x256xf32>
    %365 = vector.shape_cast %14 : vector<1x256xi1> to vector<1x256xi1>
    %366 = vector.broadcast %365 : vector<1x256xi1> to vector<8x256xi1>
    %367 = arith.select %366, %362, %364 : vector<8x256xi1>, vector<8x256xf32>
    %368 = arith.truncf %360 : vector<8x64xf32> to vector<8x64xbf16>
    %cst_59 = arith.constant dense<0.000000e+00> : vector<8x256xf32>
    %369 = tpu.matmul %368, %302, %cst_59 {dimension_numbers = #tpu.dot_dimension_numbers<[1], [0], [0], [1], [0, 0, 1, 1], [], []>} : vector<8x64xbf16>, vector<64x256xbf16>, vector<8x256xf32> -> vector<8x256xf32>
    %370 = arith.addf %367, %369 : vector<8x256xf32>
    %371 = arith.negf %370 : vector<8x256xf32>
    %372 = math.exp %371 : vector<8x256xf32>
    %cst_60 = arith.constant 1.000000e+00 : f32
    %373 = vector.broadcast %cst_60 : f32 to vector<8x256xf32>
    %374 = arith.addf %373, %372 : vector<8x256xf32>
    %375 = arith.divf %373, %374 : vector<8x256xf32>
    %376 = math.tanh %370 : vector<8x256xf32>
    %377 = vector.extract_strided_slice %375 {offsets = [0, 0], sizes = [8, 64], strides = [1, 1]} : vector<8x256xf32> to vector<8x64xf32>
    %378 = vector.extract_strided_slice %375 {offsets = [0, 64], sizes = [8, 64], strides = [1, 1]} : vector<8x256xf32> to vector<8x64xf32>
    %379 = vector.extract_strided_slice %376 {offsets = [0, 128], sizes = [8, 64], strides = [1, 1]} : vector<8x256xf32> to vector<8x64xf32>
    %380 = vector.extract_strided_slice %375 {offsets = [0, 192], sizes = [8, 64], strides = [1, 1]} : vector<8x256xf32> to vector<8x64xf32>
    %381 = arith.mulf %378, %358 : vector<8x64xf32>
    %382 = arith.mulf %377, %379 : vector<8x64xf32>
    %383 = arith.addf %381, %382 : vector<8x64xf32>
    %384 = math.tanh %383 : vector<8x64xf32>
    %385 = arith.mulf %380, %384 : vector<8x64xf32>
    %386 = vector.extract_strided_slice %308 {offsets = [0, 3, 0], sizes = [8, 1, 256], strides = [1, 1, 1]} : vector<8x8x256xf32> to vector<8x1x256xf32>
    %387 = vector.shape_cast %386 : vector<8x1x256xf32> to vector<8x256xf32>
    %388 = vector.extract_strided_slice %308 {offsets = [0, 4, 0], sizes = [8, 1, 256], strides = [1, 1, 1]} : vector<8x8x256xf32> to vector<8x1x256xf32>
    %389 = vector.shape_cast %388 : vector<8x1x256xf32> to vector<8x256xf32>
    %390 = vector.shape_cast %14 : vector<1x256xi1> to vector<1x256xi1>
    %391 = vector.broadcast %390 : vector<1x256xi1> to vector<8x256xi1>
    %392 = arith.select %391, %387, %389 : vector<8x256xi1>, vector<8x256xf32>
    %393 = arith.truncf %385 : vector<8x64xf32> to vector<8x64xbf16>
    %cst_61 = arith.constant dense<0.000000e+00> : vector<8x256xf32>
    %394 = tpu.matmul %393, %302, %cst_61 {dimension_numbers = #tpu.dot_dimension_numbers<[1], [0], [0], [1], [0, 0, 1, 1], [], []>} : vector<8x64xbf16>, vector<64x256xbf16>, vector<8x256xf32> -> vector<8x256xf32>
    %395 = arith.addf %392, %394 : vector<8x256xf32>
    %396 = arith.negf %395 : vector<8x256xf32>
    %397 = math.exp %396 : vector<8x256xf32>
    %cst_62 = arith.constant 1.000000e+00 : f32
    %398 = vector.broadcast %cst_62 : f32 to vector<8x256xf32>
    %399 = arith.addf %398, %397 : vector<8x256xf32>
    %400 = arith.divf %398, %399 : vector<8x256xf32>
    %401 = math.tanh %395 : vector<8x256xf32>
    %402 = vector.extract_strided_slice %400 {offsets = [0, 0], sizes = [8, 64], strides = [1, 1]} : vector<8x256xf32> to vector<8x64xf32>
    %403 = vector.extract_strided_slice %400 {offsets = [0, 64], sizes = [8, 64], strides = [1, 1]} : vector<8x256xf32> to vector<8x64xf32>
    %404 = vector.extract_strided_slice %401 {offsets = [0, 128], sizes = [8, 64], strides = [1, 1]} : vector<8x256xf32> to vector<8x64xf32>
    %405 = vector.extract_strided_slice %400 {offsets = [0, 192], sizes = [8, 64], strides = [1, 1]} : vector<8x256xf32> to vector<8x64xf32>
    %406 = arith.mulf %403, %383 : vector<8x64xf32>
    %407 = arith.mulf %402, %404 : vector<8x64xf32>
    %408 = arith.addf %406, %407 : vector<8x64xf32>
    %409 = math.tanh %408 : vector<8x64xf32>
    %410 = arith.mulf %405, %409 : vector<8x64xf32>
    %411 = vector.extract_strided_slice %308 {offsets = [0, 4, 0], sizes = [8, 1, 256], strides = [1, 1, 1]} : vector<8x8x256xf32> to vector<8x1x256xf32>
    %412 = vector.shape_cast %411 : vector<8x1x256xf32> to vector<8x256xf32>
    %413 = vector.extract_strided_slice %308 {offsets = [0, 3, 0], sizes = [8, 1, 256], strides = [1, 1, 1]} : vector<8x8x256xf32> to vector<8x1x256xf32>
    %414 = vector.shape_cast %413 : vector<8x1x256xf32> to vector<8x256xf32>
    %415 = vector.shape_cast %14 : vector<1x256xi1> to vector<1x256xi1>
    %416 = vector.broadcast %415 : vector<1x256xi1> to vector<8x256xi1>
    %417 = arith.select %416, %412, %414 : vector<8x256xi1>, vector<8x256xf32>
    %418 = arith.truncf %410 : vector<8x64xf32> to vector<8x64xbf16>
    %cst_63 = arith.constant dense<0.000000e+00> : vector<8x256xf32>
    %419 = tpu.matmul %418, %302, %cst_63 {dimension_numbers = #tpu.dot_dimension_numbers<[1], [0], [0], [1], [0, 0, 1, 1], [], []>} : vector<8x64xbf16>, vector<64x256xbf16>, vector<8x256xf32> -> vector<8x256xf32>
    %420 = arith.addf %417, %419 : vector<8x256xf32>
    %421 = arith.negf %420 : vector<8x256xf32>
    %422 = math.exp %421 : vector<8x256xf32>
    %cst_64 = arith.constant 1.000000e+00 : f32
    %423 = vector.broadcast %cst_64 : f32 to vector<8x256xf32>
    %424 = arith.addf %423, %422 : vector<8x256xf32>
    %425 = arith.divf %423, %424 : vector<8x256xf32>
    %426 = math.tanh %420 : vector<8x256xf32>
    %427 = vector.extract_strided_slice %425 {offsets = [0, 0], sizes = [8, 64], strides = [1, 1]} : vector<8x256xf32> to vector<8x64xf32>
    %428 = vector.extract_strided_slice %425 {offsets = [0, 64], sizes = [8, 64], strides = [1, 1]} : vector<8x256xf32> to vector<8x64xf32>
    %429 = vector.extract_strided_slice %426 {offsets = [0, 128], sizes = [8, 64], strides = [1, 1]} : vector<8x256xf32> to vector<8x64xf32>
    %430 = vector.extract_strided_slice %425 {offsets = [0, 192], sizes = [8, 64], strides = [1, 1]} : vector<8x256xf32> to vector<8x64xf32>
    %431 = arith.mulf %428, %408 : vector<8x64xf32>
    %432 = arith.mulf %427, %429 : vector<8x64xf32>
    %433 = arith.addf %431, %432 : vector<8x64xf32>
    %434 = math.tanh %433 : vector<8x64xf32>
    %435 = arith.mulf %430, %434 : vector<8x64xf32>
    %436 = vector.extract_strided_slice %308 {offsets = [0, 5, 0], sizes = [8, 1, 256], strides = [1, 1, 1]} : vector<8x8x256xf32> to vector<8x1x256xf32>
    %437 = vector.shape_cast %436 : vector<8x1x256xf32> to vector<8x256xf32>
    %438 = vector.extract_strided_slice %308 {offsets = [0, 2, 0], sizes = [8, 1, 256], strides = [1, 1, 1]} : vector<8x8x256xf32> to vector<8x1x256xf32>
    %439 = vector.shape_cast %438 : vector<8x1x256xf32> to vector<8x256xf32>
    %440 = vector.shape_cast %14 : vector<1x256xi1> to vector<1x256xi1>
    %441 = vector.broadcast %440 : vector<1x256xi1> to vector<8x256xi1>
    %442 = arith.select %441, %437, %439 : vector<8x256xi1>, vector<8x256xf32>
    %443 = arith.truncf %435 : vector<8x64xf32> to vector<8x64xbf16>
    %cst_65 = arith.constant dense<0.000000e+00> : vector<8x256xf32>
    %444 = tpu.matmul %443, %302, %cst_65 {dimension_numbers = #tpu.dot_dimension_numbers<[1], [0], [0], [1], [0, 0, 1, 1], [], []>} : vector<8x64xbf16>, vector<64x256xbf16>, vector<8x256xf32> -> vector<8x256xf32>
    %445 = arith.addf %442, %444 : vector<8x256xf32>
    %446 = arith.negf %445 : vector<8x256xf32>
    %447 = math.exp %446 : vector<8x256xf32>
    %cst_66 = arith.constant 1.000000e+00 : f32
    %448 = vector.broadcast %cst_66 : f32 to vector<8x256xf32>
    %449 = arith.addf %448, %447 : vector<8x256xf32>
    %450 = arith.divf %448, %449 : vector<8x256xf32>
    %451 = math.tanh %445 : vector<8x256xf32>
    %452 = vector.extract_strided_slice %450 {offsets = [0, 0], sizes = [8, 64], strides = [1, 1]} : vector<8x256xf32> to vector<8x64xf32>
    %453 = vector.extract_strided_slice %450 {offsets = [0, 64], sizes = [8, 64], strides = [1, 1]} : vector<8x256xf32> to vector<8x64xf32>
    %454 = vector.extract_strided_slice %451 {offsets = [0, 128], sizes = [8, 64], strides = [1, 1]} : vector<8x256xf32> to vector<8x64xf32>
    %455 = vector.extract_strided_slice %450 {offsets = [0, 192], sizes = [8, 64], strides = [1, 1]} : vector<8x256xf32> to vector<8x64xf32>
    %456 = arith.mulf %453, %433 : vector<8x64xf32>
    %457 = arith.mulf %452, %454 : vector<8x64xf32>
    %458 = arith.addf %456, %457 : vector<8x64xf32>
    %459 = math.tanh %458 : vector<8x64xf32>
    %460 = arith.mulf %455, %459 : vector<8x64xf32>
    %461 = vector.extract_strided_slice %308 {offsets = [0, 6, 0], sizes = [8, 1, 256], strides = [1, 1, 1]} : vector<8x8x256xf32> to vector<8x1x256xf32>
    %462 = vector.shape_cast %461 : vector<8x1x256xf32> to vector<8x256xf32>
    %463 = vector.extract_strided_slice %308 {offsets = [0, 1, 0], sizes = [8, 1, 256], strides = [1, 1, 1]} : vector<8x8x256xf32> to vector<8x1x256xf32>
    %464 = vector.shape_cast %463 : vector<8x1x256xf32> to vector<8x256xf32>
    %465 = vector.shape_cast %14 : vector<1x256xi1> to vector<1x256xi1>
    %466 = vector.broadcast %465 : vector<1x256xi1> to vector<8x256xi1>
    %467 = arith.select %466, %462, %464 : vector<8x256xi1>, vector<8x256xf32>
    %468 = arith.truncf %460 : vector<8x64xf32> to vector<8x64xbf16>
    %cst_67 = arith.constant dense<0.000000e+00> : vector<8x256xf32>
    %469 = tpu.matmul %468, %302, %cst_67 {dimension_numbers = #tpu.dot_dimension_numbers<[1], [0], [0], [1], [0, 0, 1, 1], [], []>} : vector<8x64xbf16>, vector<64x256xbf16>, vector<8x256xf32> -> vector<8x256xf32>
    %470 = arith.addf %467, %469 : vector<8x256xf32>
    %471 = arith.negf %470 : vector<8x256xf32>
    %472 = math.exp %471 : vector<8x256xf32>
    %cst_68 = arith.constant 1.000000e+00 : f32
    %473 = vector.broadcast %cst_68 : f32 to vector<8x256xf32>
    %474 = arith.addf %473, %472 : vector<8x256xf32>
    %475 = arith.divf %473, %474 : vector<8x256xf32>
    %476 = math.tanh %470 : vector<8x256xf32>
    %477 = vector.extract_strided_slice %475 {offsets = [0, 0], sizes = [8, 64], strides = [1, 1]} : vector<8x256xf32> to vector<8x64xf32>
    %478 = vector.extract_strided_slice %475 {offsets = [0, 64], sizes = [8, 64], strides = [1, 1]} : vector<8x256xf32> to vector<8x64xf32>
    %479 = vector.extract_strided_slice %476 {offsets = [0, 128], sizes = [8, 64], strides = [1, 1]} : vector<8x256xf32> to vector<8x64xf32>
    %480 = vector.extract_strided_slice %475 {offsets = [0, 192], sizes = [8, 64], strides = [1, 1]} : vector<8x256xf32> to vector<8x64xf32>
    %481 = arith.mulf %478, %458 : vector<8x64xf32>
    %482 = arith.mulf %477, %479 : vector<8x64xf32>
    %483 = arith.addf %481, %482 : vector<8x64xf32>
    %484 = math.tanh %483 : vector<8x64xf32>
    %485 = arith.mulf %480, %484 : vector<8x64xf32>
    %486 = vector.extract_strided_slice %308 {offsets = [0, 7, 0], sizes = [8, 1, 256], strides = [1, 1, 1]} : vector<8x8x256xf32> to vector<8x1x256xf32>
    %487 = vector.shape_cast %486 : vector<8x1x256xf32> to vector<8x256xf32>
    %488 = vector.extract_strided_slice %308 {offsets = [0, 0, 0], sizes = [8, 1, 256], strides = [1, 1, 1]} : vector<8x8x256xf32> to vector<8x1x256xf32>
    %489 = vector.shape_cast %488 : vector<8x1x256xf32> to vector<8x256xf32>
    %490 = vector.shape_cast %14 : vector<1x256xi1> to vector<1x256xi1>
    %491 = vector.broadcast %490 : vector<1x256xi1> to vector<8x256xi1>
    %492 = arith.select %491, %487, %489 : vector<8x256xi1>, vector<8x256xf32>
    %493 = arith.truncf %485 : vector<8x64xf32> to vector<8x64xbf16>
    %cst_69 = arith.constant dense<0.000000e+00> : vector<8x256xf32>
    %494 = tpu.matmul %493, %302, %cst_69 {dimension_numbers = #tpu.dot_dimension_numbers<[1], [0], [0], [1], [0, 0, 1, 1], [], []>} : vector<8x64xbf16>, vector<64x256xbf16>, vector<8x256xf32> -> vector<8x256xf32>
    %495 = arith.addf %492, %494 : vector<8x256xf32>
    %496 = arith.negf %495 : vector<8x256xf32>
    %497 = math.exp %496 : vector<8x256xf32>
    %cst_70 = arith.constant 1.000000e+00 : f32
    %498 = vector.broadcast %cst_70 : f32 to vector<8x256xf32>
    %499 = arith.addf %498, %497 : vector<8x256xf32>
    %500 = arith.divf %498, %499 : vector<8x256xf32>
    %501 = math.tanh %495 : vector<8x256xf32>
    %502 = vector.extract_strided_slice %500 {offsets = [0, 0], sizes = [8, 64], strides = [1, 1]} : vector<8x256xf32> to vector<8x64xf32>
    %503 = vector.extract_strided_slice %500 {offsets = [0, 64], sizes = [8, 64], strides = [1, 1]} : vector<8x256xf32> to vector<8x64xf32>
    %504 = vector.extract_strided_slice %501 {offsets = [0, 128], sizes = [8, 64], strides = [1, 1]} : vector<8x256xf32> to vector<8x64xf32>
    %505 = vector.extract_strided_slice %500 {offsets = [0, 192], sizes = [8, 64], strides = [1, 1]} : vector<8x256xf32> to vector<8x64xf32>
    %506 = arith.mulf %503, %483 : vector<8x64xf32>
    %507 = arith.mulf %502, %504 : vector<8x64xf32>
    %508 = arith.addf %506, %507 : vector<8x64xf32>
    %509 = math.tanh %508 : vector<8x64xf32>
    %510 = arith.mulf %505, %509 : vector<8x64xf32>
    %c0_71 = arith.constant 0 : index
    %c0_72 = arith.constant 0 : index
    %511 = vector.load %arg13[%c0_71, %c0_72] : memref<64x1xf32, #tpu.memory_space<vmem>>, vector<64x1xf32>
    %cst_73 = arith.constant dense<0.000000e+00> : vector<8x1xf32>
    %512 = tpu.matmul %510, %511, %cst_73 {dimension_numbers = #tpu.dot_dimension_numbers<[1], [0], [0], [1], [0, 0, 1, 1], [], []>} : vector<8x64xf32>, vector<64x1xf32>, vector<8x1xf32> -> vector<8x1xf32>
    %c0_74 = arith.constant 0 : index
    %c0_75 = arith.constant 0 : index
    %513 = vector.load %arg14[%c0_74, %c0_75] : memref<1x1xf32, #tpu.memory_space<vmem>>, vector<1x1xf32>
    %514 = vector.broadcast %513 : vector<1x1xf32> to vector<8x1xf32>
    %515 = arith.addf %512, %514 : vector<8x1xf32>
    %516 = arith.negf %515 : vector<8x1xf32>
    %517 = math.exp %516 : vector<8x1xf32>
    %cst_76 = arith.constant 1.000000e+00 : f32
    %518 = vector.broadcast %cst_76 : f32 to vector<8x1xf32>
    %519 = arith.addf %518, %517 : vector<8x1xf32>
    %520 = arith.divf %518, %519 : vector<8x1xf32>
    %c0_77 = arith.constant 0 : index
    %c0_78 = arith.constant 0 : index
    %521 = vector.load %arg15[%c0_77, %c0_78] : memref<8x1xf32, #tpu.memory_space<vmem>>, vector<8x1xf32>
    tpu.vector_store %arg15[%c0_77, %c0_78], %520 {strides = array<i32>} : memref<8x1xf32, #tpu.memory_space<vmem>>, vector<8x1xf32>,
    return
  }
  func.func @transform_0(%arg0: i32) -> (i32, i32, i32) {
    %c0_i32 = arith.constant 0 : i32
    %c0_i32_0 = arith.constant 0 : i32
    %c0_i32_1 = arith.constant 0 : i32
    return %arg0, %c0_i32, %c0_i32_0 : i32, i32, i32
  }
  func.func @transform_1(%arg0: i32) -> (i32, i32) {
    %c0_i32 = arith.constant 0 : i32
    %c0_i32_0 = arith.constant 0 : i32
    %c0_i32_1 = arith.constant 0 : i32
    return %c0_i32, %c0_i32_0 : i32, i32
  }
  func.func @transform_2(%arg0: i32) -> (i32, i32) {
    %c0_i32 = arith.constant 0 : i32
    %c0_i32_0 = arith.constant 0 : i32
    %c0_i32_1 = arith.constant 0 : i32
    return %c0_i32, %c0_i32_0 : i32, i32
  }
  func.func @transform_3(%arg0: i32) -> (i32, i32) {
    %c0_i32 = arith.constant 0 : i32
    %c0_i32_0 = arith.constant 0 : i32
    %c0_i32_1 = arith.constant 0 : i32
    return %c0_i32, %c0_i32_0 : i32, i32
  }
  func.func @transform_4(%arg0: i32) -> (i32, i32) {
    %c0_i32 = arith.constant 0 : i32
    %c0_i32_0 = arith.constant 0 : i32
    %c0_i32_1 = arith.constant 0 : i32
    return %c0_i32, %c0_i32_0 : i32, i32
  }
  func.func @transform_5(%arg0: i32) -> (i32, i32) {
    %c0_i32 = arith.constant 0 : i32
    %c0_i32_0 = arith.constant 0 : i32
    %c0_i32_1 = arith.constant 0 : i32
    return %c0_i32, %c0_i32_0 : i32, i32
  }
  func.func @transform_6(%arg0: i32) -> (i32, i32) {
    %c0_i32 = arith.constant 0 : i32
    %c0_i32_0 = arith.constant 0 : i32
    %c0_i32_1 = arith.constant 0 : i32
    return %c0_i32, %c0_i32_0 : i32, i32
  }
  func.func @transform_7(%arg0: i32) -> (i32, i32) {
    %c0_i32 = arith.constant 0 : i32
    %c0_i32_0 = arith.constant 0 : i32
    %c0_i32_1 = arith.constant 0 : i32
    return %c0_i32, %c0_i32_0 : i32, i32
  }
  func.func @transform_8(%arg0: i32) -> (i32, i32) {
    %c0_i32 = arith.constant 0 : i32
    %c0_i32_0 = arith.constant 0 : i32
    %c0_i32_1 = arith.constant 0 : i32
    return %c0_i32, %c0_i32_0 : i32, i32
  }
  func.func @transform_9(%arg0: i32) -> (i32, i32) {
    %c0_i32 = arith.constant 0 : i32
    %c0_i32_0 = arith.constant 0 : i32
    %c0_i32_1 = arith.constant 0 : i32
    return %c0_i32, %c0_i32_0 : i32, i32
  }
  func.func @transform_10(%arg0: i32) -> (i32, i32) {
    %c0_i32 = arith.constant 0 : i32
    %c0_i32_0 = arith.constant 0 : i32
    %c0_i32_1 = arith.constant 0 : i32
    return %c0_i32, %c0_i32_0 : i32, i32
  }
  func.func @transform_11(%arg0: i32) -> (i32, i32) {
    %c0_i32 = arith.constant 0 : i32
    %c0_i32_0 = arith.constant 0 : i32
    %c0_i32_1 = arith.constant 0 : i32
    return %c0_i32, %c0_i32_0 : i32, i32
  }
  func.func @transform_12(%arg0: i32) -> (i32, i32) {
    %c0_i32 = arith.constant 0 : i32
    %c0_i32_0 = arith.constant 0 : i32
    %c0_i32_1 = arith.constant 0 : i32
    return %c0_i32, %c0_i32_0 : i32, i32
  }
  func.func @transform_13(%arg0: i32) -> (i32, i32) {
    %c0_i32 = arith.constant 0 : i32
    %c0_i32_0 = arith.constant 0 : i32
    %c0_i32_1 = arith.constant 0 : i32
    return %c0_i32, %c0_i32_0 : i32, i32
  }
  func.func @transform_14(%arg0: i32) -> (i32, i32) {
    %c0_i32 = arith.constant 0 : i32
    %c0_i32_0 = arith.constant 0 : i32
    return %arg0, %c0_i32 : i32, i32
  }
}

</mosaic_0001>

<llo_original>
// kernel: attention_model_forward.1
$region0: #{attention_model_forward.1}
  #allocation0 [shape = 'u32[]', space=smem, size = 0x4, offset = 0x4, fixed_abs, tag = 'smem constant byte address 0x4 - core index']
  #allocation1 [shape = 'u32[144,128]{1,0:T(1,128)}', space=vmem, size = 0x12000, scoped, tag = 'internal scratch']
  #allocation2 [shape = 'f32[1,1]{1,0:T(1,128)S(1)}', space=vmem, size = 0x200, scoped, tag = 'scoped memory for attention_model_forward.1']
  %s0 = inlined_call_operand.vmem [shape: s32[16,8,1], index: 0, kind: input, shape index: {}]
  %s1 = inlined_call_operand.vmem [shape: f32[50,16], index: 1, kind: input, shape index: {}]
  %s2 = inlined_call_operand.hbm [shape: bf16[16,256], index: 2, kind: input, shape index: {}]
  %s3 = inlined_call_operand.vmem [shape: bf16[64,256], index: 3, kind: input, shape index: {}]
  %s4 = inlined_call_operand.vmem [shape: f32[1,256], index: 4, kind: input, shape index: {}]
  %s5 = inlined_call_operand.vmem [shape: bf16[64,192], index: 5, kind: input, shape index: {}]
  %s6 = inlined_call_operand.hbm [shape: f32[1,192], index: 6, kind: input, shape index: {}]
  %s7 = inlined_call_operand.vmem [shape: bf16[64,64], index: 7, kind: input, shape index: {}]
  %s8 = inlined_call_operand.vmem [shape: f32[1,64], index: 8, kind: input, shape index: {}]
  %s9 = inlined_call_operand.vmem [shape: bf16[64,256], index: 9, kind: input, shape index: {}]
  %s10 = inlined_call_operand.vmem [shape: bf16[64,256], index: 10, kind: input, shape index: {}]
  %s11 = inlined_call_operand.hbm [shape: f32[1,256], index: 11, kind: input, shape index: {}]
  %s12 = inlined_call_operand.vmem [shape: f32[64,1], index: 12, kind: input, shape index: {}]
  %s13 = inlined_call_operand.<no memory space> [shape: f32[1,1], index: 13, kind: input, shape index: {}]
  %s14 = inlined_call_operand.vmem [shape: f32[16,1], index: 14, kind: output, shape index: {}]
  %s15 = sld [smem:[#allocation0]]
  $region101: #{attention_model_forward.1} parent=0
    _
  %s17 = ssub.s32 1, %s15
  %s18 = scalar_select 0, %s17, %s15
  %v19 = vstv %s13
  %20 = vst [vmem:[#allocation2] sm:$0x1] %v19
  $region1: #{attention_model_forward.1} parent=0
    #allocation3 [shape = 'u8[8192]{0}', space=vmem, size = 0x2000, scoped, tag = 'input window, operand 2, single buffered']
    #allocation4 [shape = 's32[2]{0}', space=sflag, size = 0x8, scoped, tag = 'scoped memory for attention_model_forward.1']
    #allocation5 [shape = 'u8[1024]{0}', space=vmem, size = 0x400, scoped, tag = 'input window, operand 6, single buffered']
    #allocation6 [shape = 's32[1]{0}', space=sflag, size = 0x4, scoped, tag = 'scoped memory for attention_model_forward.1']
    #allocation7 [shape = 'u8[1024]{0}', space=vmem, size = 0x400, scoped, tag = 'input window, operand 11, single buffered']
    %21 = vsyncpa [#allocation4], 0
    %22 = vsyncpa [#allocation6], 0
    loop: start=0, step=1, limit=4
    $region2: #{attention_model_forward.1} parent=1 // loop_pre_header
      _
    $region3: #{attention_model_forward.1} parent=1 // loop_header
      %s24 = sphi 0, %s28
      %p25 = scmp.ge.s32.totalorder %s24, 4
      %s34 = sphi 0, %s36
      %s37 = sphi 0, %s34
      %s38 = sphi 0, %s37
      %s54 = sphi 0, %s38
      %s58 = sphi 0, %s58
      %s60 = sphi 0, %s58
      %s61 = sphi 0, %s60
      %s75 = sphi 0, %s61
      %s79 = sphi 0, %s79
      %s81 = sphi 0, %s79
      %s82 = sphi 0, %s81
      %s96 = sphi 0, %s82
      %s100 = sphi 0, %s100
      %s102 = sphi 0, %s100
      %s103 = sphi 0, %s102
      %s117 = sphi 0, %s103
      %s121 = sphi 0, %s121
      %s123 = sphi 0, %s121
      %s124 = sphi 0, %s123
      %s138 = sphi 0, %s124
      %s142 = sphi 0, %s142
      %s144 = sphi 0, %s142
      %s145 = sphi 0, %s144
      %s159 = sphi 0, %s145
      %s163 = sphi 0, %s163
      %s165 = sphi 0, %s163
      %s166 = sphi 0, %s165
      %s180 = sphi 0, %s166
      %s184 = sphi 0, %s184
      %s186 = sphi 0, %s184
      %s187 = sphi 0, %s186
      %s201 = sphi 0, %s187
      %s205 = sphi 0, %s205
      %s207 = sphi 0, %s205
      %s208 = sphi 0, %s207
      %s222 = sphi 0, %s208
      %s226 = sphi 0, %s226
      %s228 = sphi 0, %s226
      %s229 = sphi 0, %s228
      %s243 = sphi 0, %s229
      %s247 = sphi 0, %s247
      %s249 = sphi 0, %s247
      %s250 = sphi 0, %s249
      %s264 = sphi 0, %s250
      %s268 = sphi 0, %s268
      %s270 = sphi 0, %s268
      %s271 = sphi 0, %s270
      %s285 = sphi 0, %s271
      %s289 = sphi 0, %s289
      %s291 = sphi 0, %s289
      %s292 = sphi 0, %s291
      %s306 = sphi 0, %s292
      %s310 = sphi 0, %s310
      %s312 = sphi 0, %s310
      %s313 = sphi 0, %s312
      %s327 = sphi 0, %s313
      %s333 = sphi 0, %s335
      %s336 = sphi 0, %s333
      %s337 = sphi 0, %s336
      %s353 = sphi 0, %s337
    $region4: #{attention_model_forward.1} parent=1 // loop_header_branch
      %27 = sbr.rel (%p25) target = $region8
    $region5: #{attention_model_forward.1} parent=1 // loop_body
      %s29 = ssub.s32 %s24, 1
      %s30 = ssub.s32 %s24, 2
      %s31 = sadd.s32 %s24, 1
      %s32 = ssub.s32 %s24, %s31
      %p33 = scmp.eq.s32.totalorder %s32, 0
      %s35 = sadd.s32 %s34, 1
      %s36 = scalar_select %p33, %s34, %s35
      %p39 = pneg %p33
      %p40 = scmp.eq.s32.totalorder %s24, 1
      %p41 = por %p39, %p40
      %p42 = scmp.ne.s32.totalorder %s34, %s37
      %p43 = scmp.eq.s32.totalorder %s24, 0
      %p44 = por %p42, %p43
      %p45 = scmp.ne.s32.totalorder %s34, %s37
      %p46 = scmp.eq.s32.totalorder %s29, 1
      %p47 = por %p45, %p46
      %p48 = scmp.ne.s32.totalorder %s37, %s38
      %p49 = scmp.eq.s32.totalorder %s29, 0
      %p50 = por %p48, %p49
      %p51 = scmp.ne.s32.totalorder %s37, %s38
      %p52 = scmp.eq.s32.totalorder %s30, 1
      %p53 = por %p51, %p52
      %p55 = scmp.ne.s32.totalorder %s38, %s54
      %p56 = scmp.eq.s32.totalorder %s30, 0
      %p57 = por %p55, %p56
      %s59 = sadd.s32 %s58, 1
      %p62 = scmp.eq.s32.totalorder %s24, 1
      %p63 = scmp.ne.s32.totalorder %s58, %s60
      %p64 = scmp.eq.s32.totalorder %s24, 0
      %p65 = por %p63, %p64
      %p66 = scmp.ne.s32.totalorder %s58, %s60
      %p67 = scmp.eq.s32.totalorder %s29, 1
      %p68 = por %p66, %p67
      %p69 = scmp.ne.s32.totalorder %s60, %s61
      %p70 = scmp.eq.s32.totalorder %s29, 0
      %p71 = por %p69, %p70
      %p72 = scmp.ne.s32.totalorder %s60, %s61
      %p73 = scmp.eq.s32.totalorder %s30, 1
      %p74 = por %p72, %p73
      %p76 = scmp.ne.s32.totalorder %s61, %s75
      %p77 = scmp.eq.s32.totalorder %s30, 0
      %p78 = por %p76, %p77
      %s80 = sadd.s32 %s79, 1
      %p83 = scmp.eq.s32.totalorder %s24, 1
      %p84 = scmp.ne.s32.totalorder %s79, %s81
      %p85 = scmp.eq.s32.totalorder %s24, 0
      %p86 = por %p84, %p85
      %p87 = scmp.ne.s32.totalorder %s79, %s81
      %p88 = scmp.eq.s32.totalorder %s29, 1
      %p89 = por %p87, %p88
      %p90 = scmp.ne.s32.totalorder %s81, %s82
      %p91 = scmp.eq.s32.totalorder %s29, 0
      %p92 = por %p90, %p91
      %p93 = scmp.ne.s32.totalorder %s81, %s82
      %p94 = scmp.eq.s32.totalorder %s30, 1
      %p95 = por %p93, %p94
      %p97 = scmp.ne.s32.totalorder %s82, %s96
      %p98 = scmp.eq.s32.totalorder %s30, 0
      %p99 = por %p97, %p98
      %s101 = sadd.s32 %s100, 1
      %p104 = scmp.eq.s32.totalorder %s24, 1
      %p105 = scmp.ne.s32.totalorder %s100, %s102
      %p106 = scmp.eq.s32.totalorder %s24, 0
      %p107 = por %p105, %p106
      %p108 = scmp.ne.s32.totalorder %s100, %s102
      %p109 = scmp.eq.s32.totalorder %s29, 1
      %p110 = por %p108, %p109
      %p111 = scmp.ne.s32.totalorder %s102, %s103
      %p112 = scmp.eq.s32.totalorder %s29, 0
      %p113 = por %p111, %p112
      %p114 = scmp.ne.s32.totalorder %s102, %s103
      %p115 = scmp.eq.s32.totalorder %s30, 1
      %p116 = por %p114, %p115
      %p118 = scmp.ne.s32.totalorder %s103, %s117
      %p119 = scmp.eq.s32.totalorder %s30, 0
      %p120 = por %p118, %p119
      %s122 = sadd.s32 %s121, 1
      %p125 = scmp.eq.s32.totalorder %s24, 1
      %p126 = scmp.ne.s32.totalorder %s121, %s123
      %p127 = scmp.eq.s32.totalorder %s24, 0
      %p128 = por %p126, %p127
      %p129 = scmp.ne.s32.totalorder %s121, %s123
      %p130 = scmp.eq.s32.totalorder %s29, 1
      %p131 = por %p129, %p130
      %p132 = scmp.ne.s32.totalorder %s123, %s124
      %p133 = scmp.eq.s32.totalorder %s29, 0
      %p134 = por %p132, %p133
      %p135 = scmp.ne.s32.totalorder %s123, %s124
      %p136 = scmp.eq.s32.totalorder %s30, 1
      %p137 = por %p135, %p136
      %p139 = scmp.ne.s32.totalorder %s124, %s138
      %p140 = scmp.eq.s32.totalorder %s30, 0
      %p141 = por %p139, %p140
      %s143 = sadd.s32 %s142, 1
      %p146 = scmp.eq.s32.totalorder %s24, 1
      %p147 = scmp.ne.s32.totalorder %s142, %s144
      %p148 = scmp.eq.s32.totalorder %s24, 0
      %p149 = por %p147, %p148
      %p150 = scmp.ne.s32.totalorder %s142, %s144
      %p151 = scmp.eq.s32.totalorder %s29, 1
      %p152 = por %p150, %p151
      %p153 = scmp.ne.s32.totalorder %s144, %s145
      %p154 = scmp.eq.s32.totalorder %s29, 0
      %p155 = por %p153, %p154
      %p156 = scmp.ne.s32.totalorder %s144, %s145
      %p157 = scmp.eq.s32.totalorder %s30, 1
      %p158 = por %p156, %p157
      %p160 = scmp.ne.s32.totalorder %s145, %s159
      %p161 = scmp.eq.s32.totalorder %s30, 0
      %p162 = por %p160, %p161
      %s164 = sadd.s32 %s163, 1
      %p167 = scmp.eq.s32.totalorder %s24, 1
      %p168 = scmp.ne.s32.totalorder %s163, %s165
      %p169 = scmp.eq.s32.totalorder %s24, 0
      %p170 = por %p168, %p169
      %p171 = scmp.ne.s32.totalorder %s163, %s165
      %p172 = scmp.eq.s32.totalorder %s29, 1
      %p173 = por %p171, %p172
      %p174 = scmp.ne.s32.totalorder %s165, %s166
      %p175 = scmp.eq.s32.totalorder %s29, 0
      %p176 = por %p174, %p175
      %p177 = scmp.ne.s32.totalorder %s165, %s166
      %p178 = scmp.eq.s32.totalorder %s30, 1
      %p179 = por %p177, %p178
      %p181 = scmp.ne.s32.totalorder %s166, %s180
      %p182 = scmp.eq.s32.totalorder %s30, 0
      %p183 = por %p181, %p182
      %s185 = sadd.s32 %s184, 1
      %p188 = scmp.eq.s32.totalorder %s24, 1
      %p189 = scmp.ne.s32.totalorder %s184, %s186
      %p190 = scmp.eq.s32.totalorder %s24, 0
      %p191 = por %p189, %p190
      %p192 = scmp.ne.s32.totalorder %s184, %s186
      %p193 = scmp.eq.s32.totalorder %s29, 1
      %p194 = por %p192, %p193
      %p195 = scmp.ne.s32.totalorder %s186, %s187
      %p196 = scmp.eq.s32.totalorder %s29, 0
      %p197 = por %p195, %p196
      %p198 = scmp.ne.s32.totalorder %s186, %s187
      %p199 = scmp.eq.s32.totalorder %s30, 1
      %p200 = por %p198, %p199
      %p202 = scmp.ne.s32.totalorder %s187, %s201
      %p203 = scmp.eq.s32.totalorder %s30, 0
      %p204 = por %p202, %p203
      %s206 = sadd.s32 %s205, 1
      %p209 = scmp.eq.s32.totalorder %s24, 1
      %p210 = scmp.ne.s32.totalorder %s205, %s207
      %p211 = scmp.eq.s32.totalorder %s24, 0
      %p212 = por %p210, %p211
      %p213 = scmp.ne.s32.totalorder %s205, %s207
      %p214 = scmp.eq.s32.totalorder %s29, 1
      %p215 = por %p213, %p214
      %p216 = scmp.ne.s32.totalorder %s207, %s208
      %p217 = scmp.eq.s32.totalorder %s29, 0
      %p218 = por %p216, %p217
      %p219 = scmp.ne.s32.totalorder %s207, %s208
      %p220 = scmp.eq.s32.totalorder %s30, 1
      %p221 = por %p219, %p220
      %p223 = scmp.ne.s32.totalorder %s208, %s222
      %p224 = scmp.eq.s32.totalorder %s30, 0
      %p225 = por %p223, %p224
      %s227 = sadd.s32 %s226, 1
      %p230 = scmp.eq.s32.totalorder %s24, 1
      %p231 = scmp.ne.s32.totalorder %s226, %s228
      %p232 = scmp.eq.s32.totalorder %s24, 0
      %p233 = por %p231, %p232
      %p234 = scmp.ne.s32.totalorder %s226, %s228
      %p235 = scmp.eq.s32.totalorder %s29, 1
      %p236 = por %p234, %p235
      %p237 = scmp.ne.s32.totalorder %s228, %s229
      %p238 = scmp.eq.s32.totalorder %s29, 0
      %p239 = por %p237, %p238
      %p240 = scmp.ne.s32.totalorder %s228, %s229
      %p241 = scmp.eq.s32.totalorder %s30, 1
      %p242 = por %p240, %p241
      %p244 = scmp.ne.s32.totalorder %s229, %s243
      %p245 = scmp.eq.s32.totalorder %s30, 0
      %p246 = por %p244, %p245
      %s248 = sadd.s32 %s247, 1
      %p251 = scmp.eq.s32.totalorder %s24, 1
      %p252 = scmp.ne.s32.totalorder %s247, %s249
      %p253 = scmp.eq.s32.totalorder %s24, 0
      %p254 = por %p252, %p253
      %p255 = scmp.ne.s32.totalorder %s247, %s249
      %p256 = scmp.eq.s32.totalorder %s29, 1
      %p257 = por %p255, %p256
      %p258 = scmp.ne.s32.totalorder %s249, %s250
      %p259 = scmp.eq.s32.totalorder %s29, 0
      %p260 = por %p258, %p259
      %p261 = scmp.ne.s32.totalorder %s249, %s250
      %p262 = scmp.eq.s32.totalorder %s30, 1
      %p263 = por %p261, %p262
      %p265 = scmp.ne.s32.totalorder %s250, %s264
      %p266 = scmp.eq.s32.totalorder %s30, 0
      %p267 = por %p265, %p266
      %s269 = sadd.s32 %s268, 1
      %p272 = scmp.eq.s32.totalorder %s24, 1
      %p273 = scmp.ne.s32.totalorder %s268, %s270
      %p274 = scmp.eq.s32.totalorder %s24, 0
      %p275 = por %p273, %p274
      %p276 = scmp.ne.s32.totalorder %s268, %s270
      %p277 = scmp.eq.s32.totalorder %s29, 1
      %p278 = por %p276, %p277
      %p279 = scmp.ne.s32.totalorder %s270, %s271
      %p280 = scmp.eq.s32.totalorder %s29, 0
      %p281 = por %p279, %p280
      %p282 = scmp.ne.s32.totalorder %s270, %s271
      %p283 = scmp.eq.s32.totalorder %s30, 1
      %p284 = por %p282, %p283
      %p286 = scmp.ne.s32.totalorder %s271, %s285
      %p287 = scmp.eq.s32.totalorder %s30, 0
      %p288 = por %p286, %p287
      %s290 = sadd.s32 %s289, 1
      %p293 = scmp.eq.s32.totalorder %s24, 1
      %p294 = scmp.ne.s32.totalorder %s289, %s291
      %p295 = scmp.eq.s32.totalorder %s24, 0
      %p296 = por %p294, %p295
      %p297 = scmp.ne.s32.totalorder %s289, %s291
      %p298 = scmp.eq.s32.totalorder %s29, 1
      %p299 = por %p297, %p298
      %p300 = scmp.ne.s32.totalorder %s291, %s292
      %p301 = scmp.eq.s32.totalorder %s29, 0
      %p302 = por %p300, %p301
      %p303 = scmp.ne.s32.totalorder %s291, %s292
      %p304 = scmp.eq.s32.totalorder %s30, 1
      %p305 = por %p303, %p304
      %p307 = scmp.ne.s32.totalorder %s292, %s306
      %p308 = scmp.eq.s32.totalorder %s30, 0
      %p309 = por %p307, %p308
      %s311 = sadd.s32 %s310, 1
      %p314 = scmp.eq.s32.totalorder %s24, 1
      %p315 = scmp.ne.s32.totalorder %s310, %s312
      %p316 = scmp.eq.s32.totalorder %s24, 0
      %p317 = por %p315, %p316
      %p318 = scmp.ne.s32.totalorder %s310, %s312
      %p319 = scmp.eq.s32.totalorder %s29, 1
      %p320 = por %p318, %p319
      %p321 = scmp.ne.s32.totalorder %s312, %s313
      %p322 = scmp.eq.s32.totalorder %s29, 0
      %p323 = por %p321, %p322
      %p324 = scmp.ne.s32.totalorder %s312, %s313
      %p325 = scmp.eq.s32.totalorder %s30, 1
      %p326 = por %p324, %p325
      %p328 = scmp.ne.s32.totalorder %s313, %s327
      %p329 = scmp.eq.s32.totalorder %s30, 0
      %p330 = por %p328, %p329
      %s331 = ssub.s32 %s24, %s31
      %p332 = scmp.eq.s32.totalorder %s331, 0
      %s334 = sadd.s32 %s333, 1
      %s335 = scalar_select %p332, %s333, %s334
      %p338 = pneg %p332
      %p339 = scmp.eq.s32.totalorder %s24, 1
      %p340 = por %p338, %p339
      %p341 = scmp.ne.s32.totalorder %s333, %s336
      %p342 = scmp.eq.s32.totalorder %s24, 0
      %p343 = por %p341, %p342
      %p344 = scmp.ne.s32.totalorder %s333, %s336
      %p345 = scmp.eq.s32.totalorder %s29, 1
      %p346 = por %p344, %p345
      %p347 = scmp.ne.s32.totalorder %s336, %s337
      %p348 = scmp.eq.s32.totalorder %s29, 0
      %p349 = por %p347, %p348
      %p350 = scmp.ne.s32.totalorder %s336, %s337
      %p351 = scmp.eq.s32.totalorder %s30, 1
      %p352 = por %p350, %p351
      %p354 = scmp.ne.s32.totalorder %s337, %s353
      %p355 = scmp.eq.s32.totalorder %s30, 0
      %p356 = por %p354, %p355
      %p357 = scmp.le.s32.totalorder 1, %s24
      %p358 = scmp.lt.s32.totalorder %s24, 3
      %p359 = pnand %p357, %p358
      %p360 = pneg %p359
      // Predicated region
      $region9: #{attention_model_forward.1} parent=5 // pred_check
        _
      $region10: #{attention_model_forward.1} parent=5 // pred_check_branch
        %362 = sbr.rel (%p359) target = $region12
      $region11: #{attention_model_forward.1} parent=5 // pred_region
        %s363 = ssub.s32 %s24, 1
        // Predicated region
        $region13: #{attention_model_forward.1} parent=11 // pred_check
          %p364 = pneg %p71
        $region14: #{attention_model_forward.1} parent=11 // pred_check_branch
          %366 = sbr.rel (%p364) target = $region16
        $region15: #{attention_model_forward.1} parent=11 // pred_region
          _
        $region16: #{attention_model_forward.1} parent=11 // pred_fallthru
          _
        // Predicated region
        $region17: #{attention_model_forward.1} parent=11 // pred_check
          %p367 = pneg %p92
        $region18: #{attention_model_forward.1} parent=11 // pred_check_branch
          %369 = sbr.rel (%p367) target = $region20
        $region19: #{attention_model_forward.1} parent=11 // pred_region
          %s371 = ssub.s32 256, 256
          %372 = vsyncadd [#allocation4], %s371
          %s373 = sshll.u32 [#allocation3], 4
          %s374 = int_to_ptr.vmem [resolvable:$true] %s373
          %379 = dma.hbm_to_vmem [thread:$0]  %s2, 256, %s374, [#allocation4], 128, 128, 8
        $region20: #{attention_model_forward.1} parent=11 // pred_fallthru
          _
        // Predicated region
        $region21: #{attention_model_forward.1} parent=11 // pred_check
          %p380 = pneg %p113
        $region22: #{attention_model_forward.1} parent=11 // pred_check_branch
          %382 = sbr.rel (%p380) target = $region24
        $region23: #{attention_model_forward.1} parent=11 // pred_region
          _
        $region24: #{attention_model_forward.1} parent=11 // pred_fallthru
          _
        // Predicated region
        $region25: #{attention_model_forward.1} parent=11 // pred_check
          %p383 = pneg %p134
        $region26: #{attention_model_forward.1} parent=11 // pred_check_branch
          %385 = sbr.rel (%p383) target = $region28
        $region27: #{attention_model_forward.1} parent=11 // pred_region
          _
        $region28: #{attention_model_forward.1} parent=11 // pred_fallthru
          _
        // Predicated region
        $region29: #{attention_model_forward.1} parent=11 // pred_check
          %p386 = pneg %p155
        $region30: #{attention_model_forward.1} parent=11 // pred_check_branch
          %388 = sbr.rel (%p386) target = $region32
        $region31: #{attention_model_forward.1} parent=11 // pred_region
          _
        $region32: #{attention_model_forward.1} parent=11 // pred_fallthru
          _
        // Predicated region
        $region33: #{attention_model_forward.1} parent=11 // pred_check
          %p389 = pneg %p176
        $region34: #{attention_model_forward.1} parent=11 // pred_check_branch
          %391 = sbr.rel (%p389) target = $region36
        $region35: #{attention_model_forward.1} parent=11 // pred_region
          %s393 = ssub.s32 32, 32
          %394 = vsyncadd [#allocation6], %s393
          %s396 = sshll.u32 [#allocation5], 4
          %s397 = int_to_ptr.vmem [resolvable:$true] %s396
          %399 = dma.hbm_to_vmem [thread:$0]  %s6, 32, %s397, [#allocation6]
        $region36: #{attention_model_forward.1} parent=11 // pred_fallthru
          _
        // Predicated region
        $region37: #{attention_model_forward.1} parent=11 // pred_check
          %p400 = pneg %p197
        $region38: #{attention_model_forward.1} parent=11 // pred_check_branch
          %402 = sbr.rel (%p400) target = $region40
        $region39: #{attention_model_forward.1} parent=11 // pred_region
          _
        $region40: #{attention_model_forward.1} parent=11 // pred_fallthru
          _
        // Predicated region
        $region41: #{attention_model_forward.1} parent=11 // pred_check
          %p403 = pneg %p218
        $region42: #{attention_model_forward.1} parent=11 // pred_check_branch
          %405 = sbr.rel (%p403) target = $region44
        $region43: #{attention_model_forward.1} parent=11 // pred_region
          _
        $region44: #{attention_model_forward.1} parent=11 // pred_fallthru
          _
        // Predicated region
        $region45: #{attention_model_forward.1} parent=11 // pred_check
          %p406 = pneg %p239
        $region46: #{attention_model_forward.1} parent=11 // pred_check_branch
          %408 = sbr.rel (%p406) target = $region48
        $region47: #{attention_model_forward.1} parent=11 // pred_region
          _
        $region48: #{attention_model_forward.1} parent=11 // pred_fallthru
          _
        // Predicated region
        $region49: #{attention_model_forward.1} parent=11 // pred_check
          %p409 = pneg %p260
        $region50: #{attention_model_forward.1} parent=11 // pred_check_branch
          %411 = sbr.rel (%p409) target = $region52
        $region51: #{attention_model_forward.1} parent=11 // pred_region
          _
        $region52: #{attention_model_forward.1} parent=11 // pred_fallthru
          _
        // Predicated region
        $region53: #{attention_model_forward.1} parent=11 // pred_check
          %p412 = pneg %p281
        $region54: #{attention_model_forward.1} parent=11 // pred_check_branch
          %414 = sbr.rel (%p412) target = $region56
        $region55: #{attention_model_forward.1} parent=11 // pred_region
          %s416 = ssub.s32 32, 32
          %417 = vsyncadd [#allocation6], %s416
          %s419 = sshll.u32 [#allocation7], 4
          %s420 = int_to_ptr.vmem [resolvable:$true] %s419
          %422 = dma.hbm_to_vmem [thread:$0]  %s11, 32, %s420, [#allocation6]
        $region56: #{attention_model_forward.1} parent=11 // pred_fallthru
          _
        // Predicated region
        $region57: #{attention_model_forward.1} parent=11 // pred_check
          %p423 = pneg %p302
        $region58: #{attention_model_forward.1} parent=11 // pred_check_branch
          %425 = sbr.rel (%p423) target = $region60
        $region59: #{attention_model_forward.1} parent=11 // pred_region
          _
        $region60: #{attention_model_forward.1} parent=11 // pred_fallthru
          _
        // Predicated region
        $region61: #{attention_model_forward.1} parent=11 // pred_check
          %p426 = pneg %p323
        $region62: #{attention_model_forward.1} parent=11 // pred_check_branch
          %428 = sbr.rel (%p426) target = $region64
        $region63: #{attention_model_forward.1} parent=11 // pred_region
          _
        $region64: #{attention_model_forward.1} parent=11 // pred_fallthru
          _
      $region12: #{attention_model_forward.1} parent=5 // pred_fallthru
        _
      %p429 = scmp.lt.s32.totalorder %s24, 2
      // Predicated region
      $region65: #{attention_model_forward.1} parent=5 // pred_check
        %p430 = pneg %p429
      $region66: #{attention_model_forward.1} parent=5 // pred_check_branch
        %432 = sbr.rel (%p430) target = $region68
      $region67: #{attention_model_forward.1} parent=5 // pred_region
        // Predicated region
        $region69: #{attention_model_forward.1} parent=67 // pred_check
          %p433 = pneg %p44
        $region70: #{attention_model_forward.1} parent=67 // pred_check_branch
          %435 = sbr.rel (%p433) target = $region72
        $region71: #{attention_model_forward.1} parent=67 // pred_region
          %s436 = smul.u32 8, %s24
          %p437 = scmp.lt.s32.totalorder %s436, 15
          %s438 = scalar_select %p437, %s436, 15
          %s439 = smul.addr %s438, 8
          %s440 = scalar_lea.vmem %s0, %s439
          %s441 = smul.u32 8, %s24
        $region72: #{attention_model_forward.1} parent=67 // pred_fallthru
          _
      $region68: #{attention_model_forward.1} parent=5 // pred_fallthru
        _
      %p442 = scmp.le.s32.totalorder 1, %s24
      %p443 = scmp.lt.s32.totalorder %s24, 3
      %p444 = pnand %p442, %p443
      %p445 = pneg %p444
      // Predicated region
      $region73: #{attention_model_forward.1} parent=5 // pred_check
        _
      $region74: #{attention_model_forward.1} parent=5 // pred_check_branch
        %447 = sbr.rel (%p444) target = $region76
      $region75: #{attention_model_forward.1} parent=5 // pred_region
        %s448 = ssub.s32 %s24, 1
        // Predicated region
        $region77: #{attention_model_forward.1} parent=75 // pred_check
          %p449 = pneg %p92
        $region78: #{attention_model_forward.1} parent=75 // pred_check_branch
          %451 = sbr.rel (%p449) target = $region80
        $region79: #{attention_model_forward.1} parent=75 // pred_region
          %452 = dma.done [#allocation4], 256
        $region80: #{attention_model_forward.1} parent=75 // pred_fallthru
          _
        // Predicated region
        $region81: #{attention_model_forward.1} parent=75 // pred_check
          %p453 = pneg %p176
        $region82: #{attention_model_forward.1} parent=75 // pred_check_branch
          %455 = sbr.rel (%p453) target = $region84
        $region83: #{attention_model_forward.1} parent=75 // pred_region
          %456 = dma.done [#allocation6], 32
        $region84: #{attention_model_forward.1} parent=75 // pred_fallthru
          _
        // Predicated region
        $region85: #{attention_model_forward.1} parent=75 // pred_check
          %p457 = pneg %p281
        $region86: #{attention_model_forward.1} parent=75 // pred_check_branch
          %459 = sbr.rel (%p457) target = $region88
        $region87: #{attention_model_forward.1} parent=75 // pred_region
          %460 = dma.done [#allocation6], 32
        $region88: #{attention_model_forward.1} parent=75 // pred_fallthru
          _
        %s461 = smul.u32 8, %s29
        %p462 = scmp.lt.s32.totalorder %s461, 15
        %s463 = scalar_select %p462, %s461, 15
        %s464 = smul.addr %s463, 8
        %s465 = scalar_lea.vmem %s0, %s464
        %p466 = pneg %p50
        %p467 = pneg %p47
        %p468 = pneg %p71
        %p469 = pneg %p68
        %p470 = pneg %p92
        %p471 = pneg %p89
        %p472 = pneg %p113
        %p473 = pneg %p110
        %p474 = pneg %p134
        %p475 = pneg %p131
        %p476 = pneg %p155
        %p477 = pneg %p152
        %p478 = pneg %p176
        %p479 = pneg %p173
        %p480 = pneg %p197
        %p481 = pneg %p194
        %p482 = pneg %p218
        %p483 = pneg %p215
        %p484 = pneg %p239
        %p485 = pneg %p236
        %p486 = pneg %p260
        %p487 = pneg %p257
        %p488 = pneg %p281
        %p489 = pneg %p278
        %p490 = pneg %p302
        %p491 = pneg %p299
        %p492 = pneg %p323
        %p493 = pneg %p320
        %p494 = pneg %p349
        %p495 = pneg %p346
        %p496 = scmp.lt.s32.totalorder %s29, 1
        %s497 = scalar_select %p496, %s29, 1
        %s498 = smul.addr %s497, 8
        %s499 = scalar_lea.vmem %s14, %s498
        %s500 = smul.u32 8, %s29
        %p501 = scmp.lt.s32.totalorder %s500, 15
        %s502 = scalar_select %p501, %s500, 15
        %s503 = smul.addr %s502, 8
        %s504 = scalar_lea.vmem %s0, %s503
        %s505 = smul.u32 8, %s29
        %p506 = scmp.lt.s32.totalorder %s29, 1
        %s507 = scalar_select %p506, %s29, 1
        %s508 = smul.addr %s507, 8
        %s509 = scalar_lea.vmem %s14, %s508
        %v511 = vld [vmem:[%s504] sm:$0xff]
        %v512 = vld [vmem:[%s504 + $0x8] sm:$0xff]
        %v513 = vld [vmem:[%s504 + $0x10] sm:$0xff]
        %v514 = vld [vmem:[%s504 + $0x18] sm:$0xff]
        %v515 = vld [vmem:[%s504 + $0x20] sm:$0xff]
        %v516 = vld [vmem:[%s504 + $0x28] sm:$0xff]
        %v517 = vld [vmem:[%s504 + $0x30] sm:$0xff]
        %v518 = vld [vmem:[%s504 + $0x38] sm:$0xff]
        %v519 = vlaneseq
        %v520 = vand.u32 %v519, 127
        %521 = vset.pattern.permute.xlu0 0
        %522 = vperm.xlu0 %521, %v511
        %v523 = vpop.permute.xlu0 %522
        %524 = vset.pattern.permute.xlu0 0
        %525 = vperm.xlu0 %524, %v512
        %v526 = vpop.permute.xlu0 %525
        %527 = vset.pattern.permute.xlu0 0
        %528 = vperm.xlu0 %527, %v513
        %v529 = vpop.permute.xlu0 %528
        %530 = vset.pattern.permute.xlu0 0
        %531 = vperm.xlu0 %530, %v514
        %v532 = vpop.permute.xlu0 %531
        %533 = vset.pattern.permute.xlu0 0
        %534 = vperm.xlu0 %533, %v515
        %v535 = vpop.permute.xlu0 %534
        %536 = vset.pattern.permute.xlu0 0
        %537 = vperm.xlu0 %536, %v516
        %v538 = vpop.permute.xlu0 %537
        %539 = vset.pattern.permute.xlu0 0
        %540 = vperm.xlu0 %539, %v517
        %v541 = vpop.permute.xlu0 %540
        %542 = vset.pattern.permute.xlu0 0
        %543 = vperm.xlu0 %542, %v518
        %v544 = vpop.permute.xlu0 %543
        %vm545 = vcmp.eq.s32.totalorder %v520, %v523
        %vm546 = vcmp.eq.s32.totalorder %v520, %v526
        %vm547 = vcmp.eq.s32.totalorder %v520, %v529
        %vm548 = vcmp.eq.s32.totalorder %v520, %v532
        %vm549 = vcmp.eq.s32.totalorder %v520, %v535
        %vm550 = vcmp.eq.s32.totalorder %v520, %v538
        %vm551 = vcmp.eq.s32.totalorder %v520, %v541
        %vm552 = vcmp.eq.s32.totalorder %v520, %v544
        %v553 = vsel %vm545, 1.0, 0.0
        %v554 = vsel %vm546, 1.0, 0.0
        %v555 = vsel %vm547, 1.0, 0.0
        %v556 = vsel %vm548, 1.0, 0.0
        %v557 = vsel %vm549, 1.0, 0.0
        %v558 = vsel %vm550, 1.0, 0.0
        %v559 = vsel %vm551, 1.0, 0.0
        %v560 = vsel %vm552, 1.0, 0.0
        %v561 = vld [vmem:[%s1] sm:$0xff]
        %v562 = vld [vmem:[%s1 + $0x8] sm:$0xff]
        %v563 = vld [vmem:[%s1 + $0x10] sm:$0xff]
        %v564 = vld [vmem:[%s1 + $0x18] sm:$0xff]
        %v565 = vld [vmem:[%s1 + $0x20] sm:$0xff]
        %v566 = vld [vmem:[%s1 + $0x28] sm:$0xff]
        %v567 = vld [vmem:[%s1 + $0x30] sm:$0x3]
        %vm568 = vcmask 408576
        %v570 = vsel %vm568, %v553, 0
        %v573 = vsel %vm568, %v554, 0
        %v576 = vsel %vm568, %v555, 0
        %v579 = vsel %vm568, %v556, 0
        %v582 = vsel %vm568, %v557, 0
        %v585 = vsel %vm568, %v558, 0
        %v588 = vsel %vm568, %v559, 0
        %v591 = vsel %vm568, %v560, 0
        %vm593 = vcmask 1041408
        %v595 = vsel %vm593, %v567, 0
        %597 = vmatprep.subr.mxu0 0.0
        %598 = vmatpush1.msra.mxu0 0.0
        %599 = vmatprep.subr.mxu0 0.0
        %600 = vmatpush1.msra.mxu0 0.0
        %601 = vmatprep.subr.mxu0 0.0
        %602 = vmatpush1.msra.mxu0 0.0
        %603 = vmatprep.subr.mxu0 0.0
        %604 = vmatpush1.msra.mxu0 0.0
        %605 = vmatprep.subr.mxu0 0.0
        %606 = vmatpush1.msra.mxu0 0.0
        %607 = vmatprep.subr.mxu0 0.0
        %608 = vmatpush1.msra.mxu0 0.0
        %609 = vmatprep.subr.mxu0 0.0
        %610 = vmatpush1.msra.mxu0 0.0
        %611 = vmatprep.subr.mxu0 0.0
        %612 = vmatpush1.msra.mxu0 0.0
        %613 = vmatprep.subr.mxu0 0.0
        %614 = vmatpush1.msra.mxu0 0.0
        %615 = vmatprep.subr.mxu0 0.0
        %616 = vmatpush1.msra.mxu0 %v595
        %617 = vmatprep.subr.mxu0 0.0
        %618 = vmatpush1.msra.mxu0 %v566
        %619 = vmatprep.subr.mxu0 0.0
        %620 = vmatpush1.msra.mxu0 %v565
        %621 = vmatprep.subr.mxu0 0.0
        %622 = vmatpush1.msra.mxu0 %v564
        %623 = vmatprep.subr.mxu0 0.0
        %624 = vmatpush1.msra.mxu0 %v563
        %625 = vmatprep.subr.mxu0 0.0
        %626 = vmatpush1.msra.mxu0 %v562
        %627 = vmatprep.subr.mxu0 0.0
        %628 = vmatpush1.msra.mxu0 %v561
        %629 = vmatprep.subr.mxu0 0.0
        %630 = vmatpush2.msra.mxu0 0.0
        %631 = vmatprep.subr.mxu0 0.0
        %632 = vmatpush2.msra.mxu0 0.0
        %633 = vmatprep.subr.mxu0 0.0
        %634 = vmatpush2.msra.mxu0 0.0
        %635 = vmatprep.subr.mxu0 0.0
        %636 = vmatpush2.msra.mxu0 0.0
        %637 = vmatprep.subr.mxu0 0.0
        %638 = vmatpush2.msra.mxu0 0.0
        %639 = vmatprep.subr.mxu0 0.0
        %640 = vmatpush2.msra.mxu0 0.0
        %641 = vmatprep.subr.mxu0 0.0
        %642 = vmatpush2.msra.mxu0 0.0
        %643 = vmatprep.subr.mxu0 0.0
        %644 = vmatpush2.msra.mxu0 0.0
        %645 = vmatprep.subr.mxu0 0.0
        %646 = vmatpush2.msra.mxu0 0.0
        %647 = vmatprep.subr.mxu0 0.0
        %648 = vmatpush2.msra.mxu0 0.0
        %649 = vmatprep.subr.mxu0 0.0
        %650 = vmatpush2.msra.mxu0 0.0
        %651 = vmatprep.subr.mxu0 0.0
        %652 = vmatpush2.msra.mxu0 0.0
        %653 = vmatprep.subr.mxu0 0.0
        %654 = vmatpush2.msra.mxu0 0.0
        %655 = vmatprep.subr.mxu0 0.0
        %656 = vmatpush2.msra.mxu0 0.0
        %657 = vmatprep.subr.mxu0 0.0
        %658 = vmatpush2.msra.mxu0 0.0
        %659 = vmatprep.subr.mxu0 0.0
        %660 = vmatpush2.msra.mxu0 0.0
        %661 = vmatprep.mubr.f32.mxu0 0.0
        %662 = vmatmul.mubr.f32.gmra.mxu0 %v570
        %v663 = vpop.f32.mrf.mxu0
        %v664 = vadd.f32 0.0, %v663
        %v665 = vpop.f32.mrf.mxu0
        %666 = vmatprep.mubr.f32.mxu0 0.0
        %667 = vmatmul.mubr.f32.gmra.mxu0 %v573
        %v668 = vpop.f32.mrf.mxu0
        %v669 = vadd.f32 0.0, %v668
        %v670 = vpop.f32.mrf.mxu0
        %671 = vmatprep.mubr.f32.mxu0 0.0
        %672 = vmatmul.mubr.f32.gmra.mxu0 %v576
        %v673 = vpop.f32.mrf.mxu0
        %v674 = vadd.f32 0.0, %v673
        %v675 = vpop.f32.mrf.mxu0
        %676 = vmatprep.mubr.f32.mxu0 0.0
        %677 = vmatmul.mubr.f32.gmra.mxu0 %v579
        %v678 = vpop.f32.mrf.mxu0
        %v679 = vadd.f32 0.0, %v678
        %v680 = vpop.f32.mrf.mxu0
        %681 = vmatprep.mubr.f32.mxu0 0.0
        %682 = vmatmul.mubr.f32.gmra.mxu0 %v582
        %v683 = vpop.f32.mrf.mxu0
        %v684 = vadd.f32 0.0, %v683
        %v685 = vpop.f32.mrf.mxu0
        %686 = vmatprep.mubr.f32.mxu0 0.0
        %687 = vmatmul.mubr.f32.gmra.mxu0 %v585
        %v688 = vpop.f32.mrf.mxu0
        %v689 = vadd.f32 0.0, %v688
        %v690 = vpop.f32.mrf.mxu0
        %691 = vmatprep.mubr.f32.mxu0 0.0
        %692 = vmatmul.mubr.f32.gmra.mxu0 %v588
        %v693 = vpop.f32.mrf.mxu0
        %v694 = vadd.f32 0.0, %v693
        %v695 = vpop.f32.mrf.mxu0
        %696 = vmatprep.mubr.f32.mxu0 0.0
        %697 = vmatmul.mubr.f32.gmra.mxu0 %v591
        %v698 = vpop.f32.mrf.mxu0
        %v699 = vadd.f32 0.0, %v698
        %v700 = vpop.f32.mrf.mxu0
        %701 = vdwg.mxu0
        %v702 = vadd.s32 %v520, 128
        %v703 = vand.u32 %v520, 63
        %v704 = vand.u32 %v702, 63
        %vm705 = vcmp.lt.s32.totalorder %v703, 32
        %vm706 = vcmp.lt.s32.totalorder %v704, 32
        %v707 = vld [vmem:[#allocation3] sm:$0xff]
        %v708 = vld [vmem:[#allocation3 + $0x8] sm:$0xff]
        %v709 = vld [vmem:[%s3] sm:$0xff]
        %v710 = vld [vmem:[%s3 + $0x8] sm:$0xff]
        %v711 = vld [vmem:[%s3 + $0x10] sm:$0xff]
        %v712 = vld [vmem:[%s3 + $0x18] sm:$0xff]
        %v713 = vld [vmem:[%s3 + $0x20] sm:$0xff]
        %v714 = vld [vmem:[%s3 + $0x28] sm:$0xff]
        %v715 = vld [vmem:[%s3 + $0x30] sm:$0xff]
        %v716 = vld [vmem:[%s3 + $0x38] sm:$0xff]
        %v717 = vld [vmem:[%s4] sm:$0x3]
        %v718 = vpack.c.bf16 %v669, %v664
        %v719 = vpack.c.bf16 %v679, %v674
        %v720 = vpack.c.bf16 %v689, %v684
        %v721 = vpack.c.bf16 %v699, %v694
        %v723 = vlaneseq
        %v724 = vshrl.u32 %v723, 7
        %v725 = vsub.s32 0, %v724
        %v726 = vrot.slane %v717, %v725
        %v727 = vlaneseq
        %v728 = vshrl.u32 %v727, 7
        %v729 = vsub.s32 1, %v728
        %v730 = vrot.slane %v717, %v729
        %v735 = vunpack.c.l.b16 %v707
        %v736 = vunpack.c.h.b16 %v707
        %v737 = vunpack.c.l.b16 %v708
        %v738 = vunpack.c.h.b16 %v708
        %v739 = vpack.c.b16 %v737, %v735
        %v740 = vpack.c.b16 %v738, %v736
        %vm743 = vcmask 130048
        %v745 = vsel %vm743, %v718, 0
        %v748 = vsel %vm743, %v719, 0
        %v751 = vsel %vm743, %v720, 0
        %v754 = vsel %vm743, %v721, 0
        %756 = vmatprep.subr.bf16.mxu0 0
        %757 = vmatpush1.bf16.msra.mxu0 0
        %758 = vmatprep.subr.bf16.mxu0 0
        %759 = vmatpush1.bf16.msra.mxu0 0
        %760 = vmatprep.subr.bf16.mxu0 0
        %761 = vmatpush1.bf16.msra.mxu0 0
        %762 = vmatprep.subr.bf16.mxu0 0
        %763 = vmatpush1.bf16.msra.mxu0 0
        %764 = vmatprep.subr.bf16.mxu0 0
        %765 = vmatpush1.bf16.msra.mxu0 0
        %766 = vmatprep.subr.bf16.mxu0 0
        %767 = vmatpush1.bf16.msra.mxu0 0
        %768 = vmatprep.subr.bf16.mxu0 0
        %769 = vmatpush1.bf16.msra.mxu0 0
        %770 = vmatprep.subr.bf16.mxu0 %v740
        %771 = vmatpush1.bf16.msra.mxu0 %v739
        %772 = vmatprep.subr.bf16.mxu0 0
        %773 = vmatpush2.bf16.msra.mxu0 0
        %774 = vmatprep.subr.bf16.mxu0 0
        %775 = vmatpush2.bf16.msra.mxu0 0
        %776 = vmatprep.subr.bf16.mxu0 0
        %777 = vmatpush2.bf16.msra.mxu0 0
        %778 = vmatprep.subr.bf16.mxu0 0
        %779 = vmatpush2.bf16.msra.mxu0 0
        %780 = vmatprep.subr.bf16.mxu0 0
        %781 = vmatpush2.bf16.msra.mxu0 0
        %782 = vmatprep.subr.bf16.mxu0 0
        %783 = vmatpush2.bf16.msra.mxu0 0
        %784 = vmatprep.subr.bf16.mxu0 0
        %785 = vmatpush2.bf16.msra.mxu0 0
        %786 = vmatprep.subr.bf16.mxu0 0
        %787 = vmatpush2.bf16.msra.mxu0 0
        %788 = vmatprep.mubr.bf16.mxu0 0
        %789 = vmatmul.mubr.bf16.gmra.mxu0 %v745
        %v790 = vpop.f32.mrf.mxu0
        %v791 = vadd.f32 %v726, %v790
        %v792 = vpop.f32.mrf.mxu0
        %v793 = vadd.f32 %v730, %v792
        %v794 = vpop.f32.mrf.mxu0
        %v795 = vadd.f32 %v726, %v794
        %v796 = vpop.f32.mrf.mxu0
        %v797 = vadd.f32 %v730, %v796
        %798 = vmatprep.mubr.bf16.mxu0 0
        %799 = vmatmul.mubr.bf16.gmra.mxu0 %v748
        %v800 = vpop.f32.mrf.mxu0
        %v801 = vadd.f32 %v726, %v800
        %v802 = vpop.f32.mrf.mxu0
        %v803 = vadd.f32 %v730, %v802
        %v804 = vpop.f32.mrf.mxu0
        %v805 = vadd.f32 %v726, %v804
        %v806 = vpop.f32.mrf.mxu0
        %v807 = vadd.f32 %v730, %v806
        %808 = vmatprep.mubr.bf16.mxu0 0
        %809 = vmatmul.mubr.bf16.gmra.mxu0 %v751
        %v810 = vpop.f32.mrf.mxu0
        %v811 = vadd.f32 %v726, %v810
        %v812 = vpop.f32.mrf.mxu0
        %v813 = vadd.f32 %v730, %v812
        %v814 = vpop.f32.mrf.mxu0
        %v815 = vadd.f32 %v726, %v814
        %v816 = vpop.f32.mrf.mxu0
        %v817 = vadd.f32 %v730, %v816
        %818 = vmatprep.mubr.bf16.mxu0 0
        %819 = vmatmul.mubr.bf16.gmra.mxu0 %v754
        %v820 = vpop.f32.mrf.mxu0
        %v821 = vadd.f32 %v726, %v820
        %v822 = vpop.f32.mrf.mxu0
        %v823 = vadd.f32 %v730, %v822
        %v824 = vpop.f32.mrf.mxu0
        %v825 = vadd.f32 %v726, %v824
        %v826 = vpop.f32.mrf.mxu0
        %v827 = vadd.f32 %v730, %v826
        %828 = vdwg.mxu0
        %v829 = vsel %vm705, 1, 0
        %v830 = vsel %vm706, 1, 0
        %vm831 = vcmp.eq.s32.totalorder %v829, 1
        %vm832 = vcmp.eq.s32.totalorder %v830, 1
        %v849 = vrot.slane %v795, 7
        %vm850 = vcmask 1041409
        %v851 = vsel %vm850, %v849, %v791
        %v852 = vrot.slane %v801, 6
        %vm853 = vcmask 1042434
        %v854 = vsel %vm853, %v852, %v851
        %v855 = vrot.slane %v805, 5
        %vm856 = vcmask 1043459
        %v857 = vsel %vm856, %v855, %v854
        %v858 = vrot.slane %v811, 4
        %vm859 = vcmask 1044484
        %v860 = vsel %vm859, %v858, %v857
        %v861 = vrot.slane %v815, 3
        %vm862 = vcmask 1045509
        %v863 = vsel %vm862, %v861, %v860
        %v864 = vrot.slane %v821, 2
        %vm865 = vcmask 1046534
        %v866 = vsel %vm865, %v864, %v863
        %v867 = vrot.slane %v825, 1
        %vm868 = vcmask 1047559
        %v869 = vsel %vm868, %v867, %v866
        %v870 = vrot.slane %v797, 7
        %v871 = vsel %vm850, %v870, %v793
        %v872 = vrot.slane %v803, 6
        %v873 = vsel %vm853, %v872, %v871
        %v874 = vrot.slane %v807, 5
        %v875 = vsel %vm856, %v874, %v873
        %v876 = vrot.slane %v813, 4
        %v877 = vsel %vm859, %v876, %v875
        %v878 = vrot.slane %v817, 3
        %v879 = vsel %vm862, %v878, %v877
        %v880 = vrot.slane %v823, 2
        %v881 = vsel %vm865, %v880, %v879
        %v882 = vrot.slane %v827, 1
        %v883 = vsel %vm868, %v882, %v881
        %v886 = vrot.slane %v791, 7
        %v887 = vrot.slane %v795, 6
        %v888 = vsel %vm850, %v887, %v886
        %v889 = vrot.slane %v801, 5
        %v890 = vsel %vm853, %v889, %v888
        %v891 = vrot.slane %v805, 4
        %v892 = vsel %vm856, %v891, %v890
        %v893 = vrot.slane %v811, 3
        %v894 = vsel %vm859, %v893, %v892
        %v895 = vrot.slane %v815, 2
        %v896 = vsel %vm862, %v895, %v894
        %v897 = vrot.slane %v821, 1
        %v898 = vsel %vm865, %v897, %v896
        %v899 = vsel %vm868, %v825, %v898
        %v900 = vrot.slane %v793, 7
        %v901 = vrot.slane %v797, 6
        %v902 = vsel %vm850, %v901, %v900
        %v903 = vrot.slane %v803, 5
        %v904 = vsel %vm853, %v903, %v902
        %v905 = vrot.slane %v807, 4
        %v906 = vsel %vm856, %v905, %v904
        %v907 = vrot.slane %v813, 3
        %v908 = vsel %vm859, %v907, %v906
        %v909 = vrot.slane %v817, 2
        %v910 = vsel %vm862, %v909, %v908
        %v911 = vrot.slane %v823, 1
        %v912 = vsel %vm865, %v911, %v910
        %v913 = vsel %vm868, %v827, %v912
        %v916 = vsel %vm831, %v869, %v899
        %v917 = vsel %vm832, %v883, %v913
        %v926 = vunpack.c.l.b16 %v709
        %v927 = vunpack.c.h.b16 %v709
        %v928 = vunpack.c.l.b16 %v710
        %v929 = vunpack.c.h.b16 %v710
        %v930 = vunpack.c.l.b16 %v711
        %v931 = vunpack.c.h.b16 %v711
        %v932 = vunpack.c.l.b16 %v712
        %v933 = vunpack.c.h.b16 %v712
        %v934 = vunpack.c.l.b16 %v713
        %v935 = vunpack.c.h.b16 %v713
        %v936 = vunpack.c.l.b16 %v714
        %v937 = vunpack.c.h.b16 %v714
        %v938 = vunpack.c.l.b16 %v715
        %v939 = vunpack.c.h.b16 %v715
        %v940 = vunpack.c.l.b16 %v716
        %v941 = vunpack.c.h.b16 %v716
        %v942 = vpack.c.b16 %v928, %v926
        %v943 = vpack.c.b16 %v929, %v927
        %v944 = vpack.c.b16 %v932, %v930
        %v945 = vpack.c.b16 %v933, %v931
        %v946 = vpack.c.b16 %v936, %v934
        %v947 = vpack.c.b16 %v937, %v935
        %v948 = vpack.c.b16 %v940, %v938
        %v949 = vpack.c.b16 %v941, %v939
        %vm958 = vcmask 523264
        %v960 = vsel %vm958, 0, 0
        %962 = vmatprep.subr.bf16.mxu0 0
        %963 = vmatpush1.bf16.msra.mxu0 0
        %964 = vmatprep.subr.bf16.mxu0 0
        %965 = vmatpush1.bf16.msra.mxu0 0
        %966 = vmatprep.subr.bf16.mxu0 0
        %967 = vmatpush1.bf16.msra.mxu0 0
        %968 = vmatprep.subr.bf16.mxu0 0
        %969 = vmatpush1.bf16.msra.mxu0 0
        %970 = vmatprep.subr.bf16.mxu0 %v949
        %971 = vmatpush1.bf16.msra.mxu0 %v948
        %972 = vmatprep.subr.bf16.mxu0 %v947
        %973 = vmatpush1.bf16.msra.mxu0 %v946
        %974 = vmatprep.subr.bf16.mxu0 %v945
        %975 = vmatpush1.bf16.msra.mxu0 %v944
        %976 = vmatprep.subr.bf16.mxu0 %v943
        %977 = vmatpush1.bf16.msra.mxu0 %v942
        %978 = vmatprep.subr.bf16.mxu0 0
        %979 = vmatpush2.bf16.msra.mxu0 0
        %980 = vmatprep.subr.bf16.mxu0 0
        %981 = vmatpush2.bf16.msra.mxu0 0
        %982 = vmatprep.subr.bf16.mxu0 0
        %983 = vmatpush2.bf16.msra.mxu0 0
        %984 = vmatprep.subr.bf16.mxu0 0
        %985 = vmatpush2.bf16.msra.mxu0 0
        %986 = vmatprep.subr.bf16.mxu0 0
        %987 = vmatpush2.bf16.msra.mxu0 0
        %988 = vmatprep.subr.bf16.mxu0 0
        %989 = vmatpush2.bf16.msra.mxu0 0
        %990 = vmatprep.subr.bf16.mxu0 0
        %991 = vmatpush2.bf16.msra.mxu0 0
        %992 = vmatprep.subr.bf16.mxu0 0
        %993 = vmatpush2.bf16.msra.mxu0 0
        %994 = vmatprep.mubr.bf16.mxu0 0
        %995 = vmatmul.mubr.bf16.gmra.mxu0 %v960
        %v996 = vpop.f32.mrf.mxu0
        %v997 = vadd.f32 0.0, %v996
        %v998 = vpop.f32.mrf.mxu0
        %v999 = vadd.f32 0.0, %v998
        %v1000 = vpop.f32.mrf.mxu0
        %v1001 = vpop.f32.mrf.mxu0
        %1002 = vdwg.mxu0
        %v1003 = vadd.f32 %v916, %v997
        %v1004 = vadd.f32 %v917, %v999
        %v1005 = vxor.u32 %v1003, 2147483648
        %v1006 = vxor.u32 %v1004, 2147483648
        %v1007 = vmul.f32 %v1005, 1.442695
        %v1008 = vpow.pop %v1007
        %v1009 = vmul.f32 %v1006, 1.442695
        %v1010 = vpow.pop %v1009
        %v1011 = vadd.f32 %v1008, 1.0
        %v1012 = vadd.f32 %v1010, 1.0
        %v1013 = vrcp.pop %v1011
        %v1014 = vmul.f32 1.0, %v1013
        %v1015 = vrcp.pop %v1012
        %v1016 = vmul.f32 1.0, %v1015
        %v1017 = vtanh.pop %v1004
        %v1018 = vmul.f32 %v1014, 0.0
        %v1019 = vmul.f32 %v1014, %v1017
        %1021 = vrot.lane.b32.xlu0 %v1019, 64
        %v1022 = vpop.permute.xlu0 %1021
        %v1024 = vadd.f32 %v1018, %v1022
        %v1025 = vtanh.pop %v1024
        %v1026 = vmul.f32 %v1016, %v1025
        %v1027 = vrot.slane %v791, 1
        %v1028 = vsel %vm850, %v795, %v1027
        %v1029 = vrot.slane %v801, 7
        %v1030 = vsel %vm853, %v1029, %v1028
        %v1031 = vrot.slane %v805, 6
        %v1032 = vsel %vm856, %v1031, %v1030
        %v1033 = vrot.slane %v811, 5
        %v1034 = vsel %vm859, %v1033, %v1032
        %v1035 = vrot.slane %v815, 4
        %v1036 = vsel %vm862, %v1035, %v1034
        %v1037 = vrot.slane %v821, 3
        %v1038 = vsel %vm865, %v1037, %v1036
        %v1039 = vrot.slane %v825, 2
        %v1040 = vsel %vm868, %v1039, %v1038
        %v1041 = vrot.slane %v793, 1
        %v1042 = vsel %vm850, %v797, %v1041
        %v1043 = vrot.slane %v803, 7
        %v1044 = vsel %vm853, %v1043, %v1042
        %v1045 = vrot.slane %v807, 6
        %v1046 = vsel %vm856, %v1045, %v1044
        %v1047 = vrot.slane %v813, 5
        %v1048 = vsel %vm859, %v1047, %v1046
        %v1049 = vrot.slane %v817, 4
        %v1050 = vsel %vm862, %v1049, %v1048
        %v1051 = vrot.slane %v823, 3
        %v1052 = vsel %vm865, %v1051, %v1050
        %v1053 = vrot.slane %v827, 2
        %v1054 = vsel %vm868, %v1053, %v1052
        %v1057 = vrot.slane %v791, 6
        %v1058 = vrot.slane %v795, 5
        %v1059 = vsel %vm850, %v1058, %v1057
        %v1060 = vrot.slane %v801, 4
        %v1061 = vsel %vm853, %v1060, %v1059
        %v1062 = vrot.slane %v805, 3
        %v1063 = vsel %vm856, %v1062, %v1061
        %v1064 = vrot.slane %v811, 2
        %v1065 = vsel %vm859, %v1064, %v1063
        %v1066 = vrot.slane %v815, 1
        %v1067 = vsel %vm862, %v1066, %v1065
        %v1068 = vsel %vm865, %v821, %v1067
        %v1069 = vrot.slane %v825, 7
        %v1070 = vsel %vm868, %v1069, %v1068
        %v1071 = vrot.slane %v793, 6
        %v1072 = vrot.slane %v797, 5
        %v1073 = vsel %vm850, %v1072, %v1071
        %v1074 = vrot.slane %v803, 4
        %v1075 = vsel %vm853, %v1074, %v1073
        %v1076 = vrot.slane %v807, 3
        %v1077 = vsel %vm856, %v1076, %v1075
        %v1078 = vrot.slane %v813, 2
        %v1079 = vsel %vm859, %v1078, %v1077
        %v1080 = vrot.slane %v817, 1
        %v1081 = vsel %vm862, %v1080, %v1079
        %v1082 = vsel %vm865, %v823, %v1081
        %v1083 = vrot.slane %v827, 7
        %v1084 = vsel %vm868, %v1083, %v1082
        %v1087 = vsel %vm831, %v1040, %v1070
        %v1088 = vsel %vm832, %v1054, %v1084
        %v1089 = vpack.c.bf16 %v1026, %v1026
        %1091 = vrot.lane.b32.xlu0 %v1089, 64
        %v1092 = vpop.permute.xlu0 %1091
        %v1094 = vsel %vm958, %v1092, 0
        %1096 = vmatprep.subr.bf16.mxu0 0
        %1097 = vmatpush1.bf16.msra.mxu0 0
        %1098 = vmatprep.subr.bf16.mxu0 0
        %1099 = vmatpush1.bf16.msra.mxu0 0
        %1100 = vmatprep.subr.bf16.mxu0 0
        %1101 = vmatpush1.bf16.msra.mxu0 0
        %1102 = vmatprep.subr.bf16.mxu0 0
        %1103 = vmatpush1.bf16.msra.mxu0 0
        %1104 = vmatprep.subr.bf16.mxu0 %v949
        %1105 = vmatpush1.bf16.msra.mxu0 %v948
        %1106 = vmatprep.subr.bf16.mxu0 %v947
        %1107 = vmatpush1.bf16.msra.mxu0 %v946
        %1108 = vmatprep.subr.bf16.mxu0 %v945
        %1109 = vmatpush1.bf16.msra.mxu0 %v944
        %1110 = vmatprep.subr.bf16.mxu0 %v943
        %1111 = vmatpush1.bf16.msra.mxu0 %v942
        %1112 = vmatprep.subr.bf16.mxu0 0
        %1113 = vmatpush2.bf16.msra.mxu0 0
        %1114 = vmatprep.subr.bf16.mxu0 0
        %1115 = vmatpush2.bf16.msra.mxu0 0
        %1116 = vmatprep.subr.bf16.mxu0 0
        %1117 = vmatpush2.bf16.msra.mxu0 0
        %1118 = vmatprep.subr.bf16.mxu0 0
        %1119 = vmatpush2.bf16.msra.mxu0 0
        %1120 = vmatprep.subr.bf16.mxu0 0
        %1121 = vmatpush2.bf16.msra.mxu0 0
        %1122 = vmatprep.subr.bf16.mxu0 0
        %1123 = vmatpush2.bf16.msra.mxu0 0
        %1124 = vmatprep.subr.bf16.mxu0 0
        %1125 = vmatpush2.bf16.msra.mxu0 0
        %1126 = vmatprep.subr.bf16.mxu0 0
        %1127 = vmatpush2.bf16.msra.mxu0 0
        %1128 = vmatprep.mubr.bf16.mxu0 0
        %1129 = vmatmul.mubr.bf16.gmra.mxu0 %v1094
        %v1130 = vpop.f32.mrf.mxu0
        %v1131 = vadd.f32 0.0, %v1130
        %v1132 = vpop.f32.mrf.mxu0
        %v1133 = vadd.f32 0.0, %v1132
        %v1134 = vpop.f32.mrf.mxu0
        %v1135 = vpop.f32.mrf.mxu0
        %1136 = vdwg.mxu0
        %v1137 = vadd.f32 %v1087, %v1131
        %v1138 = vadd.f32 %v1088, %v1133
        %v1139 = vxor.u32 %v1137, 2147483648
        %v1140 = vxor.u32 %v1138, 2147483648
        %v1141 = vmul.f32 %v1139, 1.442695
        %v1142 = vpow.pop %v1141
        %v1143 = vmul.f32 %v1140, 1.442695
        %v1144 = vpow.pop %v1143
        %v1145 = vadd.f32 %v1142, 1.0
        %v1146 = vadd.f32 %v1144, 1.0
        %v1147 = vrcp.pop %v1145
        %v1148 = vmul.f32 1.0, %v1147
        %v1149 = vrcp.pop %v1146
        %v1150 = vmul.f32 1.0, %v1149
        %v1151 = vtanh.pop %v1138
        %v1152 = vmul.f32 %v1148, %v1024
        %v1153 = vmul.f32 %v1148, %v1151
        %1155 = vrot.lane.b32.xlu0 %v1153, 64
        %v1156 = vpop.permute.xlu0 %1155
        %v1158 = vadd.f32 %v1152, %v1156
        %v1159 = vtanh.pop %v1158
        %v1160 = vmul.f32 %v1150, %v1159
        %v1161 = vrot.slane %v791, 2
        %v1162 = vrot.slane %v795, 1
        %v1163 = vsel %vm850, %v1162, %v1161
        %v1164 = vsel %vm853, %v801, %v1163
        %v1165 = vrot.slane %v805, 7
        %v1166 = vsel %vm856, %v1165, %v1164
        %v1167 = vrot.slane %v811, 6
        %v1168 = vsel %vm859, %v1167, %v1166
        %v1169 = vrot.slane %v815, 5
        %v1170 = vsel %vm862, %v1169, %v1168
        %v1171 = vrot.slane %v821, 4
        %v1172 = vsel %vm865, %v1171, %v1170
        %v1173 = vrot.slane %v825, 3
        %v1174 = vsel %vm868, %v1173, %v1172
        %v1175 = vrot.slane %v793, 2
        %v1176 = vrot.slane %v797, 1
        %v1177 = vsel %vm850, %v1176, %v1175
        %v1178 = vsel %vm853, %v803, %v1177
        %v1179 = vrot.slane %v807, 7
        %v1180 = vsel %vm856, %v1179, %v1178
        %v1181 = vrot.slane %v813, 6
        %v1182 = vsel %vm859, %v1181, %v1180
        %v1183 = vrot.slane %v817, 5
        %v1184 = vsel %vm862, %v1183, %v1182
        %v1185 = vrot.slane %v823, 4
        %v1186 = vsel %vm865, %v1185, %v1184
        %v1187 = vrot.slane %v827, 3
        %v1188 = vsel %vm868, %v1187, %v1186
        %v1191 = vrot.slane %v791, 5
        %v1192 = vrot.slane %v795, 4
        %v1193 = vsel %vm850, %v1192, %v1191
        %v1194 = vrot.slane %v801, 3
        %v1195 = vsel %vm853, %v1194, %v1193
        %v1196 = vrot.slane %v805, 2
        %v1197 = vsel %vm856, %v1196, %v1195
        %v1198 = vrot.slane %v811, 1
        %v1199 = vsel %vm859, %v1198, %v1197
        %v1200 = vsel %vm862, %v815, %v1199
        %v1201 = vrot.slane %v821, 7
        %v1202 = vsel %vm865, %v1201, %v1200
        %v1203 = vrot.slane %v825, 6
        %v1204 = vsel %vm868, %v1203, %v1202
        %v1205 = vrot.slane %v793, 5
        %v1206 = vrot.slane %v797, 4
        %v1207 = vsel %vm850, %v1206, %v1205
        %v1208 = vrot.slane %v803, 3
        %v1209 = vsel %vm853, %v1208, %v1207
        %v1210 = vrot.slane %v807, 2
        %v1211 = vsel %vm856, %v1210, %v1209
        %v1212 = vrot.slane %v813, 1
        %v1213 = vsel %vm859, %v1212, %v1211
        %v1214 = vsel %vm862, %v817, %v1213
        %v1215 = vrot.slane %v823, 7
        %v1216 = vsel %vm865, %v1215, %v1214
        %v1217 = vrot.slane %v827, 6
        %v1218 = vsel %vm868, %v1217, %v1216
        %v1221 = vsel %vm831, %v1174, %v1204
        %v1222 = vsel %vm832, %v1188, %v1218
        %v1223 = vpack.c.bf16 %v1160, %v1160
        %1225 = vrot.lane.b32.xlu0 %v1223, 64
        %v1226 = vpop.permute.xlu0 %1225
        %v1228 = vsel %vm958, %v1226, 0
        %1230 = vmatprep.subr.bf16.mxu0 0
        %1231 = vmatpush1.bf16.msra.mxu0 0
        %1232 = vmatprep.subr.bf16.mxu0 0
        %1233 = vmatpush1.bf16.msra.mxu0 0
        %1234 = vmatprep.subr.bf16.mxu0 0
        %1235 = vmatpush1.bf16.msra.mxu0 0
        %1236 = vmatprep.subr.bf16.mxu0 0
        %1237 = vmatpush1.bf16.msra.mxu0 0
        %1238 = vmatprep.subr.bf16.mxu0 %v949
        %1239 = vmatpush1.bf16.msra.mxu0 %v948
        %1240 = vmatprep.subr.bf16.mxu0 %v947
        %1241 = vmatpush1.bf16.msra.mxu0 %v946
        %1242 = vmatprep.subr.bf16.mxu0 %v945
        %1243 = vmatpush1.bf16.msra.mxu0 %v944
        %1244 = vmatprep.subr.bf16.mxu0 %v943
        %1245 = vmatpush1.bf16.msra.mxu0 %v942
        %1246 = vmatprep.subr.bf16.mxu0 0
        %1247 = vmatpush2.bf16.msra.mxu0 0
        %1248 = vmatprep.subr.bf16.mxu0 0
        %1249 = vmatpush2.bf16.msra.mxu0 0
        %1250 = vmatprep.subr.bf16.mxu0 0
        %1251 = vmatpush2.bf16.msra.mxu0 0
        %1252 = vmatprep.subr.bf16.mxu0 0
        %1253 = vmatpush2.bf16.msra.mxu0 0
        %1254 = vmatprep.subr.bf16.mxu0 0
        %1255 = vmatpush2.bf16.msra.mxu0 0
        %1256 = vmatprep.subr.bf16.mxu0 0
        %1257 = vmatpush2.bf16.msra.mxu0 0
        %1258 = vmatprep.subr.bf16.mxu0 0
        %1259 = vmatpush2.bf16.msra.mxu0 0
        %1260 = vmatprep.subr.bf16.mxu0 0
        %1261 = vmatpush2.bf16.msra.mxu0 0
        %1262 = vmatprep.mubr.bf16.mxu0 0
        %1263 = vmatmul.mubr.bf16.gmra.mxu0 %v1228
        %v1264 = vpop.f32.mrf.mxu0
        %v1265 = vadd.f32 0.0, %v1264
        %v1266 = vpop.f32.mrf.mxu0
        %v1267 = vadd.f32 0.0, %v1266
        %v1268 = vpop.f32.mrf.mxu0
        %v1269 = vpop.f32.mrf.mxu0
        %1270 = vdwg.mxu0
        %v1271 = vadd.f32 %v1221, %v1265
        %v1272 = vadd.f32 %v1222, %v1267
        %v1273 = vxor.u32 %v1271, 2147483648
        %v1274 = vxor.u32 %v1272, 2147483648
        %v1275 = vmul.f32 %v1273, 1.442695
        %v1276 = vpow.pop %v1275
        %v1277 = vmul.f32 %v1274, 1.442695
        %v1278 = vpow.pop %v1277
        %v1279 = vadd.f32 %v1276, 1.0
        %v1280 = vadd.f32 %v1278, 1.0
        %v1281 = vrcp.pop %v1279
        %v1282 = vmul.f32 1.0, %v1281
        %v1283 = vrcp.pop %v1280
        %v1284 = vmul.f32 1.0, %v1283
        %v1285 = vtanh.pop %v1272
        %v1286 = vmul.f32 %v1282, %v1158
        %v1287 = vmul.f32 %v1282, %v1285
        %1289 = vrot.lane.b32.xlu0 %v1287, 64
        %v1290 = vpop.permute.xlu0 %1289
        %v1292 = vadd.f32 %v1286, %v1290
        %v1293 = vtanh.pop %v1292
        %v1294 = vmul.f32 %v1284, %v1293
        %v1295 = vrot.slane %v791, 3
        %v1296 = vrot.slane %v795, 2
        %v1297 = vsel %vm850, %v1296, %v1295
        %v1298 = vrot.slane %v801, 1
        %v1299 = vsel %vm853, %v1298, %v1297
        %v1300 = vsel %vm856, %v805, %v1299
        %v1301 = vrot.slane %v811, 7
        %v1302 = vsel %vm859, %v1301, %v1300
        %v1303 = vrot.slane %v815, 6
        %v1304 = vsel %vm862, %v1303, %v1302
        %v1305 = vrot.slane %v821, 5
        %v1306 = vsel %vm865, %v1305, %v1304
        %v1307 = vrot.slane %v825, 4
        %v1308 = vsel %vm868, %v1307, %v1306
        %v1309 = vrot.slane %v793, 3
        %v1310 = vrot.slane %v797, 2
        %v1311 = vsel %vm850, %v1310, %v1309
        %v1312 = vrot.slane %v803, 1
        %v1313 = vsel %vm853, %v1312, %v1311
        %v1314 = vsel %vm856, %v807, %v1313
        %v1315 = vrot.slane %v813, 7
        %v1316 = vsel %vm859, %v1315, %v1314
        %v1317 = vrot.slane %v817, 6
        %v1318 = vsel %vm862, %v1317, %v1316
        %v1319 = vrot.slane %v823, 5
        %v1320 = vsel %vm865, %v1319, %v1318
        %v1321 = vrot.slane %v827, 4
        %v1322 = vsel %vm868, %v1321, %v1320
        %v1325 = vrot.slane %v791, 4
        %v1326 = vrot.slane %v795, 3
        %v1327 = vsel %vm850, %v1326, %v1325
        %v1328 = vrot.slane %v801, 2
        %v1329 = vsel %vm853, %v1328, %v1327
        %v1330 = vrot.slane %v805, 1
        %v1331 = vsel %vm856, %v1330, %v1329
        %v1332 = vsel %vm859, %v811, %v1331
        %v1333 = vrot.slane %v815, 7
        %v1334 = vsel %vm862, %v1333, %v1332
        %v1335 = vrot.slane %v821, 6
        %v1336 = vsel %vm865, %v1335, %v1334
        %v1337 = vrot.slane %v825, 5
        %v1338 = vsel %vm868, %v1337, %v1336
        %v1339 = vrot.slane %v793, 4
        %v1340 = vrot.slane %v797, 3
        %v1341 = vsel %vm850, %v1340, %v1339
        %v1342 = vrot.slane %v803, 2
        %v1343 = vsel %vm853, %v1342, %v1341
        %v1344 = vrot.slane %v807, 1
        %v1345 = vsel %vm856, %v1344, %v1343
        %v1346 = vsel %vm859, %v813, %v1345
        %v1347 = vrot.slane %v817, 7
        %v1348 = vsel %vm862, %v1347, %v1346
        %v1349 = vrot.slane %v823, 6
        %v1350 = vsel %vm865, %v1349, %v1348
        %v1351 = vrot.slane %v827, 5
        %v1352 = vsel %vm868, %v1351, %v1350
        %v1355 = vsel %vm831, %v1308, %v1338
        %v1356 = vsel %vm832, %v1322, %v1352
        %v1357 = vpack.c.bf16 %v1294, %v1294
        %1359 = vrot.lane.b32.xlu0 %v1357, 64
        %v1360 = vpop.permute.xlu0 %1359
        %v1362 = vsel %vm958, %v1360, 0
        %1364 = vmatprep.subr.bf16.mxu0 0
        %1365 = vmatpush1.bf16.msra.mxu0 0
        %1366 = vmatprep.subr.bf16.mxu0 0
        %1367 = vmatpush1.bf16.msra.mxu0 0
        %1368 = vmatprep.subr.bf16.mxu0 0
        %1369 = vmatpush1.bf16.msra.mxu0 0
        %1370 = vmatprep.subr.bf16.mxu0 0
        %1371 = vmatpush1.bf16.msra.mxu0 0
        %1372 = vmatprep.subr.bf16.mxu0 %v949
        %1373 = vmatpush1.bf16.msra.mxu0 %v948
        %1374 = vmatprep.subr.bf16.mxu0 %v947
        %1375 = vmatpush1.bf16.msra.mxu0 %v946
        %1376 = vmatprep.subr.bf16.mxu0 %v945
        %1377 = vmatpush1.bf16.msra.mxu0 %v944
        %1378 = vmatprep.subr.bf16.mxu0 %v943
        %1379 = vmatpush1.bf16.msra.mxu0 %v942
        %1380 = vmatprep.subr.bf16.mxu0 0
        %1381 = vmatpush2.bf16.msra.mxu0 0
        %1382 = vmatprep.subr.bf16.mxu0 0
        %1383 = vmatpush2.bf16.msra.mxu0 0
        %1384 = vmatprep.subr.bf16.mxu0 0
        %1385 = vmatpush2.bf16.msra.mxu0 0
        %1386 = vmatprep.subr.bf16.mxu0 0
        %1387 = vmatpush2.bf16.msra.mxu0 0
        %1388 = vmatprep.subr.bf16.mxu0 0
        %1389 = vmatpush2.bf16.msra.mxu0 0
        %1390 = vmatprep.subr.bf16.mxu0 0
        %1391 = vmatpush2.bf16.msra.mxu0 0
        %1392 = vmatprep.subr.bf16.mxu0 0
        %1393 = vmatpush2.bf16.msra.mxu0 0
        %1394 = vmatprep.subr.bf16.mxu0 0
        %1395 = vmatpush2.bf16.msra.mxu0 0
        %1396 = vmatprep.mubr.bf16.mxu0 0
        %1397 = vmatmul.mubr.bf16.gmra.mxu0 %v1362
        %v1398 = vpop.f32.mrf.mxu0
        %v1399 = vadd.f32 0.0, %v1398
        %v1400 = vpop.f32.mrf.mxu0
        %v1401 = vadd.f32 0.0, %v1400
        %v1402 = vpop.f32.mrf.mxu0
        %v1403 = vpop.f32.mrf.mxu0
        %1404 = vdwg.mxu0
        %v1405 = vadd.f32 %v1355, %v1399
        %v1406 = vadd.f32 %v1356, %v1401
        %v1407 = vxor.u32 %v1405, 2147483648
        %v1408 = vxor.u32 %v1406, 2147483648
        %v1409 = vmul.f32 %v1407, 1.442695
        %v1410 = vpow.pop %v1409
        %v1411 = vmul.f32 %v1408, 1.442695
        %v1412 = vpow.pop %v1411
        %v1413 = vadd.f32 %v1410, 1.0
        %v1414 = vadd.f32 %v1412, 1.0
        %v1415 = vrcp.pop %v1413
        %v1416 = vmul.f32 1.0, %v1415
        %v1417 = vrcp.pop %v1414
        %v1418 = vmul.f32 1.0, %v1417
        %v1419 = vtanh.pop %v1406
        %v1420 = vmul.f32 %v1416, %v1292
        %v1421 = vmul.f32 %v1416, %v1419
        %1423 = vrot.lane.b32.xlu0 %v1421, 64
        %v1424 = vpop.permute.xlu0 %1423
        %v1426 = vadd.f32 %v1420, %v1424
        %v1427 = vtanh.pop %v1426
        %v1428 = vmul.f32 %v1418, %v1427
        %v1429 = vsel %vm831, %v1338, %v1308
        %v1430 = vsel %vm832, %v1352, %v1322
        %v1431 = vpack.c.bf16 %v1428, %v1428
        %1433 = vrot.lane.b32.xlu0 %v1431, 64
        %v1434 = vpop.permute.xlu0 %1433
        %v1436 = vsel %vm958, %v1434, 0
        %1438 = vmatprep.subr.bf16.mxu0 0
        %1439 = vmatpush1.bf16.msra.mxu0 0
        %1440 = vmatprep.subr.bf16.mxu0 0
        %1441 = vmatpush1.bf16.msra.mxu0 0
        %1442 = vmatprep.subr.bf16.mxu0 0
        %1443 = vmatpush1.bf16.msra.mxu0 0
        %1444 = vmatprep.subr.bf16.mxu0 0
        %1445 = vmatpush1.bf16.msra.mxu0 0
        %1446 = vmatprep.subr.bf16.mxu0 %v949
        %1447 = vmatpush1.bf16.msra.mxu0 %v948
        %1448 = vmatprep.subr.bf16.mxu0 %v947
        %1449 = vmatpush1.bf16.msra.mxu0 %v946
        %1450 = vmatprep.subr.bf16.mxu0 %v945
        %1451 = vmatpush1.bf16.msra.mxu0 %v944
        %1452 = vmatprep.subr.bf16.mxu0 %v943
        %1453 = vmatpush1.bf16.msra.mxu0 %v942
        %1454 = vmatprep.subr.bf16.mxu0 0
        %1455 = vmatpush2.bf16.msra.mxu0 0
        %1456 = vmatprep.subr.bf16.mxu0 0
        %1457 = vmatpush2.bf16.msra.mxu0 0
        %1458 = vmatprep.subr.bf16.mxu0 0
        %1459 = vmatpush2.bf16.msra.mxu0 0
        %1460 = vmatprep.subr.bf16.mxu0 0
        %1461 = vmatpush2.bf16.msra.mxu0 0
        %1462 = vmatprep.subr.bf16.mxu0 0
        %1463 = vmatpush2.bf16.msra.mxu0 0
        %1464 = vmatprep.subr.bf16.mxu0 0
        %1465 = vmatpush2.bf16.msra.mxu0 0
        %1466 = vmatprep.subr.bf16.mxu0 0
        %1467 = vmatpush2.bf16.msra.mxu0 0
        %1468 = vmatprep.subr.bf16.mxu0 0
        %1469 = vmatpush2.bf16.msra.mxu0 0
        %1470 = vmatprep.mubr.bf16.mxu0 0
        %1471 = vmatmul.mubr.bf16.gmra.mxu0 %v1436
        %v1472 = vpop.f32.mrf.mxu0
        %v1473 = vadd.f32 0.0, %v1472
        %v1474 = vpop.f32.mrf.mxu0
        %v1475 = vadd.f32 0.0, %v1474
        %v1476 = vpop.f32.mrf.mxu0
        %v1477 = vpop.f32.mrf.mxu0
        %1478 = vdwg.mxu0
        %v1479 = vadd.f32 %v1429, %v1473
        %v1480 = vadd.f32 %v1430, %v1475
        %v1481 = vxor.u32 %v1479, 2147483648
        %v1482 = vxor.u32 %v1480, 2147483648
        %v1483 = vmul.f32 %v1481, 1.442695
        %v1484 = vpow.pop %v1483
        %v1485 = vmul.f32 %v1482, 1.442695
        %v1486 = vpow.pop %v1485
        %v1487 = vadd.f32 %v1484, 1.0
        %v1488 = vadd.f32 %v1486, 1.0
        %v1489 = vrcp.pop %v1487
        %v1490 = vmul.f32 1.0, %v1489
        %v1491 = vrcp.pop %v1488
        %v1492 = vmul.f32 1.0, %v1491
        %v1493 = vtanh.pop %v1480
        %v1494 = vmul.f32 %v1490, %v1426
        %v1495 = vmul.f32 %v1490, %v1493
        %1497 = vrot.lane.b32.xlu0 %v1495, 64
        %v1498 = vpop.permute.xlu0 %1497
        %v1500 = vadd.f32 %v1494, %v1498
        %v1501 = vtanh.pop %v1500
        %v1502 = vmul.f32 %v1492, %v1501
        %v1503 = vsel %vm831, %v1204, %v1174
        %v1504 = vsel %vm832, %v1218, %v1188
        %v1505 = vpack.c.bf16 %v1502, %v1502
        %1507 = vrot.lane.b32.xlu0 %v1505, 64
        %v1508 = vpop.permute.xlu0 %1507
        %v1510 = vsel %vm958, %v1508, 0
        %1512 = vmatprep.subr.bf16.mxu0 0
        %1513 = vmatpush1.bf16.msra.mxu0 0
        %1514 = vmatprep.subr.bf16.mxu0 0
        %1515 = vmatpush1.bf16.msra.mxu0 0
        %1516 = vmatprep.subr.bf16.mxu0 0
        %1517 = vmatpush1.bf16.msra.mxu0 0
        %1518 = vmatprep.subr.bf16.mxu0 0
        %1519 = vmatpush1.bf16.msra.mxu0 0
        %1520 = vmatprep.subr.bf16.mxu0 %v949
        %1521 = vmatpush1.bf16.msra.mxu0 %v948
        %1522 = vmatprep.subr.bf16.mxu0 %v947
        %1523 = vmatpush1.bf16.msra.mxu0 %v946
        %1524 = vmatprep.subr.bf16.mxu0 %v945
        %1525 = vmatpush1.bf16.msra.mxu0 %v944
        %1526 = vmatprep.subr.bf16.mxu0 %v943
        %1527 = vmatpush1.bf16.msra.mxu0 %v942
        %1528 = vmatprep.subr.bf16.mxu0 0
        %1529 = vmatpush2.bf16.msra.mxu0 0
        %1530 = vmatprep.subr.bf16.mxu0 0
        %1531 = vmatpush2.bf16.msra.mxu0 0
        %1532 = vmatprep.subr.bf16.mxu0 0
        %1533 = vmatpush2.bf16.msra.mxu0 0
        %1534 = vmatprep.subr.bf16.mxu0 0
        %1535 = vmatpush2.bf16.msra.mxu0 0
        %1536 = vmatprep.subr.bf16.mxu0 0
        %1537 = vmatpush2.bf16.msra.mxu0 0
        %1538 = vmatprep.subr.bf16.mxu0 0
        %1539 = vmatpush2.bf16.msra.mxu0 0
        %1540 = vmatprep.subr.bf16.mxu0 0
        %1541 = vmatpush2.bf16.msra.mxu0 0
        %1542 = vmatprep.subr.bf16.mxu0 0
        %1543 = vmatpush2.bf16.msra.mxu0 0
        %1544 = vmatprep.mubr.bf16.mxu0 0
        %1545 = vmatmul.mubr.bf16.gmra.mxu0 %v1510
        %v1546 = vpop.f32.mrf.mxu0
        %v1547 = vadd.f32 0.0, %v1546
        %v1548 = vpop.f32.mrf.mxu0
        %v1549 = vadd.f32 0.0, %v1548
        %v1550 = vpop.f32.mrf.mxu0
        %v1551 = vpop.f32.mrf.mxu0
        %1552 = vdwg.mxu0
        %v1553 = vadd.f32 %v1503, %v1547
        %v1554 = vadd.f32 %v1504, %v1549
        %v1555 = vxor.u32 %v1553, 2147483648
        %v1556 = vxor.u32 %v1554, 2147483648
        %v1557 = vmul.f32 %v1555, 1.442695
        %v1558 = vpow.pop %v1557
        %v1559 = vmul.f32 %v1556, 1.442695
        %v1560 = vpow.pop %v1559
        %v1561 = vadd.f32 %v1558, 1.0
        %v1562 = vadd.f32 %v1560, 1.0
        %v1563 = vrcp.pop %v1561
        %v1564 = vmul.f32 1.0, %v1563
        %v1565 = vrcp.pop %v1562
        %v1566 = vmul.f32 1.0, %v1565
        %v1567 = vtanh.pop %v1554
        %v1568 = vmul.f32 %v1564, %v1500
        %v1569 = vmul.f32 %v1564, %v1567
        %1571 = vrot.lane.b32.xlu0 %v1569, 64
        %v1572 = vpop.permute.xlu0 %1571
        %v1574 = vadd.f32 %v1568, %v1572
        %v1575 = vtanh.pop %v1574
        %v1576 = vmul.f32 %v1566, %v1575
        %v1577 = vsel %vm831, %v1070, %v1040
        %v1578 = vsel %vm832, %v1084, %v1054
        %v1579 = vpack.c.bf16 %v1576, %v1576
        %1581 = vrot.lane.b32.xlu0 %v1579, 64
        %v1582 = vpop.permute.xlu0 %1581
        %v1584 = vsel %vm958, %v1582, 0
        %1586 = vmatprep.subr.bf16.mxu0 0
        %1587 = vmatpush1.bf16.msra.mxu0 0
        %1588 = vmatprep.subr.bf16.mxu0 0
        %1589 = vmatpush1.bf16.msra.mxu0 0
        %1590 = vmatprep.subr.bf16.mxu0 0
        %1591 = vmatpush1.bf16.msra.mxu0 0
        %1592 = vmatprep.subr.bf16.mxu0 0
        %1593 = vmatpush1.bf16.msra.mxu0 0
        %1594 = vmatprep.subr.bf16.mxu0 %v949
        %1595 = vmatpush1.bf16.msra.mxu0 %v948
        %1596 = vmatprep.subr.bf16.mxu0 %v947
        %1597 = vmatpush1.bf16.msra.mxu0 %v946
        %1598 = vmatprep.subr.bf16.mxu0 %v945
        %1599 = vmatpush1.bf16.msra.mxu0 %v944
        %1600 = vmatprep.subr.bf16.mxu0 %v943
        %1601 = vmatpush1.bf16.msra.mxu0 %v942
        %1602 = vmatprep.subr.bf16.mxu0 0
        %1603 = vmatpush2.bf16.msra.mxu0 0
        %1604 = vmatprep.subr.bf16.mxu0 0
        %1605 = vmatpush2.bf16.msra.mxu0 0
        %1606 = vmatprep.subr.bf16.mxu0 0
        %1607 = vmatpush2.bf16.msra.mxu0 0
        %1608 = vmatprep.subr.bf16.mxu0 0
        %1609 = vmatpush2.bf16.msra.mxu0 0
        %1610 = vmatprep.subr.bf16.mxu0 0
        %1611 = vmatpush2.bf16.msra.mxu0 0
        %1612 = vmatprep.subr.bf16.mxu0 0
        %1613 = vmatpush2.bf16.msra.mxu0 0
        %1614 = vmatprep.subr.bf16.mxu0 0
        %1615 = vmatpush2.bf16.msra.mxu0 0
        %1616 = vmatprep.subr.bf16.mxu0 0
        %1617 = vmatpush2.bf16.msra.mxu0 0
        %1618 = vmatprep.mubr.bf16.mxu0 0
        %1619 = vmatmul.mubr.bf16.gmra.mxu0 %v1584
        %v1620 = vpop.f32.mrf.mxu0
        %v1621 = vadd.f32 0.0, %v1620
        %v1622 = vpop.f32.mrf.mxu0
        %v1623 = vadd.f32 0.0, %v1622
        %v1624 = vpop.f32.mrf.mxu0
        %v1625 = vpop.f32.mrf.mxu0
        %1626 = vdwg.mxu0
        %v1627 = vadd.f32 %v1577, %v1621
        %v1628 = vadd.f32 %v1578, %v1623
        %v1629 = vxor.u32 %v1627, 2147483648
        %v1630 = vxor.u32 %v1628, 2147483648
        %v1631 = vmul.f32 %v1629, 1.442695
        %v1632 = vpow.pop %v1631
        %v1633 = vmul.f32 %v1630, 1.442695
        %v1634 = vpow.pop %v1633
        %v1635 = vadd.f32 %v1632, 1.0
        %v1636 = vadd.f32 %v1634, 1.0
        %v1637 = vrcp.pop %v1635
        %v1638 = vmul.f32 1.0, %v1637
        %v1639 = vrcp.pop %v1636
        %v1640 = vmul.f32 1.0, %v1639
        %v1641 = vtanh.pop %v1628
        %v1642 = vmul.f32 %v1638, %v1574
        %v1643 = vmul.f32 %v1638, %v1641
        %1645 = vrot.lane.b32.xlu0 %v1643, 64
        %v1646 = vpop.permute.xlu0 %1645
        %v1648 = vadd.f32 %v1642, %v1646
        %v1649 = vtanh.pop %v1648
        %v1650 = vmul.f32 %v1640, %v1649
        %v1651 = vsel %vm831, %v899, %v869
        %v1652 = vsel %vm832, %v913, %v883
        %v1653 = vpack.c.bf16 %v1650, %v1650
        %1655 = vrot.lane.b32.xlu0 %v1653, 64
        %v1656 = vpop.permute.xlu0 %1655
        %v1658 = vsel %vm958, %v1656, 0
        %1660 = vmatprep.subr.bf16.mxu0 0
        %1661 = vmatpush1.bf16.msra.mxu0 0
        %1662 = vmatprep.subr.bf16.mxu0 0
        %1663 = vmatpush1.bf16.msra.mxu0 0
        %1664 = vmatprep.subr.bf16.mxu0 0
        %1665 = vmatpush1.bf16.msra.mxu0 0
        %1666 = vmatprep.subr.bf16.mxu0 0
        %1667 = vmatpush1.bf16.msra.mxu0 0
        %1668 = vmatprep.subr.bf16.mxu0 %v949
        %1669 = vmatpush1.bf16.msra.mxu0 %v948
        %1670 = vmatprep.subr.bf16.mxu0 %v947
        %1671 = vmatpush1.bf16.msra.mxu0 %v946
        %1672 = vmatprep.subr.bf16.mxu0 %v945
        %1673 = vmatpush1.bf16.msra.mxu0 %v944
        %1674 = vmatprep.subr.bf16.mxu0 %v943
        %1675 = vmatpush1.bf16.msra.mxu0 %v942
        %1676 = vmatprep.subr.bf16.mxu0 0
        %1677 = vmatpush2.bf16.msra.mxu0 0
        %1678 = vmatprep.subr.bf16.mxu0 0
        %1679 = vmatpush2.bf16.msra.mxu0 0
        %1680 = vmatprep.subr.bf16.mxu0 0
        %1681 = vmatpush2.bf16.msra.mxu0 0
        %1682 = vmatprep.subr.bf16.mxu0 0
        %1683 = vmatpush2.bf16.msra.mxu0 0
        %1684 = vmatprep.subr.bf16.mxu0 0
        %1685 = vmatpush2.bf16.msra.mxu0 0
        %1686 = vmatprep.subr.bf16.mxu0 0
        %1687 = vmatpush2.bf16.msra.mxu0 0
        %1688 = vmatprep.subr.bf16.mxu0 0
        %1689 = vmatpush2.bf16.msra.mxu0 0
        %1690 = vmatprep.subr.bf16.mxu0 0
        %1691 = vmatpush2.bf16.msra.mxu0 0
        %1692 = vmatprep.mubr.bf16.mxu0 0
        %1693 = vmatmul.mubr.bf16.gmra.mxu0 %v1658
        %v1694 = vpop.f32.mrf.mxu0
        %v1695 = vadd.f32 0.0, %v1694
        %v1696 = vpop.f32.mrf.mxu0
        %v1697 = vadd.f32 0.0, %v1696
        %v1698 = vpop.f32.mrf.mxu0
        %v1699 = vpop.f32.mrf.mxu0
        %1700 = vdwg.mxu0
        %v1701 = vadd.f32 %v1651, %v1695
        %v1702 = vadd.f32 %v1652, %v1697
        %v1703 = vxor.u32 %v1701, 2147483648
        %v1704 = vxor.u32 %v1702, 2147483648
        %v1705 = vmul.f32 %v1703, 1.442695
        %v1706 = vpow.pop %v1705
        %v1707 = vmul.f32 %v1704, 1.442695
        %v1708 = vpow.pop %v1707
        %v1709 = vadd.f32 %v1706, 1.0
        %v1710 = vadd.f32 %v1708, 1.0
        %v1711 = vrcp.pop %v1709
        %v1712 = vmul.f32 1.0, %v1711
        %v1713 = vrcp.pop %v1710
        %v1714 = vmul.f32 1.0, %v1713
        %v1715 = vtanh.pop %v1702
        %v1716 = vmul.f32 %v1712, %v1648
        %v1717 = vmul.f32 %v1712, %v1715
        %1719 = vrot.lane.b32.xlu0 %v1717, 64
        %v1720 = vpop.permute.xlu0 %1719
        %v1722 = vadd.f32 %v1716, %v1720
        %v1723 = vtanh.pop %v1722
        %v1724 = vmul.f32 %v1714, %v1723
        %v1726 = vcombine.high %v1026, %v1026
        %v1728 = vunpack.c.l.s4 1966171168
        %v1729 = vunpack.c.0.s8 %v1728
        %v1730 = vlaneseq
        %v1731 = vshrl.u32 %v1730, 7
        %v1732 = vsub.s32 %v1729, %v1731
        %v1733 = vrot.slane %v1026, %v1732
        %v1735 = vunpack.c.l.s4 1966171168
        %v1736 = vunpack.c.0.s8 %v1735
        %v1737 = vlaneseq
        %v1738 = vshrl.u32 %v1737, 7
        %v1739 = vsub.s32 %v1736, %v1738
        %v1740 = vrot.slane %v1726, %v1739
        %v1741 = vcombine.high %v1733, %v1733
        %v1742 = vcombine.high %v1740, %v1740
        %v1744 = vunpack.c.l.s4 1966171168
        %v1745 = vunpack.c.0.s8 %v1744
        %v1746 = vlaneseq
        %v1747 = vshrl.u32 %v1746, 7
        %v1748 = vsub.s32 %v1745, %v1747
        %v1749 = vrot.slane %v1733, %v1748
        %v1751 = vunpack.c.l.s4 1966171168
        %v1752 = vunpack.c.0.s8 %v1751
        %v1753 = vlaneseq
        %v1754 = vshrl.u32 %v1753, 7
        %v1755 = vsub.s32 %v1752, %v1754
        %v1756 = vrot.slane %v1740, %v1755
        %v1758 = vunpack.c.l.s4 1966171168
        %v1759 = vunpack.c.0.s8 %v1758
        %v1760 = vlaneseq
        %v1761 = vshrl.u32 %v1760, 7
        %v1762 = vsub.s32 %v1759, %v1761
        %v1763 = vrot.slane %v1741, %v1762
        %v1765 = vunpack.c.l.s4 1966171168
        %v1766 = vunpack.c.0.s8 %v1765
        %v1767 = vlaneseq
        %v1768 = vshrl.u32 %v1767, 7
        %v1769 = vsub.s32 %v1766, %v1768
        %v1770 = vrot.slane %v1742, %v1769
        %v1771 = vcombine.high %v1749, %v1749
        %v1772 = vcombine.high %v1756, %v1756
        %v1773 = vcombine.high %v1763, %v1763
        %v1774 = vcombine.high %v1770, %v1770
        %v1784 = vcombine.high %v1160, %v1160
        %v1786 = vunpack.c.l.s4 1966171168
        %v1787 = vunpack.c.0.s8 %v1786
        %v1788 = vlaneseq
        %v1789 = vshrl.u32 %v1788, 7
        %v1790 = vsub.s32 %v1787, %v1789
        %v1791 = vrot.slane %v1160, %v1790
        %v1793 = vunpack.c.l.s4 1966171168
        %v1794 = vunpack.c.0.s8 %v1793
        %v1795 = vlaneseq
        %v1796 = vshrl.u32 %v1795, 7
        %v1797 = vsub.s32 %v1794, %v1796
        %v1798 = vrot.slane %v1784, %v1797
        %v1799 = vcombine.high %v1791, %v1791
        %v1800 = vcombine.high %v1798, %v1798
        %v1802 = vunpack.c.l.s4 1966171168
        %v1803 = vunpack.c.0.s8 %v1802
        %v1804 = vlaneseq
        %v1805 = vshrl.u32 %v1804, 7
        %v1806 = vsub.s32 %v1803, %v1805
        %v1807 = vrot.slane %v1791, %v1806
        %v1809 = vunpack.c.l.s4 1966171168
        %v1810 = vunpack.c.0.s8 %v1809
        %v1811 = vlaneseq
        %v1812 = vshrl.u32 %v1811, 7
        %v1813 = vsub.s32 %v1810, %v1812
        %v1814 = vrot.slane %v1798, %v1813
        %v1816 = vunpack.c.l.s4 1966171168
        %v1817 = vunpack.c.0.s8 %v1816
        %v1818 = vlaneseq
        %v1819 = vshrl.u32 %v1818, 7
        %v1820 = vsub.s32 %v1817, %v1819
        %v1821 = vrot.slane %v1799, %v1820
        %v1823 = vunpack.c.l.s4 1966171168
        %v1824 = vunpack.c.0.s8 %v1823
        %v1825 = vlaneseq
        %v1826 = vshrl.u32 %v1825, 7
        %v1827 = vsub.s32 %v1824, %v1826
        %v1828 = vrot.slane %v1800, %v1827
        %v1829 = vcombine.high %v1807, %v1807
        %v1830 = vcombine.high %v1814, %v1814
        %v1831 = vcombine.high %v1821, %v1821
        %v1832 = vcombine.high %v1828, %v1828
        %v1834 = vcombine.high %v1294, %v1294
        %v1836 = vunpack.c.l.s4 1966171168
        %v1837 = vunpack.c.0.s8 %v1836
        %v1838 = vlaneseq
        %v1839 = vshrl.u32 %v1838, 7
        %v1840 = vsub.s32 %v1837, %v1839
        %v1841 = vrot.slane %v1294, %v1840
        %v1843 = vunpack.c.l.s4 1966171168
        %v1844 = vunpack.c.0.s8 %v1843
        %v1845 = vlaneseq
        %v1846 = vshrl.u32 %v1845, 7
        %v1847 = vsub.s32 %v1844, %v1846
        %v1848 = vrot.slane %v1834, %v1847
        %v1849 = vcombine.high %v1841, %v1841
        %v1850 = vcombine.high %v1848, %v1848
        %v1852 = vunpack.c.l.s4 1966171168
        %v1853 = vunpack.c.0.s8 %v1852
        %v1854 = vlaneseq
        %v1855 = vshrl.u32 %v1854, 7
        %v1856 = vsub.s32 %v1853, %v1855
        %v1857 = vrot.slane %v1841, %v1856
        %v1859 = vunpack.c.l.s4 1966171168
        %v1860 = vunpack.c.0.s8 %v1859
        %v1861 = vlaneseq
        %v1862 = vshrl.u32 %v1861, 7
        %v1863 = vsub.s32 %v1860, %v1862
        %v1864 = vrot.slane %v1848, %v1863
        %v1866 = vunpack.c.l.s4 1966171168
        %v1867 = vunpack.c.0.s8 %v1866
        %v1868 = vlaneseq
        %v1869 = vshrl.u32 %v1868, 7
        %v1870 = vsub.s32 %v1867, %v1869
        %v1871 = vrot.slane %v1849, %v1870
        %v1873 = vunpack.c.l.s4 1966171168
        %v1874 = vunpack.c.0.s8 %v1873
        %v1875 = vlaneseq
        %v1876 = vshrl.u32 %v1875, 7
        %v1877 = vsub.s32 %v1874, %v1876
        %v1878 = vrot.slane %v1850, %v1877
        %v1879 = vcombine.high %v1857, %v1857
        %v1880 = vcombine.high %v1864, %v1864
        %v1881 = vcombine.high %v1871, %v1871
        %v1882 = vcombine.high %v1878, %v1878
        %v1884 = vcombine.high %v1428, %v1428
        %v1886 = vunpack.c.l.s4 1966171168
        %v1887 = vunpack.c.0.s8 %v1886
        %v1888 = vlaneseq
        %v1889 = vshrl.u32 %v1888, 7
        %v1890 = vsub.s32 %v1887, %v1889
        %v1891 = vrot.slane %v1428, %v1890
        %v1893 = vunpack.c.l.s4 1966171168
        %v1894 = vunpack.c.0.s8 %v1893
        %v1895 = vlaneseq
        %v1896 = vshrl.u32 %v1895, 7
        %v1897 = vsub.s32 %v1894, %v1896
        %v1898 = vrot.slane %v1884, %v1897
        %v1899 = vcombine.high %v1891, %v1891
        %v1900 = vcombine.high %v1898, %v1898
        %v1902 = vunpack.c.l.s4 1966171168
        %v1903 = vunpack.c.0.s8 %v1902
        %v1904 = vlaneseq
        %v1905 = vshrl.u32 %v1904, 7
        %v1906 = vsub.s32 %v1903, %v1905
        %v1907 = vrot.slane %v1891, %v1906
        %v1909 = vunpack.c.l.s4 1966171168
        %v1910 = vunpack.c.0.s8 %v1909
        %v1911 = vlaneseq
        %v1912 = vshrl.u32 %v1911, 7
        %v1913 = vsub.s32 %v1910, %v1912
        %v1914 = vrot.slane %v1898, %v1913
        %v1916 = vunpack.c.l.s4 1966171168
        %v1917 = vunpack.c.0.s8 %v1916
        %v1918 = vlaneseq
        %v1919 = vshrl.u32 %v1918, 7
        %v1920 = vsub.s32 %v1917, %v1919
        %v1921 = vrot.slane %v1899, %v1920
        %v1923 = vunpack.c.l.s4 1966171168
        %v1924 = vunpack.c.0.s8 %v1923
        %v1925 = vlaneseq
        %v1926 = vshrl.u32 %v1925, 7
        %v1927 = vsub.s32 %v1924, %v1926
        %v1928 = vrot.slane %v1900, %v1927
        %v1929 = vcombine.high %v1907, %v1907
        %v1930 = vcombine.high %v1914, %v1914
        %v1931 = vcombine.high %v1921, %v1921
        %v1932 = vcombine.high %v1928, %v1928
        %v1934 = vcombine.high %v1502, %v1502
        %v1936 = vunpack.c.l.s4 1966171168
        %v1937 = vunpack.c.0.s8 %v1936
        %v1938 = vlaneseq
        %v1939 = vshrl.u32 %v1938, 7
        %v1940 = vsub.s32 %v1937, %v1939
        %v1941 = vrot.slane %v1502, %v1940
        %v1943 = vunpack.c.l.s4 1966171168
        %v1944 = vunpack.c.0.s8 %v1943
        %v1945 = vlaneseq
        %v1946 = vshrl.u32 %v1945, 7
        %v1947 = vsub.s32 %v1944, %v1946
        %v1948 = vrot.slane %v1934, %v1947
        %v1949 = vcombine.high %v1941, %v1941
        %v1950 = vcombine.high %v1948, %v1948
        %v1952 = vunpack.c.l.s4 1966171168
        %v1953 = vunpack.c.0.s8 %v1952
        %v1954 = vlaneseq
        %v1955 = vshrl.u32 %v1954, 7
        %v1956 = vsub.s32 %v1953, %v1955
        %v1957 = vrot.slane %v1941, %v1956
        %v1959 = vunpack.c.l.s4 1966171168
        %v1960 = vunpack.c.0.s8 %v1959
        %v1961 = vlaneseq
        %v1962 = vshrl.u32 %v1961, 7
        %v1963 = vsub.s32 %v1960, %v1962
        %v1964 = vrot.slane %v1948, %v1963
        %v1966 = vunpack.c.l.s4 1966171168
        %v1967 = vunpack.c.0.s8 %v1966
        %v1968 = vlaneseq
        %v1969 = vshrl.u32 %v1968, 7
        %v1970 = vsub.s32 %v1967, %v1969
        %v1971 = vrot.slane %v1949, %v1970
        %v1973 = vunpack.c.l.s4 1966171168
        %v1974 = vunpack.c.0.s8 %v1973
        %v1975 = vlaneseq
        %v1976 = vshrl.u32 %v1975, 7
        %v1977 = vsub.s32 %v1974, %v1976
        %v1978 = vrot.slane %v1950, %v1977
        %v1979 = vcombine.high %v1957, %v1957
        %v1980 = vcombine.high %v1964, %v1964
        %v1981 = vcombine.high %v1971, %v1971
        %v1982 = vcombine.high %v1978, %v1978
        %v1984 = vcombine.high %v1576, %v1576
        %v1986 = vunpack.c.l.s4 1966171168
        %v1987 = vunpack.c.0.s8 %v1986
        %v1988 = vlaneseq
        %v1989 = vshrl.u32 %v1988, 7
        %v1990 = vsub.s32 %v1987, %v1989
        %v1991 = vrot.slane %v1576, %v1990
        %v1993 = vunpack.c.l.s4 1966171168
        %v1994 = vunpack.c.0.s8 %v1993
        %v1995 = vlaneseq
        %v1996 = vshrl.u32 %v1995, 7
        %v1997 = vsub.s32 %v1994, %v1996
        %v1998 = vrot.slane %v1984, %v1997
        %v1999 = vcombine.high %v1991, %v1991
        %v2000 = vcombine.high %v1998, %v1998
        %v2002 = vunpack.c.l.s4 1966171168
        %v2003 = vunpack.c.0.s8 %v2002
        %v2004 = vlaneseq
        %v2005 = vshrl.u32 %v2004, 7
        %v2006 = vsub.s32 %v2003, %v2005
        %v2007 = vrot.slane %v1991, %v2006
        %v2009 = vunpack.c.l.s4 1966171168
        %v2010 = vunpack.c.0.s8 %v2009
        %v2011 = vlaneseq
        %v2012 = vshrl.u32 %v2011, 7
        %v2013 = vsub.s32 %v2010, %v2012
        %v2014 = vrot.slane %v1998, %v2013
        %v2016 = vunpack.c.l.s4 1966171168
        %v2017 = vunpack.c.0.s8 %v2016
        %v2018 = vlaneseq
        %v2019 = vshrl.u32 %v2018, 7
        %v2020 = vsub.s32 %v2017, %v2019
        %v2021 = vrot.slane %v1999, %v2020
        %v2023 = vunpack.c.l.s4 1966171168
        %v2024 = vunpack.c.0.s8 %v2023
        %v2025 = vlaneseq
        %v2026 = vshrl.u32 %v2025, 7
        %v2027 = vsub.s32 %v2024, %v2026
        %v2028 = vrot.slane %v2000, %v2027
        %v2029 = vcombine.high %v2007, %v2007
        %v2030 = vcombine.high %v2014, %v2014
        %v2031 = vcombine.high %v2021, %v2021
        %v2032 = vcombine.high %v2028, %v2028
        %v2034 = vcombine.high %v1650, %v1650
        %v2036 = vunpack.c.l.s4 1966171168
        %v2037 = vunpack.c.0.s8 %v2036
        %v2038 = vlaneseq
        %v2039 = vshrl.u32 %v2038, 7
        %v2040 = vsub.s32 %v2037, %v2039
        %v2041 = vrot.slane %v1650, %v2040
        %v2043 = vunpack.c.l.s4 1966171168
        %v2044 = vunpack.c.0.s8 %v2043
        %v2045 = vlaneseq
        %v2046 = vshrl.u32 %v2045, 7
        %v2047 = vsub.s32 %v2044, %v2046
        %v2048 = vrot.slane %v2034, %v2047
        %v2049 = vcombine.high %v2041, %v2041
        %v2050 = vcombine.high %v2048, %v2048
        %v2052 = vunpack.c.l.s4 1966171168
        %v2053 = vunpack.c.0.s8 %v2052
        %v2054 = vlaneseq
        %v2055 = vshrl.u32 %v2054, 7
        %v2056 = vsub.s32 %v2053, %v2055
        %v2057 = vrot.slane %v2041, %v2056
        %v2059 = vunpack.c.l.s4 1966171168
        %v2060 = vunpack.c.0.s8 %v2059
        %v2061 = vlaneseq
        %v2062 = vshrl.u32 %v2061, 7
        %v2063 = vsub.s32 %v2060, %v2062
        %v2064 = vrot.slane %v2048, %v2063
        %v2066 = vunpack.c.l.s4 1966171168
        %v2067 = vunpack.c.0.s8 %v2066
        %v2068 = vlaneseq
        %v2069 = vshrl.u32 %v2068, 7
        %v2070 = vsub.s32 %v2067, %v2069
        %v2071 = vrot.slane %v2049, %v2070
        %v2073 = vunpack.c.l.s4 1966171168
        %v2074 = vunpack.c.0.s8 %v2073
        %v2075 = vlaneseq
        %v2076 = vshrl.u32 %v2075, 7
        %v2077 = vsub.s32 %v2074, %v2076
        %v2078 = vrot.slane %v2050, %v2077
        %v2079 = vcombine.high %v2057, %v2057
        %v2080 = vcombine.high %v2064, %v2064
        %v2081 = vcombine.high %v2071, %v2071
        %v2082 = vcombine.high %v2078, %v2078
        %v2084 = vcombine.high %v1724, %v1724
        %v2086 = vunpack.c.l.s4 1966171168
        %v2087 = vunpack.c.0.s8 %v2086
        %v2088 = vlaneseq
        %v2089 = vshrl.u32 %v2088, 7
        %v2090 = vsub.s32 %v2087, %v2089
        %v2091 = vrot.slane %v1724, %v2090
        %v2093 = vunpack.c.l.s4 1966171168
        %v2094 = vunpack.c.0.s8 %v2093
        %v2095 = vlaneseq
        %v2096 = vshrl.u32 %v2095, 7
        %v2097 = vsub.s32 %v2094, %v2096
        %v2098 = vrot.slane %v2084, %v2097
        %v2099 = vcombine.high %v2091, %v2091
        %v2100 = vcombine.high %v2098, %v2098
        %v2102 = vunpack.c.l.s4 1966171168
        %v2103 = vunpack.c.0.s8 %v2102
        %v2104 = vlaneseq
        %v2105 = vshrl.u32 %v2104, 7
        %v2106 = vsub.s32 %v2103, %v2105
        %v2107 = vrot.slane %v2091, %v2106
        %v2109 = vunpack.c.l.s4 1966171168
        %v2110 = vunpack.c.0.s8 %v2109
        %v2111 = vlaneseq
        %v2112 = vshrl.u32 %v2111, 7
        %v2113 = vsub.s32 %v2110, %v2112
        %v2114 = vrot.slane %v2098, %v2113
        %v2116 = vunpack.c.l.s4 1966171168
        %v2117 = vunpack.c.0.s8 %v2116
        %v2118 = vlaneseq
        %v2119 = vshrl.u32 %v2118, 7
        %v2120 = vsub.s32 %v2117, %v2119
        %v2121 = vrot.slane %v2099, %v2120
        %v2123 = vunpack.c.l.s4 1966171168
        %v2124 = vunpack.c.0.s8 %v2123
        %v2125 = vlaneseq
        %v2126 = vshrl.u32 %v2125, 7
        %v2127 = vsub.s32 %v2124, %v2126
        %v2128 = vrot.slane %v2100, %v2127
        %v2129 = vcombine.high %v2107, %v2107
        %v2130 = vcombine.high %v2114, %v2114
        %v2131 = vcombine.high %v2121, %v2121
        %v2132 = vcombine.high %v2128, %v2128
        %v2141 = vlaneseq
        %v2142 = vshrl.u32 %v2141, 7
        %v2143 = vsub.s32 0, %v2142
        %v2144 = vrot.slane %v1807, %v2143
        %v2145 = vlaneseq
        %v2146 = vshrl.u32 %v2145, 7
        %v2147 = vsub.s32 0, %v2146
        %v2148 = vrot.slane %v1821, %v2147
        %v2149 = vlaneseq
        %v2150 = vshrl.u32 %v2149, 7
        %v2151 = vsub.s32 0, %v2150
        %v2152 = vrot.slane %v1829, %v2151
        %v2153 = vlaneseq
        %v2154 = vshrl.u32 %v2153, 7
        %v2155 = vsub.s32 0, %v2154
        %v2156 = vrot.slane %v1831, %v2155
        %v2157 = vlaneseq
        %v2158 = vshrl.u32 %v2157, 7
        %v2159 = vsub.s32 0, %v2158
        %v2160 = vrot.slane %v1814, %v2159
        %v2161 = vlaneseq
        %v2162 = vshrl.u32 %v2161, 7
        %v2163 = vsub.s32 0, %v2162
        %v2164 = vrot.slane %v1828, %v2163
        %v2165 = vlaneseq
        %v2166 = vshrl.u32 %v2165, 7
        %v2167 = vsub.s32 0, %v2166
        %v2168 = vrot.slane %v1830, %v2167
        %v2169 = vlaneseq
        %v2170 = vshrl.u32 %v2169, 7
        %v2171 = vsub.s32 0, %v2170
        %v2172 = vrot.slane %v1832, %v2171
        %v2181 = vlaneseq
        %v2182 = vshrl.u32 %v2181, 7
        %v2183 = vsub.s32 0, %v2182
        %v2184 = vrot.slane %v1857, %v2183
        %v2185 = vlaneseq
        %v2186 = vshrl.u32 %v2185, 7
        %v2187 = vsub.s32 0, %v2186
        %v2188 = vrot.slane %v1871, %v2187
        %v2189 = vlaneseq
        %v2190 = vshrl.u32 %v2189, 7
        %v2191 = vsub.s32 0, %v2190
        %v2192 = vrot.slane %v1879, %v2191
        %v2193 = vlaneseq
        %v2194 = vshrl.u32 %v2193, 7
        %v2195 = vsub.s32 0, %v2194
        %v2196 = vrot.slane %v1881, %v2195
        %v2197 = vlaneseq
        %v2198 = vshrl.u32 %v2197, 7
        %v2199 = vsub.s32 0, %v2198
        %v2200 = vrot.slane %v1864, %v2199
        %v2201 = vlaneseq
        %v2202 = vshrl.u32 %v2201, 7
        %v2203 = vsub.s32 0, %v2202
        %v2204 = vrot.slane %v1878, %v2203
        %v2205 = vlaneseq
        %v2206 = vshrl.u32 %v2205, 7
        %v2207 = vsub.s32 0, %v2206
        %v2208 = vrot.slane %v1880, %v2207
        %v2209 = vlaneseq
        %v2210 = vshrl.u32 %v2209, 7
        %v2211 = vsub.s32 0, %v2210
        %v2212 = vrot.slane %v1882, %v2211
        %v2221 = vlaneseq
        %v2222 = vshrl.u32 %v2221, 7
        %v2223 = vsub.s32 0, %v2222
        %v2224 = vrot.slane %v1907, %v2223
        %v2225 = vlaneseq
        %v2226 = vshrl.u32 %v2225, 7
        %v2227 = vsub.s32 0, %v2226
        %v2228 = vrot.slane %v1921, %v2227
        %v2229 = vlaneseq
        %v2230 = vshrl.u32 %v2229, 7
        %v2231 = vsub.s32 0, %v2230
        %v2232 = vrot.slane %v1929, %v2231
        %v2233 = vlaneseq
        %v2234 = vshrl.u32 %v2233, 7
        %v2235 = vsub.s32 0, %v2234
        %v2236 = vrot.slane %v1931, %v2235
        %v2237 = vlaneseq
        %v2238 = vshrl.u32 %v2237, 7
        %v2239 = vsub.s32 0, %v2238
        %v2240 = vrot.slane %v1914, %v2239
        %v2241 = vlaneseq
        %v2242 = vshrl.u32 %v2241, 7
        %v2243 = vsub.s32 0, %v2242
        %v2244 = vrot.slane %v1928, %v2243
        %v2245 = vlaneseq
        %v2246 = vshrl.u32 %v2245, 7
        %v2247 = vsub.s32 0, %v2246
        %v2248 = vrot.slane %v1930, %v2247
        %v2249 = vlaneseq
        %v2250 = vshrl.u32 %v2249, 7
        %v2251 = vsub.s32 0, %v2250
        %v2252 = vrot.slane %v1932, %v2251
        %v2261 = vlaneseq
        %v2262 = vshrl.u32 %v2261, 7
        %v2263 = vsub.s32 0, %v2262
        %v2264 = vrot.slane %v1957, %v2263
        %v2265 = vlaneseq
        %v2266 = vshrl.u32 %v2265, 7
        %v2267 = vsub.s32 0, %v2266
        %v2268 = vrot.slane %v1971, %v2267
        %v2269 = vlaneseq
        %v2270 = vshrl.u32 %v2269, 7
        %v2271 = vsub.s32 0, %v2270
        %v2272 = vrot.slane %v1979, %v2271
        %v2273 = vlaneseq
        %v2274 = vshrl.u32 %v2273, 7
        %v2275 = vsub.s32 0, %v2274
        %v2276 = vrot.slane %v1981, %v2275
        %v2277 = vlaneseq
        %v2278 = vshrl.u32 %v2277, 7
        %v2279 = vsub.s32 0, %v2278
        %v2280 = vrot.slane %v1964, %v2279
        %v2281 = vlaneseq
        %v2282 = vshrl.u32 %v2281, 7
        %v2283 = vsub.s32 0, %v2282
        %v2284 = vrot.slane %v1978, %v2283
        %v2285 = vlaneseq
        %v2286 = vshrl.u32 %v2285, 7
        %v2287 = vsub.s32 0, %v2286
        %v2288 = vrot.slane %v1980, %v2287
        %v2289 = vlaneseq
        %v2290 = vshrl.u32 %v2289, 7
        %v2291 = vsub.s32 0, %v2290
        %v2292 = vrot.slane %v1982, %v2291
        %v2301 = vlaneseq
        %v2302 = vshrl.u32 %v2301, 7
        %v2303 = vsub.s32 0, %v2302
        %v2304 = vrot.slane %v2007, %v2303
        %v2305 = vlaneseq
        %v2306 = vshrl.u32 %v2305, 7
        %v2307 = vsub.s32 0, %v2306
        %v2308 = vrot.slane %v2021, %v2307
        %v2309 = vlaneseq
        %v2310 = vshrl.u32 %v2309, 7
        %v2311 = vsub.s32 0, %v2310
        %v2312 = vrot.slane %v2029, %v2311
        %v2313 = vlaneseq
        %v2314 = vshrl.u32 %v2313, 7
        %v2315 = vsub.s32 0, %v2314
        %v2316 = vrot.slane %v2031, %v2315
        %v2317 = vlaneseq
        %v2318 = vshrl.u32 %v2317, 7
        %v2319 = vsub.s32 0, %v2318
        %v2320 = vrot.slane %v2014, %v2319
        %v2321 = vlaneseq
        %v2322 = vshrl.u32 %v2321, 7
        %v2323 = vsub.s32 0, %v2322
        %v2324 = vrot.slane %v2028, %v2323
        %v2325 = vlaneseq
        %v2326 = vshrl.u32 %v2325, 7
        %v2327 = vsub.s32 0, %v2326
        %v2328 = vrot.slane %v2030, %v2327
        %v2329 = vlaneseq
        %v2330 = vshrl.u32 %v2329, 7
        %v2331 = vsub.s32 0, %v2330
        %v2332 = vrot.slane %v2032, %v2331
        %v2341 = vlaneseq
        %v2342 = vshrl.u32 %v2341, 7
        %v2343 = vsub.s32 0, %v2342
        %v2344 = vrot.slane %v2057, %v2343
        %v2345 = vlaneseq
        %v2346 = vshrl.u32 %v2345, 7
        %v2347 = vsub.s32 0, %v2346
        %v2348 = vrot.slane %v2071, %v2347
        %v2349 = vlaneseq
        %v2350 = vshrl.u32 %v2349, 7
        %v2351 = vsub.s32 0, %v2350
        %v2352 = vrot.slane %v2079, %v2351
        %v2353 = vlaneseq
        %v2354 = vshrl.u32 %v2353, 7
        %v2355 = vsub.s32 0, %v2354
        %v2356 = vrot.slane %v2081, %v2355
        %v2357 = vlaneseq
        %v2358 = vshrl.u32 %v2357, 7
        %v2359 = vsub.s32 0, %v2358
        %v2360 = vrot.slane %v2064, %v2359
        %v2361 = vlaneseq
        %v2362 = vshrl.u32 %v2361, 7
        %v2363 = vsub.s32 0, %v2362
        %v2364 = vrot.slane %v2078, %v2363
        %v2365 = vlaneseq
        %v2366 = vshrl.u32 %v2365, 7
        %v2367 = vsub.s32 0, %v2366
        %v2368 = vrot.slane %v2080, %v2367
        %v2369 = vlaneseq
        %v2370 = vshrl.u32 %v2369, 7
        %v2371 = vsub.s32 0, %v2370
        %v2372 = vrot.slane %v2082, %v2371
        %v2381 = vlaneseq
        %v2382 = vshrl.u32 %v2381, 7
        %v2383 = vsub.s32 0, %v2382
        %v2384 = vrot.slane %v2107, %v2383
        %v2385 = vlaneseq
        %v2386 = vshrl.u32 %v2385, 7
        %v2387 = vsub.s32 0, %v2386
        %v2388 = vrot.slane %v2121, %v2387
        %v2389 = vlaneseq
        %v2390 = vshrl.u32 %v2389, 7
        %v2391 = vsub.s32 0, %v2390
        %v2392 = vrot.slane %v2129, %v2391
        %v2393 = vlaneseq
        %v2394 = vshrl.u32 %v2393, 7
        %v2395 = vsub.s32 0, %v2394
        %v2396 = vrot.slane %v2131, %v2395
        %v2397 = vlaneseq
        %v2398 = vshrl.u32 %v2397, 7
        %v2399 = vsub.s32 0, %v2398
        %v2400 = vrot.slane %v2114, %v2399
        %v2401 = vlaneseq
        %v2402 = vshrl.u32 %v2401, 7
        %v2403 = vsub.s32 0, %v2402
        %v2404 = vrot.slane %v2128, %v2403
        %v2405 = vlaneseq
        %v2406 = vshrl.u32 %v2405, 7
        %v2407 = vsub.s32 0, %v2406
        %v2408 = vrot.slane %v2130, %v2407
        %v2409 = vlaneseq
        %v2410 = vshrl.u32 %v2409, 7
        %v2411 = vsub.s32 0, %v2410
        %v2412 = vrot.slane %v2132, %v2411
        %vm2421 = vcmask 1040384
        %v2422 = vsel %vm2421, %v1749, %v2144
        %v2423 = vsel %vm2421, %v1763, %v2148
        %v2424 = vsel %vm2421, %v1771, %v2152
        %v2425 = vsel %vm2421, %v1773, %v2156
        %v2426 = vsel %vm2421, %v1756, %v2160
        %v2427 = vsel %vm2421, %v1770, %v2164
        %v2428 = vsel %vm2421, %v1772, %v2168
        %v2429 = vsel %vm2421, %v1774, %v2172
        %v2430 = vsel %vm593, %v2422, %v2184
        %v2431 = vsel %vm593, %v2423, %v2188
        %v2432 = vsel %vm593, %v2424, %v2192
        %v2433 = vsel %vm593, %v2425, %v2196
        %v2434 = vsel %vm593, %v2426, %v2200
        %v2435 = vsel %vm593, %v2427, %v2204
        %v2436 = vsel %vm593, %v2428, %v2208
        %v2437 = vsel %vm593, %v2429, %v2212
        %vm2438 = vcmask 1042432
        %v2439 = vsel %vm2438, %v2430, %v2224
        %v2440 = vsel %vm2438, %v2431, %v2228
        %v2441 = vsel %vm2438, %v2432, %v2232
        %v2442 = vsel %vm2438, %v2433, %v2236
        %v2443 = vsel %vm2438, %v2434, %v2240
        %v2444 = vsel %vm2438, %v2435, %v2244
        %v2445 = vsel %vm2438, %v2436, %v2248
        %v2446 = vsel %vm2438, %v2437, %v2252
        %vm2447 = vcmask 1043456
        %v2448 = vsel %vm2447, %v2439, %v2264
        %v2449 = vsel %vm2447, %v2440, %v2268
        %v2450 = vsel %vm2447, %v2441, %v2272
        %v2451 = vsel %vm2447, %v2442, %v2276
        %v2452 = vsel %vm2447, %v2443, %v2280
        %v2453 = vsel %vm2447, %v2444, %v2284
        %v2454 = vsel %vm2447, %v2445, %v2288
        %v2455 = vsel %vm2447, %v2446, %v2292
        %vm2456 = vcmask 1044480
        %v2457 = vsel %vm2456, %v2448, %v2304
        %v2458 = vsel %vm2456, %v2449, %v2308
        %v2459 = vsel %vm2456, %v2450, %v2312
        %v2460 = vsel %vm2456, %v2451, %v2316
        %v2461 = vsel %vm2456, %v2452, %v2320
        %v2462 = vsel %vm2456, %v2453, %v2324
        %v2463 = vsel %vm2456, %v2454, %v2328
        %v2464 = vsel %vm2456, %v2455, %v2332
        %vm2465 = vcmask 1045504
        %v2466 = vsel %vm2465, %v2457, %v2344
        %v2467 = vsel %vm2465, %v2458, %v2348
        %v2468 = vsel %vm2465, %v2459, %v2352
        %v2469 = vsel %vm2465, %v2460, %v2356
        %v2470 = vsel %vm2465, %v2461, %v2360
        %v2471 = vsel %vm2465, %v2462, %v2364
        %v2472 = vsel %vm2465, %v2463, %v2368
        %v2473 = vsel %vm2465, %v2464, %v2372
        %vm2474 = vcmask 1046528
        %v2475 = vsel %vm2474, %v2466, %v2384
        %v2476 = vsel %vm2474, %v2467, %v2388
        %v2477 = vsel %vm2474, %v2468, %v2392
        %v2478 = vsel %vm2474, %v2469, %v2396
        %v2479 = vsel %vm2474, %v2470, %v2400
        %v2480 = vsel %vm2474, %v2471, %v2404
        %v2481 = vsel %vm2474, %v2472, %v2408
        %v2482 = vsel %vm2474, %v2473, %v2412
        %v2483 = vlaneseq
        %v2484 = vshrl.u32 %v2483, 7
        %v2485 = vsub.s32 0, %v2484
        %v2486 = vrot.slane %v1749, %v2485
        %v2487 = vlaneseq
        %v2488 = vshrl.u32 %v2487, 7
        %v2489 = vsub.s32 0, %v2488
        %v2490 = vrot.slane %v1763, %v2489
        %v2491 = vlaneseq
        %v2492 = vshrl.u32 %v2491, 7
        %v2493 = vsub.s32 0, %v2492
        %v2494 = vrot.slane %v1771, %v2493
        %v2495 = vlaneseq
        %v2496 = vshrl.u32 %v2495, 7
        %v2497 = vsub.s32 0, %v2496
        %v2498 = vrot.slane %v1773, %v2497
        %v2499 = vlaneseq
        %v2500 = vshrl.u32 %v2499, 7
        %v2501 = vsub.s32 0, %v2500
        %v2502 = vrot.slane %v1756, %v2501
        %v2503 = vlaneseq
        %v2504 = vshrl.u32 %v2503, 7
        %v2505 = vsub.s32 0, %v2504
        %v2506 = vrot.slane %v1770, %v2505
        %v2507 = vlaneseq
        %v2508 = vshrl.u32 %v2507, 7
        %v2509 = vsub.s32 0, %v2508
        %v2510 = vrot.slane %v1772, %v2509
        %v2511 = vlaneseq
        %v2512 = vshrl.u32 %v2511, 7
        %v2513 = vsub.s32 0, %v2512
        %v2514 = vrot.slane %v1774, %v2513
        %v2523 = vsel %vm2421, %v2107, %v2344
        %v2524 = vsel %vm2421, %v2121, %v2348
        %v2525 = vsel %vm2421, %v2129, %v2352
        %v2526 = vsel %vm2421, %v2131, %v2356
        %v2527 = vsel %vm2421, %v2114, %v2360
        %v2528 = vsel %vm2421, %v2128, %v2364
        %v2529 = vsel %vm2421, %v2130, %v2368
        %v2530 = vsel %vm2421, %v2132, %v2372
        %v2531 = vsel %vm593, %v2523, %v2304
        %v2532 = vsel %vm593, %v2524, %v2308
        %v2533 = vsel %vm593, %v2525, %v2312
        %v2534 = vsel %vm593, %v2526, %v2316
        %v2535 = vsel %vm593, %v2527, %v2320
        %v2536 = vsel %vm593, %v2528, %v2324
        %v2537 = vsel %vm593, %v2529, %v2328
        %v2538 = vsel %vm593, %v2530, %v2332
        %v2539 = vsel %vm2438, %v2531, %v2264
        %v2540 = vsel %vm2438, %v2532, %v2268
        %v2541 = vsel %vm2438, %v2533, %v2272
        %v2542 = vsel %vm2438, %v2534, %v2276
        %v2543 = vsel %vm2438, %v2535, %v2280
        %v2544 = vsel %vm2438, %v2536, %v2284
        %v2545 = vsel %vm2438, %v2537, %v2288
        %v2546 = vsel %vm2438, %v2538, %v2292
        %v2547 = vsel %vm2447, %v2539, %v2224
        %v2548 = vsel %vm2447, %v2540, %v2228
        %v2549 = vsel %vm2447, %v2541, %v2232
        %v2550 = vsel %vm2447, %v2542, %v2236
        %v2551 = vsel %vm2447, %v2543, %v2240
        %v2552 = vsel %vm2447, %v2544, %v2244
        %v2553 = vsel %vm2447, %v2545, %v2248
        %v2554 = vsel %vm2447, %v2546, %v2252
        %v2555 = vsel %vm2456, %v2547, %v2184
        %v2556 = vsel %vm2456, %v2548, %v2188
        %v2557 = vsel %vm2456, %v2549, %v2192
        %v2558 = vsel %vm2456, %v2550, %v2196
        %v2559 = vsel %vm2456, %v2551, %v2200
        %v2560 = vsel %vm2456, %v2552, %v2204
        %v2561 = vsel %vm2456, %v2553, %v2208
        %v2562 = vsel %vm2456, %v2554, %v2212
        %v2563 = vsel %vm2465, %v2555, %v2144
        %v2564 = vsel %vm2465, %v2556, %v2148
        %v2565 = vsel %vm2465, %v2557, %v2152
        %v2566 = vsel %vm2465, %v2558, %v2156
        %v2567 = vsel %vm2465, %v2559, %v2160
        %v2568 = vsel %vm2465, %v2560, %v2164
        %v2569 = vsel %vm2465, %v2561, %v2168
        %v2570 = vsel %vm2465, %v2562, %v2172
        %v2571 = vsel %vm2474, %v2563, %v2486
        %v2572 = vsel %vm2474, %v2564, %v2490
        %v2573 = vsel %vm2474, %v2565, %v2494
        %v2574 = vsel %vm2474, %v2566, %v2498
        %v2575 = vsel %vm2474, %v2567, %v2502
        %v2576 = vsel %vm2474, %v2568, %v2506
        %v2577 = vsel %vm2474, %v2569, %v2510
        %v2578 = vsel %vm2474, %v2570, %v2514
        %vm2579 = vcmp.lt.s32.totalorder %v520, 32
        %v2580 = vsel %vm2579, 1, 0
        %vm2581 = vcmp.eq.s32.totalorder %v2580, 1
        %2590 = vrot.lane.b32.xlu0 %v2475, 64
        %v2591 = vpop.permute.xlu0 %2590
        %2592 = vrot.lane.b32.xlu0 %v2476, 64
        %v2593 = vpop.permute.xlu0 %2592
        %2594 = vrot.lane.b32.xlu0 %v2477, 64
        %v2595 = vpop.permute.xlu0 %2594
        %2596 = vrot.lane.b32.xlu0 %v2478, 64
        %v2597 = vpop.permute.xlu0 %2596
        %2598 = vrot.lane.b32.xlu0 %v2479, 64
        %v2599 = vpop.permute.xlu0 %2598
        %2600 = vrot.lane.b32.xlu0 %v2480, 64
        %v2601 = vpop.permute.xlu0 %2600
        %2602 = vrot.lane.b32.xlu0 %v2481, 64
        %v2603 = vpop.permute.xlu0 %2602
        %2604 = vrot.lane.b32.xlu0 %v2482, 64
        %v2605 = vpop.permute.xlu0 %2604
        %2622 = vrot.lane.b32.xlu0 %v2571, 64
        %v2623 = vpop.permute.xlu0 %2622
        %2624 = vrot.lane.b32.xlu0 %v2572, 64
        %v2625 = vpop.permute.xlu0 %2624
        %2626 = vrot.lane.b32.xlu0 %v2573, 64
        %v2627 = vpop.permute.xlu0 %2626
        %2628 = vrot.lane.b32.xlu0 %v2574, 64
        %v2629 = vpop.permute.xlu0 %2628
        %2630 = vrot.lane.b32.xlu0 %v2575, 64
        %v2631 = vpop.permute.xlu0 %2630
        %2632 = vrot.lane.b32.xlu0 %v2576, 64
        %v2633 = vpop.permute.xlu0 %2632
        %2634 = vrot.lane.b32.xlu0 %v2577, 64
        %v2635 = vpop.permute.xlu0 %2634
        %2636 = vrot.lane.b32.xlu0 %v2578, 64
        %v2637 = vpop.permute.xlu0 %2636
        %v2646 = vsel %vm2581, %v2591, %v2623
        %v2647 = vsel %vm2581, %v2593, %v2625
        %v2648 = vsel %vm2581, %v2595, %v2627
        %v2649 = vsel %vm2581, %v2597, %v2629
        %v2650 = vsel %vm2581, %v2599, %v2631
        %v2651 = vsel %vm2581, %v2601, %v2633
        %v2652 = vsel %vm2581, %v2603, %v2635
        %v2653 = vsel %vm2581, %v2605, %v2637
        %v2654 = vpack.c.bf16 %v2647, %v2646
        %v2655 = vpack.c.bf16 %v2649, %v2648
        %v2656 = vpack.c.bf16 %v2651, %v2650
        %v2657 = vpack.c.bf16 %v2653, %v2652
        %v2658 = vld [vmem:[%s5] sm:$0xff]
        %v2659 = vld [vmem:[%s5 + $0x8] sm:$0xff]
        %v2660 = vld [vmem:[%s5 + $0x10] sm:$0xff]
        %v2661 = vld [vmem:[%s5 + $0x18] sm:$0xff]
        %v2662 = vld [vmem:[%s5 + $0x20] sm:$0xff]
        %v2663 = vld [vmem:[%s5 + $0x28] sm:$0xff]
        %v2664 = vld [vmem:[%s5 + $0x30] sm:$0xff]
        %v2665 = vld [vmem:[%s5 + $0x38] sm:$0xff]
        %v2666 = vld [vmem:[#allocation5] sm:$0x3]
        %v2668 = vlaneseq
        %v2669 = vshrl.u32 %v2668, 7
        %v2670 = vsub.s32 0, %v2669
        %v2671 = vrot.slane %v2666, %v2670
        %v2672 = vlaneseq
        %v2673 = vshrl.u32 %v2672, 7
        %v2674 = vsub.s32 1, %v2673
        %v2675 = vrot.slane %v2666, %v2674
        %v2686 = vunpack.c.l.b16 %v2658
        %v2687 = vunpack.c.h.b16 %v2658
        %v2688 = vunpack.c.l.b16 %v2659
        %v2689 = vunpack.c.h.b16 %v2659
        %v2690 = vunpack.c.l.b16 %v2660
        %v2691 = vunpack.c.h.b16 %v2660
        %v2692 = vunpack.c.l.b16 %v2661
        %v2693 = vunpack.c.h.b16 %v2661
        %v2694 = vunpack.c.l.b16 %v2662
        %v2695 = vunpack.c.h.b16 %v2662
        %v2696 = vunpack.c.l.b16 %v2663
        %v2697 = vunpack.c.h.b16 %v2663
        %v2698 = vunpack.c.l.b16 %v2664
        %v2699 = vunpack.c.h.b16 %v2664
        %v2700 = vunpack.c.l.b16 %v2665
        %v2701 = vunpack.c.h.b16 %v2665
        %v2702 = vpack.c.b16 %v2688, %v2686
        %v2703 = vpack.c.b16 %v2689, %v2687
        %v2704 = vpack.c.b16 %v2692, %v2690
        %v2705 = vpack.c.b16 %v2693, %v2691
        %v2706 = vpack.c.b16 %v2696, %v2694
        %v2707 = vpack.c.b16 %v2697, %v2695
        %v2708 = vpack.c.b16 %v2700, %v2698
        %v2709 = vpack.c.b16 %v2701, %v2699
        %v2719 = vsel %vm958, %v2654, 0
        %v2722 = vsel %vm958, %v2655, 0
        %v2725 = vsel %vm958, %v2656, 0
        %v2728 = vsel %vm958, %v2657, 0
        %2730 = vmatprep.subr.bf16.mxu0 0
        %2731 = vmatpush1.bf16.msra.mxu0 0
        %2732 = vmatprep.subr.bf16.mxu0 0
        %2733 = vmatpush1.bf16.msra.mxu0 0
        %2734 = vmatprep.subr.bf16.mxu0 0
        %2735 = vmatpush1.bf16.msra.mxu0 0
        %2736 = vmatprep.subr.bf16.mxu0 0
        %2737 = vmatpush1.bf16.msra.mxu0 0
        %2738 = vmatprep.subr.bf16.mxu0 %v2709
        %2739 = vmatpush1.bf16.msra.mxu0 %v2708
        %2740 = vmatprep.subr.bf16.mxu0 %v2707
        %2741 = vmatpush1.bf16.msra.mxu0 %v2706
        %2742 = vmatprep.subr.bf16.mxu0 %v2705
        %2743 = vmatpush1.bf16.msra.mxu0 %v2704
        %2744 = vmatprep.subr.bf16.mxu0 %v2703
        %2745 = vmatpush1.bf16.msra.mxu0 %v2702
        %2746 = vmatprep.subr.bf16.mxu0 0
        %2747 = vmatpush2.bf16.msra.mxu0 0
        %2748 = vmatprep.subr.bf16.mxu0 0
        %2749 = vmatpush2.bf16.msra.mxu0 0
        %2750 = vmatprep.subr.bf16.mxu0 0
        %2751 = vmatpush2.bf16.msra.mxu0 0
        %2752 = vmatprep.subr.bf16.mxu0 0
        %2753 = vmatpush2.bf16.msra.mxu0 0
        %2754 = vmatprep.subr.bf16.mxu0 0
        %2755 = vmatpush2.bf16.msra.mxu0 0
        %2756 = vmatprep.subr.bf16.mxu0 0
        %2757 = vmatpush2.bf16.msra.mxu0 0
        %2758 = vmatprep.subr.bf16.mxu0 0
        %2759 = vmatpush2.bf16.msra.mxu0 0
        %2760 = vmatprep.subr.bf16.mxu0 0
        %2761 = vmatpush2.bf16.msra.mxu0 0
        %2762 = vmatprep.mubr.bf16.mxu0 0
        %2763 = vmatmul.mubr.bf16.gmra.mxu0 %v2719
        %v2764 = vpop.f32.mrf.mxu0
        %v2765 = vadd.f32 %v2671, %v2764
        %v2766 = vpop.f32.mrf.mxu0
        %v2767 = vadd.f32 %v2675, %v2766
        %v2768 = vpop.f32.mrf.mxu0
        %v2769 = vadd.f32 %v2671, %v2768
        %v2770 = vpop.f32.mrf.mxu0
        %v2771 = vadd.f32 %v2675, %v2770
        %2772 = vmatprep.mubr.bf16.mxu0 0
        %2773 = vmatmul.mubr.bf16.gmra.mxu0 %v2722
        %v2774 = vpop.f32.mrf.mxu0
        %v2775 = vadd.f32 %v2671, %v2774
        %v2776 = vpop.f32.mrf.mxu0
        %v2777 = vadd.f32 %v2675, %v2776
        %v2778 = vpop.f32.mrf.mxu0
        %v2779 = vadd.f32 %v2671, %v2778
        %v2780 = vpop.f32.mrf.mxu0
        %v2781 = vadd.f32 %v2675, %v2780
        %2782 = vmatprep.mubr.bf16.mxu0 0
        %2783 = vmatmul.mubr.bf16.gmra.mxu0 %v2725
        %v2784 = vpop.f32.mrf.mxu0
        %v2785 = vadd.f32 %v2671, %v2784
        %v2786 = vpop.f32.mrf.mxu0
        %v2787 = vadd.f32 %v2675, %v2786
        %v2788 = vpop.f32.mrf.mxu0
        %v2789 = vadd.f32 %v2671, %v2788
        %v2790 = vpop.f32.mrf.mxu0
        %v2791 = vadd.f32 %v2675, %v2790
        %2792 = vmatprep.mubr.bf16.mxu0 0
        %2793 = vmatmul.mubr.bf16.gmra.mxu0 %v2728
        %v2794 = vpop.f32.mrf.mxu0
        %v2795 = vadd.f32 %v2671, %v2794
        %v2796 = vpop.f32.mrf.mxu0
        %v2797 = vadd.f32 %v2675, %v2796
        %v2798 = vpop.f32.mrf.mxu0
        %v2799 = vadd.f32 %v2671, %v2798
        %v2800 = vpop.f32.mrf.mxu0
        %v2801 = vadd.f32 %v2675, %v2800
        %2802 = vdwg.mxu0
        %2811 = vrot.lane.b32.xlu0 %v2765, 112
        %v2812 = vpop.permute.xlu0 %2811
        %2813 = vrot.lane.b32.xlu0 %v2769, 112
        %v2814 = vpop.permute.xlu0 %2813
        %2815 = vrot.lane.b32.xlu0 %v2775, 112
        %v2816 = vpop.permute.xlu0 %2815
        %2817 = vrot.lane.b32.xlu0 %v2779, 112
        %v2818 = vpop.permute.xlu0 %2817
        %2819 = vrot.lane.b32.xlu0 %v2785, 112
        %v2820 = vpop.permute.xlu0 %2819
        %2821 = vrot.lane.b32.xlu0 %v2789, 112
        %v2822 = vpop.permute.xlu0 %2821
        %2823 = vrot.lane.b32.xlu0 %v2795, 112
        %v2824 = vpop.permute.xlu0 %2823
        %2825 = vrot.lane.b32.xlu0 %v2799, 112
        %v2826 = vpop.permute.xlu0 %2825
        %2827 = vrot.lane.b32.xlu0 %v2765, 96
        %v2828 = vpop.permute.xlu0 %2827
        %2829 = vrot.lane.b32.xlu0 %v2769, 96
        %v2830 = vpop.permute.xlu0 %2829
        %2831 = vrot.lane.b32.xlu0 %v2775, 96
        %v2832 = vpop.permute.xlu0 %2831
        %2833 = vrot.lane.b32.xlu0 %v2779, 96
        %v2834 = vpop.permute.xlu0 %2833
        %2835 = vrot.lane.b32.xlu0 %v2785, 96
        %v2836 = vpop.permute.xlu0 %2835
        %2837 = vrot.lane.b32.xlu0 %v2789, 96
        %v2838 = vpop.permute.xlu0 %2837
        %2839 = vrot.lane.b32.xlu0 %v2795, 96
        %v2840 = vpop.permute.xlu0 %2839
        %2841 = vrot.lane.b32.xlu0 %v2799, 96
        %v2842 = vpop.permute.xlu0 %2841
        %2843 = vrot.lane.b32.xlu0 %v2765, 80
        %v2844 = vpop.permute.xlu0 %2843
        %2845 = vrot.lane.b32.xlu0 %v2769, 80
        %v2846 = vpop.permute.xlu0 %2845
        %2847 = vrot.lane.b32.xlu0 %v2775, 80
        %v2848 = vpop.permute.xlu0 %2847
        %2849 = vrot.lane.b32.xlu0 %v2779, 80
        %v2850 = vpop.permute.xlu0 %2849
        %2851 = vrot.lane.b32.xlu0 %v2785, 80
        %v2852 = vpop.permute.xlu0 %2851
        %2853 = vrot.lane.b32.xlu0 %v2789, 80
        %v2854 = vpop.permute.xlu0 %2853
        %2855 = vrot.lane.b32.xlu0 %v2795, 80
        %v2856 = vpop.permute.xlu0 %2855
        %2857 = vrot.lane.b32.xlu0 %v2799, 80
        %v2858 = vpop.permute.xlu0 %2857
        %2867 = vrot.lane.b32.xlu0 %v2767, 112
        %v2868 = vpop.permute.xlu0 %2867
        %2869 = vrot.lane.b32.xlu0 %v2771, 112
        %v2870 = vpop.permute.xlu0 %2869
        %2871 = vrot.lane.b32.xlu0 %v2777, 112
        %v2872 = vpop.permute.xlu0 %2871
        %2873 = vrot.lane.b32.xlu0 %v2781, 112
        %v2874 = vpop.permute.xlu0 %2873
        %2875 = vrot.lane.b32.xlu0 %v2787, 112
        %v2876 = vpop.permute.xlu0 %2875
        %2877 = vrot.lane.b32.xlu0 %v2791, 112
        %v2878 = vpop.permute.xlu0 %2877
        %2879 = vrot.lane.b32.xlu0 %v2797, 112
        %v2880 = vpop.permute.xlu0 %2879
        %2881 = vrot.lane.b32.xlu0 %v2801, 112
        %v2882 = vpop.permute.xlu0 %2881
        %2891 = vrot.lane.b32.xlu0 %v2767, 96
        %v2892 = vpop.permute.xlu0 %2891
        %2893 = vrot.lane.b32.xlu0 %v2771, 96
        %v2894 = vpop.permute.xlu0 %2893
        %2895 = vrot.lane.b32.xlu0 %v2777, 96
        %v2896 = vpop.permute.xlu0 %2895
        %2897 = vrot.lane.b32.xlu0 %v2781, 96
        %v2898 = vpop.permute.xlu0 %2897
        %2899 = vrot.lane.b32.xlu0 %v2787, 96
        %v2900 = vpop.permute.xlu0 %2899
        %2901 = vrot.lane.b32.xlu0 %v2791, 96
        %v2902 = vpop.permute.xlu0 %2901
        %2903 = vrot.lane.b32.xlu0 %v2797, 96
        %v2904 = vpop.permute.xlu0 %2903
        %2905 = vrot.lane.b32.xlu0 %v2801, 96
        %v2906 = vpop.permute.xlu0 %2905
        %2915 = vrot.lane.b32.xlu0 %v2767, 80
        %v2916 = vpop.permute.xlu0 %2915
        %2917 = vrot.lane.b32.xlu0 %v2771, 80
        %v2918 = vpop.permute.xlu0 %2917
        %2919 = vrot.lane.b32.xlu0 %v2777, 80
        %v2920 = vpop.permute.xlu0 %2919
        %2921 = vrot.lane.b32.xlu0 %v2781, 80
        %v2922 = vpop.permute.xlu0 %2921
        %2923 = vrot.lane.b32.xlu0 %v2787, 80
        %v2924 = vpop.permute.xlu0 %2923
        %2925 = vrot.lane.b32.xlu0 %v2791, 80
        %v2926 = vpop.permute.xlu0 %2925
        %2927 = vrot.lane.b32.xlu0 %v2797, 80
        %v2928 = vpop.permute.xlu0 %2927
        %2929 = vrot.lane.b32.xlu0 %v2801, 80
        %v2930 = vpop.permute.xlu0 %2929
        %2939 = vrot.lane.b32.xlu0 %v2765, 64
        %v2940 = vpop.permute.xlu0 %2939
        %v2941 = vsel %vm743, %v2765, 0
        %v2943 = vsel %vm743, %v2940, 0
        %2945 = vmatprep.subr.mxu0 0.0
        %2946 = vmatpush1.xpose.msra.mxu0 0.0
        %2947 = vmatprep.subr.mxu0 0.0
        %2948 = vmatpush1.xpose.msra.mxu0 0.0
        %2949 = vmatprep.subr.mxu0 0.0
        %2950 = vmatpush1.xpose.msra.mxu0 0.0
        %2951 = vmatprep.subr.mxu0 0.0
        %2952 = vmatpush1.xpose.msra.mxu0 0.0
        %2953 = vmatprep.subr.mxu0 0.0
        %2954 = vmatpush1.xpose.msra.mxu0 0.0
        %2955 = vmatprep.subr.mxu0 0.0
        %2956 = vmatpush1.xpose.msra.mxu0 0.0
        %2957 = vmatprep.subr.mxu0 0.0
        %2958 = vmatpush1.xpose.msra.mxu0 0.0
        %2959 = vmatprep.subr.mxu0 0.0
        %2960 = vmatpush1.xpose.msra.mxu0 0.0
        %2961 = vmatprep.subr.mxu0 0.0
        %2962 = vmatpush1.xpose.msra.mxu0 0.0
        %2963 = vmatprep.subr.mxu0 0.0
        %2964 = vmatpush1.xpose.msra.mxu0 0.0
        %2965 = vmatprep.subr.mxu0 0.0
        %2966 = vmatpush1.xpose.msra.mxu0 0.0
        %2967 = vmatprep.subr.mxu0 0.0
        %2968 = vmatpush1.xpose.msra.mxu0 0.0
        %2969 = vmatprep.subr.mxu0 0.0
        %2970 = vmatpush1.xpose.msra.mxu0 0.0
        %2971 = vmatprep.subr.mxu0 0.0
        %2972 = vmatpush1.xpose.msra.mxu0 0.0
        %2973 = vmatprep.subr.mxu0 0.0
        %2974 = vmatpush1.xpose.msra.mxu0 0.0
        %2975 = vmatprep.subr.mxu0 0.0
        %2976 = vmatpush1.xpose.msra.mxu0 %v2943
        %2977 = vmatprep.subr.mxu0 0.0
        %2978 = vmatpush2.xpose.msra.mxu0 0.0
        %2979 = vmatprep.subr.mxu0 0.0
        %2980 = vmatpush2.xpose.msra.mxu0 0.0
        %2981 = vmatprep.subr.mxu0 0.0
        %2982 = vmatpush2.xpose.msra.mxu0 0.0
        %2983 = vmatprep.subr.mxu0 0.0
        %2984 = vmatpush2.xpose.msra.mxu0 0.0
        %2985 = vmatprep.subr.mxu0 0.0
        %2986 = vmatpush2.xpose.msra.mxu0 0.0
        %2987 = vmatprep.subr.mxu0 0.0
        %2988 = vmatpush2.xpose.msra.mxu0 0.0
        %2989 = vmatprep.subr.mxu0 0.0
        %2990 = vmatpush2.xpose.msra.mxu0 0.0
        %2991 = vmatprep.subr.mxu0 0.0
        %2992 = vmatpush2.xpose.msra.mxu0 0.0
        %2993 = vmatprep.subr.mxu0 0.0
        %2994 = vmatpush2.xpose.msra.mxu0 0.0
        %2995 = vmatprep.subr.mxu0 0.0
        %2996 = vmatpush2.xpose.msra.mxu0 0.0
        %2997 = vmatprep.subr.mxu0 0.0
        %2998 = vmatpush2.xpose.msra.mxu0 0.0
        %2999 = vmatprep.subr.mxu0 0.0
        %3000 = vmatpush2.xpose.msra.mxu0 0.0
        %3001 = vmatprep.subr.mxu0 0.0
        %3002 = vmatpush2.xpose.msra.mxu0 0.0
        %3003 = vmatprep.subr.mxu0 0.0
        %3004 = vmatpush2.xpose.msra.mxu0 0.0
        %3005 = vmatprep.subr.mxu0 0.0
        %3006 = vmatpush2.xpose.msra.mxu0 0.0
        %3007 = vmatprep.subr.mxu0 0.0
        %3008 = vmatpush2.xpose.msra.mxu0 0.0
        %3009 = vmatprep.mubr.f32.mxu0 0.0
        %3010 = vmatmul.mubr.f32.gmra.mxu0 %v2941
        %v3011 = vpop.f32.mrf.mxu0
        %v3012 = vadd.f32 0.0, %v3011
        %v3013 = vpop.f32.mrf.mxu0
        %3014 = vdwg.mxu0
        %3015 = vrot.lane.b32.xlu0 %v2769, 64
        %v3016 = vpop.permute.xlu0 %3015
        %v3017 = vsel %vm743, %v2769, 0
        %v3019 = vsel %vm743, %v3016, 0
        %3021 = vmatprep.subr.mxu0 0.0
        %3022 = vmatpush1.xpose.msra.mxu0 0.0
        %3023 = vmatprep.subr.mxu0 0.0
        %3024 = vmatpush1.xpose.msra.mxu0 0.0
        %3025 = vmatprep.subr.mxu0 0.0
        %3026 = vmatpush1.xpose.msra.mxu0 0.0
        %3027 = vmatprep.subr.mxu0 0.0
        %3028 = vmatpush1.xpose.msra.mxu0 0.0
        %3029 = vmatprep.subr.mxu0 0.0
        %3030 = vmatpush1.xpose.msra.mxu0 0.0
        %3031 = vmatprep.subr.mxu0 0.0
        %3032 = vmatpush1.xpose.msra.mxu0 0.0
        %3033 = vmatprep.subr.mxu0 0.0
        %3034 = vmatpush1.xpose.msra.mxu0 0.0
        %3035 = vmatprep.subr.mxu0 0.0
        %3036 = vmatpush1.xpose.msra.mxu0 0.0
        %3037 = vmatprep.subr.mxu0 0.0
        %3038 = vmatpush1.xpose.msra.mxu0 0.0
        %3039 = vmatprep.subr.mxu0 0.0
        %3040 = vmatpush1.xpose.msra.mxu0 0.0
        %3041 = vmatprep.subr.mxu0 0.0
        %3042 = vmatpush1.xpose.msra.mxu0 0.0
        %3043 = vmatprep.subr.mxu0 0.0
        %3044 = vmatpush1.xpose.msra.mxu0 0.0
        %3045 = vmatprep.subr.mxu0 0.0
        %3046 = vmatpush1.xpose.msra.mxu0 0.0
        %3047 = vmatprep.subr.mxu0 0.0
        %3048 = vmatpush1.xpose.msra.mxu0 0.0
        %3049 = vmatprep.subr.mxu0 0.0
        %3050 = vmatpush1.xpose.msra.mxu0 0.0
        %3051 = vmatprep.subr.mxu0 0.0
        %3052 = vmatpush1.xpose.msra.mxu0 %v3019
        %3053 = vmatprep.subr.mxu0 0.0
        %3054 = vmatpush2.xpose.msra.mxu0 0.0
        %3055 = vmatprep.subr.mxu0 0.0
        %3056 = vmatpush2.xpose.msra.mxu0 0.0
        %3057 = vmatprep.subr.mxu0 0.0
        %3058 = vmatpush2.xpose.msra.mxu0 0.0
        %3059 = vmatprep.subr.mxu0 0.0
        %3060 = vmatpush2.xpose.msra.mxu0 0.0
        %3061 = vmatprep.subr.mxu0 0.0
        %3062 = vmatpush2.xpose.msra.mxu0 0.0
        %3063 = vmatprep.subr.mxu0 0.0
        %3064 = vmatpush2.xpose.msra.mxu0 0.0
        %3065 = vmatprep.subr.mxu0 0.0
        %3066 = vmatpush2.xpose.msra.mxu0 0.0
        %3067 = vmatprep.subr.mxu0 0.0
        %3068 = vmatpush2.xpose.msra.mxu0 0.0
        %3069 = vmatprep.subr.mxu0 0.0
        %3070 = vmatpush2.xpose.msra.mxu0 0.0
        %3071 = vmatprep.subr.mxu0 0.0
        %3072 = vmatpush2.xpose.msra.mxu0 0.0
        %3073 = vmatprep.subr.mxu0 0.0
        %3074 = vmatpush2.xpose.msra.mxu0 0.0
        %3075 = vmatprep.subr.mxu0 0.0
        %3076 = vmatpush2.xpose.msra.mxu0 0.0
        %3077 = vmatprep.subr.mxu0 0.0
        %3078 = vmatpush2.xpose.msra.mxu0 0.0
        %3079 = vmatprep.subr.mxu0 0.0
        %3080 = vmatpush2.xpose.msra.mxu0 0.0
        %3081 = vmatprep.subr.mxu0 0.0
        %3082 = vmatpush2.xpose.msra.mxu0 0.0
        %3083 = vmatprep.subr.mxu0 0.0
        %3084 = vmatpush2.xpose.msra.mxu0 0.0
        %3085 = vmatprep.mubr.f32.mxu0 0.0
        %3086 = vmatmul.mubr.f32.gmra.mxu0 %v3017
        %v3087 = vpop.f32.mrf.mxu0
        %v3088 = vadd.f32 0.0, %v3087
        %v3089 = vpop.f32.mrf.mxu0
        %3090 = vdwg.mxu0
        %3091 = vrot.lane.b32.xlu0 %v2775, 64
        %v3092 = vpop.permute.xlu0 %3091
        %v3093 = vsel %vm743, %v2775, 0
        %v3095 = vsel %vm743, %v3092, 0
        %3097 = vmatprep.subr.mxu0 0.0
        %3098 = vmatpush1.xpose.msra.mxu0 0.0
        %3099 = vmatprep.subr.mxu0 0.0
        %3100 = vmatpush1.xpose.msra.mxu0 0.0
        %3101 = vmatprep.subr.mxu0 0.0
        %3102 = vmatpush1.xpose.msra.mxu0 0.0
        %3103 = vmatprep.subr.mxu0 0.0
        %3104 = vmatpush1.xpose.msra.mxu0 0.0
        %3105 = vmatprep.subr.mxu0 0.0
        %3106 = vmatpush1.xpose.msra.mxu0 0.0
        %3107 = vmatprep.subr.mxu0 0.0
        %3108 = vmatpush1.xpose.msra.mxu0 0.0
        %3109 = vmatprep.subr.mxu0 0.0
        %3110 = vmatpush1.xpose.msra.mxu0 0.0
        %3111 = vmatprep.subr.mxu0 0.0
        %3112 = vmatpush1.xpose.msra.mxu0 0.0
        %3113 = vmatprep.subr.mxu0 0.0
        %3114 = vmatpush1.xpose.msra.mxu0 0.0
        %3115 = vmatprep.subr.mxu0 0.0
        %3116 = vmatpush1.xpose.msra.mxu0 0.0
        %3117 = vmatprep.subr.mxu0 0.0
        %3118 = vmatpush1.xpose.msra.mxu0 0.0
        %3119 = vmatprep.subr.mxu0 0.0
        %3120 = vmatpush1.xpose.msra.mxu0 0.0
        %3121 = vmatprep.subr.mxu0 0.0
        %3122 = vmatpush1.xpose.msra.mxu0 0.0
        %3123 = vmatprep.subr.mxu0 0.0
        %3124 = vmatpush1.xpose.msra.mxu0 0.0
        %3125 = vmatprep.subr.mxu0 0.0
        %3126 = vmatpush1.xpose.msra.mxu0 0.0
        %3127 = vmatprep.subr.mxu0 0.0
        %3128 = vmatpush1.xpose.msra.mxu0 %v3095
        %3129 = vmatprep.subr.mxu0 0.0
        %3130 = vmatpush2.xpose.msra.mxu0 0.0
        %3131 = vmatprep.subr.mxu0 0.0
        %3132 = vmatpush2.xpose.msra.mxu0 0.0
        %3133 = vmatprep.subr.mxu0 0.0
        %3134 = vmatpush2.xpose.msra.mxu0 0.0
        %3135 = vmatprep.subr.mxu0 0.0
        %3136 = vmatpush2.xpose.msra.mxu0 0.0
        %3137 = vmatprep.subr.mxu0 0.0
        %3138 = vmatpush2.xpose.msra.mxu0 0.0
        %3139 = vmatprep.subr.mxu0 0.0
        %3140 = vmatpush2.xpose.msra.mxu0 0.0
        %3141 = vmatprep.subr.mxu0 0.0
        %3142 = vmatpush2.xpose.msra.mxu0 0.0
        %3143 = vmatprep.subr.mxu0 0.0
        %3144 = vmatpush2.xpose.msra.mxu0 0.0
        %3145 = vmatprep.subr.mxu0 0.0
        %3146 = vmatpush2.xpose.msra.mxu0 0.0
        %3147 = vmatprep.subr.mxu0 0.0
        %3148 = vmatpush2.xpose.msra.mxu0 0.0
        %3149 = vmatprep.subr.mxu0 0.0
        %3150 = vmatpush2.xpose.msra.mxu0 0.0
        %3151 = vmatprep.subr.mxu0 0.0
        %3152 = vmatpush2.xpose.msra.mxu0 0.0
        %3153 = vmatprep.subr.mxu0 0.0
        %3154 = vmatpush2.xpose.msra.mxu0 0.0
        %3155 = vmatprep.subr.mxu0 0.0
        %3156 = vmatpush2.xpose.msra.mxu0 0.0
        %3157 = vmatprep.subr.mxu0 0.0
        %3158 = vmatpush2.xpose.msra.mxu0 0.0
        %3159 = vmatprep.subr.mxu0 0.0
        %3160 = vmatpush2.xpose.msra.mxu0 0.0
        %3161 = vmatprep.mubr.f32.mxu0 0.0
        %3162 = vmatmul.mubr.f32.gmra.mxu0 %v3093
        %v3163 = vpop.f32.mrf.mxu0
        %v3164 = vadd.f32 0.0, %v3163
        %v3165 = vpop.f32.mrf.mxu0
        %3166 = vdwg.mxu0
        %3167 = vrot.lane.b32.xlu0 %v2779, 64
        %v3168 = vpop.permute.xlu0 %3167
        %v3169 = vsel %vm743, %v2779, 0
        %v3171 = vsel %vm743, %v3168, 0
        %3173 = vmatprep.subr.mxu0 0.0
        %3174 = vmatpush1.xpose.msra.mxu0 0.0
        %3175 = vmatprep.subr.mxu0 0.0
        %3176 = vmatpush1.xpose.msra.mxu0 0.0
        %3177 = vmatprep.subr.mxu0 0.0
        %3178 = vmatpush1.xpose.msra.mxu0 0.0
        %3179 = vmatprep.subr.mxu0 0.0
        %3180 = vmatpush1.xpose.msra.mxu0 0.0
        %3181 = vmatprep.subr.mxu0 0.0
        %3182 = vmatpush1.xpose.msra.mxu0 0.0
        %3183 = vmatprep.subr.mxu0 0.0
        %3184 = vmatpush1.xpose.msra.mxu0 0.0
        %3185 = vmatprep.subr.mxu0 0.0
        %3186 = vmatpush1.xpose.msra.mxu0 0.0
        %3187 = vmatprep.subr.mxu0 0.0
        %3188 = vmatpush1.xpose.msra.mxu0 0.0
        %3189 = vmatprep.subr.mxu0 0.0
        %3190 = vmatpush1.xpose.msra.mxu0 0.0
        %3191 = vmatprep.subr.mxu0 0.0
        %3192 = vmatpush1.xpose.msra.mxu0 0.0
        %3193 = vmatprep.subr.mxu0 0.0
        %3194 = vmatpush1.xpose.msra.mxu0 0.0
        %3195 = vmatprep.subr.mxu0 0.0
        %3196 = vmatpush1.xpose.msra.mxu0 0.0
        %3197 = vmatprep.subr.mxu0 0.0
        %3198 = vmatpush1.xpose.msra.mxu0 0.0
        %3199 = vmatprep.subr.mxu0 0.0
        %3200 = vmatpush1.xpose.msra.mxu0 0.0
        %3201 = vmatprep.subr.mxu0 0.0
        %3202 = vmatpush1.xpose.msra.mxu0 0.0
        %3203 = vmatprep.subr.mxu0 0.0
        %3204 = vmatpush1.xpose.msra.mxu0 %v3171
        %3205 = vmatprep.subr.mxu0 0.0
        %3206 = vmatpush2.xpose.msra.mxu0 0.0
        %3207 = vmatprep.subr.mxu0 0.0
        %3208 = vmatpush2.xpose.msra.mxu0 0.0
        %3209 = vmatprep.subr.mxu0 0.0
        %3210 = vmatpush2.xpose.msra.mxu0 0.0
        %3211 = vmatprep.subr.mxu0 0.0
        %3212 = vmatpush2.xpose.msra.mxu0 0.0
        %3213 = vmatprep.subr.mxu0 0.0
        %3214 = vmatpush2.xpose.msra.mxu0 0.0
        %3215 = vmatprep.subr.mxu0 0.0
        %3216 = vmatpush2.xpose.msra.mxu0 0.0
        %3217 = vmatprep.subr.mxu0 0.0
        %3218 = vmatpush2.xpose.msra.mxu0 0.0
        %3219 = vmatprep.subr.mxu0 0.0
        %3220 = vmatpush2.xpose.msra.mxu0 0.0
        %3221 = vmatprep.subr.mxu0 0.0
        %3222 = vmatpush2.xpose.msra.mxu0 0.0
        %3223 = vmatprep.subr.mxu0 0.0
        %3224 = vmatpush2.xpose.msra.mxu0 0.0
        %3225 = vmatprep.subr.mxu0 0.0
        %3226 = vmatpush2.xpose.msra.mxu0 0.0
        %3227 = vmatprep.subr.mxu0 0.0
        %3228 = vmatpush2.xpose.msra.mxu0 0.0
        %3229 = vmatprep.subr.mxu0 0.0
        %3230 = vmatpush2.xpose.msra.mxu0 0.0
        %3231 = vmatprep.subr.mxu0 0.0
        %3232 = vmatpush2.xpose.msra.mxu0 0.0
        %3233 = vmatprep.subr.mxu0 0.0
        %3234 = vmatpush2.xpose.msra.mxu0 0.0
        %3235 = vmatprep.subr.mxu0 0.0
        %3236 = vmatpush2.xpose.msra.mxu0 0.0
        %3237 = vmatprep.mubr.f32.mxu0 0.0
        %3238 = vmatmul.mubr.f32.gmra.mxu0 %v3169
        %v3239 = vpop.f32.mrf.mxu0
        %v3240 = vadd.f32 0.0, %v3239
        %v3241 = vpop.f32.mrf.mxu0
        %3242 = vdwg.mxu0
        %3243 = vrot.lane.b32.xlu0 %v2785, 64
        %v3244 = vpop.permute.xlu0 %3243
        %v3245 = vsel %vm743, %v2785, 0
        %v3247 = vsel %vm743, %v3244, 0
        %3249 = vmatprep.subr.mxu0 0.0
        %3250 = vmatpush1.xpose.msra.mxu0 0.0
        %3251 = vmatprep.subr.mxu0 0.0
        %3252 = vmatpush1.xpose.msra.mxu0 0.0
        %3253 = vmatprep.subr.mxu0 0.0
        %3254 = vmatpush1.xpose.msra.mxu0 0.0
        %3255 = vmatprep.subr.mxu0 0.0
        %3256 = vmatpush1.xpose.msra.mxu0 0.0
        %3257 = vmatprep.subr.mxu0 0.0
        %3258 = vmatpush1.xpose.msra.mxu0 0.0
        %3259 = vmatprep.subr.mxu0 0.0
        %3260 = vmatpush1.xpose.msra.mxu0 0.0
        %3261 = vmatprep.subr.mxu0 0.0
        %3262 = vmatpush1.xpose.msra.mxu0 0.0
        %3263 = vmatprep.subr.mxu0 0.0
        %3264 = vmatpush1.xpose.msra.mxu0 0.0
        %3265 = vmatprep.subr.mxu0 0.0
        %3266 = vmatpush1.xpose.msra.mxu0 0.0
        %3267 = vmatprep.subr.mxu0 0.0
        %3268 = vmatpush1.xpose.msra.mxu0 0.0
        %3269 = vmatprep.subr.mxu0 0.0
        %3270 = vmatpush1.xpose.msra.mxu0 0.0
        %3271 = vmatprep.subr.mxu0 0.0
        %3272 = vmatpush1.xpose.msra.mxu0 0.0
        %3273 = vmatprep.subr.mxu0 0.0
        %3274 = vmatpush1.xpose.msra.mxu0 0.0
        %3275 = vmatprep.subr.mxu0 0.0
        %3276 = vmatpush1.xpose.msra.mxu0 0.0
        %3277 = vmatprep.subr.mxu0 0.0
        %3278 = vmatpush1.xpose.msra.mxu0 0.0
        %3279 = vmatprep.subr.mxu0 0.0
        %3280 = vmatpush1.xpose.msra.mxu0 %v3247
        %3281 = vmatprep.subr.mxu0 0.0
        %3282 = vmatpush2.xpose.msra.mxu0 0.0
        %3283 = vmatprep.subr.mxu0 0.0
        %3284 = vmatpush2.xpose.msra.mxu0 0.0
        %3285 = vmatprep.subr.mxu0 0.0
        %3286 = vmatpush2.xpose.msra.mxu0 0.0
        %3287 = vmatprep.subr.mxu0 0.0
        %3288 = vmatpush2.xpose.msra.mxu0 0.0
        %3289 = vmatprep.subr.mxu0 0.0
        %3290 = vmatpush2.xpose.msra.mxu0 0.0
        %3291 = vmatprep.subr.mxu0 0.0
        %3292 = vmatpush2.xpose.msra.mxu0 0.0
        %3293 = vmatprep.subr.mxu0 0.0
        %3294 = vmatpush2.xpose.msra.mxu0 0.0
        %3295 = vmatprep.subr.mxu0 0.0
        %3296 = vmatpush2.xpose.msra.mxu0 0.0
        %3297 = vmatprep.subr.mxu0 0.0
        %3298 = vmatpush2.xpose.msra.mxu0 0.0
        %3299 = vmatprep.subr.mxu0 0.0
        %3300 = vmatpush2.xpose.msra.mxu0 0.0
        %3301 = vmatprep.subr.mxu0 0.0
        %3302 = vmatpush2.xpose.msra.mxu0 0.0
        %3303 = vmatprep.subr.mxu0 0.0
        %3304 = vmatpush2.xpose.msra.mxu0 0.0
        %3305 = vmatprep.subr.mxu0 0.0
        %3306 = vmatpush2.xpose.msra.mxu0 0.0
        %3307 = vmatprep.subr.mxu0 0.0
        %3308 = vmatpush2.xpose.msra.mxu0 0.0
        %3309 = vmatprep.subr.mxu0 0.0
        %3310 = vmatpush2.xpose.msra.mxu0 0.0
        %3311 = vmatprep.subr.mxu0 0.0
        %3312 = vmatpush2.xpose.msra.mxu0 0.0
        %3313 = vmatprep.mubr.f32.mxu0 0.0
        %3314 = vmatmul.mubr.f32.gmra.mxu0 %v3245
        %v3315 = vpop.f32.mrf.mxu0
        %v3316 = vadd.f32 0.0, %v3315
        %v3317 = vpop.f32.mrf.mxu0
        %3318 = vdwg.mxu0
        %3319 = vrot.lane.b32.xlu0 %v2789, 64
        %v3320 = vpop.permute.xlu0 %3319
        %v3321 = vsel %vm743, %v2789, 0
        %v3323 = vsel %vm743, %v3320, 0
        %3325 = vmatprep.subr.mxu0 0.0
        %3326 = vmatpush1.xpose.msra.mxu0 0.0
        %3327 = vmatprep.subr.mxu0 0.0
        %3328 = vmatpush1.xpose.msra.mxu0 0.0
        %3329 = vmatprep.subr.mxu0 0.0
        %3330 = vmatpush1.xpose.msra.mxu0 0.0
        %3331 = vmatprep.subr.mxu0 0.0
        %3332 = vmatpush1.xpose.msra.mxu0 0.0
        %3333 = vmatprep.subr.mxu0 0.0
        %3334 = vmatpush1.xpose.msra.mxu0 0.0
        %3335 = vmatprep.subr.mxu0 0.0
        %3336 = vmatpush1.xpose.msra.mxu0 0.0
        %3337 = vmatprep.subr.mxu0 0.0
        %3338 = vmatpush1.xpose.msra.mxu0 0.0
        %3339 = vmatprep.subr.mxu0 0.0
        %3340 = vmatpush1.xpose.msra.mxu0 0.0
        %3341 = vmatprep.subr.mxu0 0.0
        %3342 = vmatpush1.xpose.msra.mxu0 0.0
        %3343 = vmatprep.subr.mxu0 0.0
        %3344 = vmatpush1.xpose.msra.mxu0 0.0
        %3345 = vmatprep.subr.mxu0 0.0
        %3346 = vmatpush1.xpose.msra.mxu0 0.0
        %3347 = vmatprep.subr.mxu0 0.0
        %3348 = vmatpush1.xpose.msra.mxu0 0.0
        %3349 = vmatprep.subr.mxu0 0.0
        %3350 = vmatpush1.xpose.msra.mxu0 0.0
        %3351 = vmatprep.subr.mxu0 0.0
        %3352 = vmatpush1.xpose.msra.mxu0 0.0
        %3353 = vmatprep.subr.mxu0 0.0
        %3354 = vmatpush1.xpose.msra.mxu0 0.0
        %3355 = vmatprep.subr.mxu0 0.0
        %3356 = vmatpush1.xpose.msra.mxu0 %v3323
        %3357 = vmatprep.subr.mxu0 0.0
        %3358 = vmatpush2.xpose.msra.mxu0 0.0
        %3359 = vmatprep.subr.mxu0 0.0
        %3360 = vmatpush2.xpose.msra.mxu0 0.0
        %3361 = vmatprep.subr.mxu0 0.0
        %3362 = vmatpush2.xpose.msra.mxu0 0.0
        %3363 = vmatprep.subr.mxu0 0.0
        %3364 = vmatpush2.xpose.msra.mxu0 0.0
        %3365 = vmatprep.subr.mxu0 0.0
        %3366 = vmatpush2.xpose.msra.mxu0 0.0
        %3367 = vmatprep.subr.mxu0 0.0
        %3368 = vmatpush2.xpose.msra.mxu0 0.0
        %3369 = vmatprep.subr.mxu0 0.0
        %3370 = vmatpush2.xpose.msra.mxu0 0.0
        %3371 = vmatprep.subr.mxu0 0.0
        %3372 = vmatpush2.xpose.msra.mxu0 0.0
        %3373 = vmatprep.subr.mxu0 0.0
        %3374 = vmatpush2.xpose.msra.mxu0 0.0
        %3375 = vmatprep.subr.mxu0 0.0
        %3376 = vmatpush2.xpose.msra.mxu0 0.0
        %3377 = vmatprep.subr.mxu0 0.0
        %3378 = vmatpush2.xpose.msra.mxu0 0.0
        %3379 = vmatprep.subr.mxu0 0.0
        %3380 = vmatpush2.xpose.msra.mxu0 0.0
        %3381 = vmatprep.subr.mxu0 0.0
        %3382 = vmatpush2.xpose.msra.mxu0 0.0
        %3383 = vmatprep.subr.mxu0 0.0
        %3384 = vmatpush2.xpose.msra.mxu0 0.0
        %3385 = vmatprep.subr.mxu0 0.0
        %3386 = vmatpush2.xpose.msra.mxu0 0.0
        %3387 = vmatprep.subr.mxu0 0.0
        %3388 = vmatpush2.xpose.msra.mxu0 0.0
        %3389 = vmatprep.mubr.f32.mxu0 0.0
        %3390 = vmatmul.mubr.f32.gmra.mxu0 %v3321
        %v3391 = vpop.f32.mrf.mxu0
        %v3392 = vadd.f32 0.0, %v3391
        %v3393 = vpop.f32.mrf.mxu0
        %3394 = vdwg.mxu0
        %3395 = vrot.lane.b32.xlu0 %v2795, 64
        %v3396 = vpop.permute.xlu0 %3395
        %v3397 = vsel %vm743, %v2795, 0
        %v3399 = vsel %vm743, %v3396, 0
        %3401 = vmatprep.subr.mxu0 0.0
        %3402 = vmatpush1.xpose.msra.mxu0 0.0
        %3403 = vmatprep.subr.mxu0 0.0
        %3404 = vmatpush1.xpose.msra.mxu0 0.0
        %3405 = vmatprep.subr.mxu0 0.0
        %3406 = vmatpush1.xpose.msra.mxu0 0.0
        %3407 = vmatprep.subr.mxu0 0.0
        %3408 = vmatpush1.xpose.msra.mxu0 0.0
        %3409 = vmatprep.subr.mxu0 0.0
        %3410 = vmatpush1.xpose.msra.mxu0 0.0
        %3411 = vmatprep.subr.mxu0 0.0
        %3412 = vmatpush1.xpose.msra.mxu0 0.0
        %3413 = vmatprep.subr.mxu0 0.0
        %3414 = vmatpush1.xpose.msra.mxu0 0.0
        %3415 = vmatprep.subr.mxu0 0.0
        %3416 = vmatpush1.xpose.msra.mxu0 0.0
        %3417 = vmatprep.subr.mxu0 0.0
        %3418 = vmatpush1.xpose.msra.mxu0 0.0
        %3419 = vmatprep.subr.mxu0 0.0
        %3420 = vmatpush1.xpose.msra.mxu0 0.0
        %3421 = vmatprep.subr.mxu0 0.0
        %3422 = vmatpush1.xpose.msra.mxu0 0.0
        %3423 = vmatprep.subr.mxu0 0.0
        %3424 = vmatpush1.xpose.msra.mxu0 0.0
        %3425 = vmatprep.subr.mxu0 0.0
        %3426 = vmatpush1.xpose.msra.mxu0 0.0
        %3427 = vmatprep.subr.mxu0 0.0
        %3428 = vmatpush1.xpose.msra.mxu0 0.0
        %3429 = vmatprep.subr.mxu0 0.0
        %3430 = vmatpush1.xpose.msra.mxu0 0.0
        %3431 = vmatprep.subr.mxu0 0.0
        %3432 = vmatpush1.xpose.msra.mxu0 %v3399
        %3433 = vmatprep.subr.mxu0 0.0
        %3434 = vmatpush2.xpose.msra.mxu0 0.0
        %3435 = vmatprep.subr.mxu0 0.0
        %3436 = vmatpush2.xpose.msra.mxu0 0.0
        %3437 = vmatprep.subr.mxu0 0.0
        %3438 = vmatpush2.xpose.msra.mxu0 0.0
        %3439 = vmatprep.subr.mxu0 0.0
        %3440 = vmatpush2.xpose.msra.mxu0 0.0
        %3441 = vmatprep.subr.mxu0 0.0
        %3442 = vmatpush2.xpose.msra.mxu0 0.0
        %3443 = vmatprep.subr.mxu0 0.0
        %3444 = vmatpush2.xpose.msra.mxu0 0.0
        %3445 = vmatprep.subr.mxu0 0.0
        %3446 = vmatpush2.xpose.msra.mxu0 0.0
        %3447 = vmatprep.subr.mxu0 0.0
        %3448 = vmatpush2.xpose.msra.mxu0 0.0
        %3449 = vmatprep.subr.mxu0 0.0
        %3450 = vmatpush2.xpose.msra.mxu0 0.0
        %3451 = vmatprep.subr.mxu0 0.0
        %3452 = vmatpush2.xpose.msra.mxu0 0.0
        %3453 = vmatprep.subr.mxu0 0.0
        %3454 = vmatpush2.xpose.msra.mxu0 0.0
        %3455 = vmatprep.subr.mxu0 0.0
        %3456 = vmatpush2.xpose.msra.mxu0 0.0
        %3457 = vmatprep.subr.mxu0 0.0
        %3458 = vmatpush2.xpose.msra.mxu0 0.0
        %3459 = vmatprep.subr.mxu0 0.0
        %3460 = vmatpush2.xpose.msra.mxu0 0.0
        %3461 = vmatprep.subr.mxu0 0.0
        %3462 = vmatpush2.xpose.msra.mxu0 0.0
        %3463 = vmatprep.subr.mxu0 0.0
        %3464 = vmatpush2.xpose.msra.mxu0 0.0
        %3465 = vmatprep.mubr.f32.mxu0 0.0
        %3466 = vmatmul.mubr.f32.gmra.mxu0 %v3397
        %v3467 = vpop.f32.mrf.mxu0
        %v3468 = vadd.f32 0.0, %v3467
        %v3469 = vpop.f32.mrf.mxu0
        %3470 = vdwg.mxu0
        %3471 = vrot.lane.b32.xlu0 %v2799, 64
        %v3472 = vpop.permute.xlu0 %3471
        %v3473 = vsel %vm743, %v2799, 0
        %v3475 = vsel %vm743, %v3472, 0
        %3477 = vmatprep.subr.mxu0 0.0
        %3478 = vmatpush1.xpose.msra.mxu0 0.0
        %3479 = vmatprep.subr.mxu0 0.0
        %3480 = vmatpush1.xpose.msra.mxu0 0.0
        %3481 = vmatprep.subr.mxu0 0.0
        %3482 = vmatpush1.xpose.msra.mxu0 0.0
        %3483 = vmatprep.subr.mxu0 0.0
        %3484 = vmatpush1.xpose.msra.mxu0 0.0
        %3485 = vmatprep.subr.mxu0 0.0
        %3486 = vmatpush1.xpose.msra.mxu0 0.0
        %3487 = vmatprep.subr.mxu0 0.0
        %3488 = vmatpush1.xpose.msra.mxu0 0.0
        %3489 = vmatprep.subr.mxu0 0.0
        %3490 = vmatpush1.xpose.msra.mxu0 0.0
        %3491 = vmatprep.subr.mxu0 0.0
        %3492 = vmatpush1.xpose.msra.mxu0 0.0
        %3493 = vmatprep.subr.mxu0 0.0
        %3494 = vmatpush1.xpose.msra.mxu0 0.0
        %3495 = vmatprep.subr.mxu0 0.0
        %3496 = vmatpush1.xpose.msra.mxu0 0.0
        %3497 = vmatprep.subr.mxu0 0.0
        %3498 = vmatpush1.xpose.msra.mxu0 0.0
        %3499 = vmatprep.subr.mxu0 0.0
        %3500 = vmatpush1.xpose.msra.mxu0 0.0
        %3501 = vmatprep.subr.mxu0 0.0
        %3502 = vmatpush1.xpose.msra.mxu0 0.0
        %3503 = vmatprep.subr.mxu0 0.0
        %3504 = vmatpush1.xpose.msra.mxu0 0.0
        %3505 = vmatprep.subr.mxu0 0.0
        %3506 = vmatpush1.xpose.msra.mxu0 0.0
        %3507 = vmatprep.subr.mxu0 0.0
        %3508 = vmatpush1.xpose.msra.mxu0 %v3475
        %3509 = vmatprep.subr.mxu0 0.0
        %3510 = vmatpush2.xpose.msra.mxu0 0.0
        %3511 = vmatprep.subr.mxu0 0.0
        %3512 = vmatpush2.xpose.msra.mxu0 0.0
        %3513 = vmatprep.subr.mxu0 0.0
        %3514 = vmatpush2.xpose.msra.mxu0 0.0
        %3515 = vmatprep.subr.mxu0 0.0
        %3516 = vmatpush2.xpose.msra.mxu0 0.0
        %3517 = vmatprep.subr.mxu0 0.0
        %3518 = vmatpush2.xpose.msra.mxu0 0.0
        %3519 = vmatprep.subr.mxu0 0.0
        %3520 = vmatpush2.xpose.msra.mxu0 0.0
        %3521 = vmatprep.subr.mxu0 0.0
        %3522 = vmatpush2.xpose.msra.mxu0 0.0
        %3523 = vmatprep.subr.mxu0 0.0
        %3524 = vmatpush2.xpose.msra.mxu0 0.0
        %3525 = vmatprep.subr.mxu0 0.0
        %3526 = vmatpush2.xpose.msra.mxu0 0.0
        %3527 = vmatprep.subr.mxu0 0.0
        %3528 = vmatpush2.xpose.msra.mxu0 0.0
        %3529 = vmatprep.subr.mxu0 0.0
        %3530 = vmatpush2.xpose.msra.mxu0 0.0
        %3531 = vmatprep.subr.mxu0 0.0
        %3532 = vmatpush2.xpose.msra.mxu0 0.0
        %3533 = vmatprep.subr.mxu0 0.0
        %3534 = vmatpush2.xpose.msra.mxu0 0.0
        %3535 = vmatprep.subr.mxu0 0.0
        %3536 = vmatpush2.xpose.msra.mxu0 0.0
        %3537 = vmatprep.subr.mxu0 0.0
        %3538 = vmatpush2.xpose.msra.mxu0 0.0
        %3539 = vmatprep.subr.mxu0 0.0
        %3540 = vmatpush2.xpose.msra.mxu0 0.0
        %3541 = vmatprep.mubr.f32.mxu0 0.0
        %3542 = vmatmul.mubr.f32.gmra.mxu0 %v3473
        %v3543 = vpop.f32.mrf.mxu0
        %v3544 = vadd.f32 0.0, %v3543
        %v3545 = vpop.f32.mrf.mxu0
        %3546 = vdwg.mxu0
        %3547 = vrot.lane.b32.xlu0 %v2812, 64
        %v3548 = vpop.permute.xlu0 %3547
        %v3549 = vsel %vm743, %v2812, 0
        %v3551 = vsel %vm743, %v3548, 0
        %3553 = vmatprep.subr.mxu0 0.0
        %3554 = vmatpush1.xpose.msra.mxu0 0.0
        %3555 = vmatprep.subr.mxu0 0.0
        %3556 = vmatpush1.xpose.msra.mxu0 0.0
        %3557 = vmatprep.subr.mxu0 0.0
        %3558 = vmatpush1.xpose.msra.mxu0 0.0
        %3559 = vmatprep.subr.mxu0 0.0
        %3560 = vmatpush1.xpose.msra.mxu0 0.0
        %3561 = vmatprep.subr.mxu0 0.0
        %3562 = vmatpush1.xpose.msra.mxu0 0.0
        %3563 = vmatprep.subr.mxu0 0.0
        %3564 = vmatpush1.xpose.msra.mxu0 0.0
        %3565 = vmatprep.subr.mxu0 0.0
        %3566 = vmatpush1.xpose.msra.mxu0 0.0
        %3567 = vmatprep.subr.mxu0 0.0
        %3568 = vmatpush1.xpose.msra.mxu0 0.0
        %3569 = vmatprep.subr.mxu0 0.0
        %3570 = vmatpush1.xpose.msra.mxu0 0.0
        %3571 = vmatprep.subr.mxu0 0.0
        %3572 = vmatpush1.xpose.msra.mxu0 0.0
        %3573 = vmatprep.subr.mxu0 0.0
        %3574 = vmatpush1.xpose.msra.mxu0 0.0
        %3575 = vmatprep.subr.mxu0 0.0
        %3576 = vmatpush1.xpose.msra.mxu0 0.0
        %3577 = vmatprep.subr.mxu0 0.0
        %3578 = vmatpush1.xpose.msra.mxu0 0.0
        %3579 = vmatprep.subr.mxu0 0.0
        %3580 = vmatpush1.xpose.msra.mxu0 0.0
        %3581 = vmatprep.subr.mxu0 0.0
        %3582 = vmatpush1.xpose.msra.mxu0 0.0
        %3583 = vmatprep.subr.mxu0 0.0
        %3584 = vmatpush1.xpose.msra.mxu0 %v3551
        %3585 = vmatprep.subr.mxu0 0.0
        %3586 = vmatpush2.xpose.msra.mxu0 0.0
        %3587 = vmatprep.subr.mxu0 0.0
        %3588 = vmatpush2.xpose.msra.mxu0 0.0
        %3589 = vmatprep.subr.mxu0 0.0
        %3590 = vmatpush2.xpose.msra.mxu0 0.0
        %3591 = vmatprep.subr.mxu0 0.0
        %3592 = vmatpush2.xpose.msra.mxu0 0.0
        %3593 = vmatprep.subr.mxu0 0.0
        %3594 = vmatpush2.xpose.msra.mxu0 0.0
        %3595 = vmatprep.subr.mxu0 0.0
        %3596 = vmatpush2.xpose.msra.mxu0 0.0
        %3597 = vmatprep.subr.mxu0 0.0
        %3598 = vmatpush2.xpose.msra.mxu0 0.0
        %3599 = vmatprep.subr.mxu0 0.0
        %3600 = vmatpush2.xpose.msra.mxu0 0.0
        %3601 = vmatprep.subr.mxu0 0.0
        %3602 = vmatpush2.xpose.msra.mxu0 0.0
        %3603 = vmatprep.subr.mxu0 0.0
        %3604 = vmatpush2.xpose.msra.mxu0 0.0
        %3605 = vmatprep.subr.mxu0 0.0
        %3606 = vmatpush2.xpose.msra.mxu0 0.0
        %3607 = vmatprep.subr.mxu0 0.0
        %3608 = vmatpush2.xpose.msra.mxu0 0.0
        %3609 = vmatprep.subr.mxu0 0.0
        %3610 = vmatpush2.xpose.msra.mxu0 0.0
        %3611 = vmatprep.subr.mxu0 0.0
        %3612 = vmatpush2.xpose.msra.mxu0 0.0
        %3613 = vmatprep.subr.mxu0 0.0
        %3614 = vmatpush2.xpose.msra.mxu0 0.0
        %3615 = vmatprep.subr.mxu0 0.0
        %3616 = vmatpush2.xpose.msra.mxu0 0.0
        %3617 = vmatprep.mubr.f32.mxu0 0.0
        %3618 = vmatmul.mubr.f32.gmra.mxu0 %v3549
        %v3619 = vpop.f32.mrf.mxu0
        %v3620 = vadd.f32 0.0, %v3619
        %v3621 = vpop.f32.mrf.mxu0
        %3622 = vdwg.mxu0
        %3623 = vrot.lane.b32.xlu0 %v2814, 64
        %v3624 = vpop.permute.xlu0 %3623
        %v3625 = vsel %vm743, %v2814, 0
        %v3627 = vsel %vm743, %v3624, 0
        %3629 = vmatprep.subr.mxu0 0.0
        %3630 = vmatpush1.xpose.msra.mxu0 0.0
        %3631 = vmatprep.subr.mxu0 0.0
        %3632 = vmatpush1.xpose.msra.mxu0 0.0
        %3633 = vmatprep.subr.mxu0 0.0
        %3634 = vmatpush1.xpose.msra.mxu0 0.0
        %3635 = vmatprep.subr.mxu0 0.0
        %3636 = vmatpush1.xpose.msra.mxu0 0.0
        %3637 = vmatprep.subr.mxu0 0.0
        %3638 = vmatpush1.xpose.msra.mxu0 0.0
        %3639 = vmatprep.subr.mxu0 0.0
        %3640 = vmatpush1.xpose.msra.mxu0 0.0
        %3641 = vmatprep.subr.mxu0 0.0
        %3642 = vmatpush1.xpose.msra.mxu0 0.0
        %3643 = vmatprep.subr.mxu0 0.0
        %3644 = vmatpush1.xpose.msra.mxu0 0.0
        %3645 = vmatprep.subr.mxu0 0.0
        %3646 = vmatpush1.xpose.msra.mxu0 0.0
        %3647 = vmatprep.subr.mxu0 0.0
        %3648 = vmatpush1.xpose.msra.mxu0 0.0
        %3649 = vmatprep.subr.mxu0 0.0
        %3650 = vmatpush1.xpose.msra.mxu0 0.0
        %3651 = vmatprep.subr.mxu0 0.0
        %3652 = vmatpush1.xpose.msra.mxu0 0.0
        %3653 = vmatprep.subr.mxu0 0.0
        %3654 = vmatpush1.xpose.msra.mxu0 0.0
        %3655 = vmatprep.subr.mxu0 0.0
        %3656 = vmatpush1.xpose.msra.mxu0 0.0
        %3657 = vmatprep.subr.mxu0 0.0
        %3658 = vmatpush1.xpose.msra.mxu0 0.0
        %3659 = vmatprep.subr.mxu0 0.0
        %3660 = vmatpush1.xpose.msra.mxu0 %v3627
        %3661 = vmatprep.subr.mxu0 0.0
        %3662 = vmatpush2.xpose.msra.mxu0 0.0
        %3663 = vmatprep.subr.mxu0 0.0
        %3664 = vmatpush2.xpose.msra.mxu0 0.0
        %3665 = vmatprep.subr.mxu0 0.0
        %3666 = vmatpush2.xpose.msra.mxu0 0.0
        %3667 = vmatprep.subr.mxu0 0.0
        %3668 = vmatpush2.xpose.msra.mxu0 0.0
        %3669 = vmatprep.subr.mxu0 0.0
        %3670 = vmatpush2.xpose.msra.mxu0 0.0
        %3671 = vmatprep.subr.mxu0 0.0
        %3672 = vmatpush2.xpose.msra.mxu0 0.0
        %3673 = vmatprep.subr.mxu0 0.0
        %3674 = vmatpush2.xpose.msra.mxu0 0.0
        %3675 = vmatprep.subr.mxu0 0.0
        %3676 = vmatpush2.xpose.msra.mxu0 0.0
        %3677 = vmatprep.subr.mxu0 0.0
        %3678 = vmatpush2.xpose.msra.mxu0 0.0
        %3679 = vmatprep.subr.mxu0 0.0
        %3680 = vmatpush2.xpose.msra.mxu0 0.0
        %3681 = vmatprep.subr.mxu0 0.0
        %3682 = vmatpush2.xpose.msra.mxu0 0.0
        %3683 = vmatprep.subr.mxu0 0.0
        %3684 = vmatpush2.xpose.msra.mxu0 0.0
        %3685 = vmatprep.subr.mxu0 0.0
        %3686 = vmatpush2.xpose.msra.mxu0 0.0
        %3687 = vmatprep.subr.mxu0 0.0
        %3688 = vmatpush2.xpose.msra.mxu0 0.0
        %3689 = vmatprep.subr.mxu0 0.0
        %3690 = vmatpush2.xpose.msra.mxu0 0.0
        %3691 = vmatprep.subr.mxu0 0.0
        %3692 = vmatpush2.xpose.msra.mxu0 0.0
        %3693 = vmatprep.mubr.f32.mxu0 0.0
        %3694 = vmatmul.mubr.f32.gmra.mxu0 %v3625
        %v3695 = vpop.f32.mrf.mxu0
        %v3696 = vadd.f32 0.0, %v3695
        %v3697 = vpop.f32.mrf.mxu0
        %3698 = vdwg.mxu0
        %3699 = vrot.lane.b32.xlu0 %v2816, 64
        %v3700 = vpop.permute.xlu0 %3699
        %v3701 = vsel %vm743, %v2816, 0
        %v3703 = vsel %vm743, %v3700, 0
        %3705 = vmatprep.subr.mxu0 0.0
        %3706 = vmatpush1.xpose.msra.mxu0 0.0
        %3707 = vmatprep.subr.mxu0 0.0
        %3708 = vmatpush1.xpose.msra.mxu0 0.0
        %3709 = vmatprep.subr.mxu0 0.0
        %3710 = vmatpush1.xpose.msra.mxu0 0.0
        %3711 = vmatprep.subr.mxu0 0.0
        %3712 = vmatpush1.xpose.msra.mxu0 0.0
        %3713 = vmatprep.subr.mxu0 0.0
        %3714 = vmatpush1.xpose.msra.mxu0 0.0
        %3715 = vmatprep.subr.mxu0 0.0
        %3716 = vmatpush1.xpose.msra.mxu0 0.0
        %3717 = vmatprep.subr.mxu0 0.0
        %3718 = vmatpush1.xpose.msra.mxu0 0.0
        %3719 = vmatprep.subr.mxu0 0.0
        %3720 = vmatpush1.xpose.msra.mxu0 0.0
        %3721 = vmatprep.subr.mxu0 0.0
        %3722 = vmatpush1.xpose.msra.mxu0 0.0
        %3723 = vmatprep.subr.mxu0 0.0
        %3724 = vmatpush1.xpose.msra.mxu0 0.0
        %3725 = vmatprep.subr.mxu0 0.0
        %3726 = vmatpush1.xpose.msra.mxu0 0.0
        %3727 = vmatprep.subr.mxu0 0.0
        %3728 = vmatpush1.xpose.msra.mxu0 0.0
        %3729 = vmatprep.subr.mxu0 0.0
        %3730 = vmatpush1.xpose.msra.mxu0 0.0
        %3731 = vmatprep.subr.mxu0 0.0
        %3732 = vmatpush1.xpose.msra.mxu0 0.0
        %3733 = vmatprep.subr.mxu0 0.0
        %3734 = vmatpush1.xpose.msra.mxu0 0.0
        %3735 = vmatprep.subr.mxu0 0.0
        %3736 = vmatpush1.xpose.msra.mxu0 %v3703
        %3737 = vmatprep.subr.mxu0 0.0
        %3738 = vmatpush2.xpose.msra.mxu0 0.0
        %3739 = vmatprep.subr.mxu0 0.0
        %3740 = vmatpush2.xpose.msra.mxu0 0.0
        %3741 = vmatprep.subr.mxu0 0.0
        %3742 = vmatpush2.xpose.msra.mxu0 0.0
        %3743 = vmatprep.subr.mxu0 0.0
        %3744 = vmatpush2.xpose.msra.mxu0 0.0
        %3745 = vmatprep.subr.mxu0 0.0
        %3746 = vmatpush2.xpose.msra.mxu0 0.0
        %3747 = vmatprep.subr.mxu0 0.0
        %3748 = vmatpush2.xpose.msra.mxu0 0.0
        %3749 = vmatprep.subr.mxu0 0.0
        %3750 = vmatpush2.xpose.msra.mxu0 0.0
        %3751 = vmatprep.subr.mxu0 0.0
        %3752 = vmatpush2.xpose.msra.mxu0 0.0
        %3753 = vmatprep.subr.mxu0 0.0
        %3754 = vmatpush2.xpose.msra.mxu0 0.0
        %3755 = vmatprep.subr.mxu0 0.0
        %3756 = vmatpush2.xpose.msra.mxu0 0.0
        %3757 = vmatprep.subr.mxu0 0.0
        %3758 = vmatpush2.xpose.msra.mxu0 0.0
        %3759 = vmatprep.subr.mxu0 0.0
        %3760 = vmatpush2.xpose.msra.mxu0 0.0
        %3761 = vmatprep.subr.mxu0 0.0
        %3762 = vmatpush2.xpose.msra.mxu0 0.0
        %3763 = vmatprep.subr.mxu0 0.0
        %3764 = vmatpush2.xpose.msra.mxu0 0.0
        %3765 = vmatprep.subr.mxu0 0.0
        %3766 = vmatpush2.xpose.msra.mxu0 0.0
        %3767 = vmatprep.subr.mxu0 0.0
        %3768 = vmatpush2.xpose.msra.mxu0 0.0
        %3769 = vmatprep.mubr.f32.mxu0 0.0
        %3770 = vmatmul.mubr.f32.gmra.mxu0 %v3701
        %v3771 = vpop.f32.mrf.mxu0
        %v3772 = vadd.f32 0.0, %v3771
        %v3773 = vpop.f32.mrf.mxu0
        %3774 = vdwg.mxu0
        %3775 = vrot.lane.b32.xlu0 %v2818, 64
        %v3776 = vpop.permute.xlu0 %3775
        %v3777 = vsel %vm743, %v2818, 0
        %v3779 = vsel %vm743, %v3776, 0
        %3781 = vmatprep.subr.mxu0 0.0
        %3782 = vmatpush1.xpose.msra.mxu0 0.0
        %3783 = vmatprep.subr.mxu0 0.0
        %3784 = vmatpush1.xpose.msra.mxu0 0.0
        %3785 = vmatprep.subr.mxu0 0.0
        %3786 = vmatpush1.xpose.msra.mxu0 0.0
        %3787 = vmatprep.subr.mxu0 0.0
        %3788 = vmatpush1.xpose.msra.mxu0 0.0
        %3789 = vmatprep.subr.mxu0 0.0
        %3790 = vmatpush1.xpose.msra.mxu0 0.0
        %3791 = vmatprep.subr.mxu0 0.0
        %3792 = vmatpush1.xpose.msra.mxu0 0.0
        %3793 = vmatprep.subr.mxu0 0.0
        %3794 = vmatpush1.xpose.msra.mxu0 0.0
        %3795 = vmatprep.subr.mxu0 0.0
        %3796 = vmatpush1.xpose.msra.mxu0 0.0
        %3797 = vmatprep.subr.mxu0 0.0
        %3798 = vmatpush1.xpose.msra.mxu0 0.0
        %3799 = vmatprep.subr.mxu0 0.0
        %3800 = vmatpush1.xpose.msra.mxu0 0.0
        %3801 = vmatprep.subr.mxu0 0.0
        %3802 = vmatpush1.xpose.msra.mxu0 0.0
        %3803 = vmatprep.subr.mxu0 0.0
        %3804 = vmatpush1.xpose.msra.mxu0 0.0
        %3805 = vmatprep.subr.mxu0 0.0
        %3806 = vmatpush1.xpose.msra.mxu0 0.0
        %3807 = vmatprep.subr.mxu0 0.0
        %3808 = vmatpush1.xpose.msra.mxu0 0.0
        %3809 = vmatprep.subr.mxu0 0.0
        %3810 = vmatpush1.xpose.msra.mxu0 0.0
        %3811 = vmatprep.subr.mxu0 0.0
        %3812 = vmatpush1.xpose.msra.mxu0 %v3779
        %3813 = vmatprep.subr.mxu0 0.0
        %3814 = vmatpush2.xpose.msra.mxu0 0.0
        %3815 = vmatprep.subr.mxu0 0.0
        %3816 = vmatpush2.xpose.msra.mxu0 0.0
        %3817 = vmatprep.subr.mxu0 0.0
        %3818 = vmatpush2.xpose.msra.mxu0 0.0
        %3819 = vmatprep.subr.mxu0 0.0
        %3820 = vmatpush2.xpose.msra.mxu0 0.0
        %3821 = vmatprep.subr.mxu0 0.0
        %3822 = vmatpush2.xpose.msra.mxu0 0.0
        %3823 = vmatprep.subr.mxu0 0.0
        %3824 = vmatpush2.xpose.msra.mxu0 0.0
        %3825 = vmatprep.subr.mxu0 0.0
        %3826 = vmatpush2.xpose.msra.mxu0 0.0
        %3827 = vmatprep.subr.mxu0 0.0
        %3828 = vmatpush2.xpose.msra.mxu0 0.0
        %3829 = vmatprep.subr.mxu0 0.0
        %3830 = vmatpush2.xpose.msra.mxu0 0.0
        %3831 = vmatprep.subr.mxu0 0.0
        %3832 = vmatpush2.xpose.msra.mxu0 0.0
        %3833 = vmatprep.subr.mxu0 0.0
        %3834 = vmatpush2.xpose.msra.mxu0 0.0
        %3835 = vmatprep.subr.mxu0 0.0
        %3836 = vmatpush2.xpose.msra.mxu0 0.0
        %3837 = vmatprep.subr.mxu0 0.0
        %3838 = vmatpush2.xpose.msra.mxu0 0.0
        %3839 = vmatprep.subr.mxu0 0.0
        %3840 = vmatpush2.xpose.msra.mxu0 0.0
        %3841 = vmatprep.subr.mxu0 0.0
        %3842 = vmatpush2.xpose.msra.mxu0 0.0
        %3843 = vmatprep.subr.mxu0 0.0
        %3844 = vmatpush2.xpose.msra.mxu0 0.0
        %3845 = vmatprep.mubr.f32.mxu0 0.0
        %3846 = vmatmul.mubr.f32.gmra.mxu0 %v3777
        %v3847 = vpop.f32.mrf.mxu0
        %v3848 = vadd.f32 0.0, %v3847
        %v3849 = vpop.f32.mrf.mxu0
        %3850 = vdwg.mxu0
        %3851 = vrot.lane.b32.xlu0 %v2820, 64
        %v3852 = vpop.permute.xlu0 %3851
        %v3853 = vsel %vm743, %v2820, 0
        %v3855 = vsel %vm743, %v3852, 0
        %3857 = vmatprep.subr.mxu0 0.0
        %3858 = vmatpush1.xpose.msra.mxu0 0.0
        %3859 = vmatprep.subr.mxu0 0.0
        %3860 = vmatpush1.xpose.msra.mxu0 0.0
        %3861 = vmatprep.subr.mxu0 0.0
        %3862 = vmatpush1.xpose.msra.mxu0 0.0
        %3863 = vmatprep.subr.mxu0 0.0
        %3864 = vmatpush1.xpose.msra.mxu0 0.0
        %3865 = vmatprep.subr.mxu0 0.0
        %3866 = vmatpush1.xpose.msra.mxu0 0.0
        %3867 = vmatprep.subr.mxu0 0.0
        %3868 = vmatpush1.xpose.msra.mxu0 0.0
        %3869 = vmatprep.subr.mxu0 0.0
        %3870 = vmatpush1.xpose.msra.mxu0 0.0
        %3871 = vmatprep.subr.mxu0 0.0
        %3872 = vmatpush1.xpose.msra.mxu0 0.0
        %3873 = vmatprep.subr.mxu0 0.0
        %3874 = vmatpush1.xpose.msra.mxu0 0.0
        %3875 = vmatprep.subr.mxu0 0.0
        %3876 = vmatpush1.xpose.msra.mxu0 0.0
        %3877 = vmatprep.subr.mxu0 0.0
        %3878 = vmatpush1.xpose.msra.mxu0 0.0
        %3879 = vmatprep.subr.mxu0 0.0
        %3880 = vmatpush1.xpose.msra.mxu0 0.0
        %3881 = vmatprep.subr.mxu0 0.0
        %3882 = vmatpush1.xpose.msra.mxu0 0.0
        %3883 = vmatprep.subr.mxu0 0.0
        %3884 = vmatpush1.xpose.msra.mxu0 0.0
        %3885 = vmatprep.subr.mxu0 0.0
        %3886 = vmatpush1.xpose.msra.mxu0 0.0
        %3887 = vmatprep.subr.mxu0 0.0
        %3888 = vmatpush1.xpose.msra.mxu0 %v3855
        %3889 = vmatprep.subr.mxu0 0.0
        %3890 = vmatpush2.xpose.msra.mxu0 0.0
        %3891 = vmatprep.subr.mxu0 0.0
        %3892 = vmatpush2.xpose.msra.mxu0 0.0
        %3893 = vmatprep.subr.mxu0 0.0
        %3894 = vmatpush2.xpose.msra.mxu0 0.0
        %3895 = vmatprep.subr.mxu0 0.0
        %3896 = vmatpush2.xpose.msra.mxu0 0.0
        %3897 = vmatprep.subr.mxu0 0.0
        %3898 = vmatpush2.xpose.msra.mxu0 0.0
        %3899 = vmatprep.subr.mxu0 0.0
        %3900 = vmatpush2.xpose.msra.mxu0 0.0
        %3901 = vmatprep.subr.mxu0 0.0
        %3902 = vmatpush2.xpose.msra.mxu0 0.0
        %3903 = vmatprep.subr.mxu0 0.0
        %3904 = vmatpush2.xpose.msra.mxu0 0.0
        %3905 = vmatprep.subr.mxu0 0.0
        %3906 = vmatpush2.xpose.msra.mxu0 0.0
        %3907 = vmatprep.subr.mxu0 0.0
        %3908 = vmatpush2.xpose.msra.mxu0 0.0
        %3909 = vmatprep.subr.mxu0 0.0
        %3910 = vmatpush2.xpose.msra.mxu0 0.0
        %3911 = vmatprep.subr.mxu0 0.0
        %3912 = vmatpush2.xpose.msra.mxu0 0.0
        %3913 = vmatprep.subr.mxu0 0.0
        %3914 = vmatpush2.xpose.msra.mxu0 0.0
        %3915 = vmatprep.subr.mxu0 0.0
        %3916 = vmatpush2.xpose.msra.mxu0 0.0
        %3917 = vmatprep.subr.mxu0 0.0
        %3918 = vmatpush2.xpose.msra.mxu0 0.0
        %3919 = vmatprep.subr.mxu0 0.0
        %3920 = vmatpush2.xpose.msra.mxu0 0.0
        %3921 = vmatprep.mubr.f32.mxu0 0.0
        %3922 = vmatmul.mubr.f32.gmra.mxu0 %v3853
        %v3923 = vpop.f32.mrf.mxu0
        %v3924 = vadd.f32 0.0, %v3923
        %v3925 = vpop.f32.mrf.mxu0
        %3926 = vdwg.mxu0
        %3927 = vrot.lane.b32.xlu0 %v2822, 64
        %v3928 = vpop.permute.xlu0 %3927
        %v3929 = vsel %vm743, %v2822, 0
        %v3931 = vsel %vm743, %v3928, 0
        %3933 = vmatprep.subr.mxu0 0.0
        %3934 = vmatpush1.xpose.msra.mxu0 0.0
        %3935 = vmatprep.subr.mxu0 0.0
        %3936 = vmatpush1.xpose.msra.mxu0 0.0
        %3937 = vmatprep.subr.mxu0 0.0
        %3938 = vmatpush1.xpose.msra.mxu0 0.0
        %3939 = vmatprep.subr.mxu0 0.0
        %3940 = vmatpush1.xpose.msra.mxu0 0.0
        %3941 = vmatprep.subr.mxu0 0.0
        %3942 = vmatpush1.xpose.msra.mxu0 0.0
        %3943 = vmatprep.subr.mxu0 0.0
        %3944 = vmatpush1.xpose.msra.mxu0 0.0
        %3945 = vmatprep.subr.mxu0 0.0
        %3946 = vmatpush1.xpose.msra.mxu0 0.0
        %3947 = vmatprep.subr.mxu0 0.0
        %3948 = vmatpush1.xpose.msra.mxu0 0.0
        %3949 = vmatprep.subr.mxu0 0.0
        %3950 = vmatpush1.xpose.msra.mxu0 0.0
        %3951 = vmatprep.subr.mxu0 0.0
        %3952 = vmatpush1.xpose.msra.mxu0 0.0
        %3953 = vmatprep.subr.mxu0 0.0
        %3954 = vmatpush1.xpose.msra.mxu0 0.0
        %3955 = vmatprep.subr.mxu0 0.0
        %3956 = vmatpush1.xpose.msra.mxu0 0.0
        %3957 = vmatprep.subr.mxu0 0.0
        %3958 = vmatpush1.xpose.msra.mxu0 0.0
        %3959 = vmatprep.subr.mxu0 0.0
        %3960 = vmatpush1.xpose.msra.mxu0 0.0
        %3961 = vmatprep.subr.mxu0 0.0
        %3962 = vmatpush1.xpose.msra.mxu0 0.0
        %3963 = vmatprep.subr.mxu0 0.0
        %3964 = vmatpush1.xpose.msra.mxu0 %v3931
        %3965 = vmatprep.subr.mxu0 0.0
        %3966 = vmatpush2.xpose.msra.mxu0 0.0
        %3967 = vmatprep.subr.mxu0 0.0
        %3968 = vmatpush2.xpose.msra.mxu0 0.0
        %3969 = vmatprep.subr.mxu0 0.0
        %3970 = vmatpush2.xpose.msra.mxu0 0.0
        %3971 = vmatprep.subr.mxu0 0.0
        %3972 = vmatpush2.xpose.msra.mxu0 0.0
        %3973 = vmatprep.subr.mxu0 0.0
        %3974 = vmatpush2.xpose.msra.mxu0 0.0
        %3975 = vmatprep.subr.mxu0 0.0
        %3976 = vmatpush2.xpose.msra.mxu0 0.0
        %3977 = vmatprep.subr.mxu0 0.0
        %3978 = vmatpush2.xpose.msra.mxu0 0.0
        %3979 = vmatprep.subr.mxu0 0.0
        %3980 = vmatpush2.xpose.msra.mxu0 0.0
        %3981 = vmatprep.subr.mxu0 0.0
        %3982 = vmatpush2.xpose.msra.mxu0 0.0
        %3983 = vmatprep.subr.mxu0 0.0
        %3984 = vmatpush2.xpose.msra.mxu0 0.0
        %3985 = vmatprep.subr.mxu0 0.0
        %3986 = vmatpush2.xpose.msra.mxu0 0.0
        %3987 = vmatprep.subr.mxu0 0.0
        %3988 = vmatpush2.xpose.msra.mxu0 0.0
        %3989 = vmatprep.subr.mxu0 0.0
        %3990 = vmatpush2.xpose.msra.mxu0 0.0
        %3991 = vmatprep.subr.mxu0 0.0
        %3992 = vmatpush2.xpose.msra.mxu0 0.0
        %3993 = vmatprep.subr.mxu0 0.0
        %3994 = vmatpush2.xpose.msra.mxu0 0.0
        %3995 = vmatprep.subr.mxu0 0.0
        %3996 = vmatpush2.xpose.msra.mxu0 0.0
        %3997 = vmatprep.mubr.f32.mxu0 0.0
        %3998 = vmatmul.mubr.f32.gmra.mxu0 %v3929
        %v3999 = vpop.f32.mrf.mxu0
        %v4000 = vadd.f32 0.0, %v3999
        %v4001 = vpop.f32.mrf.mxu0
        %4002 = vdwg.mxu0
        %4003 = vrot.lane.b32.xlu0 %v2824, 64
        %v4004 = vpop.permute.xlu0 %4003
        %v4005 = vsel %vm743, %v2824, 0
        %v4007 = vsel %vm743, %v4004, 0
        %4009 = vmatprep.subr.mxu0 0.0
        %4010 = vmatpush1.xpose.msra.mxu0 0.0
        %4011 = vmatprep.subr.mxu0 0.0
        %4012 = vmatpush1.xpose.msra.mxu0 0.0
        %4013 = vmatprep.subr.mxu0 0.0
        %4014 = vmatpush1.xpose.msra.mxu0 0.0
        %4015 = vmatprep.subr.mxu0 0.0
        %4016 = vmatpush1.xpose.msra.mxu0 0.0
        %4017 = vmatprep.subr.mxu0 0.0
        %4018 = vmatpush1.xpose.msra.mxu0 0.0
        %4019 = vmatprep.subr.mxu0 0.0
        %4020 = vmatpush1.xpose.msra.mxu0 0.0
        %4021 = vmatprep.subr.mxu0 0.0
        %4022 = vmatpush1.xpose.msra.mxu0 0.0
        %4023 = vmatprep.subr.mxu0 0.0
        %4024 = vmatpush1.xpose.msra.mxu0 0.0
        %4025 = vmatprep.subr.mxu0 0.0
        %4026 = vmatpush1.xpose.msra.mxu0 0.0
        %4027 = vmatprep.subr.mxu0 0.0
        %4028 = vmatpush1.xpose.msra.mxu0 0.0
        %4029 = vmatprep.subr.mxu0 0.0
        %4030 = vmatpush1.xpose.msra.mxu0 0.0
        %4031 = vmatprep.subr.mxu0 0.0
        %4032 = vmatpush1.xpose.msra.mxu0 0.0
        %4033 = vmatprep.subr.mxu0 0.0
        %4034 = vmatpush1.xpose.msra.mxu0 0.0
        %4035 = vmatprep.subr.mxu0 0.0
        %4036 = vmatpush1.xpose.msra.mxu0 0.0
        %4037 = vmatprep.subr.mxu0 0.0
        %4038 = vmatpush1.xpose.msra.mxu0 0.0
        %4039 = vmatprep.subr.mxu0 0.0
        %4040 = vmatpush1.xpose.msra.mxu0 %v4007
        %4041 = vmatprep.subr.mxu0 0.0
        %4042 = vmatpush2.xpose.msra.mxu0 0.0
        %4043 = vmatprep.subr.mxu0 0.0
        %4044 = vmatpush2.xpose.msra.mxu0 0.0
        %4045 = vmatprep.subr.mxu0 0.0
        %4046 = vmatpush2.xpose.msra.mxu0 0.0
        %4047 = vmatprep.subr.mxu0 0.0
        %4048 = vmatpush2.xpose.msra.mxu0 0.0
        %4049 = vmatprep.subr.mxu0 0.0
        %4050 = vmatpush2.xpose.msra.mxu0 0.0
        %4051 = vmatprep.subr.mxu0 0.0
        %4052 = vmatpush2.xpose.msra.mxu0 0.0
        %4053 = vmatprep.subr.mxu0 0.0
        %4054 = vmatpush2.xpose.msra.mxu0 0.0
        %4055 = vmatprep.subr.mxu0 0.0
        %4056 = vmatpush2.xpose.msra.mxu0 0.0
        %4057 = vmatprep.subr.mxu0 0.0
        %4058 = vmatpush2.xpose.msra.mxu0 0.0
        %4059 = vmatprep.subr.mxu0 0.0
        %4060 = vmatpush2.xpose.msra.mxu0 0.0
        %4061 = vmatprep.subr.mxu0 0.0
        %4062 = vmatpush2.xpose.msra.mxu0 0.0
        %4063 = vmatprep.subr.mxu0 0.0
        %4064 = vmatpush2.xpose.msra.mxu0 0.0
        %4065 = vmatprep.subr.mxu0 0.0
        %4066 = vmatpush2.xpose.msra.mxu0 0.0
        %4067 = vmatprep.subr.mxu0 0.0
        %4068 = vmatpush2.xpose.msra.mxu0 0.0
        %4069 = vmatprep.subr.mxu0 0.0
        %4070 = vmatpush2.xpose.msra.mxu0 0.0
        %4071 = vmatprep.subr.mxu0 0.0
        %4072 = vmatpush2.xpose.msra.mxu0 0.0
        %4073 = vmatprep.mubr.f32.mxu0 0.0
        %4074 = vmatmul.mubr.f32.gmra.mxu0 %v4005
        %v4075 = vpop.f32.mrf.mxu0
        %v4076 = vadd.f32 0.0, %v4075
        %v4077 = vpop.f32.mrf.mxu0
        %4078 = vdwg.mxu0
        %4079 = vrot.lane.b32.xlu0 %v2826, 64
        %v4080 = vpop.permute.xlu0 %4079
        %v4081 = vsel %vm743, %v2826, 0
        %v4083 = vsel %vm743, %v4080, 0
        %4085 = vmatprep.subr.mxu0 0.0
        %4086 = vmatpush1.xpose.msra.mxu0 0.0
        %4087 = vmatprep.subr.mxu0 0.0
        %4088 = vmatpush1.xpose.msra.mxu0 0.0
        %4089 = vmatprep.subr.mxu0 0.0
        %4090 = vmatpush1.xpose.msra.mxu0 0.0
        %4091 = vmatprep.subr.mxu0 0.0
        %4092 = vmatpush1.xpose.msra.mxu0 0.0
        %4093 = vmatprep.subr.mxu0 0.0
        %4094 = vmatpush1.xpose.msra.mxu0 0.0
        %4095 = vmatprep.subr.mxu0 0.0
        %4096 = vmatpush1.xpose.msra.mxu0 0.0
        %4097 = vmatprep.subr.mxu0 0.0
        %4098 = vmatpush1.xpose.msra.mxu0 0.0
        %4099 = vmatprep.subr.mxu0 0.0
        %4100 = vmatpush1.xpose.msra.mxu0 0.0
        %4101 = vmatprep.subr.mxu0 0.0
        %4102 = vmatpush1.xpose.msra.mxu0 0.0
        %4103 = vmatprep.subr.mxu0 0.0
        %4104 = vmatpush1.xpose.msra.mxu0 0.0
        %4105 = vmatprep.subr.mxu0 0.0
        %4106 = vmatpush1.xpose.msra.mxu0 0.0
        %4107 = vmatprep.subr.mxu0 0.0
        %4108 = vmatpush1.xpose.msra.mxu0 0.0
        %4109 = vmatprep.subr.mxu0 0.0
        %4110 = vmatpush1.xpose.msra.mxu0 0.0
        %4111 = vmatprep.subr.mxu0 0.0
        %4112 = vmatpush1.xpose.msra.mxu0 0.0
        %4113 = vmatprep.subr.mxu0 0.0
        %4114 = vmatpush1.xpose.msra.mxu0 0.0
        %4115 = vmatprep.subr.mxu0 0.0
        %4116 = vmatpush1.xpose.msra.mxu0 %v4083
        %4117 = vmatprep.subr.mxu0 0.0
        %4118 = vmatpush2.xpose.msra.mxu0 0.0
        %4119 = vmatprep.subr.mxu0 0.0
        %4120 = vmatpush2.xpose.msra.mxu0 0.0
        %4121 = vmatprep.subr.mxu0 0.0
        %4122 = vmatpush2.xpose.msra.mxu0 0.0
        %4123 = vmatprep.subr.mxu0 0.0
        %4124 = vmatpush2.xpose.msra.mxu0 0.0
        %4125 = vmatprep.subr.mxu0 0.0
        %4126 = vmatpush2.xpose.msra.mxu0 0.0
        %4127 = vmatprep.subr.mxu0 0.0
        %4128 = vmatpush2.xpose.msra.mxu0 0.0
        %4129 = vmatprep.subr.mxu0 0.0
        %4130 = vmatpush2.xpose.msra.mxu0 0.0
        %4131 = vmatprep.subr.mxu0 0.0
        %4132 = vmatpush2.xpose.msra.mxu0 0.0
        %4133 = vmatprep.subr.mxu0 0.0
        %4134 = vmatpush2.xpose.msra.mxu0 0.0
        %4135 = vmatprep.subr.mxu0 0.0
        %4136 = vmatpush2.xpose.msra.mxu0 0.0
        %4137 = vmatprep.subr.mxu0 0.0
        %4138 = vmatpush2.xpose.msra.mxu0 0.0
        %4139 = vmatprep.subr.mxu0 0.0
        %4140 = vmatpush2.xpose.msra.mxu0 0.0
        %4141 = vmatprep.subr.mxu0 0.0
        %4142 = vmatpush2.xpose.msra.mxu0 0.0
        %4143 = vmatprep.subr.mxu0 0.0
        %4144 = vmatpush2.xpose.msra.mxu0 0.0
        %4145 = vmatprep.subr.mxu0 0.0
        %4146 = vmatpush2.xpose.msra.mxu0 0.0
        %4147 = vmatprep.subr.mxu0 0.0
        %4148 = vmatpush2.xpose.msra.mxu0 0.0
        %4149 = vmatprep.mubr.f32.mxu0 0.0
        %4150 = vmatmul.mubr.f32.gmra.mxu0 %v4081
        %v4151 = vpop.f32.mrf.mxu0
        %v4152 = vadd.f32 0.0, %v4151
        %v4153 = vpop.f32.mrf.mxu0
        %4154 = vdwg.mxu0
        %4155 = vrot.lane.b32.xlu0 %v2828, 64
        %v4156 = vpop.permute.xlu0 %4155
        %v4157 = vsel %vm743, %v2828, 0
        %v4159 = vsel %vm743, %v4156, 0
        %4161 = vmatprep.subr.mxu0 0.0
        %4162 = vmatpush1.xpose.msra.mxu0 0.0
        %4163 = vmatprep.subr.mxu0 0.0
        %4164 = vmatpush1.xpose.msra.mxu0 0.0
        %4165 = vmatprep.subr.mxu0 0.0
        %4166 = vmatpush1.xpose.msra.mxu0 0.0
        %4167 = vmatprep.subr.mxu0 0.0
        %4168 = vmatpush1.xpose.msra.mxu0 0.0
        %4169 = vmatprep.subr.mxu0 0.0
        %4170 = vmatpush1.xpose.msra.mxu0 0.0
        %4171 = vmatprep.subr.mxu0 0.0
        %4172 = vmatpush1.xpose.msra.mxu0 0.0
        %4173 = vmatprep.subr.mxu0 0.0
        %4174 = vmatpush1.xpose.msra.mxu0 0.0
        %4175 = vmatprep.subr.mxu0 0.0
        %4176 = vmatpush1.xpose.msra.mxu0 0.0
        %4177 = vmatprep.subr.mxu0 0.0
        %4178 = vmatpush1.xpose.msra.mxu0 0.0
        %4179 = vmatprep.subr.mxu0 0.0
        %4180 = vmatpush1.xpose.msra.mxu0 0.0
        %4181 = vmatprep.subr.mxu0 0.0
        %4182 = vmatpush1.xpose.msra.mxu0 0.0
        %4183 = vmatprep.subr.mxu0 0.0
        %4184 = vmatpush1.xpose.msra.mxu0 0.0
        %4185 = vmatprep.subr.mxu0 0.0
        %4186 = vmatpush1.xpose.msra.mxu0 0.0
        %4187 = vmatprep.subr.mxu0 0.0
        %4188 = vmatpush1.xpose.msra.mxu0 0.0
        %4189 = vmatprep.subr.mxu0 0.0
        %4190 = vmatpush1.xpose.msra.mxu0 0.0
        %4191 = vmatprep.subr.mxu0 0.0
        %4192 = vmatpush1.xpose.msra.mxu0 %v4159
        %4193 = vmatprep.subr.mxu0 0.0
        %4194 = vmatpush2.xpose.msra.mxu0 0.0
        %4195 = vmatprep.subr.mxu0 0.0
        %4196 = vmatpush2.xpose.msra.mxu0 0.0
        %4197 = vmatprep.subr.mxu0 0.0
        %4198 = vmatpush2.xpose.msra.mxu0 0.0
        %4199 = vmatprep.subr.mxu0 0.0
        %4200 = vmatpush2.xpose.msra.mxu0 0.0
        %4201 = vmatprep.subr.mxu0 0.0
        %4202 = vmatpush2.xpose.msra.mxu0 0.0
        %4203 = vmatprep.subr.mxu0 0.0
        %4204 = vmatpush2.xpose.msra.mxu0 0.0
        %4205 = vmatprep.subr.mxu0 0.0
        %4206 = vmatpush2.xpose.msra.mxu0 0.0
        %4207 = vmatprep.subr.mxu0 0.0
        %4208 = vmatpush2.xpose.msra.mxu0 0.0
        %4209 = vmatprep.subr.mxu0 0.0
        %4210 = vmatpush2.xpose.msra.mxu0 0.0
        %4211 = vmatprep.subr.mxu0 0.0
        %4212 = vmatpush2.xpose.msra.mxu0 0.0
        %4213 = vmatprep.subr.mxu0 0.0
        %4214 = vmatpush2.xpose.msra.mxu0 0.0
        %4215 = vmatprep.subr.mxu0 0.0
        %4216 = vmatpush2.xpose.msra.mxu0 0.0
        %4217 = vmatprep.subr.mxu0 0.0
        %4218 = vmatpush2.xpose.msra.mxu0 0.0
        %4219 = vmatprep.subr.mxu0 0.0
        %4220 = vmatpush2.xpose.msra.mxu0 0.0
        %4221 = vmatprep.subr.mxu0 0.0
        %4222 = vmatpush2.xpose.msra.mxu0 0.0
        %4223 = vmatprep.subr.mxu0 0.0
        %4224 = vmatpush2.xpose.msra.mxu0 0.0
        %4225 = vmatprep.mubr.f32.mxu0 0.0
        %4226 = vmatmul.mubr.f32.gmra.mxu0 %v4157
        %v4227 = vpop.f32.mrf.mxu0
        %v4228 = vadd.f32 0.0, %v4227
        %v4229 = vpop.f32.mrf.mxu0
        %4230 = vdwg.mxu0
        %4231 = vrot.lane.b32.xlu0 %v2830, 64
        %v4232 = vpop.permute.xlu0 %4231
        %v4233 = vsel %vm743, %v2830, 0
        %v4235 = vsel %vm743, %v4232, 0
        %4237 = vmatprep.subr.mxu0 0.0
        %4238 = vmatpush1.xpose.msra.mxu0 0.0
        %4239 = vmatprep.subr.mxu0 0.0
        %4240 = vmatpush1.xpose.msra.mxu0 0.0
        %4241 = vmatprep.subr.mxu0 0.0
        %4242 = vmatpush1.xpose.msra.mxu0 0.0
        %4243 = vmatprep.subr.mxu0 0.0
        %4244 = vmatpush1.xpose.msra.mxu0 0.0
        %4245 = vmatprep.subr.mxu0 0.0
        %4246 = vmatpush1.xpose.msra.mxu0 0.0
        %4247 = vmatprep.subr.mxu0 0.0
        %4248 = vmatpush1.xpose.msra.mxu0 0.0
        %4249 = vmatprep.subr.mxu0 0.0
        %4250 = vmatpush1.xpose.msra.mxu0 0.0
        %4251 = vmatprep.subr.mxu0 0.0
        %4252 = vmatpush1.xpose.msra.mxu0 0.0
        %4253 = vmatprep.subr.mxu0 0.0
        %4254 = vmatpush1.xpose.msra.mxu0 0.0
        %4255 = vmatprep.subr.mxu0 0.0
        %4256 = vmatpush1.xpose.msra.mxu0 0.0
        %4257 = vmatprep.subr.mxu0 0.0
        %4258 = vmatpush1.xpose.msra.mxu0 0.0
        %4259 = vmatprep.subr.mxu0 0.0
        %4260 = vmatpush1.xpose.msra.mxu0 0.0
        %4261 = vmatprep.subr.mxu0 0.0
        %4262 = vmatpush1.xpose.msra.mxu0 0.0
        %4263 = vmatprep.subr.mxu0 0.0
        %4264 = vmatpush1.xpose.msra.mxu0 0.0
        %4265 = vmatprep.subr.mxu0 0.0
        %4266 = vmatpush1.xpose.msra.mxu0 0.0
        %4267 = vmatprep.subr.mxu0 0.0
        %4268 = vmatpush1.xpose.msra.mxu0 %v4235
        %4269 = vmatprep.subr.mxu0 0.0
        %4270 = vmatpush2.xpose.msra.mxu0 0.0
        %4271 = vmatprep.subr.mxu0 0.0
        %4272 = vmatpush2.xpose.msra.mxu0 0.0
        %4273 = vmatprep.subr.mxu0 0.0
        %4274 = vmatpush2.xpose.msra.mxu0 0.0
        %4275 = vmatprep.subr.mxu0 0.0
        %4276 = vmatpush2.xpose.msra.mxu0 0.0
        %4277 = vmatprep.subr.mxu0 0.0
        %4278 = vmatpush2.xpose.msra.mxu0 0.0
        %4279 = vmatprep.subr.mxu0 0.0
        %4280 = vmatpush2.xpose.msra.mxu0 0.0
        %4281 = vmatprep.subr.mxu0 0.0
        %4282 = vmatpush2.xpose.msra.mxu0 0.0
        %4283 = vmatprep.subr.mxu0 0.0
        %4284 = vmatpush2.xpose.msra.mxu0 0.0
        %4285 = vmatprep.subr.mxu0 0.0
        %4286 = vmatpush2.xpose.msra.mxu0 0.0
        %4287 = vmatprep.subr.mxu0 0.0
        %4288 = vmatpush2.xpose.msra.mxu0 0.0
        %4289 = vmatprep.subr.mxu0 0.0
        %4290 = vmatpush2.xpose.msra.mxu0 0.0
        %4291 = vmatprep.subr.mxu0 0.0
        %4292 = vmatpush2.xpose.msra.mxu0 0.0
        %4293 = vmatprep.subr.mxu0 0.0
        %4294 = vmatpush2.xpose.msra.mxu0 0.0
        %4295 = vmatprep.subr.mxu0 0.0
        %4296 = vmatpush2.xpose.msra.mxu0 0.0
        %4297 = vmatprep.subr.mxu0 0.0
        %4298 = vmatpush2.xpose.msra.mxu0 0.0
        %4299 = vmatprep.subr.mxu0 0.0
        %4300 = vmatpush2.xpose.msra.mxu0 0.0
        %4301 = vmatprep.mubr.f32.mxu0 0.0
        %4302 = vmatmul.mubr.f32.gmra.mxu0 %v4233
        %v4303 = vpop.f32.mrf.mxu0
        %v4304 = vadd.f32 0.0, %v4303
        %v4305 = vpop.f32.mrf.mxu0
        %4306 = vdwg.mxu0
        %4307 = vrot.lane.b32.xlu0 %v2832, 64
        %v4308 = vpop.permute.xlu0 %4307
        %v4309 = vsel %vm743, %v2832, 0
        %v4311 = vsel %vm743, %v4308, 0
        %4313 = vmatprep.subr.mxu0 0.0
        %4314 = vmatpush1.xpose.msra.mxu0 0.0
        %4315 = vmatprep.subr.mxu0 0.0
        %4316 = vmatpush1.xpose.msra.mxu0 0.0
        %4317 = vmatprep.subr.mxu0 0.0
        %4318 = vmatpush1.xpose.msra.mxu0 0.0
        %4319 = vmatprep.subr.mxu0 0.0
        %4320 = vmatpush1.xpose.msra.mxu0 0.0
        %4321 = vmatprep.subr.mxu0 0.0
        %4322 = vmatpush1.xpose.msra.mxu0 0.0
        %4323 = vmatprep.subr.mxu0 0.0
        %4324 = vmatpush1.xpose.msra.mxu0 0.0
        %4325 = vmatprep.subr.mxu0 0.0
        %4326 = vmatpush1.xpose.msra.mxu0 0.0
        %4327 = vmatprep.subr.mxu0 0.0
        %4328 = vmatpush1.xpose.msra.mxu0 0.0
        %4329 = vmatprep.subr.mxu0 0.0
        %4330 = vmatpush1.xpose.msra.mxu0 0.0
        %4331 = vmatprep.subr.mxu0 0.0
        %4332 = vmatpush1.xpose.msra.mxu0 0.0
        %4333 = vmatprep.subr.mxu0 0.0
        %4334 = vmatpush1.xpose.msra.mxu0 0.0
        %4335 = vmatprep.subr.mxu0 0.0
        %4336 = vmatpush1.xpose.msra.mxu0 0.0
        %4337 = vmatprep.subr.mxu0 0.0
        %4338 = vmatpush1.xpose.msra.mxu0 0.0
        %4339 = vmatprep.subr.mxu0 0.0
        %4340 = vmatpush1.xpose.msra.mxu0 0.0
        %4341 = vmatprep.subr.mxu0 0.0
        %4342 = vmatpush1.xpose.msra.mxu0 0.0
        %4343 = vmatprep.subr.mxu0 0.0
        %4344 = vmatpush1.xpose.msra.mxu0 %v4311
        %4345 = vmatprep.subr.mxu0 0.0
        %4346 = vmatpush2.xpose.msra.mxu0 0.0
        %4347 = vmatprep.subr.mxu0 0.0
        %4348 = vmatpush2.xpose.msra.mxu0 0.0
        %4349 = vmatprep.subr.mxu0 0.0
        %4350 = vmatpush2.xpose.msra.mxu0 0.0
        %4351 = vmatprep.subr.mxu0 0.0
        %4352 = vmatpush2.xpose.msra.mxu0 0.0
        %4353 = vmatprep.subr.mxu0 0.0
        %4354 = vmatpush2.xpose.msra.mxu0 0.0
        %4355 = vmatprep.subr.mxu0 0.0
        %4356 = vmatpush2.xpose.msra.mxu0 0.0
        %4357 = vmatprep.subr.mxu0 0.0
        %4358 = vmatpush2.xpose.msra.mxu0 0.0
        %4359 = vmatprep.subr.mxu0 0.0
        %4360 = vmatpush2.xpose.msra.mxu0 0.0
        %4361 = vmatprep.subr.mxu0 0.0
        %4362 = vmatpush2.xpose.msra.mxu0 0.0
        %4363 = vmatprep.subr.mxu0 0.0
        %4364 = vmatpush2.xpose.msra.mxu0 0.0
        %4365 = vmatprep.subr.mxu0 0.0
        %4366 = vmatpush2.xpose.msra.mxu0 0.0
        %4367 = vmatprep.subr.mxu0 0.0
        %4368 = vmatpush2.xpose.msra.mxu0 0.0
        %4369 = vmatprep.subr.mxu0 0.0
        %4370 = vmatpush2.xpose.msra.mxu0 0.0
        %4371 = vmatprep.subr.mxu0 0.0
        %4372 = vmatpush2.xpose.msra.mxu0 0.0
        %4373 = vmatprep.subr.mxu0 0.0
        %4374 = vmatpush2.xpose.msra.mxu0 0.0
        %4375 = vmatprep.subr.mxu0 0.0
        %4376 = vmatpush2.xpose.msra.mxu0 0.0
        %4377 = vmatprep.mubr.f32.mxu0 0.0
        %4378 = vmatmul.mubr.f32.gmra.mxu0 %v4309
        %v4379 = vpop.f32.mrf.mxu0
        %v4380 = vadd.f32 0.0, %v4379
        %v4381 = vpop.f32.mrf.mxu0
        %4382 = vdwg.mxu0
        %4383 = vrot.lane.b32.xlu0 %v2834, 64
        %v4384 = vpop.permute.xlu0 %4383
        %v4385 = vsel %vm743, %v2834, 0
        %v4387 = vsel %vm743, %v4384, 0
        %4389 = vmatprep.subr.mxu0 0.0
        %4390 = vmatpush1.xpose.msra.mxu0 0.0
        %4391 = vmatprep.subr.mxu0 0.0
        %4392 = vmatpush1.xpose.msra.mxu0 0.0
        %4393 = vmatprep.subr.mxu0 0.0
        %4394 = vmatpush1.xpose.msra.mxu0 0.0
        %4395 = vmatprep.subr.mxu0 0.0
        %4396 = vmatpush1.xpose.msra.mxu0 0.0
        %4397 = vmatprep.subr.mxu0 0.0
        %4398 = vmatpush1.xpose.msra.mxu0 0.0
        %4399 = vmatprep.subr.mxu0 0.0
        %4400 = vmatpush1.xpose.msra.mxu0 0.0
        %4401 = vmatprep.subr.mxu0 0.0
        %4402 = vmatpush1.xpose.msra.mxu0 0.0
        %4403 = vmatprep.subr.mxu0 0.0
        %4404 = vmatpush1.xpose.msra.mxu0 0.0
        %4405 = vmatprep.subr.mxu0 0.0
        %4406 = vmatpush1.xpose.msra.mxu0 0.0
        %4407 = vmatprep.subr.mxu0 0.0
        %4408 = vmatpush1.xpose.msra.mxu0 0.0
        %4409 = vmatprep.subr.mxu0 0.0
        %4410 = vmatpush1.xpose.msra.mxu0 0.0
        %4411 = vmatprep.subr.mxu0 0.0
        %4412 = vmatpush1.xpose.msra.mxu0 0.0
        %4413 = vmatprep.subr.mxu0 0.0
        %4414 = vmatpush1.xpose.msra.mxu0 0.0
        %4415 = vmatprep.subr.mxu0 0.0
        %4416 = vmatpush1.xpose.msra.mxu0 0.0
        %4417 = vmatprep.subr.mxu0 0.0
        %4418 = vmatpush1.xpose.msra.mxu0 0.0
        %4419 = vmatprep.subr.mxu0 0.0
        %4420 = vmatpush1.xpose.msra.mxu0 %v4387
        %4421 = vmatprep.subr.mxu0 0.0
        %4422 = vmatpush2.xpose.msra.mxu0 0.0
        %4423 = vmatprep.subr.mxu0 0.0
        %4424 = vmatpush2.xpose.msra.mxu0 0.0
        %4425 = vmatprep.subr.mxu0 0.0
        %4426 = vmatpush2.xpose.msra.mxu0 0.0
        %4427 = vmatprep.subr.mxu0 0.0
        %4428 = vmatpush2.xpose.msra.mxu0 0.0
        %4429 = vmatprep.subr.mxu0 0.0
        %4430 = vmatpush2.xpose.msra.mxu0 0.0
        %4431 = vmatprep.subr.mxu0 0.0
        %4432 = vmatpush2.xpose.msra.mxu0 0.0
        %4433 = vmatprep.subr.mxu0 0.0
        %4434 = vmatpush2.xpose.msra.mxu0 0.0
        %4435 = vmatprep.subr.mxu0 0.0
        %4436 = vmatpush2.xpose.msra.mxu0 0.0
        %4437 = vmatprep.subr.mxu0 0.0
        %4438 = vmatpush2.xpose.msra.mxu0 0.0
        %4439 = vmatprep.subr.mxu0 0.0
        %4440 = vmatpush2.xpose.msra.mxu0 0.0
        %4441 = vmatprep.subr.mxu0 0.0
        %4442 = vmatpush2.xpose.msra.mxu0 0.0
        %4443 = vmatprep.subr.mxu0 0.0
        %4444 = vmatpush2.xpose.msra.mxu0 0.0
        %4445 = vmatprep.subr.mxu0 0.0
        %4446 = vmatpush2.xpose.msra.mxu0 0.0
        %4447 = vmatprep.subr.mxu0 0.0
        %4448 = vmatpush2.xpose.msra.mxu0 0.0
        %4449 = vmatprep.subr.mxu0 0.0
        %4450 = vmatpush2.xpose.msra.mxu0 0.0
        %4451 = vmatprep.subr.mxu0 0.0
        %4452 = vmatpush2.xpose.msra.mxu0 0.0
        %4453 = vmatprep.mubr.f32.mxu0 0.0
        %4454 = vmatmul.mubr.f32.gmra.mxu0 %v4385
        %v4455 = vpop.f32.mrf.mxu0
        %v4456 = vadd.f32 0.0, %v4455
        %v4457 = vpop.f32.mrf.mxu0
        %4458 = vdwg.mxu0
        %4459 = vrot.lane.b32.xlu0 %v2836, 64
        %v4460 = vpop.permute.xlu0 %4459
        %v4461 = vsel %vm743, %v2836, 0
        %v4463 = vsel %vm743, %v4460, 0
        %4465 = vmatprep.subr.mxu0 0.0
        %4466 = vmatpush1.xpose.msra.mxu0 0.0
        %4467 = vmatprep.subr.mxu0 0.0
        %4468 = vmatpush1.xpose.msra.mxu0 0.0
        %4469 = vmatprep.subr.mxu0 0.0
        %4470 = vmatpush1.xpose.msra.mxu0 0.0
        %4471 = vmatprep.subr.mxu0 0.0
        %4472 = vmatpush1.xpose.msra.mxu0 0.0
        %4473 = vmatprep.subr.mxu0 0.0
        %4474 = vmatpush1.xpose.msra.mxu0 0.0
        %4475 = vmatprep.subr.mxu0 0.0
        %4476 = vmatpush1.xpose.msra.mxu0 0.0
        %4477 = vmatprep.subr.mxu0 0.0
        %4478 = vmatpush1.xpose.msra.mxu0 0.0
        %4479 = vmatprep.subr.mxu0 0.0
        %4480 = vmatpush1.xpose.msra.mxu0 0.0
        %4481 = vmatprep.subr.mxu0 0.0
        %4482 = vmatpush1.xpose.msra.mxu0 0.0
        %4483 = vmatprep.subr.mxu0 0.0
        %4484 = vmatpush1.xpose.msra.mxu0 0.0
        %4485 = vmatprep.subr.mxu0 0.0
        %4486 = vmatpush1.xpose.msra.mxu0 0.0
        %4487 = vmatprep.subr.mxu0 0.0
        %4488 = vmatpush1.xpose.msra.mxu0 0.0
        %4489 = vmatprep.subr.mxu0 0.0
        %4490 = vmatpush1.xpose.msra.mxu0 0.0
        %4491 = vmatprep.subr.mxu0 0.0
        %4492 = vmatpush1.xpose.msra.mxu0 0.0
        %4493 = vmatprep.subr.mxu0 0.0
        %4494 = vmatpush1.xpose.msra.mxu0 0.0
        %4495 = vmatprep.subr.mxu0 0.0
        %4496 = vmatpush1.xpose.msra.mxu0 %v4463
        %4497 = vmatprep.subr.mxu0 0.0
        %4498 = vmatpush2.xpose.msra.mxu0 0.0
        %4499 = vmatprep.subr.mxu0 0.0
        %4500 = vmatpush2.xpose.msra.mxu0 0.0
        %4501 = vmatprep.subr.mxu0 0.0
        %4502 = vmatpush2.xpose.msra.mxu0 0.0
        %4503 = vmatprep.subr.mxu0 0.0
        %4504 = vmatpush2.xpose.msra.mxu0 0.0
        %4505 = vmatprep.subr.mxu0 0.0
        %4506 = vmatpush2.xpose.msra.mxu0 0.0
        %4507 = vmatprep.subr.mxu0 0.0
        %4508 = vmatpush2.xpose.msra.mxu0 0.0
        %4509 = vmatprep.subr.mxu0 0.0
        %4510 = vmatpush2.xpose.msra.mxu0 0.0
        %4511 = vmatprep.subr.mxu0 0.0
        %4512 = vmatpush2.xpose.msra.mxu0 0.0
        %4513 = vmatprep.subr.mxu0 0.0
        %4514 = vmatpush2.xpose.msra.mxu0 0.0
        %4515 = vmatprep.subr.mxu0 0.0
        %4516 = vmatpush2.xpose.msra.mxu0 0.0
        %4517 = vmatprep.subr.mxu0 0.0
        %4518 = vmatpush2.xpose.msra.mxu0 0.0
        %4519 = vmatprep.subr.mxu0 0.0
        %4520 = vmatpush2.xpose.msra.mxu0 0.0
        %4521 = vmatprep.subr.mxu0 0.0
        %4522 = vmatpush2.xpose.msra.mxu0 0.0
        %4523 = vmatprep.subr.mxu0 0.0
        %4524 = vmatpush2.xpose.msra.mxu0 0.0
        %4525 = vmatprep.subr.mxu0 0.0
        %4526 = vmatpush2.xpose.msra.mxu0 0.0
        %4527 = vmatprep.subr.mxu0 0.0
        %4528 = vmatpush2.xpose.msra.mxu0 0.0
        %4529 = vmatprep.mubr.f32.mxu0 0.0
        %4530 = vmatmul.mubr.f32.gmra.mxu0 %v4461
        %v4531 = vpop.f32.mrf.mxu0
        %v4532 = vadd.f32 0.0, %v4531
        %v4533 = vpop.f32.mrf.mxu0
        %4534 = vdwg.mxu0
        %4535 = vrot.lane.b32.xlu0 %v2838, 64
        %v4536 = vpop.permute.xlu0 %4535
        %v4537 = vsel %vm743, %v2838, 0
        %v4539 = vsel %vm743, %v4536, 0
        %4541 = vmatprep.subr.mxu0 0.0
        %4542 = vmatpush1.xpose.msra.mxu0 0.0
        %4543 = vmatprep.subr.mxu0 0.0
        %4544 = vmatpush1.xpose.msra.mxu0 0.0
        %4545 = vmatprep.subr.mxu0 0.0
        %4546 = vmatpush1.xpose.msra.mxu0 0.0
        %4547 = vmatprep.subr.mxu0 0.0
        %4548 = vmatpush1.xpose.msra.mxu0 0.0
        %4549 = vmatprep.subr.mxu0 0.0
        %4550 = vmatpush1.xpose.msra.mxu0 0.0
        %4551 = vmatprep.subr.mxu0 0.0
        %4552 = vmatpush1.xpose.msra.mxu0 0.0
        %4553 = vmatprep.subr.mxu0 0.0
        %4554 = vmatpush1.xpose.msra.mxu0 0.0
        %4555 = vmatprep.subr.mxu0 0.0
        %4556 = vmatpush1.xpose.msra.mxu0 0.0
        %4557 = vmatprep.subr.mxu0 0.0
        %4558 = vmatpush1.xpose.msra.mxu0 0.0
        %4559 = vmatprep.subr.mxu0 0.0
        %4560 = vmatpush1.xpose.msra.mxu0 0.0
        %4561 = vmatprep.subr.mxu0 0.0
        %4562 = vmatpush1.xpose.msra.mxu0 0.0
        %4563 = vmatprep.subr.mxu0 0.0
        %4564 = vmatpush1.xpose.msra.mxu0 0.0
        %4565 = vmatprep.subr.mxu0 0.0
        %4566 = vmatpush1.xpose.msra.mxu0 0.0
        %4567 = vmatprep.subr.mxu0 0.0
        %4568 = vmatpush1.xpose.msra.mxu0 0.0
        %4569 = vmatprep.subr.mxu0 0.0
        %4570 = vmatpush1.xpose.msra.mxu0 0.0
        %4571 = vmatprep.subr.mxu0 0.0
        %4572 = vmatpush1.xpose.msra.mxu0 %v4539
        %4573 = vmatprep.subr.mxu0 0.0
        %4574 = vmatpush2.xpose.msra.mxu0 0.0
        %4575 = vmatprep.subr.mxu0 0.0
        %4576 = vmatpush2.xpose.msra.mxu0 0.0
        %4577 = vmatprep.subr.mxu0 0.0
        %4578 = vmatpush2.xpose.msra.mxu0 0.0
        %4579 = vmatprep.subr.mxu0 0.0
        %4580 = vmatpush2.xpose.msra.mxu0 0.0
        %4581 = vmatprep.subr.mxu0 0.0
        %4582 = vmatpush2.xpose.msra.mxu0 0.0
        %4583 = vmatprep.subr.mxu0 0.0
        %4584 = vmatpush2.xpose.msra.mxu0 0.0
        %4585 = vmatprep.subr.mxu0 0.0
        %4586 = vmatpush2.xpose.msra.mxu0 0.0
        %4587 = vmatprep.subr.mxu0 0.0
        %4588 = vmatpush2.xpose.msra.mxu0 0.0
        %4589 = vmatprep.subr.mxu0 0.0
        %4590 = vmatpush2.xpose.msra.mxu0 0.0
        %4591 = vmatprep.subr.mxu0 0.0
        %4592 = vmatpush2.xpose.msra.mxu0 0.0
        %4593 = vmatprep.subr.mxu0 0.0
        %4594 = vmatpush2.xpose.msra.mxu0 0.0
        %4595 = vmatprep.subr.mxu0 0.0
        %4596 = vmatpush2.xpose.msra.mxu0 0.0
        %4597 = vmatprep.subr.mxu0 0.0
        %4598 = vmatpush2.xpose.msra.mxu0 0.0
        %4599 = vmatprep.subr.mxu0 0.0
        %4600 = vmatpush2.xpose.msra.mxu0 0.0
        %4601 = vmatprep.subr.mxu0 0.0
        %4602 = vmatpush2.xpose.msra.mxu0 0.0
        %4603 = vmatprep.subr.mxu0 0.0
        %4604 = vmatpush2.xpose.msra.mxu0 0.0
        %4605 = vmatprep.mubr.f32.mxu0 0.0
        %4606 = vmatmul.mubr.f32.gmra.mxu0 %v4537
        %v4607 = vpop.f32.mrf.mxu0
        %v4608 = vadd.f32 0.0, %v4607
        %v4609 = vpop.f32.mrf.mxu0
        %4610 = vdwg.mxu0
        %4611 = vrot.lane.b32.xlu0 %v2840, 64
        %v4612 = vpop.permute.xlu0 %4611
        %v4613 = vsel %vm743, %v2840, 0
        %v4615 = vsel %vm743, %v4612, 0
        %4617 = vmatprep.subr.mxu0 0.0
        %4618 = vmatpush1.xpose.msra.mxu0 0.0
        %4619 = vmatprep.subr.mxu0 0.0
        %4620 = vmatpush1.xpose.msra.mxu0 0.0
        %4621 = vmatprep.subr.mxu0 0.0
        %4622 = vmatpush1.xpose.msra.mxu0 0.0
        %4623 = vmatprep.subr.mxu0 0.0
        %4624 = vmatpush1.xpose.msra.mxu0 0.0
        %4625 = vmatprep.subr.mxu0 0.0
        %4626 = vmatpush1.xpose.msra.mxu0 0.0
        %4627 = vmatprep.subr.mxu0 0.0
        %4628 = vmatpush1.xpose.msra.mxu0 0.0
        %4629 = vmatprep.subr.mxu0 0.0
        %4630 = vmatpush1.xpose.msra.mxu0 0.0
        %4631 = vmatprep.subr.mxu0 0.0
        %4632 = vmatpush1.xpose.msra.mxu0 0.0
        %4633 = vmatprep.subr.mxu0 0.0
        %4634 = vmatpush1.xpose.msra.mxu0 0.0
        %4635 = vmatprep.subr.mxu0 0.0
        %4636 = vmatpush1.xpose.msra.mxu0 0.0
        %4637 = vmatprep.subr.mxu0 0.0
        %4638 = vmatpush1.xpose.msra.mxu0 0.0
        %4639 = vmatprep.subr.mxu0 0.0
        %4640 = vmatpush1.xpose.msra.mxu0 0.0
        %4641 = vmatprep.subr.mxu0 0.0
        %4642 = vmatpush1.xpose.msra.mxu0 0.0
        %4643 = vmatprep.subr.mxu0 0.0
        %4644 = vmatpush1.xpose.msra.mxu0 0.0
        %4645 = vmatprep.subr.mxu0 0.0
        %4646 = vmatpush1.xpose.msra.mxu0 0.0
        %4647 = vmatprep.subr.mxu0 0.0
        %4648 = vmatpush1.xpose.msra.mxu0 %v4615
        %4649 = vmatprep.subr.mxu0 0.0
        %4650 = vmatpush2.xpose.msra.mxu0 0.0
        %4651 = vmatprep.subr.mxu0 0.0
        %4652 = vmatpush2.xpose.msra.mxu0 0.0
        %4653 = vmatprep.subr.mxu0 0.0
        %4654 = vmatpush2.xpose.msra.mxu0 0.0
        %4655 = vmatprep.subr.mxu0 0.0
        %4656 = vmatpush2.xpose.msra.mxu0 0.0
        %4657 = vmatprep.subr.mxu0 0.0
        %4658 = vmatpush2.xpose.msra.mxu0 0.0
        %4659 = vmatprep.subr.mxu0 0.0
        %4660 = vmatpush2.xpose.msra.mxu0 0.0
        %4661 = vmatprep.subr.mxu0 0.0
        %4662 = vmatpush2.xpose.msra.mxu0 0.0
        %4663 = vmatprep.subr.mxu0 0.0
        %4664 = vmatpush2.xpose.msra.mxu0 0.0
        %4665 = vmatprep.subr.mxu0 0.0
        %4666 = vmatpush2.xpose.msra.mxu0 0.0
        %4667 = vmatprep.subr.mxu0 0.0
        %4668 = vmatpush2.xpose.msra.mxu0 0.0
        %4669 = vmatprep.subr.mxu0 0.0
        %4670 = vmatpush2.xpose.msra.mxu0 0.0
        %4671 = vmatprep.subr.mxu0 0.0
        %4672 = vmatpush2.xpose.msra.mxu0 0.0
        %4673 = vmatprep.subr.mxu0 0.0
        %4674 = vmatpush2.xpose.msra.mxu0 0.0
        %4675 = vmatprep.subr.mxu0 0.0
        %4676 = vmatpush2.xpose.msra.mxu0 0.0
        %4677 = vmatprep.subr.mxu0 0.0
        %4678 = vmatpush2.xpose.msra.mxu0 0.0
        %4679 = vmatprep.subr.mxu0 0.0
        %4680 = vmatpush2.xpose.msra.mxu0 0.0
        %4681 = vmatprep.mubr.f32.mxu0 0.0
        %4682 = vmatmul.mubr.f32.gmra.mxu0 %v4613
        %v4683 = vpop.f32.mrf.mxu0
        %v4684 = vadd.f32 0.0, %v4683
        %v4685 = vpop.f32.mrf.mxu0
        %4686 = vdwg.mxu0
        %4687 = vrot.lane.b32.xlu0 %v2842, 64
        %v4688 = vpop.permute.xlu0 %4687
        %v4689 = vsel %vm743, %v2842, 0
        %v4691 = vsel %vm743, %v4688, 0
        %4693 = vmatprep.subr.mxu0 0.0
        %4694 = vmatpush1.xpose.msra.mxu0 0.0
        %4695 = vmatprep.subr.mxu0 0.0
        %4696 = vmatpush1.xpose.msra.mxu0 0.0
        %4697 = vmatprep.subr.mxu0 0.0
        %4698 = vmatpush1.xpose.msra.mxu0 0.0
        %4699 = vmatprep.subr.mxu0 0.0
        %4700 = vmatpush1.xpose.msra.mxu0 0.0
        %4701 = vmatprep.subr.mxu0 0.0
        %4702 = vmatpush1.xpose.msra.mxu0 0.0
        %4703 = vmatprep.subr.mxu0 0.0
        %4704 = vmatpush1.xpose.msra.mxu0 0.0
        %4705 = vmatprep.subr.mxu0 0.0
        %4706 = vmatpush1.xpose.msra.mxu0 0.0
        %4707 = vmatprep.subr.mxu0 0.0
        %4708 = vmatpush1.xpose.msra.mxu0 0.0
        %4709 = vmatprep.subr.mxu0 0.0
        %4710 = vmatpush1.xpose.msra.mxu0 0.0
        %4711 = vmatprep.subr.mxu0 0.0
        %4712 = vmatpush1.xpose.msra.mxu0 0.0
        %4713 = vmatprep.subr.mxu0 0.0
        %4714 = vmatpush1.xpose.msra.mxu0 0.0
        %4715 = vmatprep.subr.mxu0 0.0
        %4716 = vmatpush1.xpose.msra.mxu0 0.0
        %4717 = vmatprep.subr.mxu0 0.0
        %4718 = vmatpush1.xpose.msra.mxu0 0.0
        %4719 = vmatprep.subr.mxu0 0.0
        %4720 = vmatpush1.xpose.msra.mxu0 0.0
        %4721 = vmatprep.subr.mxu0 0.0
        %4722 = vmatpush1.xpose.msra.mxu0 0.0
        %4723 = vmatprep.subr.mxu0 0.0
        %4724 = vmatpush1.xpose.msra.mxu0 %v4691
        %4725 = vmatprep.subr.mxu0 0.0
        %4726 = vmatpush2.xpose.msra.mxu0 0.0
        %4727 = vmatprep.subr.mxu0 0.0
        %4728 = vmatpush2.xpose.msra.mxu0 0.0
        %4729 = vmatprep.subr.mxu0 0.0
        %4730 = vmatpush2.xpose.msra.mxu0 0.0
        %4731 = vmatprep.subr.mxu0 0.0
        %4732 = vmatpush2.xpose.msra.mxu0 0.0
        %4733 = vmatprep.subr.mxu0 0.0
        %4734 = vmatpush2.xpose.msra.mxu0 0.0
        %4735 = vmatprep.subr.mxu0 0.0
        %4736 = vmatpush2.xpose.msra.mxu0 0.0
        %4737 = vmatprep.subr.mxu0 0.0
        %4738 = vmatpush2.xpose.msra.mxu0 0.0
        %4739 = vmatprep.subr.mxu0 0.0
        %4740 = vmatpush2.xpose.msra.mxu0 0.0
        %4741 = vmatprep.subr.mxu0 0.0
        %4742 = vmatpush2.xpose.msra.mxu0 0.0
        %4743 = vmatprep.subr.mxu0 0.0
        %4744 = vmatpush2.xpose.msra.mxu0 0.0
        %4745 = vmatprep.subr.mxu0 0.0
        %4746 = vmatpush2.xpose.msra.mxu0 0.0
        %4747 = vmatprep.subr.mxu0 0.0
        %4748 = vmatpush2.xpose.msra.mxu0 0.0
        %4749 = vmatprep.subr.mxu0 0.0
        %4750 = vmatpush2.xpose.msra.mxu0 0.0
        %4751 = vmatprep.subr.mxu0 0.0
        %4752 = vmatpush2.xpose.msra.mxu0 0.0
        %4753 = vmatprep.subr.mxu0 0.0
        %4754 = vmatpush2.xpose.msra.mxu0 0.0
        %4755 = vmatprep.subr.mxu0 0.0
        %4756 = vmatpush2.xpose.msra.mxu0 0.0
        %4757 = vmatprep.mubr.f32.mxu0 0.0
        %4758 = vmatmul.mubr.f32.gmra.mxu0 %v4689
        %v4759 = vpop.f32.mrf.mxu0
        %v4760 = vadd.f32 0.0, %v4759
        %v4761 = vpop.f32.mrf.mxu0
        %4762 = vdwg.mxu0
        %4763 = vrot.lane.b32.xlu0 %v2844, 64
        %v4764 = vpop.permute.xlu0 %4763
        %v4765 = vsel %vm743, %v2844, 0
        %v4767 = vsel %vm743, %v4764, 0
        %4769 = vmatprep.subr.mxu0 0.0
        %4770 = vmatpush1.xpose.msra.mxu0 0.0
        %4771 = vmatprep.subr.mxu0 0.0
        %4772 = vmatpush1.xpose.msra.mxu0 0.0
        %4773 = vmatprep.subr.mxu0 0.0
        %4774 = vmatpush1.xpose.msra.mxu0 0.0
        %4775 = vmatprep.subr.mxu0 0.0
        %4776 = vmatpush1.xpose.msra.mxu0 0.0
        %4777 = vmatprep.subr.mxu0 0.0
        %4778 = vmatpush1.xpose.msra.mxu0 0.0
        %4779 = vmatprep.subr.mxu0 0.0
        %4780 = vmatpush1.xpose.msra.mxu0 0.0
        %4781 = vmatprep.subr.mxu0 0.0
        %4782 = vmatpush1.xpose.msra.mxu0 0.0
        %4783 = vmatprep.subr.mxu0 0.0
        %4784 = vmatpush1.xpose.msra.mxu0 0.0
        %4785 = vmatprep.subr.mxu0 0.0
        %4786 = vmatpush1.xpose.msra.mxu0 0.0
        %4787 = vmatprep.subr.mxu0 0.0
        %4788 = vmatpush1.xpose.msra.mxu0 0.0
        %4789 = vmatprep.subr.mxu0 0.0
        %4790 = vmatpush1.xpose.msra.mxu0 0.0
        %4791 = vmatprep.subr.mxu0 0.0
        %4792 = vmatpush1.xpose.msra.mxu0 0.0
        %4793 = vmatprep.subr.mxu0 0.0
        %4794 = vmatpush1.xpose.msra.mxu0 0.0
        %4795 = vmatprep.subr.mxu0 0.0
        %4796 = vmatpush1.xpose.msra.mxu0 0.0
        %4797 = vmatprep.subr.mxu0 0.0
        %4798 = vmatpush1.xpose.msra.mxu0 0.0
        %4799 = vmatprep.subr.mxu0 0.0
        %4800 = vmatpush1.xpose.msra.mxu0 %v4767
        %4801 = vmatprep.subr.mxu0 0.0
        %4802 = vmatpush2.xpose.msra.mxu0 0.0
        %4803 = vmatprep.subr.mxu0 0.0
        %4804 = vmatpush2.xpose.msra.mxu0 0.0
        %4805 = vmatprep.subr.mxu0 0.0
        %4806 = vmatpush2.xpose.msra.mxu0 0.0
        %4807 = vmatprep.subr.mxu0 0.0
        %4808 = vmatpush2.xpose.msra.mxu0 0.0
        %4809 = vmatprep.subr.mxu0 0.0
        %4810 = vmatpush2.xpose.msra.mxu0 0.0
        %4811 = vmatprep.subr.mxu0 0.0
        %4812 = vmatpush2.xpose.msra.mxu0 0.0
        %4813 = vmatprep.subr.mxu0 0.0
        %4814 = vmatpush2.xpose.msra.mxu0 0.0
        %4815 = vmatprep.subr.mxu0 0.0
        %4816 = vmatpush2.xpose.msra.mxu0 0.0
        %4817 = vmatprep.subr.mxu0 0.0
        %4818 = vmatpush2.xpose.msra.mxu0 0.0
        %4819 = vmatprep.subr.mxu0 0.0
        %4820 = vmatpush2.xpose.msra.mxu0 0.0
        %4821 = vmatprep.subr.mxu0 0.0
        %4822 = vmatpush2.xpose.msra.mxu0 0.0
        %4823 = vmatprep.subr.mxu0 0.0
        %4824 = vmatpush2.xpose.msra.mxu0 0.0
        %4825 = vmatprep.subr.mxu0 0.0
        %4826 = vmatpush2.xpose.msra.mxu0 0.0
        %4827 = vmatprep.subr.mxu0 0.0
        %4828 = vmatpush2.xpose.msra.mxu0 0.0
        %4829 = vmatprep.subr.mxu0 0.0
        %4830 = vmatpush2.xpose.msra.mxu0 0.0
        %4831 = vmatprep.subr.mxu0 0.0
        %4832 = vmatpush2.xpose.msra.mxu0 0.0
        %4833 = vmatprep.mubr.f32.mxu0 0.0
        %4834 = vmatmul.mubr.f32.gmra.mxu0 %v4765
        %v4835 = vpop.f32.mrf.mxu0
        %v4836 = vadd.f32 0.0, %v4835
        %v4837 = vpop.f32.mrf.mxu0
        %4838 = vdwg.mxu0
        %4839 = vrot.lane.b32.xlu0 %v2846, 64
        %v4840 = vpop.permute.xlu0 %4839
        %v4841 = vsel %vm743, %v2846, 0
        %v4843 = vsel %vm743, %v4840, 0
        %4845 = vmatprep.subr.mxu0 0.0
        %4846 = vmatpush1.xpose.msra.mxu0 0.0
        %4847 = vmatprep.subr.mxu0 0.0
        %4848 = vmatpush1.xpose.msra.mxu0 0.0
        %4849 = vmatprep.subr.mxu0 0.0
        %4850 = vmatpush1.xpose.msra.mxu0 0.0
        %4851 = vmatprep.subr.mxu0 0.0
        %4852 = vmatpush1.xpose.msra.mxu0 0.0
        %4853 = vmatprep.subr.mxu0 0.0
        %4854 = vmatpush1.xpose.msra.mxu0 0.0
        %4855 = vmatprep.subr.mxu0 0.0
        %4856 = vmatpush1.xpose.msra.mxu0 0.0
        %4857 = vmatprep.subr.mxu0 0.0
        %4858 = vmatpush1.xpose.msra.mxu0 0.0
        %4859 = vmatprep.subr.mxu0 0.0
        %4860 = vmatpush1.xpose.msra.mxu0 0.0
        %4861 = vmatprep.subr.mxu0 0.0
        %4862 = vmatpush1.xpose.msra.mxu0 0.0
        %4863 = vmatprep.subr.mxu0 0.0
        %4864 = vmatpush1.xpose.msra.mxu0 0.0
        %4865 = vmatprep.subr.mxu0 0.0
        %4866 = vmatpush1.xpose.msra.mxu0 0.0
        %4867 = vmatprep.subr.mxu0 0.0
        %4868 = vmatpush1.xpose.msra.mxu0 0.0
        %4869 = vmatprep.subr.mxu0 0.0
        %4870 = vmatpush1.xpose.msra.mxu0 0.0
        %4871 = vmatprep.subr.mxu0 0.0
        %4872 = vmatpush1.xpose.msra.mxu0 0.0
        %4873 = vmatprep.subr.mxu0 0.0
        %4874 = vmatpush1.xpose.msra.mxu0 0.0
        %4875 = vmatprep.subr.mxu0 0.0
        %4876 = vmatpush1.xpose.msra.mxu0 %v4843
        %4877 = vmatprep.subr.mxu0 0.0
        %4878 = vmatpush2.xpose.msra.mxu0 0.0
        %4879 = vmatprep.subr.mxu0 0.0
        %4880 = vmatpush2.xpose.msra.mxu0 0.0
        %4881 = vmatprep.subr.mxu0 0.0
        %4882 = vmatpush2.xpose.msra.mxu0 0.0
        %4883 = vmatprep.subr.mxu0 0.0
        %4884 = vmatpush2.xpose.msra.mxu0 0.0
        %4885 = vmatprep.subr.mxu0 0.0
        %4886 = vmatpush2.xpose.msra.mxu0 0.0
        %4887 = vmatprep.subr.mxu0 0.0
        %4888 = vmatpush2.xpose.msra.mxu0 0.0
        %4889 = vmatprep.subr.mxu0 0.0
        %4890 = vmatpush2.xpose.msra.mxu0 0.0
        %4891 = vmatprep.subr.mxu0 0.0
        %4892 = vmatpush2.xpose.msra.mxu0 0.0
        %4893 = vmatprep.subr.mxu0 0.0
        %4894 = vmatpush2.xpose.msra.mxu0 0.0
        %4895 = vmatprep.subr.mxu0 0.0
        %4896 = vmatpush2.xpose.msra.mxu0 0.0
        %4897 = vmatprep.subr.mxu0 0.0
        %4898 = vmatpush2.xpose.msra.mxu0 0.0
        %4899 = vmatprep.subr.mxu0 0.0
        %4900 = vmatpush2.xpose.msra.mxu0 0.0
        %4901 = vmatprep.subr.mxu0 0.0
        %4902 = vmatpush2.xpose.msra.mxu0 0.0
        %4903 = vmatprep.subr.mxu0 0.0
        %4904 = vmatpush2.xpose.msra.mxu0 0.0
        %4905 = vmatprep.subr.mxu0 0.0
        %4906 = vmatpush2.xpose.msra.mxu0 0.0
        %4907 = vmatprep.subr.mxu0 0.0
        %4908 = vmatpush2.xpose.msra.mxu0 0.0
        %4909 = vmatprep.mubr.f32.mxu0 0.0
        %4910 = vmatmul.mubr.f32.gmra.mxu0 %v4841
        %v4911 = vpop.f32.mrf.mxu0
        %v4912 = vadd.f32 0.0, %v4911
        %v4913 = vpop.f32.mrf.mxu0
        %4914 = vdwg.mxu0
        %4915 = vrot.lane.b32.xlu0 %v2848, 64
        %v4916 = vpop.permute.xlu0 %4915
        %v4917 = vsel %vm743, %v2848, 0
        %v4919 = vsel %vm743, %v4916, 0
        %4921 = vmatprep.subr.mxu0 0.0
        %4922 = vmatpush1.xpose.msra.mxu0 0.0
        %4923 = vmatprep.subr.mxu0 0.0
        %4924 = vmatpush1.xpose.msra.mxu0 0.0
        %4925 = vmatprep.subr.mxu0 0.0
        %4926 = vmatpush1.xpose.msra.mxu0 0.0
        %4927 = vmatprep.subr.mxu0 0.0
        %4928 = vmatpush1.xpose.msra.mxu0 0.0
        %4929 = vmatprep.subr.mxu0 0.0
        %4930 = vmatpush1.xpose.msra.mxu0 0.0
        %4931 = vmatprep.subr.mxu0 0.0
        %4932 = vmatpush1.xpose.msra.mxu0 0.0
        %4933 = vmatprep.subr.mxu0 0.0
        %4934 = vmatpush1.xpose.msra.mxu0 0.0
        %4935 = vmatprep.subr.mxu0 0.0
        %4936 = vmatpush1.xpose.msra.mxu0 0.0
        %4937 = vmatprep.subr.mxu0 0.0
        %4938 = vmatpush1.xpose.msra.mxu0 0.0
        %4939 = vmatprep.subr.mxu0 0.0
        %4940 = vmatpush1.xpose.msra.mxu0 0.0
        %4941 = vmatprep.subr.mxu0 0.0
        %4942 = vmatpush1.xpose.msra.mxu0 0.0
        %4943 = vmatprep.subr.mxu0 0.0
        %4944 = vmatpush1.xpose.msra.mxu0 0.0
        %4945 = vmatprep.subr.mxu0 0.0
        %4946 = vmatpush1.xpose.msra.mxu0 0.0
        %4947 = vmatprep.subr.mxu0 0.0
        %4948 = vmatpush1.xpose.msra.mxu0 0.0
        %4949 = vmatprep.subr.mxu0 0.0
        %4950 = vmatpush1.xpose.msra.mxu0 0.0
        %4951 = vmatprep.subr.mxu0 0.0
        %4952 = vmatpush1.xpose.msra.mxu0 %v4919
        %4953 = vmatprep.subr.mxu0 0.0
        %4954 = vmatpush2.xpose.msra.mxu0 0.0
        %4955 = vmatprep.subr.mxu0 0.0
        %4956 = vmatpush2.xpose.msra.mxu0 0.0
        %4957 = vmatprep.subr.mxu0 0.0
        %4958 = vmatpush2.xpose.msra.mxu0 0.0
        %4959 = vmatprep.subr.mxu0 0.0
        %4960 = vmatpush2.xpose.msra.mxu0 0.0
        %4961 = vmatprep.subr.mxu0 0.0
        %4962 = vmatpush2.xpose.msra.mxu0 0.0
        %4963 = vmatprep.subr.mxu0 0.0
        %4964 = vmatpush2.xpose.msra.mxu0 0.0
        %4965 = vmatprep.subr.mxu0 0.0
        %4966 = vmatpush2.xpose.msra.mxu0 0.0
        %4967 = vmatprep.subr.mxu0 0.0
        %4968 = vmatpush2.xpose.msra.mxu0 0.0
        %4969 = vmatprep.subr.mxu0 0.0
        %4970 = vmatpush2.xpose.msra.mxu0 0.0
        %4971 = vmatprep.subr.mxu0 0.0
        %4972 = vmatpush2.xpose.msra.mxu0 0.0
        %4973 = vmatprep.subr.mxu0 0.0
        %4974 = vmatpush2.xpose.msra.mxu0 0.0
        %4975 = vmatprep.subr.mxu0 0.0
        %4976 = vmatpush2.xpose.msra.mxu0 0.0
        %4977 = vmatprep.subr.mxu0 0.0
        %4978 = vmatpush2.xpose.msra.mxu0 0.0
        %4979 = vmatprep.subr.mxu0 0.0
        %4980 = vmatpush2.xpose.msra.mxu0 0.0
        %4981 = vmatprep.subr.mxu0 0.0
        %4982 = vmatpush2.xpose.msra.mxu0 0.0
        %4983 = vmatprep.subr.mxu0 0.0
        %4984 = vmatpush2.xpose.msra.mxu0 0.0
        %4985 = vmatprep.mubr.f32.mxu0 0.0
        %4986 = vmatmul.mubr.f32.gmra.mxu0 %v4917
        %v4987 = vpop.f32.mrf.mxu0
        %v4988 = vadd.f32 0.0, %v4987
        %v4989 = vpop.f32.mrf.mxu0
        %4990 = vdwg.mxu0
        %4991 = vrot.lane.b32.xlu0 %v2850, 64
        %v4992 = vpop.permute.xlu0 %4991
        %v4993 = vsel %vm743, %v2850, 0
        %v4995 = vsel %vm743, %v4992, 0
        %4997 = vmatprep.subr.mxu0 0.0
        %4998 = vmatpush1.xpose.msra.mxu0 0.0
        %4999 = vmatprep.subr.mxu0 0.0
        %5000 = vmatpush1.xpose.msra.mxu0 0.0
        %5001 = vmatprep.subr.mxu0 0.0
        %5002 = vmatpush1.xpose.msra.mxu0 0.0
        %5003 = vmatprep.subr.mxu0 0.0
        %5004 = vmatpush1.xpose.msra.mxu0 0.0
        %5005 = vmatprep.subr.mxu0 0.0
        %5006 = vmatpush1.xpose.msra.mxu0 0.0
        %5007 = vmatprep.subr.mxu0 0.0
        %5008 = vmatpush1.xpose.msra.mxu0 0.0
        %5009 = vmatprep.subr.mxu0 0.0
        %5010 = vmatpush1.xpose.msra.mxu0 0.0
        %5011 = vmatprep.subr.mxu0 0.0
        %5012 = vmatpush1.xpose.msra.mxu0 0.0
        %5013 = vmatprep.subr.mxu0 0.0
        %5014 = vmatpush1.xpose.msra.mxu0 0.0
        %5015 = vmatprep.subr.mxu0 0.0
        %5016 = vmatpush1.xpose.msra.mxu0 0.0
        %5017 = vmatprep.subr.mxu0 0.0
        %5018 = vmatpush1.xpose.msra.mxu0 0.0
        %5019 = vmatprep.subr.mxu0 0.0
        %5020 = vmatpush1.xpose.msra.mxu0 0.0
        %5021 = vmatprep.subr.mxu0 0.0
        %5022 = vmatpush1.xpose.msra.mxu0 0.0
        %5023 = vmatprep.subr.mxu0 0.0
        %5024 = vmatpush1.xpose.msra.mxu0 0.0
        %5025 = vmatprep.subr.mxu0 0.0
        %5026 = vmatpush1.xpose.msra.mxu0 0.0
        %5027 = vmatprep.subr.mxu0 0.0
        %5028 = vmatpush1.xpose.msra.mxu0 %v4995
        %5029 = vmatprep.subr.mxu0 0.0
        %5030 = vmatpush2.xpose.msra.mxu0 0.0
        %5031 = vmatprep.subr.mxu0 0.0
        %5032 = vmatpush2.xpose.msra.mxu0 0.0
        %5033 = vmatprep.subr.mxu0 0.0
        %5034 = vmatpush2.xpose.msra.mxu0 0.0
        %5035 = vmatprep.subr.mxu0 0.0
        %5036 = vmatpush2.xpose.msra.mxu0 0.0
        %5037 = vmatprep.subr.mxu0 0.0
        %5038 = vmatpush2.xpose.msra.mxu0 0.0
        %5039 = vmatprep.subr.mxu0 0.0
        %5040 = vmatpush2.xpose.msra.mxu0 0.0
        %5041 = vmatprep.subr.mxu0 0.0
        %5042 = vmatpush2.xpose.msra.mxu0 0.0
        %5043 = vmatprep.subr.mxu0 0.0
        %5044 = vmatpush2.xpose.msra.mxu0 0.0
        %5045 = vmatprep.subr.mxu0 0.0
        %5046 = vmatpush2.xpose.msra.mxu0 0.0
        %5047 = vmatprep.subr.mxu0 0.0
        %5048 = vmatpush2.xpose.msra.mxu0 0.0
        %5049 = vmatprep.subr.mxu0 0.0
        %5050 = vmatpush2.xpose.msra.mxu0 0.0
        %5051 = vmatprep.subr.mxu0 0.0
        %5052 = vmatpush2.xpose.msra.mxu0 0.0
        %5053 = vmatprep.subr.mxu0 0.0
        %5054 = vmatpush2.xpose.msra.mxu0 0.0
        %5055 = vmatprep.subr.mxu0 0.0
        %5056 = vmatpush2.xpose.msra.mxu0 0.0
        %5057 = vmatprep.subr.mxu0 0.0
        %5058 = vmatpush2.xpose.msra.mxu0 0.0
        %5059 = vmatprep.subr.mxu0 0.0
        %5060 = vmatpush2.xpose.msra.mxu0 0.0
        %5061 = vmatprep.mubr.f32.mxu0 0.0
        %5062 = vmatmul.mubr.f32.gmra.mxu0 %v4993
        %v5063 = vpop.f32.mrf.mxu0
        %v5064 = vadd.f32 0.0, %v5063
        %v5065 = vpop.f32.mrf.mxu0
        %5066 = vdwg.mxu0
        %5067 = vrot.lane.b32.xlu0 %v2852, 64
        %v5068 = vpop.permute.xlu0 %5067
        %v5069 = vsel %vm743, %v2852, 0
        %v5071 = vsel %vm743, %v5068, 0
        %5073 = vmatprep.subr.mxu0 0.0
        %5074 = vmatpush1.xpose.msra.mxu0 0.0
        %5075 = vmatprep.subr.mxu0 0.0
        %5076 = vmatpush1.xpose.msra.mxu0 0.0
        %5077 = vmatprep.subr.mxu0 0.0
        %5078 = vmatpush1.xpose.msra.mxu0 0.0
        %5079 = vmatprep.subr.mxu0 0.0
        %5080 = vmatpush1.xpose.msra.mxu0 0.0
        %5081 = vmatprep.subr.mxu0 0.0
        %5082 = vmatpush1.xpose.msra.mxu0 0.0
        %5083 = vmatprep.subr.mxu0 0.0
        %5084 = vmatpush1.xpose.msra.mxu0 0.0
        %5085 = vmatprep.subr.mxu0 0.0
        %5086 = vmatpush1.xpose.msra.mxu0 0.0
        %5087 = vmatprep.subr.mxu0 0.0
        %5088 = vmatpush1.xpose.msra.mxu0 0.0
        %5089 = vmatprep.subr.mxu0 0.0
        %5090 = vmatpush1.xpose.msra.mxu0 0.0
        %5091 = vmatprep.subr.mxu0 0.0
        %5092 = vmatpush1.xpose.msra.mxu0 0.0
        %5093 = vmatprep.subr.mxu0 0.0
        %5094 = vmatpush1.xpose.msra.mxu0 0.0
        %5095 = vmatprep.subr.mxu0 0.0
        %5096 = vmatpush1.xpose.msra.mxu0 0.0
        %5097 = vmatprep.subr.mxu0 0.0
        %5098 = vmatpush1.xpose.msra.mxu0 0.0
        %5099 = vmatprep.subr.mxu0 0.0
        %5100 = vmatpush1.xpose.msra.mxu0 0.0
        %5101 = vmatprep.subr.mxu0 0.0
        %5102 = vmatpush1.xpose.msra.mxu0 0.0
        %5103 = vmatprep.subr.mxu0 0.0
        %5104 = vmatpush1.xpose.msra.mxu0 %v5071
        %5105 = vmatprep.subr.mxu0 0.0
        %5106 = vmatpush2.xpose.msra.mxu0 0.0
        %5107 = vmatprep.subr.mxu0 0.0
        %5108 = vmatpush2.xpose.msra.mxu0 0.0
        %5109 = vmatprep.subr.mxu0 0.0
        %5110 = vmatpush2.xpose.msra.mxu0 0.0
        %5111 = vmatprep.subr.mxu0 0.0
        %5112 = vmatpush2.xpose.msra.mxu0 0.0
        %5113 = vmatprep.subr.mxu0 0.0
        %5114 = vmatpush2.xpose.msra.mxu0 0.0
        %5115 = vmatprep.subr.mxu0 0.0
        %5116 = vmatpush2.xpose.msra.mxu0 0.0
        %5117 = vmatprep.subr.mxu0 0.0
        %5118 = vmatpush2.xpose.msra.mxu0 0.0
        %5119 = vmatprep.subr.mxu0 0.0
        %5120 = vmatpush2.xpose.msra.mxu0 0.0
        %5121 = vmatprep.subr.mxu0 0.0
        %5122 = vmatpush2.xpose.msra.mxu0 0.0
        %5123 = vmatprep.subr.mxu0 0.0
        %5124 = vmatpush2.xpose.msra.mxu0 0.0
        %5125 = vmatprep.subr.mxu0 0.0
        %5126 = vmatpush2.xpose.msra.mxu0 0.0
        %5127 = vmatprep.subr.mxu0 0.0
        %5128 = vmatpush2.xpose.msra.mxu0 0.0
        %5129 = vmatprep.subr.mxu0 0.0
        %5130 = vmatpush2.xpose.msra.mxu0 0.0
        %5131 = vmatprep.subr.mxu0 0.0
        %5132 = vmatpush2.xpose.msra.mxu0 0.0
        %5133 = vmatprep.subr.mxu0 0.0
        %5134 = vmatpush2.xpose.msra.mxu0 0.0
        %5135 = vmatprep.subr.mxu0 0.0
        %5136 = vmatpush2.xpose.msra.mxu0 0.0
        %5137 = vmatprep.mubr.f32.mxu0 0.0
        %5138 = vmatmul.mubr.f32.gmra.mxu0 %v5069
        %v5139 = vpop.f32.mrf.mxu0
        %v5140 = vadd.f32 0.0, %v5139
        %v5141 = vpop.f32.mrf.mxu0
        %5142 = vdwg.mxu0
        %5143 = vrot.lane.b32.xlu0 %v2854, 64
        %v5144 = vpop.permute.xlu0 %5143
        %v5145 = vsel %vm743, %v2854, 0
        %v5147 = vsel %vm743, %v5144, 0
        %5149 = vmatprep.subr.mxu0 0.0
        %5150 = vmatpush1.xpose.msra.mxu0 0.0
        %5151 = vmatprep.subr.mxu0 0.0
        %5152 = vmatpush1.xpose.msra.mxu0 0.0
        %5153 = vmatprep.subr.mxu0 0.0
        %5154 = vmatpush1.xpose.msra.mxu0 0.0
        %5155 = vmatprep.subr.mxu0 0.0
        %5156 = vmatpush1.xpose.msra.mxu0 0.0
        %5157 = vmatprep.subr.mxu0 0.0
        %5158 = vmatpush1.xpose.msra.mxu0 0.0
        %5159 = vmatprep.subr.mxu0 0.0
        %5160 = vmatpush1.xpose.msra.mxu0 0.0
        %5161 = vmatprep.subr.mxu0 0.0
        %5162 = vmatpush1.xpose.msra.mxu0 0.0
        %5163 = vmatprep.subr.mxu0 0.0
        %5164 = vmatpush1.xpose.msra.mxu0 0.0
        %5165 = vmatprep.subr.mxu0 0.0
        %5166 = vmatpush1.xpose.msra.mxu0 0.0
        %5167 = vmatprep.subr.mxu0 0.0
        %5168 = vmatpush1.xpose.msra.mxu0 0.0
        %5169 = vmatprep.subr.mxu0 0.0
        %5170 = vmatpush1.xpose.msra.mxu0 0.0
        %5171 = vmatprep.subr.mxu0 0.0
        %5172 = vmatpush1.xpose.msra.mxu0 0.0
        %5173 = vmatprep.subr.mxu0 0.0
        %5174 = vmatpush1.xpose.msra.mxu0 0.0
        %5175 = vmatprep.subr.mxu0 0.0
        %5176 = vmatpush1.xpose.msra.mxu0 0.0
        %5177 = vmatprep.subr.mxu0 0.0
        %5178 = vmatpush1.xpose.msra.mxu0 0.0
        %5179 = vmatprep.subr.mxu0 0.0
        %5180 = vmatpush1.xpose.msra.mxu0 %v5147
        %5181 = vmatprep.subr.mxu0 0.0
        %5182 = vmatpush2.xpose.msra.mxu0 0.0
        %5183 = vmatprep.subr.mxu0 0.0
        %5184 = vmatpush2.xpose.msra.mxu0 0.0
        %5185 = vmatprep.subr.mxu0 0.0
        %5186 = vmatpush2.xpose.msra.mxu0 0.0
        %5187 = vmatprep.subr.mxu0 0.0
        %5188 = vmatpush2.xpose.msra.mxu0 0.0
        %5189 = vmatprep.subr.mxu0 0.0
        %5190 = vmatpush2.xpose.msra.mxu0 0.0
        %5191 = vmatprep.subr.mxu0 0.0
        %5192 = vmatpush2.xpose.msra.mxu0 0.0
        %5193 = vmatprep.subr.mxu0 0.0
        %5194 = vmatpush2.xpose.msra.mxu0 0.0
        %5195 = vmatprep.subr.mxu0 0.0
        %5196 = vmatpush2.xpose.msra.mxu0 0.0
        %5197 = vmatprep.subr.mxu0 0.0
        %5198 = vmatpush2.xpose.msra.mxu0 0.0
        %5199 = vmatprep.subr.mxu0 0.0
        %5200 = vmatpush2.xpose.msra.mxu0 0.0
        %5201 = vmatprep.subr.mxu0 0.0
        %5202 = vmatpush2.xpose.msra.mxu0 0.0
        %5203 = vmatprep.subr.mxu0 0.0
        %5204 = vmatpush2.xpose.msra.mxu0 0.0
        %5205 = vmatprep.subr.mxu0 0.0
        %5206 = vmatpush2.xpose.msra.mxu0 0.0
        %5207 = vmatprep.subr.mxu0 0.0
        %5208 = vmatpush2.xpose.msra.mxu0 0.0
        %5209 = vmatprep.subr.mxu0 0.0
        %5210 = vmatpush2.xpose.msra.mxu0 0.0
        %5211 = vmatprep.subr.mxu0 0.0
        %5212 = vmatpush2.xpose.msra.mxu0 0.0
        %5213 = vmatprep.mubr.f32.mxu0 0.0
        %5214 = vmatmul.mubr.f32.gmra.mxu0 %v5145
        %v5215 = vpop.f32.mrf.mxu0
        %v5216 = vadd.f32 0.0, %v5215
        %v5217 = vpop.f32.mrf.mxu0
        %5218 = vdwg.mxu0
        %5219 = vrot.lane.b32.xlu0 %v2856, 64
        %v5220 = vpop.permute.xlu0 %5219
        %v5221 = vsel %vm743, %v2856, 0
        %v5223 = vsel %vm743, %v5220, 0
        %5225 = vmatprep.subr.mxu0 0.0
        %5226 = vmatpush1.xpose.msra.mxu0 0.0
        %5227 = vmatprep.subr.mxu0 0.0
        %5228 = vmatpush1.xpose.msra.mxu0 0.0
        %5229 = vmatprep.subr.mxu0 0.0
        %5230 = vmatpush1.xpose.msra.mxu0 0.0
        %5231 = vmatprep.subr.mxu0 0.0
        %5232 = vmatpush1.xpose.msra.mxu0 0.0
        %5233 = vmatprep.subr.mxu0 0.0
        %5234 = vmatpush1.xpose.msra.mxu0 0.0
        %5235 = vmatprep.subr.mxu0 0.0
        %5236 = vmatpush1.xpose.msra.mxu0 0.0
        %5237 = vmatprep.subr.mxu0 0.0
        %5238 = vmatpush1.xpose.msra.mxu0 0.0
        %5239 = vmatprep.subr.mxu0 0.0
        %5240 = vmatpush1.xpose.msra.mxu0 0.0
        %5241 = vmatprep.subr.mxu0 0.0
        %5242 = vmatpush1.xpose.msra.mxu0 0.0
        %5243 = vmatprep.subr.mxu0 0.0
        %5244 = vmatpush1.xpose.msra.mxu0 0.0
        %5245 = vmatprep.subr.mxu0 0.0
        %5246 = vmatpush1.xpose.msra.mxu0 0.0
        %5247 = vmatprep.subr.mxu0 0.0
        %5248 = vmatpush1.xpose.msra.mxu0 0.0
        %5249 = vmatprep.subr.mxu0 0.0
        %5250 = vmatpush1.xpose.msra.mxu0 0.0
        %5251 = vmatprep.subr.mxu0 0.0
        %5252 = vmatpush1.xpose.msra.mxu0 0.0
        %5253 = vmatprep.subr.mxu0 0.0
        %5254 = vmatpush1.xpose.msra.mxu0 0.0
        %5255 = vmatprep.subr.mxu0 0.0
        %5256 = vmatpush1.xpose.msra.mxu0 %v5223
        %5257 = vmatprep.subr.mxu0 0.0
        %5258 = vmatpush2.xpose.msra.mxu0 0.0
        %5259 = vmatprep.subr.mxu0 0.0
        %5260 = vmatpush2.xpose.msra.mxu0 0.0
        %5261 = vmatprep.subr.mxu0 0.0
        %5262 = vmatpush2.xpose.msra.mxu0 0.0
        %5263 = vmatprep.subr.mxu0 0.0
        %5264 = vmatpush2.xpose.msra.mxu0 0.0
        %5265 = vmatprep.subr.mxu0 0.0
        %5266 = vmatpush2.xpose.msra.mxu0 0.0
        %5267 = vmatprep.subr.mxu0 0.0
        %5268 = vmatpush2.xpose.msra.mxu0 0.0
        %5269 = vmatprep.subr.mxu0 0.0
        %5270 = vmatpush2.xpose.msra.mxu0 0.0
        %5271 = vmatprep.subr.mxu0 0.0
        %5272 = vmatpush2.xpose.msra.mxu0 0.0
        %5273 = vmatprep.subr.mxu0 0.0
        %5274 = vmatpush2.xpose.msra.mxu0 0.0
        %5275 = vmatprep.subr.mxu0 0.0
        %5276 = vmatpush2.xpose.msra.mxu0 0.0
        %5277 = vmatprep.subr.mxu0 0.0
        %5278 = vmatpush2.xpose.msra.mxu0 0.0
        %5279 = vmatprep.subr.mxu0 0.0
        %5280 = vmatpush2.xpose.msra.mxu0 0.0
        %5281 = vmatprep.subr.mxu0 0.0
        %5282 = vmatpush2.xpose.msra.mxu0 0.0
        %5283 = vmatprep.subr.mxu0 0.0
        %5284 = vmatpush2.xpose.msra.mxu0 0.0
        %5285 = vmatprep.subr.mxu0 0.0
        %5286 = vmatpush2.xpose.msra.mxu0 0.0
        %5287 = vmatprep.subr.mxu0 0.0
        %5288 = vmatpush2.xpose.msra.mxu0 0.0
        %5289 = vmatprep.mubr.f32.mxu0 0.0
        %5290 = vmatmul.mubr.f32.gmra.mxu0 %v5221
        %v5291 = vpop.f32.mrf.mxu0
        %v5292 = vadd.f32 0.0, %v5291
        %v5293 = vpop.f32.mrf.mxu0
        %5294 = vdwg.mxu0
        %5295 = vrot.lane.b32.xlu0 %v2858, 64
        %v5296 = vpop.permute.xlu0 %5295
        %v5297 = vsel %vm743, %v2858, 0
        %v5299 = vsel %vm743, %v5296, 0
        %5301 = vmatprep.subr.mxu0 0.0
        %5302 = vmatpush1.xpose.msra.mxu0 0.0
        %5303 = vmatprep.subr.mxu0 0.0
        %5304 = vmatpush1.xpose.msra.mxu0 0.0
        %5305 = vmatprep.subr.mxu0 0.0
        %5306 = vmatpush1.xpose.msra.mxu0 0.0
        %5307 = vmatprep.subr.mxu0 0.0
        %5308 = vmatpush1.xpose.msra.mxu0 0.0
        %5309 = vmatprep.subr.mxu0 0.0
        %5310 = vmatpush1.xpose.msra.mxu0 0.0
        %5311 = vmatprep.subr.mxu0 0.0
        %5312 = vmatpush1.xpose.msra.mxu0 0.0
        %5313 = vmatprep.subr.mxu0 0.0
        %5314 = vmatpush1.xpose.msra.mxu0 0.0
        %5315 = vmatprep.subr.mxu0 0.0
        %5316 = vmatpush1.xpose.msra.mxu0 0.0
        %5317 = vmatprep.subr.mxu0 0.0
        %5318 = vmatpush1.xpose.msra.mxu0 0.0
        %5319 = vmatprep.subr.mxu0 0.0
        %5320 = vmatpush1.xpose.msra.mxu0 0.0
        %5321 = vmatprep.subr.mxu0 0.0
        %5322 = vmatpush1.xpose.msra.mxu0 0.0
        %5323 = vmatprep.subr.mxu0 0.0
        %5324 = vmatpush1.xpose.msra.mxu0 0.0
        %5325 = vmatprep.subr.mxu0 0.0
        %5326 = vmatpush1.xpose.msra.mxu0 0.0
        %5327 = vmatprep.subr.mxu0 0.0
        %5328 = vmatpush1.xpose.msra.mxu0 0.0
        %5329 = vmatprep.subr.mxu0 0.0
        %5330 = vmatpush1.xpose.msra.mxu0 0.0
        %5331 = vmatprep.subr.mxu0 0.0
        %5332 = vmatpush1.xpose.msra.mxu0 %v5299
        %5333 = vmatprep.subr.mxu0 0.0
        %5334 = vmatpush2.xpose.msra.mxu0 0.0
        %5335 = vmatprep.subr.mxu0 0.0
        %5336 = vmatpush2.xpose.msra.mxu0 0.0
        %5337 = vmatprep.subr.mxu0 0.0
        %5338 = vmatpush2.xpose.msra.mxu0 0.0
        %5339 = vmatprep.subr.mxu0 0.0
        %5340 = vmatpush2.xpose.msra.mxu0 0.0
        %5341 = vmatprep.subr.mxu0 0.0
        %5342 = vmatpush2.xpose.msra.mxu0 0.0
        %5343 = vmatprep.subr.mxu0 0.0
        %5344 = vmatpush2.xpose.msra.mxu0 0.0
        %5345 = vmatprep.subr.mxu0 0.0
        %5346 = vmatpush2.xpose.msra.mxu0 0.0
        %5347 = vmatprep.subr.mxu0 0.0
        %5348 = vmatpush2.xpose.msra.mxu0 0.0
        %5349 = vmatprep.subr.mxu0 0.0
        %5350 = vmatpush2.xpose.msra.mxu0 0.0
        %5351 = vmatprep.subr.mxu0 0.0
        %5352 = vmatpush2.xpose.msra.mxu0 0.0
        %5353 = vmatprep.subr.mxu0 0.0
        %5354 = vmatpush2.xpose.msra.mxu0 0.0
        %5355 = vmatprep.subr.mxu0 0.0
        %5356 = vmatpush2.xpose.msra.mxu0 0.0
        %5357 = vmatprep.subr.mxu0 0.0
        %5358 = vmatpush2.xpose.msra.mxu0 0.0
        %5359 = vmatprep.subr.mxu0 0.0
        %5360 = vmatpush2.xpose.msra.mxu0 0.0
        %5361 = vmatprep.subr.mxu0 0.0
        %5362 = vmatpush2.xpose.msra.mxu0 0.0
        %5363 = vmatprep.subr.mxu0 0.0
        %5364 = vmatpush2.xpose.msra.mxu0 0.0
        %5365 = vmatprep.mubr.f32.mxu0 0.0
        %5366 = vmatmul.mubr.f32.gmra.mxu0 %v5297
        %v5367 = vpop.f32.mrf.mxu0
        %v5368 = vadd.f32 0.0, %v5367
        %v5369 = vpop.f32.mrf.mxu0
        %5370 = vdwg.mxu0
        %vm5371 = vcmask 64512
        %v5372 = vsel %vm5371, %v3012, -inf
        %5373 = vmax.xlane.f32.xlu0 %v5372
        %v5374 = vpop.xlane.xlu0 %5373
        %v5375 = vsel %vm5371, %v3088, -inf
        %5376 = vmax.xlane.f32.xlu0 %v5375
        %v5377 = vpop.xlane.xlu0 %5376
        %v5378 = vsel %vm5371, %v3164, -inf
        %5379 = vmax.xlane.f32.xlu0 %v5378
        %v5380 = vpop.xlane.xlu0 %5379
        %v5381 = vsel %vm5371, %v3240, -inf
        %5382 = vmax.xlane.f32.xlu0 %v5381
        %v5383 = vpop.xlane.xlu0 %5382
        %v5384 = vsel %vm5371, %v3316, -inf
        %5385 = vmax.xlane.f32.xlu0 %v5384
        %v5386 = vpop.xlane.xlu0 %5385
        %v5387 = vsel %vm5371, %v3392, -inf
        %5388 = vmax.xlane.f32.xlu0 %v5387
        %v5389 = vpop.xlane.xlu0 %5388
        %v5390 = vsel %vm5371, %v3468, -inf
        %5391 = vmax.xlane.f32.xlu0 %v5390
        %v5392 = vpop.xlane.xlu0 %5391
        %v5393 = vsel %vm5371, %v3544, -inf
        %5394 = vmax.xlane.f32.xlu0 %v5393
        %v5395 = vpop.xlane.xlu0 %5394
        %v5396 = vsel %vm5371, %v3620, -inf
        %5397 = vmax.xlane.f32.xlu0 %v5396
        %v5398 = vpop.xlane.xlu0 %5397
        %v5399 = vsel %vm5371, %v3696, -inf
        %5400 = vmax.xlane.f32.xlu0 %v5399
        %v5401 = vpop.xlane.xlu0 %5400
        %v5402 = vsel %vm5371, %v3772, -inf
        %5403 = vmax.xlane.f32.xlu0 %v5402
        %v5404 = vpop.xlane.xlu0 %5403
        %v5405 = vsel %vm5371, %v3848, -inf
        %5406 = vmax.xlane.f32.xlu0 %v5405
        %v5407 = vpop.xlane.xlu0 %5406
        %v5408 = vsel %vm5371, %v3924, -inf
        %5409 = vmax.xlane.f32.xlu0 %v5408
        %v5410 = vpop.xlane.xlu0 %5409
        %v5411 = vsel %vm5371, %v4000, -inf
        %5412 = vmax.xlane.f32.xlu0 %v5411
        %v5413 = vpop.xlane.xlu0 %5412
        %v5414 = vsel %vm5371, %v4076, -inf
        %5415 = vmax.xlane.f32.xlu0 %v5414
        %v5416 = vpop.xlane.xlu0 %5415
        %v5417 = vsel %vm5371, %v4152, -inf
        %5418 = vmax.xlane.f32.xlu0 %v5417
        %v5419 = vpop.xlane.xlu0 %5418
        %v5420 = vsel %vm5371, %v4228, -inf
        %5421 = vmax.xlane.f32.xlu0 %v5420
        %v5422 = vpop.xlane.xlu0 %5421
        %v5423 = vsel %vm5371, %v4304, -inf
        %5424 = vmax.xlane.f32.xlu0 %v5423
        %v5425 = vpop.xlane.xlu0 %5424
        %v5426 = vsel %vm5371, %v4380, -inf
        %5427 = vmax.xlane.f32.xlu0 %v5426
        %v5428 = vpop.xlane.xlu0 %5427
        %v5429 = vsel %vm5371, %v4456, -inf
        %5430 = vmax.xlane.f32.xlu0 %v5429
        %v5431 = vpop.xlane.xlu0 %5430
        %v5432 = vsel %vm5371, %v4532, -inf
        %5433 = vmax.xlane.f32.xlu0 %v5432
        %v5434 = vpop.xlane.xlu0 %5433
        %v5435 = vsel %vm5371, %v4608, -inf
        %5436 = vmax.xlane.f32.xlu0 %v5435
        %v5437 = vpop.xlane.xlu0 %5436
        %v5438 = vsel %vm5371, %v4684, -inf
        %5439 = vmax.xlane.f32.xlu0 %v5438
        %v5440 = vpop.xlane.xlu0 %5439
        %v5441 = vsel %vm5371, %v4760, -inf
        %5442 = vmax.xlane.f32.xlu0 %v5441
        %v5443 = vpop.xlane.xlu0 %5442
        %v5444 = vsel %vm5371, %v4836, -inf
        %5445 = vmax.xlane.f32.xlu0 %v5444
        %v5446 = vpop.xlane.xlu0 %5445
        %v5447 = vsel %vm5371, %v4912, -inf
        %5448 = vmax.xlane.f32.xlu0 %v5447
        %v5449 = vpop.xlane.xlu0 %5448
        %v5450 = vsel %vm5371, %v4988, -inf
        %5451 = vmax.xlane.f32.xlu0 %v5450
        %v5452 = vpop.xlane.xlu0 %5451
        %v5453 = vsel %vm5371, %v5064, -inf
        %5454 = vmax.xlane.f32.xlu0 %v5453
        %v5455 = vpop.xlane.xlu0 %5454
        %v5456 = vsel %vm5371, %v5140, -inf
        %5457 = vmax.xlane.f32.xlu0 %v5456
        %v5458 = vpop.xlane.xlu0 %5457
        %v5459 = vsel %vm5371, %v5216, -inf
        %5460 = vmax.xlane.f32.xlu0 %v5459
        %v5461 = vpop.xlane.xlu0 %5460
        %v5462 = vsel %vm5371, %v5292, -inf
        %5463 = vmax.xlane.f32.xlu0 %v5462
        %v5464 = vpop.xlane.xlu0 %5463
        %v5465 = vsel %vm5371, %v5368, -inf
        %5466 = vmax.xlane.f32.xlu0 %v5465
        %v5467 = vpop.xlane.xlu0 %5466
        %v5468 = vsub.f32 %v3012, %v5374
        %v5469 = vsub.f32 %v3088, %v5377
        %v5470 = vsub.f32 %v3164, %v5380
        %v5471 = vsub.f32 %v3240, %v5383
        %v5472 = vsub.f32 %v3316, %v5386
        %v5473 = vsub.f32 %v3392, %v5389
        %v5474 = vsub.f32 %v3468, %v5392
        %v5475 = vsub.f32 %v3544, %v5395
        %v5476 = vsub.f32 %v3620, %v5398
        %v5477 = vsub.f32 %v3696, %v5401
        %v5478 = vsub.f32 %v3772, %v5404
        %v5479 = vsub.f32 %v3848, %v5407
        %v5480 = vsub.f32 %v3924, %v5410
        %v5481 = vsub.f32 %v4000, %v5413
        %v5482 = vsub.f32 %v4076, %v5416
        %v5483 = vsub.f32 %v4152, %v5419
        %v5484 = vsub.f32 %v4228, %v5422
        %v5485 = vsub.f32 %v4304, %v5425
        %v5486 = vsub.f32 %v4380, %v5428
        %v5487 = vsub.f32 %v4456, %v5431
        %v5488 = vsub.f32 %v4532, %v5434
        %v5489 = vsub.f32 %v4608, %v5437
        %v5490 = vsub.f32 %v4684, %v5440
        %v5491 = vsub.f32 %v4760, %v5443
        %v5492 = vsub.f32 %v4836, %v5446
        %v5493 = vsub.f32 %v4912, %v5449
        %v5494 = vsub.f32 %v4988, %v5452
        %v5495 = vsub.f32 %v5064, %v5455
        %v5496 = vsub.f32 %v5140, %v5458
        %v5497 = vsub.f32 %v5216, %v5461
        %v5498 = vsub.f32 %v5292, %v5464
        %v5499 = vsub.f32 %v5368, %v5467
        %v5500 = vmul.f32 %v5468, 1.442695
        %v5501 = vpow.pop %v5500
        %v5502 = vmul.f32 %v5469, 1.442695
        %v5503 = vpow.pop %v5502
        %v5504 = vmul.f32 %v5470, 1.442695
        %v5505 = vpow.pop %v5504
        %v5506 = vmul.f32 %v5471, 1.442695
        %v5507 = vpow.pop %v5506
        %v5508 = vmul.f32 %v5472, 1.442695
        %v5509 = vpow.pop %v5508
        %v5510 = vmul.f32 %v5473, 1.442695
        %v5511 = vpow.pop %v5510
        %v5512 = vmul.f32 %v5474, 1.442695
        %v5513 = vpow.pop %v5512
        %v5514 = vmul.f32 %v5475, 1.442695
        %v5515 = vpow.pop %v5514
        %v5516 = vmul.f32 %v5476, 1.442695
        %v5517 = vpow.pop %v5516
        %v5518 = vmul.f32 %v5477, 1.442695
        %v5519 = vpow.pop %v5518
        %v5520 = vmul.f32 %v5478, 1.442695
        %v5521 = vpow.pop %v5520
        %v5522 = vmul.f32 %v5479, 1.442695
        %v5523 = vpow.pop %v5522
        %v5524 = vmul.f32 %v5480, 1.442695
        %v5525 = vpow.pop %v5524
        %v5526 = vmul.f32 %v5481, 1.442695
        %v5527 = vpow.pop %v5526
        %v5528 = vmul.f32 %v5482, 1.442695
        %v5529 = vpow.pop %v5528
        %v5530 = vmul.f32 %v5483, 1.442695
        %v5531 = vpow.pop %v5530
        %v5532 = vmul.f32 %v5484, 1.442695
        %v5533 = vpow.pop %v5532
        %v5534 = vmul.f32 %v5485, 1.442695
        %v5535 = vpow.pop %v5534
        %v5536 = vmul.f32 %v5486, 1.442695
        %v5537 = vpow.pop %v5536
        %v5538 = vmul.f32 %v5487, 1.442695
        %v5539 = vpow.pop %v5538
        %v5540 = vmul.f32 %v5488, 1.442695
        %v5541 = vpow.pop %v5540
        %v5542 = vmul.f32 %v5489, 1.442695
        %v5543 = vpow.pop %v5542
        %v5544 = vmul.f32 %v5490, 1.442695
        %v5545 = vpow.pop %v5544
        %v5546 = vmul.f32 %v5491, 1.442695
        %v5547 = vpow.pop %v5546
        %v5548 = vmul.f32 %v5492, 1.442695
        %v5549 = vpow.pop %v5548
        %v5550 = vmul.f32 %v5493, 1.442695
        %v5551 = vpow.pop %v5550
        %v5552 = vmul.f32 %v5494, 1.442695
        %v5553 = vpow.pop %v5552
        %v5554 = vmul.f32 %v5495, 1.442695
        %v5555 = vpow.pop %v5554
        %v5556 = vmul.f32 %v5496, 1.442695
        %v5557 = vpow.pop %v5556
        %v5558 = vmul.f32 %v5497, 1.442695
        %v5559 = vpow.pop %v5558
        %v5560 = vmul.f32 %v5498, 1.442695
        %v5561 = vpow.pop %v5560
        %v5562 = vmul.f32 %v5499, 1.442695
        %v5563 = vpow.pop %v5562
        %v5564 = vsel %vm5371, %v5501, 0.0
        %5565 = vadd.xlane.f32.xlu0 %v5564
        %v5566 = vpop.xlane.xlu0 %5565
        %v5567 = vsel %vm5371, %v5503, 0.0
        %5568 = vadd.xlane.f32.xlu0 %v5567
        %v5569 = vpop.xlane.xlu0 %5568
        %v5570 = vsel %vm5371, %v5505, 0.0
        %5571 = vadd.xlane.f32.xlu0 %v5570
        %v5572 = vpop.xlane.xlu0 %5571
        %v5573 = vsel %vm5371, %v5507, 0.0
        %5574 = vadd.xlane.f32.xlu0 %v5573
        %v5575 = vpop.xlane.xlu0 %5574
        %v5576 = vsel %vm5371, %v5509, 0.0
        %5577 = vadd.xlane.f32.xlu0 %v5576
        %v5578 = vpop.xlane.xlu0 %5577
        %v5579 = vsel %vm5371, %v5511, 0.0
        %5580 = vadd.xlane.f32.xlu0 %v5579
        %v5581 = vpop.xlane.xlu0 %5580
        %v5582 = vsel %vm5371, %v5513, 0.0
        %5583 = vadd.xlane.f32.xlu0 %v5582
        %v5584 = vpop.xlane.xlu0 %5583
        %v5585 = vsel %vm5371, %v5515, 0.0
        %5586 = vadd.xlane.f32.xlu0 %v5585
        %v5587 = vpop.xlane.xlu0 %5586
        %v5588 = vsel %vm5371, %v5517, 0.0
        %5589 = vadd.xlane.f32.xlu0 %v5588
        %v5590 = vpop.xlane.xlu0 %5589
        %v5591 = vsel %vm5371, %v5519, 0.0
        %5592 = vadd.xlane.f32.xlu0 %v5591
        %v5593 = vpop.xlane.xlu0 %5592
        %v5594 = vsel %vm5371, %v5521, 0.0
        %5595 = vadd.xlane.f32.xlu0 %v5594
        %v5596 = vpop.xlane.xlu0 %5595
        %v5597 = vsel %vm5371, %v5523, 0.0
        %5598 = vadd.xlane.f32.xlu0 %v5597
        %v5599 = vpop.xlane.xlu0 %5598
        %v5600 = vsel %vm5371, %v5525, 0.0
        %5601 = vadd.xlane.f32.xlu0 %v5600
        %v5602 = vpop.xlane.xlu0 %5601
        %v5603 = vsel %vm5371, %v5527, 0.0
        %5604 = vadd.xlane.f32.xlu0 %v5603
        %v5605 = vpop.xlane.xlu0 %5604
        %v5606 = vsel %vm5371, %v5529, 0.0
        %5607 = vadd.xlane.f32.xlu0 %v5606
        %v5608 = vpop.xlane.xlu0 %5607
        %v5609 = vsel %vm5371, %v5531, 0.0
        %5610 = vadd.xlane.f32.xlu0 %v5609
        %v5611 = vpop.xlane.xlu0 %5610
        %v5612 = vsel %vm5371, %v5533, 0.0
        %5613 = vadd.xlane.f32.xlu0 %v5612
        %v5614 = vpop.xlane.xlu0 %5613
        %v5615 = vsel %vm5371, %v5535, 0.0
        %5616 = vadd.xlane.f32.xlu0 %v5615
        %v5617 = vpop.xlane.xlu0 %5616
        %v5618 = vsel %vm5371, %v5537, 0.0
        %5619 = vadd.xlane.f32.xlu0 %v5618
        %v5620 = vpop.xlane.xlu0 %5619
        %v5621 = vsel %vm5371, %v5539, 0.0
        %5622 = vadd.xlane.f32.xlu0 %v5621
        %v5623 = vpop.xlane.xlu0 %5622
        %v5624 = vsel %vm5371, %v5541, 0.0
        %5625 = vadd.xlane.f32.xlu0 %v5624
        %v5626 = vpop.xlane.xlu0 %5625
        %v5627 = vsel %vm5371, %v5543, 0.0
        %5628 = vadd.xlane.f32.xlu0 %v5627
        %v5629 = vpop.xlane.xlu0 %5628
        %v5630 = vsel %vm5371, %v5545, 0.0
        %5631 = vadd.xlane.f32.xlu0 %v5630
        %v5632 = vpop.xlane.xlu0 %5631
        %v5633 = vsel %vm5371, %v5547, 0.0
        %5634 = vadd.xlane.f32.xlu0 %v5633
        %v5635 = vpop.xlane.xlu0 %5634
        %v5636 = vsel %vm5371, %v5549, 0.0
        %5637 = vadd.xlane.f32.xlu0 %v5636
        %v5638 = vpop.xlane.xlu0 %5637
        %v5639 = vsel %vm5371, %v5551, 0.0
        %5640 = vadd.xlane.f32.xlu0 %v5639
        %v5641 = vpop.xlane.xlu0 %5640
        %v5642 = vsel %vm5371, %v5553, 0.0
        %5643 = vadd.xlane.f32.xlu0 %v5642
        %v5644 = vpop.xlane.xlu0 %5643
        %v5645 = vsel %vm5371, %v5555, 0.0
        %5646 = vadd.xlane.f32.xlu0 %v5645
        %v5647 = vpop.xlane.xlu0 %5646
        %v5648 = vsel %vm5371, %v5557, 0.0
        %5649 = vadd.xlane.f32.xlu0 %v5648
        %v5650 = vpop.xlane.xlu0 %5649
        %v5651 = vsel %vm5371, %v5559, 0.0
        %5652 = vadd.xlane.f32.xlu0 %v5651
        %v5653 = vpop.xlane.xlu0 %5652
        %v5654 = vsel %vm5371, %v5561, 0.0
        %5655 = vadd.xlane.f32.xlu0 %v5654
        %v5656 = vpop.xlane.xlu0 %5655
        %v5657 = vsel %vm5371, %v5563, 0.0
        %5658 = vadd.xlane.f32.xlu0 %v5657
        %v5659 = vpop.xlane.xlu0 %5658
        %v5660 = vrcp.pop %v5566
        %v5661 = vrcp.pop %v5569
        %v5662 = vrcp.pop %v5572
        %v5663 = vrcp.pop %v5575
        %v5664 = vrcp.pop %v5578
        %v5665 = vrcp.pop %v5581
        %v5666 = vrcp.pop %v5584
        %v5667 = vrcp.pop %v5587
        %v5668 = vrcp.pop %v5590
        %v5669 = vrcp.pop %v5593
        %v5670 = vrcp.pop %v5596
        %v5671 = vrcp.pop %v5599
        %v5672 = vrcp.pop %v5602
        %v5673 = vrcp.pop %v5605
        %v5674 = vrcp.pop %v5608
        %v5675 = vrcp.pop %v5611
        %v5676 = vrcp.pop %v5614
        %v5677 = vrcp.pop %v5617
        %v5678 = vrcp.pop %v5620
        %v5679 = vrcp.pop %v5623
        %v5680 = vrcp.pop %v5626
        %v5681 = vrcp.pop %v5629
        %v5682 = vrcp.pop %v5632
        %v5683 = vrcp.pop %v5635
        %v5684 = vrcp.pop %v5638
        %v5685 = vrcp.pop %v5641
        %v5686 = vrcp.pop %v5644
        %v5687 = vrcp.pop %v5647
        %v5688 = vrcp.pop %v5650
        %v5689 = vrcp.pop %v5653
        %v5690 = vrcp.pop %v5656
        %v5691 = vrcp.pop %v5659
        %v5692 = vmul.f32 %v5501, %v5660
        %v5693 = vmul.f32 %v5503, %v5661
        %v5694 = vmul.f32 %v5505, %v5662
        %v5695 = vmul.f32 %v5507, %v5663
        %v5696 = vmul.f32 %v5509, %v5664
        %v5697 = vmul.f32 %v5511, %v5665
        %v5698 = vmul.f32 %v5513, %v5666
        %v5699 = vmul.f32 %v5515, %v5667
        %v5700 = vmul.f32 %v5517, %v5668
        %v5701 = vmul.f32 %v5519, %v5669
        %v5702 = vmul.f32 %v5521, %v5670
        %v5703 = vmul.f32 %v5523, %v5671
        %v5704 = vmul.f32 %v5525, %v5672
        %v5705 = vmul.f32 %v5527, %v5673
        %v5706 = vmul.f32 %v5529, %v5674
        %v5707 = vmul.f32 %v5531, %v5675
        %v5708 = vmul.f32 %v5533, %v5676
        %v5709 = vmul.f32 %v5535, %v5677
        %v5710 = vmul.f32 %v5537, %v5678
        %v5711 = vmul.f32 %v5539, %v5679
        %v5712 = vmul.f32 %v5541, %v5680
        %v5713 = vmul.f32 %v5543, %v5681
        %v5714 = vmul.f32 %v5545, %v5682
        %v5715 = vmul.f32 %v5547, %v5683
        %v5716 = vmul.f32 %v5549, %v5684
        %v5717 = vmul.f32 %v5551, %v5685
        %v5718 = vmul.f32 %v5553, %v5686
        %v5719 = vmul.f32 %v5555, %v5687
        %v5720 = vmul.f32 %v5557, %v5688
        %v5721 = vmul.f32 %v5559, %v5689
        %v5722 = vmul.f32 %v5561, %v5690
        %v5723 = vmul.f32 %v5563, %v5691
        %v5725 = vsel %vm5371, %v5692, 0
        %5727 = vmatprep.subr.mxu0 0.0
        %5728 = vmatpush1.msra.mxu0 0.0
        %5729 = vmatprep.subr.mxu0 0.0
        %5730 = vmatpush1.msra.mxu0 0.0
        %5731 = vmatprep.subr.mxu0 0.0
        %5732 = vmatpush1.msra.mxu0 0.0
        %5733 = vmatprep.subr.mxu0 0.0
        %5734 = vmatpush1.msra.mxu0 0.0
        %5735 = vmatprep.subr.mxu0 0.0
        %5736 = vmatpush1.msra.mxu0 0.0
        %5737 = vmatprep.subr.mxu0 0.0
        %5738 = vmatpush1.msra.mxu0 0.0
        %5739 = vmatprep.subr.mxu0 0.0
        %5740 = vmatpush1.msra.mxu0 0.0
        %5741 = vmatprep.subr.mxu0 0.0
        %5742 = vmatpush1.msra.mxu0 0.0
        %5743 = vmatprep.subr.mxu0 0.0
        %5744 = vmatpush1.msra.mxu0 0.0
        %5745 = vmatprep.subr.mxu0 0.0
        %5746 = vmatpush1.msra.mxu0 0.0
        %5747 = vmatprep.subr.mxu0 0.0
        %5748 = vmatpush1.msra.mxu0 0.0
        %5749 = vmatprep.subr.mxu0 0.0
        %5750 = vmatpush1.msra.mxu0 0.0
        %5751 = vmatprep.subr.mxu0 0.0
        %5752 = vmatpush1.msra.mxu0 0.0
        %5753 = vmatprep.subr.mxu0 0.0
        %5754 = vmatpush1.msra.mxu0 0.0
        %5755 = vmatprep.subr.mxu0 0.0
        %5756 = vmatpush1.msra.mxu0 0.0
        %5757 = vmatprep.subr.mxu0 0.0
        %5758 = vmatpush1.msra.mxu0 %v2767
        %5759 = vmatprep.subr.mxu0 0.0
        %5760 = vmatpush2.msra.mxu0 0.0
        %5761 = vmatprep.subr.mxu0 0.0
        %5762 = vmatpush2.msra.mxu0 0.0
        %5763 = vmatprep.subr.mxu0 0.0
        %5764 = vmatpush2.msra.mxu0 0.0
        %5765 = vmatprep.subr.mxu0 0.0
        %5766 = vmatpush2.msra.mxu0 0.0
        %5767 = vmatprep.subr.mxu0 0.0
        %5768 = vmatpush2.msra.mxu0 0.0
        %5769 = vmatprep.subr.mxu0 0.0
        %5770 = vmatpush2.msra.mxu0 0.0
        %5771 = vmatprep.subr.mxu0 0.0
        %5772 = vmatpush2.msra.mxu0 0.0
        %5773 = vmatprep.subr.mxu0 0.0
        %5774 = vmatpush2.msra.mxu0 0.0
        %5775 = vmatprep.subr.mxu0 0.0
        %5776 = vmatpush2.msra.mxu0 0.0
        %5777 = vmatprep.subr.mxu0 0.0
        %5778 = vmatpush2.msra.mxu0 0.0
        %5779 = vmatprep.subr.mxu0 0.0
        %5780 = vmatpush2.msra.mxu0 0.0
        %5781 = vmatprep.subr.mxu0 0.0
        %5782 = vmatpush2.msra.mxu0 0.0
        %5783 = vmatprep.subr.mxu0 0.0
        %5784 = vmatpush2.msra.mxu0 0.0
        %5785 = vmatprep.subr.mxu0 0.0
        %5786 = vmatpush2.msra.mxu0 0.0
        %5787 = vmatprep.subr.mxu0 0.0
        %5788 = vmatpush2.msra.mxu0 0.0
        %5789 = vmatprep.subr.mxu0 0.0
        %5790 = vmatpush2.msra.mxu0 0.0
        %5791 = vmatprep.mubr.f32.mxu0 0.0
        %5792 = vmatmul.mubr.f32.gmra.mxu0 %v5725
        %v5793 = vpop.f32.mrf.mxu0
        %v5794 = vadd.f32 0.0, %v5793
        %v5795 = vpop.f32.mrf.mxu0
        %5796 = vdwg.mxu0
        %v5798 = vsel %vm5371, %v5693, 0
        %5800 = vmatprep.subr.mxu0 0.0
        %5801 = vmatpush1.msra.mxu0 0.0
        %5802 = vmatprep.subr.mxu0 0.0
        %5803 = vmatpush1.msra.mxu0 0.0
        %5804 = vmatprep.subr.mxu0 0.0
        %5805 = vmatpush1.msra.mxu0 0.0
        %5806 = vmatprep.subr.mxu0 0.0
        %5807 = vmatpush1.msra.mxu0 0.0
        %5808 = vmatprep.subr.mxu0 0.0
        %5809 = vmatpush1.msra.mxu0 0.0
        %5810 = vmatprep.subr.mxu0 0.0
        %5811 = vmatpush1.msra.mxu0 0.0
        %5812 = vmatprep.subr.mxu0 0.0
        %5813 = vmatpush1.msra.mxu0 0.0
        %5814 = vmatprep.subr.mxu0 0.0
        %5815 = vmatpush1.msra.mxu0 0.0
        %5816 = vmatprep.subr.mxu0 0.0
        %5817 = vmatpush1.msra.mxu0 0.0
        %5818 = vmatprep.subr.mxu0 0.0
        %5819 = vmatpush1.msra.mxu0 0.0
        %5820 = vmatprep.subr.mxu0 0.0
        %5821 = vmatpush1.msra.mxu0 0.0
        %5822 = vmatprep.subr.mxu0 0.0
        %5823 = vmatpush1.msra.mxu0 0.0
        %5824 = vmatprep.subr.mxu0 0.0
        %5825 = vmatpush1.msra.mxu0 0.0
        %5826 = vmatprep.subr.mxu0 0.0
        %5827 = vmatpush1.msra.mxu0 0.0
        %5828 = vmatprep.subr.mxu0 0.0
        %5829 = vmatpush1.msra.mxu0 0.0
        %5830 = vmatprep.subr.mxu0 0.0
        %5831 = vmatpush1.msra.mxu0 %v2771
        %5832 = vmatprep.subr.mxu0 0.0
        %5833 = vmatpush2.msra.mxu0 0.0
        %5834 = vmatprep.subr.mxu0 0.0
        %5835 = vmatpush2.msra.mxu0 0.0
        %5836 = vmatprep.subr.mxu0 0.0
        %5837 = vmatpush2.msra.mxu0 0.0
        %5838 = vmatprep.subr.mxu0 0.0
        %5839 = vmatpush2.msra.mxu0 0.0
        %5840 = vmatprep.subr.mxu0 0.0
        %5841 = vmatpush2.msra.mxu0 0.0
        %5842 = vmatprep.subr.mxu0 0.0
        %5843 = vmatpush2.msra.mxu0 0.0
        %5844 = vmatprep.subr.mxu0 0.0
        %5845 = vmatpush2.msra.mxu0 0.0
        %5846 = vmatprep.subr.mxu0 0.0
        %5847 = vmatpush2.msra.mxu0 0.0
        %5848 = vmatprep.subr.mxu0 0.0
        %5849 = vmatpush2.msra.mxu0 0.0
        %5850 = vmatprep.subr.mxu0 0.0
        %5851 = vmatpush2.msra.mxu0 0.0
        %5852 = vmatprep.subr.mxu0 0.0
        %5853 = vmatpush2.msra.mxu0 0.0
        %5854 = vmatprep.subr.mxu0 0.0
        %5855 = vmatpush2.msra.mxu0 0.0
        %5856 = vmatprep.subr.mxu0 0.0
        %5857 = vmatpush2.msra.mxu0 0.0
        %5858 = vmatprep.subr.mxu0 0.0
        %5859 = vmatpush2.msra.mxu0 0.0
        %5860 = vmatprep.subr.mxu0 0.0
        %5861 = vmatpush2.msra.mxu0 0.0
        %5862 = vmatprep.subr.mxu0 0.0
        %5863 = vmatpush2.msra.mxu0 0.0
        %5864 = vmatprep.mubr.f32.mxu0 0.0
        %5865 = vmatmul.mubr.f32.gmra.mxu0 %v5798
        %v5866 = vpop.f32.mrf.mxu0
        %v5867 = vadd.f32 0.0, %v5866
        %v5868 = vpop.f32.mrf.mxu0
        %5869 = vdwg.mxu0
        %v5871 = vsel %vm5371, %v5694, 0
        %5873 = vmatprep.subr.mxu0 0.0
        %5874 = vmatpush1.msra.mxu0 0.0
        %5875 = vmatprep.subr.mxu0 0.0
        %5876 = vmatpush1.msra.mxu0 0.0
        %5877 = vmatprep.subr.mxu0 0.0
        %5878 = vmatpush1.msra.mxu0 0.0
        %5879 = vmatprep.subr.mxu0 0.0
        %5880 = vmatpush1.msra.mxu0 0.0
        %5881 = vmatprep.subr.mxu0 0.0
        %5882 = vmatpush1.msra.mxu0 0.0
        %5883 = vmatprep.subr.mxu0 0.0
        %5884 = vmatpush1.msra.mxu0 0.0
        %5885 = vmatprep.subr.mxu0 0.0
        %5886 = vmatpush1.msra.mxu0 0.0
        %5887 = vmatprep.subr.mxu0 0.0
        %5888 = vmatpush1.msra.mxu0 0.0
        %5889 = vmatprep.subr.mxu0 0.0
        %5890 = vmatpush1.msra.mxu0 0.0
        %5891 = vmatprep.subr.mxu0 0.0
        %5892 = vmatpush1.msra.mxu0 0.0
        %5893 = vmatprep.subr.mxu0 0.0
        %5894 = vmatpush1.msra.mxu0 0.0
        %5895 = vmatprep.subr.mxu0 0.0
        %5896 = vmatpush1.msra.mxu0 0.0
        %5897 = vmatprep.subr.mxu0 0.0
        %5898 = vmatpush1.msra.mxu0 0.0
        %5899 = vmatprep.subr.mxu0 0.0
        %5900 = vmatpush1.msra.mxu0 0.0
        %5901 = vmatprep.subr.mxu0 0.0
        %5902 = vmatpush1.msra.mxu0 0.0
        %5903 = vmatprep.subr.mxu0 0.0
        %5904 = vmatpush1.msra.mxu0 %v2777
        %5905 = vmatprep.subr.mxu0 0.0
        %5906 = vmatpush2.msra.mxu0 0.0
        %5907 = vmatprep.subr.mxu0 0.0
        %5908 = vmatpush2.msra.mxu0 0.0
        %5909 = vmatprep.subr.mxu0 0.0
        %5910 = vmatpush2.msra.mxu0 0.0
        %5911 = vmatprep.subr.mxu0 0.0
        %5912 = vmatpush2.msra.mxu0 0.0
        %5913 = vmatprep.subr.mxu0 0.0
        %5914 = vmatpush2.msra.mxu0 0.0
        %5915 = vmatprep.subr.mxu0 0.0
        %5916 = vmatpush2.msra.mxu0 0.0
        %5917 = vmatprep.subr.mxu0 0.0
        %5918 = vmatpush2.msra.mxu0 0.0
        %5919 = vmatprep.subr.mxu0 0.0
        %5920 = vmatpush2.msra.mxu0 0.0
        %5921 = vmatprep.subr.mxu0 0.0
        %5922 = vmatpush2.msra.mxu0 0.0
        %5923 = vmatprep.subr.mxu0 0.0
        %5924 = vmatpush2.msra.mxu0 0.0
        %5925 = vmatprep.subr.mxu0 0.0
        %5926 = vmatpush2.msra.mxu0 0.0
        %5927 = vmatprep.subr.mxu0 0.0
        %5928 = vmatpush2.msra.mxu0 0.0
        %5929 = vmatprep.subr.mxu0 0.0
        %5930 = vmatpush2.msra.mxu0 0.0
        %5931 = vmatprep.subr.mxu0 0.0
        %5932 = vmatpush2.msra.mxu0 0.0
        %5933 = vmatprep.subr.mxu0 0.0
        %5934 = vmatpush2.msra.mxu0 0.0
        %5935 = vmatprep.subr.mxu0 0.0
        %5936 = vmatpush2.msra.mxu0 0.0
        %5937 = vmatprep.mubr.f32.mxu0 0.0
        %5938 = vmatmul.mubr.f32.gmra.mxu0 %v5871
        %v5939 = vpop.f32.mrf.mxu0
        %v5940 = vadd.f32 0.0, %v5939
        %v5941 = vpop.f32.mrf.mxu0
        %5942 = vdwg.mxu0
        %v5944 = vsel %vm5371, %v5695, 0
        %5946 = vmatprep.subr.mxu0 0.0
        %5947 = vmatpush1.msra.mxu0 0.0
        %5948 = vmatprep.subr.mxu0 0.0
        %5949 = vmatpush1.msra.mxu0 0.0
        %5950 = vmatprep.subr.mxu0 0.0
        %5951 = vmatpush1.msra.mxu0 0.0
        %5952 = vmatprep.subr.mxu0 0.0
        %5953 = vmatpush1.msra.mxu0 0.0
        %5954 = vmatprep.subr.mxu0 0.0
        %5955 = vmatpush1.msra.mxu0 0.0
        %5956 = vmatprep.subr.mxu0 0.0
        %5957 = vmatpush1.msra.mxu0 0.0
        %5958 = vmatprep.subr.mxu0 0.0
        %5959 = vmatpush1.msra.mxu0 0.0
        %5960 = vmatprep.subr.mxu0 0.0
        %5961 = vmatpush1.msra.mxu0 0.0
        %5962 = vmatprep.subr.mxu0 0.0
        %5963 = vmatpush1.msra.mxu0 0.0
        %5964 = vmatprep.subr.mxu0 0.0
        %5965 = vmatpush1.msra.mxu0 0.0
        %5966 = vmatprep.subr.mxu0 0.0
        %5967 = vmatpush1.msra.mxu0 0.0
        %5968 = vmatprep.subr.mxu0 0.0
        %5969 = vmatpush1.msra.mxu0 0.0
        %5970 = vmatprep.subr.mxu0 0.0
        %5971 = vmatpush1.msra.mxu0 0.0
        %5972 = vmatprep.subr.mxu0 0.0
        %5973 = vmatpush1.msra.mxu0 0.0
        %5974 = vmatprep.subr.mxu0 0.0
        %5975 = vmatpush1.msra.mxu0 0.0
        %5976 = vmatprep.subr.mxu0 0.0
        %5977 = vmatpush1.msra.mxu0 %v2781
        %5978 = vmatprep.subr.mxu0 0.0
        %5979 = vmatpush2.msra.mxu0 0.0
        %5980 = vmatprep.subr.mxu0 0.0
        %5981 = vmatpush2.msra.mxu0 0.0
        %5982 = vmatprep.subr.mxu0 0.0
        %5983 = vmatpush2.msra.mxu0 0.0
        %5984 = vmatprep.subr.mxu0 0.0
        %5985 = vmatpush2.msra.mxu0 0.0
        %5986 = vmatprep.subr.mxu0 0.0
        %5987 = vmatpush2.msra.mxu0 0.0
        %5988 = vmatprep.subr.mxu0 0.0
        %5989 = vmatpush2.msra.mxu0 0.0
        %5990 = vmatprep.subr.mxu0 0.0
        %5991 = vmatpush2.msra.mxu0 0.0
        %5992 = vmatprep.subr.mxu0 0.0
        %5993 = vmatpush2.msra.mxu0 0.0
        %5994 = vmatprep.subr.mxu0 0.0
        %5995 = vmatpush2.msra.mxu0 0.0
        %5996 = vmatprep.subr.mxu0 0.0
        %5997 = vmatpush2.msra.mxu0 0.0
        %5998 = vmatprep.subr.mxu0 0.0
        %5999 = vmatpush2.msra.mxu0 0.0
        %6000 = vmatprep.subr.mxu0 0.0
        %6001 = vmatpush2.msra.mxu0 0.0
        %6002 = vmatprep.subr.mxu0 0.0
        %6003 = vmatpush2.msra.mxu0 0.0
        %6004 = vmatprep.subr.mxu0 0.0
        %6005 = vmatpush2.msra.mxu0 0.0
        %6006 = vmatprep.subr.mxu0 0.0
        %6007 = vmatpush2.msra.mxu0 0.0
        %6008 = vmatprep.subr.mxu0 0.0
        %6009 = vmatpush2.msra.mxu0 0.0
        %6010 = vmatprep.mubr.f32.mxu0 0.0
        %6011 = vmatmul.mubr.f32.gmra.mxu0 %v5944
        %v6012 = vpop.f32.mrf.mxu0
        %v6013 = vadd.f32 0.0, %v6012
        %v6014 = vpop.f32.mrf.mxu0
        %6015 = vdwg.mxu0
        %v6017 = vsel %vm5371, %v5696, 0
        %6019 = vmatprep.subr.mxu0 0.0
        %6020 = vmatpush1.msra.mxu0 0.0
        %6021 = vmatprep.subr.mxu0 0.0
        %6022 = vmatpush1.msra.mxu0 0.0
        %6023 = vmatprep.subr.mxu0 0.0
        %6024 = vmatpush1.msra.mxu0 0.0
        %6025 = vmatprep.subr.mxu0 0.0
        %6026 = vmatpush1.msra.mxu0 0.0
        %6027 = vmatprep.subr.mxu0 0.0
        %6028 = vmatpush1.msra.mxu0 0.0
        %6029 = vmatprep.subr.mxu0 0.0
        %6030 = vmatpush1.msra.mxu0 0.0
        %6031 = vmatprep.subr.mxu0 0.0
        %6032 = vmatpush1.msra.mxu0 0.0
        %6033 = vmatprep.subr.mxu0 0.0
        %6034 = vmatpush1.msra.mxu0 0.0
        %6035 = vmatprep.subr.mxu0 0.0
        %6036 = vmatpush1.msra.mxu0 0.0
        %6037 = vmatprep.subr.mxu0 0.0
        %6038 = vmatpush1.msra.mxu0 0.0
        %6039 = vmatprep.subr.mxu0 0.0
        %6040 = vmatpush1.msra.mxu0 0.0
        %6041 = vmatprep.subr.mxu0 0.0
        %6042 = vmatpush1.msra.mxu0 0.0
        %6043 = vmatprep.subr.mxu0 0.0
        %6044 = vmatpush1.msra.mxu0 0.0
        %6045 = vmatprep.subr.mxu0 0.0
        %6046 = vmatpush1.msra.mxu0 0.0
        %6047 = vmatprep.subr.mxu0 0.0
        %6048 = vmatpush1.msra.mxu0 0.0
        %6049 = vmatprep.subr.mxu0 0.0
        %6050 = vmatpush1.msra.mxu0 %v2787
        %6051 = vmatprep.subr.mxu0 0.0
        %6052 = vmatpush2.msra.mxu0 0.0
        %6053 = vmatprep.subr.mxu0 0.0
        %6054 = vmatpush2.msra.mxu0 0.0
        %6055 = vmatprep.subr.mxu0 0.0
        %6056 = vmatpush2.msra.mxu0 0.0
        %6057 = vmatprep.subr.mxu0 0.0
        %6058 = vmatpush2.msra.mxu0 0.0
        %6059 = vmatprep.subr.mxu0 0.0
        %6060 = vmatpush2.msra.mxu0 0.0
        %6061 = vmatprep.subr.mxu0 0.0
        %6062 = vmatpush2.msra.mxu0 0.0
        %6063 = vmatprep.subr.mxu0 0.0
        %6064 = vmatpush2.msra.mxu0 0.0
        %6065 = vmatprep.subr.mxu0 0.0
        %6066 = vmatpush2.msra.mxu0 0.0
        %6067 = vmatprep.subr.mxu0 0.0
        %6068 = vmatpush2.msra.mxu0 0.0
        %6069 = vmatprep.subr.mxu0 0.0
        %6070 = vmatpush2.msra.mxu0 0.0
        %6071 = vmatprep.subr.mxu0 0.0
        %6072 = vmatpush2.msra.mxu0 0.0
        %6073 = vmatprep.subr.mxu0 0.0
        %6074 = vmatpush2.msra.mxu0 0.0
        %6075 = vmatprep.subr.mxu0 0.0
        %6076 = vmatpush2.msra.mxu0 0.0
        %6077 = vmatprep.subr.mxu0 0.0
        %6078 = vmatpush2.msra.mxu0 0.0
        %6079 = vmatprep.subr.mxu0 0.0
        %6080 = vmatpush2.msra.mxu0 0.0
        %6081 = vmatprep.subr.mxu0 0.0
        %6082 = vmatpush2.msra.mxu0 0.0
        %6083 = vmatprep.mubr.f32.mxu0 0.0
        %6084 = vmatmul.mubr.f32.gmra.mxu0 %v6017
        %v6085 = vpop.f32.mrf.mxu0
        %v6086 = vadd.f32 0.0, %v6085
        %v6087 = vpop.f32.mrf.mxu0
        %6088 = vdwg.mxu0
        %v6090 = vsel %vm5371, %v5697, 0
        %6092 = vmatprep.subr.mxu0 0.0
        %6093 = vmatpush1.msra.mxu0 0.0
        %6094 = vmatprep.subr.mxu0 0.0
        %6095 = vmatpush1.msra.mxu0 0.0
        %6096 = vmatprep.subr.mxu0 0.0
        %6097 = vmatpush1.msra.mxu0 0.0
        %6098 = vmatprep.subr.mxu0 0.0
        %6099 = vmatpush1.msra.mxu0 0.0
        %6100 = vmatprep.subr.mxu0 0.0
        %6101 = vmatpush1.msra.mxu0 0.0
        %6102 = vmatprep.subr.mxu0 0.0
        %6103 = vmatpush1.msra.mxu0 0.0
        %6104 = vmatprep.subr.mxu0 0.0
        %6105 = vmatpush1.msra.mxu0 0.0
        %6106 = vmatprep.subr.mxu0 0.0
        %6107 = vmatpush1.msra.mxu0 0.0
        %6108 = vmatprep.subr.mxu0 0.0
        %6109 = vmatpush1.msra.mxu0 0.0
        %6110 = vmatprep.subr.mxu0 0.0
        %6111 = vmatpush1.msra.mxu0 0.0
        %6112 = vmatprep.subr.mxu0 0.0
        %6113 = vmatpush1.msra.mxu0 0.0
        %6114 = vmatprep.subr.mxu0 0.0
        %6115 = vmatpush1.msra.mxu0 0.0
        %6116 = vmatprep.subr.mxu0 0.0
        %6117 = vmatpush1.msra.mxu0 0.0
        %6118 = vmatprep.subr.mxu0 0.0
        %6119 = vmatpush1.msra.mxu0 0.0
        %6120 = vmatprep.subr.mxu0 0.0
        %6121 = vmatpush1.msra.mxu0 0.0
        %6122 = vmatprep.subr.mxu0 0.0
        %6123 = vmatpush1.msra.mxu0 %v2791
        %6124 = vmatprep.subr.mxu0 0.0
        %6125 = vmatpush2.msra.mxu0 0.0
        %6126 = vmatprep.subr.mxu0 0.0
        %6127 = vmatpush2.msra.mxu0 0.0
        %6128 = vmatprep.subr.mxu0 0.0
        %6129 = vmatpush2.msra.mxu0 0.0
        %6130 = vmatprep.subr.mxu0 0.0
        %6131 = vmatpush2.msra.mxu0 0.0
        %6132 = vmatprep.subr.mxu0 0.0
        %6133 = vmatpush2.msra.mxu0 0.0
        %6134 = vmatprep.subr.mxu0 0.0
        %6135 = vmatpush2.msra.mxu0 0.0
        %6136 = vmatprep.subr.mxu0 0.0
        %6137 = vmatpush2.msra.mxu0 0.0
        %6138 = vmatprep.subr.mxu0 0.0
        %6139 = vmatpush2.msra.mxu0 0.0
        %6140 = vmatprep.subr.mxu0 0.0
        %6141 = vmatpush2.msra.mxu0 0.0
        %6142 = vmatprep.subr.mxu0 0.0
        %6143 = vmatpush2.msra.mxu0 0.0
        %6144 = vmatprep.subr.mxu0 0.0
        %6145 = vmatpush2.msra.mxu0 0.0
        %6146 = vmatprep.subr.mxu0 0.0
        %6147 = vmatpush2.msra.mxu0 0.0
        %6148 = vmatprep.subr.mxu0 0.0
        %6149 = vmatpush2.msra.mxu0 0.0
        %6150 = vmatprep.subr.mxu0 0.0
        %6151 = vmatpush2.msra.mxu0 0.0
        %6152 = vmatprep.subr.mxu0 0.0
        %6153 = vmatpush2.msra.mxu0 0.0
        %6154 = vmatprep.subr.mxu0 0.0
        %6155 = vmatpush2.msra.mxu0 0.0
        %6156 = vmatprep.mubr.f32.mxu0 0.0
        %6157 = vmatmul.mubr.f32.gmra.mxu0 %v6090
        %v6158 = vpop.f32.mrf.mxu0
        %v6159 = vadd.f32 0.0, %v6158
        %v6160 = vpop.f32.mrf.mxu0
        %6161 = vdwg.mxu0
        %v6163 = vsel %vm5371, %v5698, 0
        %6165 = vmatprep.subr.mxu0 0.0
        %6166 = vmatpush1.msra.mxu0 0.0
        %6167 = vmatprep.subr.mxu0 0.0
        %6168 = vmatpush1.msra.mxu0 0.0
        %6169 = vmatprep.subr.mxu0 0.0
        %6170 = vmatpush1.msra.mxu0 0.0
        %6171 = vmatprep.subr.mxu0 0.0
        %6172 = vmatpush1.msra.mxu0 0.0
        %6173 = vmatprep.subr.mxu0 0.0
        %6174 = vmatpush1.msra.mxu0 0.0
        %6175 = vmatprep.subr.mxu0 0.0
        %6176 = vmatpush1.msra.mxu0 0.0
        %6177 = vmatprep.subr.mxu0 0.0
        %6178 = vmatpush1.msra.mxu0 0.0
        %6179 = vmatprep.subr.mxu0 0.0
        %6180 = vmatpush1.msra.mxu0 0.0
        %6181 = vmatprep.subr.mxu0 0.0
        %6182 = vmatpush1.msra.mxu0 0.0
        %6183 = vmatprep.subr.mxu0 0.0
        %6184 = vmatpush1.msra.mxu0 0.0
        %6185 = vmatprep.subr.mxu0 0.0
        %6186 = vmatpush1.msra.mxu0 0.0
        %6187 = vmatprep.subr.mxu0 0.0
        %6188 = vmatpush1.msra.mxu0 0.0
        %6189 = vmatprep.subr.mxu0 0.0
        %6190 = vmatpush1.msra.mxu0 0.0
        %6191 = vmatprep.subr.mxu0 0.0
        %6192 = vmatpush1.msra.mxu0 0.0
        %6193 = vmatprep.subr.mxu0 0.0
        %6194 = vmatpush1.msra.mxu0 0.0
        %6195 = vmatprep.subr.mxu0 0.0
        %6196 = vmatpush1.msra.mxu0 %v2797
        %6197 = vmatprep.subr.mxu0 0.0
        %6198 = vmatpush2.msra.mxu0 0.0
        %6199 = vmatprep.subr.mxu0 0.0
        %6200 = vmatpush2.msra.mxu0 0.0
        %6201 = vmatprep.subr.mxu0 0.0
        %6202 = vmatpush2.msra.mxu0 0.0
        %6203 = vmatprep.subr.mxu0 0.0
        %6204 = vmatpush2.msra.mxu0 0.0
        %6205 = vmatprep.subr.mxu0 0.0
        %6206 = vmatpush2.msra.mxu0 0.0
        %6207 = vmatprep.subr.mxu0 0.0
        %6208 = vmatpush2.msra.mxu0 0.0
        %6209 = vmatprep.subr.mxu0 0.0
        %6210 = vmatpush2.msra.mxu0 0.0
        %6211 = vmatprep.subr.mxu0 0.0
        %6212 = vmatpush2.msra.mxu0 0.0
        %6213 = vmatprep.subr.mxu0 0.0
        %6214 = vmatpush2.msra.mxu0 0.0
        %6215 = vmatprep.subr.mxu0 0.0
        %6216 = vmatpush2.msra.mxu0 0.0
        %6217 = vmatprep.subr.mxu0 0.0
        %6218 = vmatpush2.msra.mxu0 0.0
        %6219 = vmatprep.subr.mxu0 0.0
        %6220 = vmatpush2.msra.mxu0 0.0
        %6221 = vmatprep.subr.mxu0 0.0
        %6222 = vmatpush2.msra.mxu0 0.0
        %6223 = vmatprep.subr.mxu0 0.0
        %6224 = vmatpush2.msra.mxu0 0.0
        %6225 = vmatprep.subr.mxu0 0.0
        %6226 = vmatpush2.msra.mxu0 0.0
        %6227 = vmatprep.subr.mxu0 0.0
        %6228 = vmatpush2.msra.mxu0 0.0
        %6229 = vmatprep.mubr.f32.mxu0 0.0
        %6230 = vmatmul.mubr.f32.gmra.mxu0 %v6163
        %v6231 = vpop.f32.mrf.mxu0
        %v6232 = vadd.f32 0.0, %v6231
        %v6233 = vpop.f32.mrf.mxu0
        %6234 = vdwg.mxu0
        %v6236 = vsel %vm5371, %v5699, 0
        %6238 = vmatprep.subr.mxu0 0.0
        %6239 = vmatpush1.msra.mxu0 0.0
        %6240 = vmatprep.subr.mxu0 0.0
        %6241 = vmatpush1.msra.mxu0 0.0
        %6242 = vmatprep.subr.mxu0 0.0
        %6243 = vmatpush1.msra.mxu0 0.0
        %6244 = vmatprep.subr.mxu0 0.0
        %6245 = vmatpush1.msra.mxu0 0.0
        %6246 = vmatprep.subr.mxu0 0.0
        %6247 = vmatpush1.msra.mxu0 0.0
        %6248 = vmatprep.subr.mxu0 0.0
        %6249 = vmatpush1.msra.mxu0 0.0
        %6250 = vmatprep.subr.mxu0 0.0
        %6251 = vmatpush1.msra.mxu0 0.0
        %6252 = vmatprep.subr.mxu0 0.0
        %6253 = vmatpush1.msra.mxu0 0.0
        %6254 = vmatprep.subr.mxu0 0.0
        %6255 = vmatpush1.msra.mxu0 0.0
        %6256 = vmatprep.subr.mxu0 0.0
        %6257 = vmatpush1.msra.mxu0 0.0
        %6258 = vmatprep.subr.mxu0 0.0
        %6259 = vmatpush1.msra.mxu0 0.0
        %6260 = vmatprep.subr.mxu0 0.0
        %6261 = vmatpush1.msra.mxu0 0.0
        %6262 = vmatprep.subr.mxu0 0.0
        %6263 = vmatpush1.msra.mxu0 0.0
        %6264 = vmatprep.subr.mxu0 0.0
        %6265 = vmatpush1.msra.mxu0 0.0
        %6266 = vmatprep.subr.mxu0 0.0
        %6267 = vmatpush1.msra.mxu0 0.0
        %6268 = vmatprep.subr.mxu0 0.0
        %6269 = vmatpush1.msra.mxu0 %v2801
        %6270 = vmatprep.subr.mxu0 0.0
        %6271 = vmatpush2.msra.mxu0 0.0
        %6272 = vmatprep.subr.mxu0 0.0
        %6273 = vmatpush2.msra.mxu0 0.0
        %6274 = vmatprep.subr.mxu0 0.0
        %6275 = vmatpush2.msra.mxu0 0.0
        %6276 = vmatprep.subr.mxu0 0.0
        %6277 = vmatpush2.msra.mxu0 0.0
        %6278 = vmatprep.subr.mxu0 0.0
        %6279 = vmatpush2.msra.mxu0 0.0
        %6280 = vmatprep.subr.mxu0 0.0
        %6281 = vmatpush2.msra.mxu0 0.0
        %6282 = vmatprep.subr.mxu0 0.0
        %6283 = vmatpush2.msra.mxu0 0.0
        %6284 = vmatprep.subr.mxu0 0.0
        %6285 = vmatpush2.msra.mxu0 0.0
        %6286 = vmatprep.subr.mxu0 0.0
        %6287 = vmatpush2.msra.mxu0 0.0
        %6288 = vmatprep.subr.mxu0 0.0
        %6289 = vmatpush2.msra.mxu0 0.0
        %6290 = vmatprep.subr.mxu0 0.0
        %6291 = vmatpush2.msra.mxu0 0.0
        %6292 = vmatprep.subr.mxu0 0.0
        %6293 = vmatpush2.msra.mxu0 0.0
        %6294 = vmatprep.subr.mxu0 0.0
        %6295 = vmatpush2.msra.mxu0 0.0
        %6296 = vmatprep.subr.mxu0 0.0
        %6297 = vmatpush2.msra.mxu0 0.0
        %6298 = vmatprep.subr.mxu0 0.0
        %6299 = vmatpush2.msra.mxu0 0.0
        %6300 = vmatprep.subr.mxu0 0.0
        %6301 = vmatpush2.msra.mxu0 0.0
        %6302 = vmatprep.mubr.f32.mxu0 0.0
        %6303 = vmatmul.mubr.f32.gmra.mxu0 %v6236
        %v6304 = vpop.f32.mrf.mxu0
        %v6305 = vadd.f32 0.0, %v6304
        %v6306 = vpop.f32.mrf.mxu0
        %6307 = vdwg.mxu0
        %v6309 = vsel %vm5371, %v5700, 0
        %6311 = vmatprep.subr.mxu0 0.0
        %6312 = vmatpush1.msra.mxu0 0.0
        %6313 = vmatprep.subr.mxu0 0.0
        %6314 = vmatpush1.msra.mxu0 0.0
        %6315 = vmatprep.subr.mxu0 0.0
        %6316 = vmatpush1.msra.mxu0 0.0
        %6317 = vmatprep.subr.mxu0 0.0
        %6318 = vmatpush1.msra.mxu0 0.0
        %6319 = vmatprep.subr.mxu0 0.0
        %6320 = vmatpush1.msra.mxu0 0.0
        %6321 = vmatprep.subr.mxu0 0.0
        %6322 = vmatpush1.msra.mxu0 0.0
        %6323 = vmatprep.subr.mxu0 0.0
        %6324 = vmatpush1.msra.mxu0 0.0
        %6325 = vmatprep.subr.mxu0 0.0
        %6326 = vmatpush1.msra.mxu0 0.0
        %6327 = vmatprep.subr.mxu0 0.0
        %6328 = vmatpush1.msra.mxu0 0.0
        %6329 = vmatprep.subr.mxu0 0.0
        %6330 = vmatpush1.msra.mxu0 0.0
        %6331 = vmatprep.subr.mxu0 0.0
        %6332 = vmatpush1.msra.mxu0 0.0
        %6333 = vmatprep.subr.mxu0 0.0
        %6334 = vmatpush1.msra.mxu0 0.0
        %6335 = vmatprep.subr.mxu0 0.0
        %6336 = vmatpush1.msra.mxu0 0.0
        %6337 = vmatprep.subr.mxu0 0.0
        %6338 = vmatpush1.msra.mxu0 0.0
        %6339 = vmatprep.subr.mxu0 0.0
        %6340 = vmatpush1.msra.mxu0 0.0
        %6341 = vmatprep.subr.mxu0 0.0
        %6342 = vmatpush1.msra.mxu0 %v2868
        %6343 = vmatprep.subr.mxu0 0.0
        %6344 = vmatpush2.msra.mxu0 0.0
        %6345 = vmatprep.subr.mxu0 0.0
        %6346 = vmatpush2.msra.mxu0 0.0
        %6347 = vmatprep.subr.mxu0 0.0
        %6348 = vmatpush2.msra.mxu0 0.0
        %6349 = vmatprep.subr.mxu0 0.0
        %6350 = vmatpush2.msra.mxu0 0.0
        %6351 = vmatprep.subr.mxu0 0.0
        %6352 = vmatpush2.msra.mxu0 0.0
        %6353 = vmatprep.subr.mxu0 0.0
        %6354 = vmatpush2.msra.mxu0 0.0
        %6355 = vmatprep.subr.mxu0 0.0
        %6356 = vmatpush2.msra.mxu0 0.0
        %6357 = vmatprep.subr.mxu0 0.0
        %6358 = vmatpush2.msra.mxu0 0.0
        %6359 = vmatprep.subr.mxu0 0.0
        %6360 = vmatpush2.msra.mxu0 0.0
        %6361 = vmatprep.subr.mxu0 0.0
        %6362 = vmatpush2.msra.mxu0 0.0
        %6363 = vmatprep.subr.mxu0 0.0
        %6364 = vmatpush2.msra.mxu0 0.0
        %6365 = vmatprep.subr.mxu0 0.0
        %6366 = vmatpush2.msra.mxu0 0.0
        %6367 = vmatprep.subr.mxu0 0.0
        %6368 = vmatpush2.msra.mxu0 0.0
        %6369 = vmatprep.subr.mxu0 0.0
        %6370 = vmatpush2.msra.mxu0 0.0
        %6371 = vmatprep.subr.mxu0 0.0
        %6372 = vmatpush2.msra.mxu0 0.0
        %6373 = vmatprep.subr.mxu0 0.0
        %6374 = vmatpush2.msra.mxu0 0.0
        %6375 = vmatprep.mubr.f32.mxu0 0.0
        %6376 = vmatmul.mubr.f32.gmra.mxu0 %v6309
        %v6377 = vpop.f32.mrf.mxu0
        %v6378 = vadd.f32 0.0, %v6377
        %v6379 = vpop.f32.mrf.mxu0
        %6380 = vdwg.mxu0
        %v6382 = vsel %vm5371, %v5701, 0
        %6384 = vmatprep.subr.mxu0 0.0
        %6385 = vmatpush1.msra.mxu0 0.0
        %6386 = vmatprep.subr.mxu0 0.0
        %6387 = vmatpush1.msra.mxu0 0.0
        %6388 = vmatprep.subr.mxu0 0.0
        %6389 = vmatpush1.msra.mxu0 0.0
        %6390 = vmatprep.subr.mxu0 0.0
        %6391 = vmatpush1.msra.mxu0 0.0
        %6392 = vmatprep.subr.mxu0 0.0
        %6393 = vmatpush1.msra.mxu0 0.0
        %6394 = vmatprep.subr.mxu0 0.0
        %6395 = vmatpush1.msra.mxu0 0.0
        %6396 = vmatprep.subr.mxu0 0.0
        %6397 = vmatpush1.msra.mxu0 0.0
        %6398 = vmatprep.subr.mxu0 0.0
        %6399 = vmatpush1.msra.mxu0 0.0
        %6400 = vmatprep.subr.mxu0 0.0
        %6401 = vmatpush1.msra.mxu0 0.0
        %6402 = vmatprep.subr.mxu0 0.0
        %6403 = vmatpush1.msra.mxu0 0.0
        %6404 = vmatprep.subr.mxu0 0.0
        %6405 = vmatpush1.msra.mxu0 0.0
        %6406 = vmatprep.subr.mxu0 0.0
        %6407 = vmatpush1.msra.mxu0 0.0
        %6408 = vmatprep.subr.mxu0 0.0
        %6409 = vmatpush1.msra.mxu0 0.0
        %6410 = vmatprep.subr.mxu0 0.0
        %6411 = vmatpush1.msra.mxu0 0.0
        %6412 = vmatprep.subr.mxu0 0.0
        %6413 = vmatpush1.msra.mxu0 0.0
        %6414 = vmatprep.subr.mxu0 0.0
        %6415 = vmatpush1.msra.mxu0 %v2870
        %6416 = vmatprep.subr.mxu0 0.0
        %6417 = vmatpush2.msra.mxu0 0.0
        %6418 = vmatprep.subr.mxu0 0.0
        %6419 = vmatpush2.msra.mxu0 0.0
        %6420 = vmatprep.subr.mxu0 0.0
        %6421 = vmatpush2.msra.mxu0 0.0
        %6422 = vmatprep.subr.mxu0 0.0
        %6423 = vmatpush2.msra.mxu0 0.0
        %6424 = vmatprep.subr.mxu0 0.0
        %6425 = vmatpush2.msra.mxu0 0.0
        %6426 = vmatprep.subr.mxu0 0.0
        %6427 = vmatpush2.msra.mxu0 0.0
        %6428 = vmatprep.subr.mxu0 0.0
        %6429 = vmatpush2.msra.mxu0 0.0
        %6430 = vmatprep.subr.mxu0 0.0
        %6431 = vmatpush2.msra.mxu0 0.0
        %6432 = vmatprep.subr.mxu0 0.0
        %6433 = vmatpush2.msra.mxu0 0.0
        %6434 = vmatprep.subr.mxu0 0.0
        %6435 = vmatpush2.msra.mxu0 0.0
        %6436 = vmatprep.subr.mxu0 0.0
        %6437 = vmatpush2.msra.mxu0 0.0
        %6438 = vmatprep.subr.mxu0 0.0
        %6439 = vmatpush2.msra.mxu0 0.0
        %6440 = vmatprep.subr.mxu0 0.0
        %6441 = vmatpush2.msra.mxu0 0.0
        %6442 = vmatprep.subr.mxu0 0.0
        %6443 = vmatpush2.msra.mxu0 0.0
        %6444 = vmatprep.subr.mxu0 0.0
        %6445 = vmatpush2.msra.mxu0 0.0
        %6446 = vmatprep.subr.mxu0 0.0
        %6447 = vmatpush2.msra.mxu0 0.0
        %6448 = vmatprep.mubr.f32.mxu0 0.0
        %6449 = vmatmul.mubr.f32.gmra.mxu0 %v6382
        %v6450 = vpop.f32.mrf.mxu0
        %v6451 = vadd.f32 0.0, %v6450
        %v6452 = vpop.f32.mrf.mxu0
        %6453 = vdwg.mxu0
        %v6455 = vsel %vm5371, %v5702, 0
        %6457 = vmatprep.subr.mxu0 0.0
        %6458 = vmatpush1.msra.mxu0 0.0
        %6459 = vmatprep.subr.mxu0 0.0
        %6460 = vmatpush1.msra.mxu0 0.0
        %6461 = vmatprep.subr.mxu0 0.0
        %6462 = vmatpush1.msra.mxu0 0.0
        %6463 = vmatprep.subr.mxu0 0.0
        %6464 = vmatpush1.msra.mxu0 0.0
        %6465 = vmatprep.subr.mxu0 0.0
        %6466 = vmatpush1.msra.mxu0 0.0
        %6467 = vmatprep.subr.mxu0 0.0
        %6468 = vmatpush1.msra.mxu0 0.0
        %6469 = vmatprep.subr.mxu0 0.0
        %6470 = vmatpush1.msra.mxu0 0.0
        %6471 = vmatprep.subr.mxu0 0.0
        %6472 = vmatpush1.msra.mxu0 0.0
        %6473 = vmatprep.subr.mxu0 0.0
        %6474 = vmatpush1.msra.mxu0 0.0
        %6475 = vmatprep.subr.mxu0 0.0
        %6476 = vmatpush1.msra.mxu0 0.0
        %6477 = vmatprep.subr.mxu0 0.0
        %6478 = vmatpush1.msra.mxu0 0.0
        %6479 = vmatprep.subr.mxu0 0.0
        %6480 = vmatpush1.msra.mxu0 0.0
        %6481 = vmatprep.subr.mxu0 0.0
        %6482 = vmatpush1.msra.mxu0 0.0
        %6483 = vmatprep.subr.mxu0 0.0
        %6484 = vmatpush1.msra.mxu0 0.0
        %6485 = vmatprep.subr.mxu0 0.0
        %6486 = vmatpush1.msra.mxu0 0.0
        %6487 = vmatprep.subr.mxu0 0.0
        %6488 = vmatpush1.msra.mxu0 %v2872
        %6489 = vmatprep.subr.mxu0 0.0
        %6490 = vmatpush2.msra.mxu0 0.0
        %6491 = vmatprep.subr.mxu0 0.0
        %6492 = vmatpush2.msra.mxu0 0.0
        %6493 = vmatprep.subr.mxu0 0.0
        %6494 = vmatpush2.msra.mxu0 0.0
        %6495 = vmatprep.subr.mxu0 0.0
        %6496 = vmatpush2.msra.mxu0 0.0
        %6497 = vmatprep.subr.mxu0 0.0
        %6498 = vmatpush2.msra.mxu0 0.0
        %6499 = vmatprep.subr.mxu0 0.0
        %6500 = vmatpush2.msra.mxu0 0.0
        %6501 = vmatprep.subr.mxu0 0.0
        %6502 = vmatpush2.msra.mxu0 0.0
        %6503 = vmatprep.subr.mxu0 0.0
        %6504 = vmatpush2.msra.mxu0 0.0
        %6505 = vmatprep.subr.mxu0 0.0
        %6506 = vmatpush2.msra.mxu0 0.0
        %6507 = vmatprep.subr.mxu0 0.0
        %6508 = vmatpush2.msra.mxu0 0.0
        %6509 = vmatprep.subr.mxu0 0.0
        %6510 = vmatpush2.msra.mxu0 0.0
        %6511 = vmatprep.subr.mxu0 0.0
        %6512 = vmatpush2.msra.mxu0 0.0
        %6513 = vmatprep.subr.mxu0 0.0
        %6514 = vmatpush2.msra.mxu0 0.0
        %6515 = vmatprep.subr.mxu0 0.0
        %6516 = vmatpush2.msra.mxu0 0.0
        %6517 = vmatprep.subr.mxu0 0.0
        %6518 = vmatpush2.msra.mxu0 0.0
        %6519 = vmatprep.subr.mxu0 0.0
        %6520 = vmatpush2.msra.mxu0 0.0
        %6521 = vmatprep.mubr.f32.mxu0 0.0
        %6522 = vmatmul.mubr.f32.gmra.mxu0 %v6455
        %v6523 = vpop.f32.mrf.mxu0
        %v6524 = vadd.f32 0.0, %v6523
        %v6525 = vpop.f32.mrf.mxu0
        %6526 = vdwg.mxu0
        %v6528 = vsel %vm5371, %v5703, 0
        %6530 = vmatprep.subr.mxu0 0.0
        %6531 = vmatpush1.msra.mxu0 0.0
        %6532 = vmatprep.subr.mxu0 0.0
        %6533 = vmatpush1.msra.mxu0 0.0
        %6534 = vmatprep.subr.mxu0 0.0
        %6535 = vmatpush1.msra.mxu0 0.0
        %6536 = vmatprep.subr.mxu0 0.0
        %6537 = vmatpush1.msra.mxu0 0.0
        %6538 = vmatprep.subr.mxu0 0.0
        %6539 = vmatpush1.msra.mxu0 0.0
        %6540 = vmatprep.subr.mxu0 0.0
        %6541 = vmatpush1.msra.mxu0 0.0
        %6542 = vmatprep.subr.mxu0 0.0
        %6543 = vmatpush1.msra.mxu0 0.0
        %6544 = vmatprep.subr.mxu0 0.0
        %6545 = vmatpush1.msra.mxu0 0.0
        %6546 = vmatprep.subr.mxu0 0.0
        %6547 = vmatpush1.msra.mxu0 0.0
        %6548 = vmatprep.subr.mxu0 0.0
        %6549 = vmatpush1.msra.mxu0 0.0
        %6550 = vmatprep.subr.mxu0 0.0
        %6551 = vmatpush1.msra.mxu0 0.0
        %6552 = vmatprep.subr.mxu0 0.0
        %6553 = vmatpush1.msra.mxu0 0.0
        %6554 = vmatprep.subr.mxu0 0.0
        %6555 = vmatpush1.msra.mxu0 0.0
        %6556 = vmatprep.subr.mxu0 0.0
        %6557 = vmatpush1.msra.mxu0 0.0
        %6558 = vmatprep.subr.mxu0 0.0
        %6559 = vmatpush1.msra.mxu0 0.0
        %6560 = vmatprep.subr.mxu0 0.0
        %6561 = vmatpush1.msra.mxu0 %v2874
        %6562 = vmatprep.subr.mxu0 0.0
        %6563 = vmatpush2.msra.mxu0 0.0
        %6564 = vmatprep.subr.mxu0 0.0
        %6565 = vmatpush2.msra.mxu0 0.0
        %6566 = vmatprep.subr.mxu0 0.0
        %6567 = vmatpush2.msra.mxu0 0.0
        %6568 = vmatprep.subr.mxu0 0.0
        %6569 = vmatpush2.msra.mxu0 0.0
        %6570 = vmatprep.subr.mxu0 0.0
        %6571 = vmatpush2.msra.mxu0 0.0
        %6572 = vmatprep.subr.mxu0 0.0
        %6573 = vmatpush2.msra.mxu0 0.0
        %6574 = vmatprep.subr.mxu0 0.0
        %6575 = vmatpush2.msra.mxu0 0.0
        %6576 = vmatprep.subr.mxu0 0.0
        %6577 = vmatpush2.msra.mxu0 0.0
        %6578 = vmatprep.subr.mxu0 0.0
        %6579 = vmatpush2.msra.mxu0 0.0
        %6580 = vmatprep.subr.mxu0 0.0
        %6581 = vmatpush2.msra.mxu0 0.0
        %6582 = vmatprep.subr.mxu0 0.0
        %6583 = vmatpush2.msra.mxu0 0.0
        %6584 = vmatprep.subr.mxu0 0.0
        %6585 = vmatpush2.msra.mxu0 0.0
        %6586 = vmatprep.subr.mxu0 0.0
        %6587 = vmatpush2.msra.mxu0 0.0
        %6588 = vmatprep.subr.mxu0 0.0
        %6589 = vmatpush2.msra.mxu0 0.0
        %6590 = vmatprep.subr.mxu0 0.0
        %6591 = vmatpush2.msra.mxu0 0.0
        %6592 = vmatprep.subr.mxu0 0.0
        %6593 = vmatpush2.msra.mxu0 0.0
        %6594 = vmatprep.mubr.f32.mxu0 0.0
        %6595 = vmatmul.mubr.f32.gmra.mxu0 %v6528
        %v6596 = vpop.f32.mrf.mxu0
        %v6597 = vadd.f32 0.0, %v6596
        %v6598 = vpop.f32.mrf.mxu0
        %6599 = vdwg.mxu0
        %v6601 = vsel %vm5371, %v5704, 0
        %6603 = vmatprep.subr.mxu0 0.0
        %6604 = vmatpush1.msra.mxu0 0.0
        %6605 = vmatprep.subr.mxu0 0.0
        %6606 = vmatpush1.msra.mxu0 0.0
        %6607 = vmatprep.subr.mxu0 0.0
        %6608 = vmatpush1.msra.mxu0 0.0
        %6609 = vmatprep.subr.mxu0 0.0
        %6610 = vmatpush1.msra.mxu0 0.0
        %6611 = vmatprep.subr.mxu0 0.0
        %6612 = vmatpush1.msra.mxu0 0.0
        %6613 = vmatprep.subr.mxu0 0.0
        %6614 = vmatpush1.msra.mxu0 0.0
        %6615 = vmatprep.subr.mxu0 0.0
        %6616 = vmatpush1.msra.mxu0 0.0
        %6617 = vmatprep.subr.mxu0 0.0
        %6618 = vmatpush1.msra.mxu0 0.0
        %6619 = vmatprep.subr.mxu0 0.0
        %6620 = vmatpush1.msra.mxu0 0.0
        %6621 = vmatprep.subr.mxu0 0.0
        %6622 = vmatpush1.msra.mxu0 0.0
        %6623 = vmatprep.subr.mxu0 0.0
        %6624 = vmatpush1.msra.mxu0 0.0
        %6625 = vmatprep.subr.mxu0 0.0
        %6626 = vmatpush1.msra.mxu0 0.0
        %6627 = vmatprep.subr.mxu0 0.0
        %6628 = vmatpush1.msra.mxu0 0.0
        %6629 = vmatprep.subr.mxu0 0.0
        %6630 = vmatpush1.msra.mxu0 0.0
        %6631 = vmatprep.subr.mxu0 0.0
        %6632 = vmatpush1.msra.mxu0 0.0
        %6633 = vmatprep.subr.mxu0 0.0
        %6634 = vmatpush1.msra.mxu0 %v2876
        %6635 = vmatprep.subr.mxu0 0.0
        %6636 = vmatpush2.msra.mxu0 0.0
        %6637 = vmatprep.subr.mxu0 0.0
        %6638 = vmatpush2.msra.mxu0 0.0
        %6639 = vmatprep.subr.mxu0 0.0
        %6640 = vmatpush2.msra.mxu0 0.0
        %6641 = vmatprep.subr.mxu0 0.0
        %6642 = vmatpush2.msra.mxu0 0.0
        %6643 = vmatprep.subr.mxu0 0.0
        %6644 = vmatpush2.msra.mxu0 0.0
        %6645 = vmatprep.subr.mxu0 0.0
        %6646 = vmatpush2.msra.mxu0 0.0
        %6647 = vmatprep.subr.mxu0 0.0
        %6648 = vmatpush2.msra.mxu0 0.0
        %6649 = vmatprep.subr.mxu0 0.0
        %6650 = vmatpush2.msra.mxu0 0.0
        %6651 = vmatprep.subr.mxu0 0.0
        %6652 = vmatpush2.msra.mxu0 0.0
        %6653 = vmatprep.subr.mxu0 0.0
        %6654 = vmatpush2.msra.mxu0 0.0
        %6655 = vmatprep.subr.mxu0 0.0
        %6656 = vmatpush2.msra.mxu0 0.0
        %6657 = vmatprep.subr.mxu0 0.0
        %6658 = vmatpush2.msra.mxu0 0.0
        %6659 = vmatprep.subr.mxu0 0.0
        %6660 = vmatpush2.msra.mxu0 0.0
        %6661 = vmatprep.subr.mxu0 0.0
        %6662 = vmatpush2.msra.mxu0 0.0
        %6663 = vmatprep.subr.mxu0 0.0
        %6664 = vmatpush2.msra.mxu0 0.0
        %6665 = vmatprep.subr.mxu0 0.0
        %6666 = vmatpush2.msra.mxu0 0.0
        %6667 = vmatprep.mubr.f32.mxu0 0.0
        %6668 = vmatmul.mubr.f32.gmra.mxu0 %v6601
        %v6669 = vpop.f32.mrf.mxu0
        %v6670 = vadd.f32 0.0, %v6669
        %v6671 = vpop.f32.mrf.mxu0
        %6672 = vdwg.mxu0
        %v6674 = vsel %vm5371, %v5705, 0
        %6676 = vmatprep.subr.mxu0 0.0
        %6677 = vmatpush1.msra.mxu0 0.0
        %6678 = vmatprep.subr.mxu0 0.0
        %6679 = vmatpush1.msra.mxu0 0.0
        %6680 = vmatprep.subr.mxu0 0.0
        %6681 = vmatpush1.msra.mxu0 0.0
        %6682 = vmatprep.subr.mxu0 0.0
        %6683 = vmatpush1.msra.mxu0 0.0
        %6684 = vmatprep.subr.mxu0 0.0
        %6685 = vmatpush1.msra.mxu0 0.0
        %6686 = vmatprep.subr.mxu0 0.0
        %6687 = vmatpush1.msra.mxu0 0.0
        %6688 = vmatprep.subr.mxu0 0.0
        %6689 = vmatpush1.msra.mxu0 0.0
        %6690 = vmatprep.subr.mxu0 0.0
        %6691 = vmatpush1.msra.mxu0 0.0
        %6692 = vmatprep.subr.mxu0 0.0
        %6693 = vmatpush1.msra.mxu0 0.0
        %6694 = vmatprep.subr.mxu0 0.0
        %6695 = vmatpush1.msra.mxu0 0.0
        %6696 = vmatprep.subr.mxu0 0.0
        %6697 = vmatpush1.msra.mxu0 0.0
        %6698 = vmatprep.subr.mxu0 0.0
        %6699 = vmatpush1.msra.mxu0 0.0
        %6700 = vmatprep.subr.mxu0 0.0
        %6701 = vmatpush1.msra.mxu0 0.0
        %6702 = vmatprep.subr.mxu0 0.0
        %6703 = vmatpush1.msra.mxu0 0.0
        %6704 = vmatprep.subr.mxu0 0.0
        %6705 = vmatpush1.msra.mxu0 0.0
        %6706 = vmatprep.subr.mxu0 0.0
        %6707 = vmatpush1.msra.mxu0 %v2878
        %6708 = vmatprep.subr.mxu0 0.0
        %6709 = vmatpush2.msra.mxu0 0.0
        %6710 = vmatprep.subr.mxu0 0.0
        %6711 = vmatpush2.msra.mxu0 0.0
        %6712 = vmatprep.subr.mxu0 0.0
        %6713 = vmatpush2.msra.mxu0 0.0
        %6714 = vmatprep.subr.mxu0 0.0
        %6715 = vmatpush2.msra.mxu0 0.0
        %6716 = vmatprep.subr.mxu0 0.0
        %6717 = vmatpush2.msra.mxu0 0.0
        %6718 = vmatprep.subr.mxu0 0.0
        %6719 = vmatpush2.msra.mxu0 0.0
        %6720 = vmatprep.subr.mxu0 0.0
        %6721 = vmatpush2.msra.mxu0 0.0
        %6722 = vmatprep.subr.mxu0 0.0
        %6723 = vmatpush2.msra.mxu0 0.0
        %6724 = vmatprep.subr.mxu0 0.0
        %6725 = vmatpush2.msra.mxu0 0.0
        %6726 = vmatprep.subr.mxu0 0.0
        %6727 = vmatpush2.msra.mxu0 0.0
        %6728 = vmatprep.subr.mxu0 0.0
        %6729 = vmatpush2.msra.mxu0 0.0
        %6730 = vmatprep.subr.mxu0 0.0
        %6731 = vmatpush2.msra.mxu0 0.0
        %6732 = vmatprep.subr.mxu0 0.0
        %6733 = vmatpush2.msra.mxu0 0.0
        %6734 = vmatprep.subr.mxu0 0.0
        %6735 = vmatpush2.msra.mxu0 0.0
        %6736 = vmatprep.subr.mxu0 0.0
        %6737 = vmatpush2.msra.mxu0 0.0
        %6738 = vmatprep.subr.mxu0 0.0
        %6739 = vmatpush2.msra.mxu0 0.0
        %6740 = vmatprep.mubr.f32.mxu0 0.0
        %6741 = vmatmul.mubr.f32.gmra.mxu0 %v6674
        %v6742 = vpop.f32.mrf.mxu0
        %v6743 = vadd.f32 0.0, %v6742
        %v6744 = vpop.f32.mrf.mxu0
        %6745 = vdwg.mxu0
        %v6747 = vsel %vm5371, %v5706, 0
        %6749 = vmatprep.subr.mxu0 0.0
        %6750 = vmatpush1.msra.mxu0 0.0
        %6751 = vmatprep.subr.mxu0 0.0
        %6752 = vmatpush1.msra.mxu0 0.0
        %6753 = vmatprep.subr.mxu0 0.0
        %6754 = vmatpush1.msra.mxu0 0.0
        %6755 = vmatprep.subr.mxu0 0.0
        %6756 = vmatpush1.msra.mxu0 0.0
        %6757 = vmatprep.subr.mxu0 0.0
        %6758 = vmatpush1.msra.mxu0 0.0
        %6759 = vmatprep.subr.mxu0 0.0
        %6760 = vmatpush1.msra.mxu0 0.0
        %6761 = vmatprep.subr.mxu0 0.0
        %6762 = vmatpush1.msra.mxu0 0.0
        %6763 = vmatprep.subr.mxu0 0.0
        %6764 = vmatpush1.msra.mxu0 0.0
        %6765 = vmatprep.subr.mxu0 0.0
        %6766 = vmatpush1.msra.mxu0 0.0
        %6767 = vmatprep.subr.mxu0 0.0
        %6768 = vmatpush1.msra.mxu0 0.0
        %6769 = vmatprep.subr.mxu0 0.0
        %6770 = vmatpush1.msra.mxu0 0.0
        %6771 = vmatprep.subr.mxu0 0.0
        %6772 = vmatpush1.msra.mxu0 0.0
        %6773 = vmatprep.subr.mxu0 0.0
        %6774 = vmatpush1.msra.mxu0 0.0
        %6775 = vmatprep.subr.mxu0 0.0
        %6776 = vmatpush1.msra.mxu0 0.0
        %6777 = vmatprep.subr.mxu0 0.0
        %6778 = vmatpush1.msra.mxu0 0.0
        %6779 = vmatprep.subr.mxu0 0.0
        %6780 = vmatpush1.msra.mxu0 %v2880
        %6781 = vmatprep.subr.mxu0 0.0
        %6782 = vmatpush2.msra.mxu0 0.0
        %6783 = vmatprep.subr.mxu0 0.0
        %6784 = vmatpush2.msra.mxu0 0.0
        %6785 = vmatprep.subr.mxu0 0.0
        %6786 = vmatpush2.msra.mxu0 0.0
        %6787 = vmatprep.subr.mxu0 0.0
        %6788 = vmatpush2.msra.mxu0 0.0
        %6789 = vmatprep.subr.mxu0 0.0
        %6790 = vmatpush2.msra.mxu0 0.0
        %6791 = vmatprep.subr.mxu0 0.0
        %6792 = vmatpush2.msra.mxu0 0.0
        %6793 = vmatprep.subr.mxu0 0.0
        %6794 = vmatpush2.msra.mxu0 0.0
        %6795 = vmatprep.subr.mxu0 0.0
        %6796 = vmatpush2.msra.mxu0 0.0
        %6797 = vmatprep.subr.mxu0 0.0
        %6798 = vmatpush2.msra.mxu0 0.0
        %6799 = vmatprep.subr.mxu0 0.0
        %6800 = vmatpush2.msra.mxu0 0.0
        %6801 = vmatprep.subr.mxu0 0.0
        %6802 = vmatpush2.msra.mxu0 0.0
        %6803 = vmatprep.subr.mxu0 0.0
        %6804 = vmatpush2.msra.mxu0 0.0
        %6805 = vmatprep.subr.mxu0 0.0
        %6806 = vmatpush2.msra.mxu0 0.0
        %6807 = vmatprep.subr.mxu0 0.0
        %6808 = vmatpush2.msra.mxu0 0.0
        %6809 = vmatprep.subr.mxu0 0.0
        %6810 = vmatpush2.msra.mxu0 0.0
        %6811 = vmatprep.subr.mxu0 0.0
        %6812 = vmatpush2.msra.mxu0 0.0
        %6813 = vmatprep.mubr.f32.mxu0 0.0
        %6814 = vmatmul.mubr.f32.gmra.mxu0 %v6747
        %v6815 = vpop.f32.mrf.mxu0
        %v6816 = vadd.f32 0.0, %v6815
        %v6817 = vpop.f32.mrf.mxu0
        %6818 = vdwg.mxu0
        %v6820 = vsel %vm5371, %v5707, 0
        %6822 = vmatprep.subr.mxu0 0.0
        %6823 = vmatpush1.msra.mxu0 0.0
        %6824 = vmatprep.subr.mxu0 0.0
        %6825 = vmatpush1.msra.mxu0 0.0
        %6826 = vmatprep.subr.mxu0 0.0
        %6827 = vmatpush1.msra.mxu0 0.0
        %6828 = vmatprep.subr.mxu0 0.0
        %6829 = vmatpush1.msra.mxu0 0.0
        %6830 = vmatprep.subr.mxu0 0.0
        %6831 = vmatpush1.msra.mxu0 0.0
        %6832 = vmatprep.subr.mxu0 0.0
        %6833 = vmatpush1.msra.mxu0 0.0
        %6834 = vmatprep.subr.mxu0 0.0
        %6835 = vmatpush1.msra.mxu0 0.0
        %6836 = vmatprep.subr.mxu0 0.0
        %6837 = vmatpush1.msra.mxu0 0.0
        %6838 = vmatprep.subr.mxu0 0.0
        %6839 = vmatpush1.msra.mxu0 0.0
        %6840 = vmatprep.subr.mxu0 0.0
        %6841 = vmatpush1.msra.mxu0 0.0
        %6842 = vmatprep.subr.mxu0 0.0
        %6843 = vmatpush1.msra.mxu0 0.0
        %6844 = vmatprep.subr.mxu0 0.0
        %6845 = vmatpush1.msra.mxu0 0.0
        %6846 = vmatprep.subr.mxu0 0.0
        %6847 = vmatpush1.msra.mxu0 0.0
        %6848 = vmatprep.subr.mxu0 0.0
        %6849 = vmatpush1.msra.mxu0 0.0
        %6850 = vmatprep.subr.mxu0 0.0
        %6851 = vmatpush1.msra.mxu0 0.0
        %6852 = vmatprep.subr.mxu0 0.0
        %6853 = vmatpush1.msra.mxu0 %v2882
        %6854 = vmatprep.subr.mxu0 0.0
        %6855 = vmatpush2.msra.mxu0 0.0
        %6856 = vmatprep.subr.mxu0 0.0
        %6857 = vmatpush2.msra.mxu0 0.0
        %6858 = vmatprep.subr.mxu0 0.0
        %6859 = vmatpush2.msra.mxu0 0.0
        %6860 = vmatprep.subr.mxu0 0.0
        %6861 = vmatpush2.msra.mxu0 0.0
        %6862 = vmatprep.subr.mxu0 0.0
        %6863 = vmatpush2.msra.mxu0 0.0
        %6864 = vmatprep.subr.mxu0 0.0
        %6865 = vmatpush2.msra.mxu0 0.0
        %6866 = vmatprep.subr.mxu0 0.0
        %6867 = vmatpush2.msra.mxu0 0.0
        %6868 = vmatprep.subr.mxu0 0.0
        %6869 = vmatpush2.msra.mxu0 0.0
        %6870 = vmatprep.subr.mxu0 0.0
        %6871 = vmatpush2.msra.mxu0 0.0
        %6872 = vmatprep.subr.mxu0 0.0
        %6873 = vmatpush2.msra.mxu0 0.0
        %6874 = vmatprep.subr.mxu0 0.0
        %6875 = vmatpush2.msra.mxu0 0.0
        %6876 = vmatprep.subr.mxu0 0.0
        %6877 = vmatpush2.msra.mxu0 0.0
        %6878 = vmatprep.subr.mxu0 0.0
        %6879 = vmatpush2.msra.mxu0 0.0
        %6880 = vmatprep.subr.mxu0 0.0
        %6881 = vmatpush2.msra.mxu0 0.0
        %6882 = vmatprep.subr.mxu0 0.0
        %6883 = vmatpush2.msra.mxu0 0.0
        %6884 = vmatprep.subr.mxu0 0.0
        %6885 = vmatpush2.msra.mxu0 0.0
        %6886 = vmatprep.mubr.f32.mxu0 0.0
        %6887 = vmatmul.mubr.f32.gmra.mxu0 %v6820
        %v6888 = vpop.f32.mrf.mxu0
        %v6889 = vadd.f32 0.0, %v6888
        %v6890 = vpop.f32.mrf.mxu0
        %6891 = vdwg.mxu0
        %v6893 = vsel %vm5371, %v5708, 0
        %6895 = vmatprep.subr.mxu0 0.0
        %6896 = vmatpush1.msra.mxu0 0.0
        %6897 = vmatprep.subr.mxu0 0.0
        %6898 = vmatpush1.msra.mxu0 0.0
        %6899 = vmatprep.subr.mxu0 0.0
        %6900 = vmatpush1.msra.mxu0 0.0
        %6901 = vmatprep.subr.mxu0 0.0
        %6902 = vmatpush1.msra.mxu0 0.0
        %6903 = vmatprep.subr.mxu0 0.0
        %6904 = vmatpush1.msra.mxu0 0.0
        %6905 = vmatprep.subr.mxu0 0.0
        %6906 = vmatpush1.msra.mxu0 0.0
        %6907 = vmatprep.subr.mxu0 0.0
        %6908 = vmatpush1.msra.mxu0 0.0
        %6909 = vmatprep.subr.mxu0 0.0
        %6910 = vmatpush1.msra.mxu0 0.0
        %6911 = vmatprep.subr.mxu0 0.0
        %6912 = vmatpush1.msra.mxu0 0.0
        %6913 = vmatprep.subr.mxu0 0.0
        %6914 = vmatpush1.msra.mxu0 0.0
        %6915 = vmatprep.subr.mxu0 0.0
        %6916 = vmatpush1.msra.mxu0 0.0
        %6917 = vmatprep.subr.mxu0 0.0
        %6918 = vmatpush1.msra.mxu0 0.0
        %6919 = vmatprep.subr.mxu0 0.0
        %6920 = vmatpush1.msra.mxu0 0.0
        %6921 = vmatprep.subr.mxu0 0.0
        %6922 = vmatpush1.msra.mxu0 0.0
        %6923 = vmatprep.subr.mxu0 0.0
        %6924 = vmatpush1.msra.mxu0 0.0
        %6925 = vmatprep.subr.mxu0 0.0
        %6926 = vmatpush1.msra.mxu0 %v2892
        %6927 = vmatprep.subr.mxu0 0.0
        %6928 = vmatpush2.msra.mxu0 0.0
        %6929 = vmatprep.subr.mxu0 0.0
        %6930 = vmatpush2.msra.mxu0 0.0
        %6931 = vmatprep.subr.mxu0 0.0
        %6932 = vmatpush2.msra.mxu0 0.0
        %6933 = vmatprep.subr.mxu0 0.0
        %6934 = vmatpush2.msra.mxu0 0.0
        %6935 = vmatprep.subr.mxu0 0.0
        %6936 = vmatpush2.msra.mxu0 0.0
        %6937 = vmatprep.subr.mxu0 0.0
        %6938 = vmatpush2.msra.mxu0 0.0
        %6939 = vmatprep.subr.mxu0 0.0
        %6940 = vmatpush2.msra.mxu0 0.0
        %6941 = vmatprep.subr.mxu0 0.0
        %6942 = vmatpush2.msra.mxu0 0.0
        %6943 = vmatprep.subr.mxu0 0.0
        %6944 = vmatpush2.msra.mxu0 0.0
        %6945 = vmatprep.subr.mxu0 0.0
        %6946 = vmatpush2.msra.mxu0 0.0
        %6947 = vmatprep.subr.mxu0 0.0
        %6948 = vmatpush2.msra.mxu0 0.0
        %6949 = vmatprep.subr.mxu0 0.0
        %6950 = vmatpush2.msra.mxu0 0.0
        %6951 = vmatprep.subr.mxu0 0.0
        %6952 = vmatpush2.msra.mxu0 0.0
        %6953 = vmatprep.subr.mxu0 0.0
        %6954 = vmatpush2.msra.mxu0 0.0
        %6955 = vmatprep.subr.mxu0 0.0
        %6956 = vmatpush2.msra.mxu0 0.0
        %6957 = vmatprep.subr.mxu0 0.0
        %6958 = vmatpush2.msra.mxu0 0.0
        %6959 = vmatprep.mubr.f32.mxu0 0.0
        %6960 = vmatmul.mubr.f32.gmra.mxu0 %v6893
        %v6961 = vpop.f32.mrf.mxu0
        %v6962 = vadd.f32 0.0, %v6961
        %v6963 = vpop.f32.mrf.mxu0
        %6964 = vdwg.mxu0
        %v6966 = vsel %vm5371, %v5709, 0
        %6968 = vmatprep.subr.mxu0 0.0
        %6969 = vmatpush1.msra.mxu0 0.0
        %6970 = vmatprep.subr.mxu0 0.0
        %6971 = vmatpush1.msra.mxu0 0.0
        %6972 = vmatprep.subr.mxu0 0.0
        %6973 = vmatpush1.msra.mxu0 0.0
        %6974 = vmatprep.subr.mxu0 0.0
        %6975 = vmatpush1.msra.mxu0 0.0
        %6976 = vmatprep.subr.mxu0 0.0
        %6977 = vmatpush1.msra.mxu0 0.0
        %6978 = vmatprep.subr.mxu0 0.0
        %6979 = vmatpush1.msra.mxu0 0.0
        %6980 = vmatprep.subr.mxu0 0.0
        %6981 = vmatpush1.msra.mxu0 0.0
        %6982 = vmatprep.subr.mxu0 0.0
        %6983 = vmatpush1.msra.mxu0 0.0
        %6984 = vmatprep.subr.mxu0 0.0
        %6985 = vmatpush1.msra.mxu0 0.0
        %6986 = vmatprep.subr.mxu0 0.0
        %6987 = vmatpush1.msra.mxu0 0.0
        %6988 = vmatprep.subr.mxu0 0.0
        %6989 = vmatpush1.msra.mxu0 0.0
        %6990 = vmatprep.subr.mxu0 0.0
        %6991 = vmatpush1.msra.mxu0 0.0
        %6992 = vmatprep.subr.mxu0 0.0
        %6993 = vmatpush1.msra.mxu0 0.0
        %6994 = vmatprep.subr.mxu0 0.0
        %6995 = vmatpush1.msra.mxu0 0.0
        %6996 = vmatprep.subr.mxu0 0.0
        %6997 = vmatpush1.msra.mxu0 0.0
        %6998 = vmatprep.subr.mxu0 0.0
        %6999 = vmatpush1.msra.mxu0 %v2894
        %7000 = vmatprep.subr.mxu0 0.0
        %7001 = vmatpush2.msra.mxu0 0.0
        %7002 = vmatprep.subr.mxu0 0.0
        %7003 = vmatpush2.msra.mxu0 0.0
        %7004 = vmatprep.subr.mxu0 0.0
        %7005 = vmatpush2.msra.mxu0 0.0
        %7006 = vmatprep.subr.mxu0 0.0
        %7007 = vmatpush2.msra.mxu0 0.0
        %7008 = vmatprep.subr.mxu0 0.0
        %7009 = vmatpush2.msra.mxu0 0.0
        %7010 = vmatprep.subr.mxu0 0.0
        %7011 = vmatpush2.msra.mxu0 0.0
        %7012 = vmatprep.subr.mxu0 0.0
        %7013 = vmatpush2.msra.mxu0 0.0
        %7014 = vmatprep.subr.mxu0 0.0
        %7015 = vmatpush2.msra.mxu0 0.0
        %7016 = vmatprep.subr.mxu0 0.0
        %7017 = vmatpush2.msra.mxu0 0.0
        %7018 = vmatprep.subr.mxu0 0.0
        %7019 = vmatpush2.msra.mxu0 0.0
        %7020 = vmatprep.subr.mxu0 0.0
        %7021 = vmatpush2.msra.mxu0 0.0
        %7022 = vmatprep.subr.mxu0 0.0
        %7023 = vmatpush2.msra.mxu0 0.0
        %7024 = vmatprep.subr.mxu0 0.0
        %7025 = vmatpush2.msra.mxu0 0.0
        %7026 = vmatprep.subr.mxu0 0.0
        %7027 = vmatpush2.msra.mxu0 0.0
        %7028 = vmatprep.subr.mxu0 0.0
        %7029 = vmatpush2.msra.mxu0 0.0
        %7030 = vmatprep.subr.mxu0 0.0
        %7031 = vmatpush2.msra.mxu0 0.0
        %7032 = vmatprep.mubr.f32.mxu0 0.0
        %7033 = vmatmul.mubr.f32.gmra.mxu0 %v6966
        %v7034 = vpop.f32.mrf.mxu0
        %v7035 = vadd.f32 0.0, %v7034
        %v7036 = vpop.f32.mrf.mxu0
        %7037 = vdwg.mxu0
        %v7039 = vsel %vm5371, %v5710, 0
        %7041 = vmatprep.subr.mxu0 0.0
        %7042 = vmatpush1.msra.mxu0 0.0
        %7043 = vmatprep.subr.mxu0 0.0
        %7044 = vmatpush1.msra.mxu0 0.0
        %7045 = vmatprep.subr.mxu0 0.0
        %7046 = vmatpush1.msra.mxu0 0.0
        %7047 = vmatprep.subr.mxu0 0.0
        %7048 = vmatpush1.msra.mxu0 0.0
        %7049 = vmatprep.subr.mxu0 0.0
        %7050 = vmatpush1.msra.mxu0 0.0
        %7051 = vmatprep.subr.mxu0 0.0
        %7052 = vmatpush1.msra.mxu0 0.0
        %7053 = vmatprep.subr.mxu0 0.0
        %7054 = vmatpush1.msra.mxu0 0.0
        %7055 = vmatprep.subr.mxu0 0.0
        %7056 = vmatpush1.msra.mxu0 0.0
        %7057 = vmatprep.subr.mxu0 0.0
        %7058 = vmatpush1.msra.mxu0 0.0
        %7059 = vmatprep.subr.mxu0 0.0
        %7060 = vmatpush1.msra.mxu0 0.0
        %7061 = vmatprep.subr.mxu0 0.0
        %7062 = vmatpush1.msra.mxu0 0.0
        %7063 = vmatprep.subr.mxu0 0.0
        %7064 = vmatpush1.msra.mxu0 0.0
        %7065 = vmatprep.subr.mxu0 0.0
        %7066 = vmatpush1.msra.mxu0 0.0
        %7067 = vmatprep.subr.mxu0 0.0
        %7068 = vmatpush1.msra.mxu0 0.0
        %7069 = vmatprep.subr.mxu0 0.0
        %7070 = vmatpush1.msra.mxu0 0.0
        %7071 = vmatprep.subr.mxu0 0.0
        %7072 = vmatpush1.msra.mxu0 %v2896
        %7073 = vmatprep.subr.mxu0 0.0
        %7074 = vmatpush2.msra.mxu0 0.0
        %7075 = vmatprep.subr.mxu0 0.0
        %7076 = vmatpush2.msra.mxu0 0.0
        %7077 = vmatprep.subr.mxu0 0.0
        %7078 = vmatpush2.msra.mxu0 0.0
        %7079 = vmatprep.subr.mxu0 0.0
        %7080 = vmatpush2.msra.mxu0 0.0
        %7081 = vmatprep.subr.mxu0 0.0
        %7082 = vmatpush2.msra.mxu0 0.0
        %7083 = vmatprep.subr.mxu0 0.0
        %7084 = vmatpush2.msra.mxu0 0.0
        %7085 = vmatprep.subr.mxu0 0.0
        %7086 = vmatpush2.msra.mxu0 0.0
        %7087 = vmatprep.subr.mxu0 0.0
        %7088 = vmatpush2.msra.mxu0 0.0
        %7089 = vmatprep.subr.mxu0 0.0
        %7090 = vmatpush2.msra.mxu0 0.0
        %7091 = vmatprep.subr.mxu0 0.0
        %7092 = vmatpush2.msra.mxu0 0.0
        %7093 = vmatprep.subr.mxu0 0.0
        %7094 = vmatpush2.msra.mxu0 0.0
        %7095 = vmatprep.subr.mxu0 0.0
        %7096 = vmatpush2.msra.mxu0 0.0
        %7097 = vmatprep.subr.mxu0 0.0
        %7098 = vmatpush2.msra.mxu0 0.0
        %7099 = vmatprep.subr.mxu0 0.0
        %7100 = vmatpush2.msra.mxu0 0.0
        %7101 = vmatprep.subr.mxu0 0.0
        %7102 = vmatpush2.msra.mxu0 0.0
        %7103 = vmatprep.subr.mxu0 0.0
        %7104 = vmatpush2.msra.mxu0 0.0
        %7105 = vmatprep.mubr.f32.mxu0 0.0
        %7106 = vmatmul.mubr.f32.gmra.mxu0 %v7039
        %v7107 = vpop.f32.mrf.mxu0
        %v7108 = vadd.f32 0.0, %v7107
        %v7109 = vpop.f32.mrf.mxu0
        %7110 = vdwg.mxu0
        %v7112 = vsel %vm5371, %v5711, 0
        %7114 = vmatprep.subr.mxu0 0.0
        %7115 = vmatpush1.msra.mxu0 0.0
        %7116 = vmatprep.subr.mxu0 0.0
        %7117 = vmatpush1.msra.mxu0 0.0
        %7118 = vmatprep.subr.mxu0 0.0
        %7119 = vmatpush1.msra.mxu0 0.0
        %7120 = vmatprep.subr.mxu0 0.0
        %7121 = vmatpush1.msra.mxu0 0.0
        %7122 = vmatprep.subr.mxu0 0.0
        %7123 = vmatpush1.msra.mxu0 0.0
        %7124 = vmatprep.subr.mxu0 0.0
        %7125 = vmatpush1.msra.mxu0 0.0
        %7126 = vmatprep.subr.mxu0 0.0
        %7127 = vmatpush1.msra.mxu0 0.0
        %7128 = vmatprep.subr.mxu0 0.0
        %7129 = vmatpush1.msra.mxu0 0.0
        %7130 = vmatprep.subr.mxu0 0.0
        %7131 = vmatpush1.msra.mxu0 0.0
        %7132 = vmatprep.subr.mxu0 0.0
        %7133 = vmatpush1.msra.mxu0 0.0
        %7134 = vmatprep.subr.mxu0 0.0
        %7135 = vmatpush1.msra.mxu0 0.0
        %7136 = vmatprep.subr.mxu0 0.0
        %7137 = vmatpush1.msra.mxu0 0.0
        %7138 = vmatprep.subr.mxu0 0.0
        %7139 = vmatpush1.msra.mxu0 0.0
        %7140 = vmatprep.subr.mxu0 0.0
        %7141 = vmatpush1.msra.mxu0 0.0
        %7142 = vmatprep.subr.mxu0 0.0
        %7143 = vmatpush1.msra.mxu0 0.0
        %7144 = vmatprep.subr.mxu0 0.0
        %7145 = vmatpush1.msra.mxu0 %v2898
        %7146 = vmatprep.subr.mxu0 0.0
        %7147 = vmatpush2.msra.mxu0 0.0
        %7148 = vmatprep.subr.mxu0 0.0
        %7149 = vmatpush2.msra.mxu0 0.0
        %7150 = vmatprep.subr.mxu0 0.0
        %7151 = vmatpush2.msra.mxu0 0.0
        %7152 = vmatprep.subr.mxu0 0.0
        %7153 = vmatpush2.msra.mxu0 0.0
        %7154 = vmatprep.subr.mxu0 0.0
        %7155 = vmatpush2.msra.mxu0 0.0
        %7156 = vmatprep.subr.mxu0 0.0
        %7157 = vmatpush2.msra.mxu0 0.0
        %7158 = vmatprep.subr.mxu0 0.0
        %7159 = vmatpush2.msra.mxu0 0.0
        %7160 = vmatprep.subr.mxu0 0.0
        %7161 = vmatpush2.msra.mxu0 0.0
        %7162 = vmatprep.subr.mxu0 0.0
        %7163 = vmatpush2.msra.mxu0 0.0
        %7164 = vmatprep.subr.mxu0 0.0
        %7165 = vmatpush2.msra.mxu0 0.0
        %7166 = vmatprep.subr.mxu0 0.0
        %7167 = vmatpush2.msra.mxu0 0.0
        %7168 = vmatprep.subr.mxu0 0.0
        %7169 = vmatpush2.msra.mxu0 0.0
        %7170 = vmatprep.subr.mxu0 0.0
        %7171 = vmatpush2.msra.mxu0 0.0
        %7172 = vmatprep.subr.mxu0 0.0
        %7173 = vmatpush2.msra.mxu0 0.0
        %7174 = vmatprep.subr.mxu0 0.0
        %7175 = vmatpush2.msra.mxu0 0.0
        %7176 = vmatprep.subr.mxu0 0.0
        %7177 = vmatpush2.msra.mxu0 0.0
        %7178 = vmatprep.mubr.f32.mxu0 0.0
        %7179 = vmatmul.mubr.f32.gmra.mxu0 %v7112
        %v7180 = vpop.f32.mrf.mxu0
        %v7181 = vadd.f32 0.0, %v7180
        %v7182 = vpop.f32.mrf.mxu0
        %7183 = vdwg.mxu0
        %v7185 = vsel %vm5371, %v5712, 0
        %7187 = vmatprep.subr.mxu0 0.0
        %7188 = vmatpush1.msra.mxu0 0.0
        %7189 = vmatprep.subr.mxu0 0.0
        %7190 = vmatpush1.msra.mxu0 0.0
        %7191 = vmatprep.subr.mxu0 0.0
        %7192 = vmatpush1.msra.mxu0 0.0
        %7193 = vmatprep.subr.mxu0 0.0
        %7194 = vmatpush1.msra.mxu0 0.0
        %7195 = vmatprep.subr.mxu0 0.0
        %7196 = vmatpush1.msra.mxu0 0.0
        %7197 = vmatprep.subr.mxu0 0.0
        %7198 = vmatpush1.msra.mxu0 0.0
        %7199 = vmatprep.subr.mxu0 0.0
        %7200 = vmatpush1.msra.mxu0 0.0
        %7201 = vmatprep.subr.mxu0 0.0
        %7202 = vmatpush1.msra.mxu0 0.0
        %7203 = vmatprep.subr.mxu0 0.0
        %7204 = vmatpush1.msra.mxu0 0.0
        %7205 = vmatprep.subr.mxu0 0.0
        %7206 = vmatpush1.msra.mxu0 0.0
        %7207 = vmatprep.subr.mxu0 0.0
        %7208 = vmatpush1.msra.mxu0 0.0
        %7209 = vmatprep.subr.mxu0 0.0
        %7210 = vmatpush1.msra.mxu0 0.0
        %7211 = vmatprep.subr.mxu0 0.0
        %7212 = vmatpush1.msra.mxu0 0.0
        %7213 = vmatprep.subr.mxu0 0.0
        %7214 = vmatpush1.msra.mxu0 0.0
        %7215 = vmatprep.subr.mxu0 0.0
        %7216 = vmatpush1.msra.mxu0 0.0
        %7217 = vmatprep.subr.mxu0 0.0
        %7218 = vmatpush1.msra.mxu0 %v2900
        %7219 = vmatprep.subr.mxu0 0.0
        %7220 = vmatpush2.msra.mxu0 0.0
        %7221 = vmatprep.subr.mxu0 0.0
        %7222 = vmatpush2.msra.mxu0 0.0
        %7223 = vmatprep.subr.mxu0 0.0
        %7224 = vmatpush2.msra.mxu0 0.0
        %7225 = vmatprep.subr.mxu0 0.0
        %7226 = vmatpush2.msra.mxu0 0.0
        %7227 = vmatprep.subr.mxu0 0.0
        %7228 = vmatpush2.msra.mxu0 0.0
        %7229 = vmatprep.subr.mxu0 0.0
        %7230 = vmatpush2.msra.mxu0 0.0
        %7231 = vmatprep.subr.mxu0 0.0
        %7232 = vmatpush2.msra.mxu0 0.0
        %7233 = vmatprep.subr.mxu0 0.0
        %7234 = vmatpush2.msra.mxu0 0.0
        %7235 = vmatprep.subr.mxu0 0.0
        %7236 = vmatpush2.msra.mxu0 0.0
        %7237 = vmatprep.subr.mxu0 0.0
        %7238 = vmatpush2.msra.mxu0 0.0
        %7239 = vmatprep.subr.mxu0 0.0
        %7240 = vmatpush2.msra.mxu0 0.0
        %7241 = vmatprep.subr.mxu0 0.0
        %7242 = vmatpush2.msra.mxu0 0.0
        %7243 = vmatprep.subr.mxu0 0.0
        %7244 = vmatpush2.msra.mxu0 0.0
        %7245 = vmatprep.subr.mxu0 0.0
        %7246 = vmatpush2.msra.mxu0 0.0
        %7247 = vmatprep.subr.mxu0 0.0
        %7248 = vmatpush2.msra.mxu0 0.0
        %7249 = vmatprep.subr.mxu0 0.0
        %7250 = vmatpush2.msra.mxu0 0.0
        %7251 = vmatprep.mubr.f32.mxu0 0.0
        %7252 = vmatmul.mubr.f32.gmra.mxu0 %v7185
        %v7253 = vpop.f32.mrf.mxu0
        %v7254 = vadd.f32 0.0, %v7253
        %v7255 = vpop.f32.mrf.mxu0
        %7256 = vdwg.mxu0
        %v7258 = vsel %vm5371, %v5713, 0
        %7260 = vmatprep.subr.mxu0 0.0
        %7261 = vmatpush1.msra.mxu0 0.0
        %7262 = vmatprep.subr.mxu0 0.0
        %7263 = vmatpush1.msra.mxu0 0.0
        %7264 = vmatprep.subr.mxu0 0.0
        %7265 = vmatpush1.msra.mxu0 0.0
        %7266 = vmatprep.subr.mxu0 0.0
        %7267 = vmatpush1.msra.mxu0 0.0
        %7268 = vmatprep.subr.mxu0 0.0
        %7269 = vmatpush1.msra.mxu0 0.0
        %7270 = vmatprep.subr.mxu0 0.0
        %7271 = vmatpush1.msra.mxu0 0.0
        %7272 = vmatprep.subr.mxu0 0.0
        %7273 = vmatpush1.msra.mxu0 0.0
        %7274 = vmatprep.subr.mxu0 0.0
        %7275 = vmatpush1.msra.mxu0 0.0
        %7276 = vmatprep.subr.mxu0 0.0
        %7277 = vmatpush1.msra.mxu0 0.0
        %7278 = vmatprep.subr.mxu0 0.0
        %7279 = vmatpush1.msra.mxu0 0.0
        %7280 = vmatprep.subr.mxu0 0.0
        %7281 = vmatpush1.msra.mxu0 0.0
        %7282 = vmatprep.subr.mxu0 0.0
        %7283 = vmatpush1.msra.mxu0 0.0
        %7284 = vmatprep.subr.mxu0 0.0
        %7285 = vmatpush1.msra.mxu0 0.0
        %7286 = vmatprep.subr.mxu0 0.0
        %7287 = vmatpush1.msra.mxu0 0.0
        %7288 = vmatprep.subr.mxu0 0.0
        %7289 = vmatpush1.msra.mxu0 0.0
        %7290 = vmatprep.subr.mxu0 0.0
        %7291 = vmatpush1.msra.mxu0 %v2902
        %7292 = vmatprep.subr.mxu0 0.0
        %7293 = vmatpush2.msra.mxu0 0.0
        %7294 = vmatprep.subr.mxu0 0.0
        %7295 = vmatpush2.msra.mxu0 0.0
        %7296 = vmatprep.subr.mxu0 0.0
        %7297 = vmatpush2.msra.mxu0 0.0
        %7298 = vmatprep.subr.mxu0 0.0
        %7299 = vmatpush2.msra.mxu0 0.0
        %7300 = vmatprep.subr.mxu0 0.0
        %7301 = vmatpush2.msra.mxu0 0.0
        %7302 = vmatprep.subr.mxu0 0.0
        %7303 = vmatpush2.msra.mxu0 0.0
        %7304 = vmatprep.subr.mxu0 0.0
        %7305 = vmatpush2.msra.mxu0 0.0
        %7306 = vmatprep.subr.mxu0 0.0
        %7307 = vmatpush2.msra.mxu0 0.0
        %7308 = vmatprep.subr.mxu0 0.0
        %7309 = vmatpush2.msra.mxu0 0.0
        %7310 = vmatprep.subr.mxu0 0.0
        %7311 = vmatpush2.msra.mxu0 0.0
        %7312 = vmatprep.subr.mxu0 0.0
        %7313 = vmatpush2.msra.mxu0 0.0
        %7314 = vmatprep.subr.mxu0 0.0
        %7315 = vmatpush2.msra.mxu0 0.0
        %7316 = vmatprep.subr.mxu0 0.0
        %7317 = vmatpush2.msra.mxu0 0.0
        %7318 = vmatprep.subr.mxu0 0.0
        %7319 = vmatpush2.msra.mxu0 0.0
        %7320 = vmatprep.subr.mxu0 0.0
        %7321 = vmatpush2.msra.mxu0 0.0
        %7322 = vmatprep.subr.mxu0 0.0
        %7323 = vmatpush2.msra.mxu0 0.0
        %7324 = vmatprep.mubr.f32.mxu0 0.0
        %7325 = vmatmul.mubr.f32.gmra.mxu0 %v7258
        %v7326 = vpop.f32.mrf.mxu0
        %v7327 = vadd.f32 0.0, %v7326
        %v7328 = vpop.f32.mrf.mxu0
        %7329 = vdwg.mxu0
        %v7331 = vsel %vm5371, %v5714, 0
        %7333 = vmatprep.subr.mxu0 0.0
        %7334 = vmatpush1.msra.mxu0 0.0
        %7335 = vmatprep.subr.mxu0 0.0
        %7336 = vmatpush1.msra.mxu0 0.0
        %7337 = vmatprep.subr.mxu0 0.0
        %7338 = vmatpush1.msra.mxu0 0.0
        %7339 = vmatprep.subr.mxu0 0.0
        %7340 = vmatpush1.msra.mxu0 0.0
        %7341 = vmatprep.subr.mxu0 0.0
        %7342 = vmatpush1.msra.mxu0 0.0
        %7343 = vmatprep.subr.mxu0 0.0
        %7344 = vmatpush1.msra.mxu0 0.0
        %7345 = vmatprep.subr.mxu0 0.0
        %7346 = vmatpush1.msra.mxu0 0.0
        %7347 = vmatprep.subr.mxu0 0.0
        %7348 = vmatpush1.msra.mxu0 0.0
        %7349 = vmatprep.subr.mxu0 0.0
        %7350 = vmatpush1.msra.mxu0 0.0
        %7351 = vmatprep.subr.mxu0 0.0
        %7352 = vmatpush1.msra.mxu0 0.0
        %7353 = vmatprep.subr.mxu0 0.0
        %7354 = vmatpush1.msra.mxu0 0.0
        %7355 = vmatprep.subr.mxu0 0.0
        %7356 = vmatpush1.msra.mxu0 0.0
        %7357 = vmatprep.subr.mxu0 0.0
        %7358 = vmatpush1.msra.mxu0 0.0
        %7359 = vmatprep.subr.mxu0 0.0
        %7360 = vmatpush1.msra.mxu0 0.0
        %7361 = vmatprep.subr.mxu0 0.0
        %7362 = vmatpush1.msra.mxu0 0.0
        %7363 = vmatprep.subr.mxu0 0.0
        %7364 = vmatpush1.msra.mxu0 %v2904
        %7365 = vmatprep.subr.mxu0 0.0
        %7366 = vmatpush2.msra.mxu0 0.0
        %7367 = vmatprep.subr.mxu0 0.0
        %7368 = vmatpush2.msra.mxu0 0.0
        %7369 = vmatprep.subr.mxu0 0.0
        %7370 = vmatpush2.msra.mxu0 0.0
        %7371 = vmatprep.subr.mxu0 0.0
        %7372 = vmatpush2.msra.mxu0 0.0
        %7373 = vmatprep.subr.mxu0 0.0
        %7374 = vmatpush2.msra.mxu0 0.0
        %7375 = vmatprep.subr.mxu0 0.0
        %7376 = vmatpush2.msra.mxu0 0.0
        %7377 = vmatprep.subr.mxu0 0.0
        %7378 = vmatpush2.msra.mxu0 0.0
        %7379 = vmatprep.subr.mxu0 0.0
        %7380 = vmatpush2.msra.mxu0 0.0
        %7381 = vmatprep.subr.mxu0 0.0
        %7382 = vmatpush2.msra.mxu0 0.0
        %7383 = vmatprep.subr.mxu0 0.0
        %7384 = vmatpush2.msra.mxu0 0.0
        %7385 = vmatprep.subr.mxu0 0.0
        %7386 = vmatpush2.msra.mxu0 0.0
        %7387 = vmatprep.subr.mxu0 0.0
        %7388 = vmatpush2.msra.mxu0 0.0
        %7389 = vmatprep.subr.mxu0 0.0
        %7390 = vmatpush2.msra.mxu0 0.0
        %7391 = vmatprep.subr.mxu0 0.0
        %7392 = vmatpush2.msra.mxu0 0.0
        %7393 = vmatprep.subr.mxu0 0.0
        %7394 = vmatpush2.msra.mxu0 0.0
        %7395 = vmatprep.subr.mxu0 0.0
        %7396 = vmatpush2.msra.mxu0 0.0
        %7397 = vmatprep.mubr.f32.mxu0 0.0
        %7398 = vmatmul.mubr.f32.gmra.mxu0 %v7331
        %v7399 = vpop.f32.mrf.mxu0
        %v7400 = vadd.f32 0.0, %v7399
        %v7401 = vpop.f32.mrf.mxu0
        %7402 = vdwg.mxu0
        %v7404 = vsel %vm5371, %v5715, 0
        %7406 = vmatprep.subr.mxu0 0.0
        %7407 = vmatpush1.msra.mxu0 0.0
        %7408 = vmatprep.subr.mxu0 0.0
        %7409 = vmatpush1.msra.mxu0 0.0
        %7410 = vmatprep.subr.mxu0 0.0
        %7411 = vmatpush1.msra.mxu0 0.0
        %7412 = vmatprep.subr.mxu0 0.0
        %7413 = vmatpush1.msra.mxu0 0.0
        %7414 = vmatprep.subr.mxu0 0.0
        %7415 = vmatpush1.msra.mxu0 0.0
        %7416 = vmatprep.subr.mxu0 0.0
        %7417 = vmatpush1.msra.mxu0 0.0
        %7418 = vmatprep.subr.mxu0 0.0
        %7419 = vmatpush1.msra.mxu0 0.0
        %7420 = vmatprep.subr.mxu0 0.0
        %7421 = vmatpush1.msra.mxu0 0.0
        %7422 = vmatprep.subr.mxu0 0.0
        %7423 = vmatpush1.msra.mxu0 0.0
        %7424 = vmatprep.subr.mxu0 0.0
        %7425 = vmatpush1.msra.mxu0 0.0
        %7426 = vmatprep.subr.mxu0 0.0
        %7427 = vmatpush1.msra.mxu0 0.0
        %7428 = vmatprep.subr.mxu0 0.0
        %7429 = vmatpush1.msra.mxu0 0.0
        %7430 = vmatprep.subr.mxu0 0.0
        %7431 = vmatpush1.msra.mxu0 0.0
        %7432 = vmatprep.subr.mxu0 0.0
        %7433 = vmatpush1.msra.mxu0 0.0
        %7434 = vmatprep.subr.mxu0 0.0
        %7435 = vmatpush1.msra.mxu0 0.0
        %7436 = vmatprep.subr.mxu0 0.0
        %7437 = vmatpush1.msra.mxu0 %v2906
        %7438 = vmatprep.subr.mxu0 0.0
        %7439 = vmatpush2.msra.mxu0 0.0
        %7440 = vmatprep.subr.mxu0 0.0
        %7441 = vmatpush2.msra.mxu0 0.0
        %7442 = vmatprep.subr.mxu0 0.0
        %7443 = vmatpush2.msra.mxu0 0.0
        %7444 = vmatprep.subr.mxu0 0.0
        %7445 = vmatpush2.msra.mxu0 0.0
        %7446 = vmatprep.subr.mxu0 0.0
        %7447 = vmatpush2.msra.mxu0 0.0
        %7448 = vmatprep.subr.mxu0 0.0
        %7449 = vmatpush2.msra.mxu0 0.0
        %7450 = vmatprep.subr.mxu0 0.0
        %7451 = vmatpush2.msra.mxu0 0.0
        %7452 = vmatprep.subr.mxu0 0.0
        %7453 = vmatpush2.msra.mxu0 0.0
        %7454 = vmatprep.subr.mxu0 0.0
        %7455 = vmatpush2.msra.mxu0 0.0
        %7456 = vmatprep.subr.mxu0 0.0
        %7457 = vmatpush2.msra.mxu0 0.0
        %7458 = vmatprep.subr.mxu0 0.0
        %7459 = vmatpush2.msra.mxu0 0.0
        %7460 = vmatprep.subr.mxu0 0.0
        %7461 = vmatpush2.msra.mxu0 0.0
        %7462 = vmatprep.subr.mxu0 0.0
        %7463 = vmatpush2.msra.mxu0 0.0
        %7464 = vmatprep.subr.mxu0 0.0
        %7465 = vmatpush2.msra.mxu0 0.0
        %7466 = vmatprep.subr.mxu0 0.0
        %7467 = vmatpush2.msra.mxu0 0.0
        %7468 = vmatprep.subr.mxu0 0.0
        %7469 = vmatpush2.msra.mxu0 0.0
        %7470 = vmatprep.mubr.f32.mxu0 0.0
        %7471 = vmatmul.mubr.f32.gmra.mxu0 %v7404
        %v7472 = vpop.f32.mrf.mxu0
        %v7473 = vadd.f32 0.0, %v7472
        %v7474 = vpop.f32.mrf.mxu0
        %7475 = vdwg.mxu0
        %v7477 = vsel %vm5371, %v5716, 0
        %7479 = vmatprep.subr.mxu0 0.0
        %7480 = vmatpush1.msra.mxu0 0.0
        %7481 = vmatprep.subr.mxu0 0.0
        %7482 = vmatpush1.msra.mxu0 0.0
        %7483 = vmatprep.subr.mxu0 0.0
        %7484 = vmatpush1.msra.mxu0 0.0
        %7485 = vmatprep.subr.mxu0 0.0
        %7486 = vmatpush1.msra.mxu0 0.0
        %7487 = vmatprep.subr.mxu0 0.0
        %7488 = vmatpush1.msra.mxu0 0.0
        %7489 = vmatprep.subr.mxu0 0.0
        %7490 = vmatpush1.msra.mxu0 0.0
        %7491 = vmatprep.subr.mxu0 0.0
        %7492 = vmatpush1.msra.mxu0 0.0
        %7493 = vmatprep.subr.mxu0 0.0
        %7494 = vmatpush1.msra.mxu0 0.0
        %7495 = vmatprep.subr.mxu0 0.0
        %7496 = vmatpush1.msra.mxu0 0.0
        %7497 = vmatprep.subr.mxu0 0.0
        %7498 = vmatpush1.msra.mxu0 0.0
        %7499 = vmatprep.subr.mxu0 0.0
        %7500 = vmatpush1.msra.mxu0 0.0
        %7501 = vmatprep.subr.mxu0 0.0
        %7502 = vmatpush1.msra.mxu0 0.0
        %7503 = vmatprep.subr.mxu0 0.0
        %7504 = vmatpush1.msra.mxu0 0.0
        %7505 = vmatprep.subr.mxu0 0.0
        %7506 = vmatpush1.msra.mxu0 0.0
        %7507 = vmatprep.subr.mxu0 0.0
        %7508 = vmatpush1.msra.mxu0 0.0
        %7509 = vmatprep.subr.mxu0 0.0
        %7510 = vmatpush1.msra.mxu0 %v2916
        %7511 = vmatprep.subr.mxu0 0.0
        %7512 = vmatpush2.msra.mxu0 0.0
        %7513 = vmatprep.subr.mxu0 0.0
        %7514 = vmatpush2.msra.mxu0 0.0
        %7515 = vmatprep.subr.mxu0 0.0
        %7516 = vmatpush2.msra.mxu0 0.0
        %7517 = vmatprep.subr.mxu0 0.0
        %7518 = vmatpush2.msra.mxu0 0.0
        %7519 = vmatprep.subr.mxu0 0.0
        %7520 = vmatpush2.msra.mxu0 0.0
        %7521 = vmatprep.subr.mxu0 0.0
        %7522 = vmatpush2.msra.mxu0 0.0
        %7523 = vmatprep.subr.mxu0 0.0
        %7524 = vmatpush2.msra.mxu0 0.0
        %7525 = vmatprep.subr.mxu0 0.0
        %7526 = vmatpush2.msra.mxu0 0.0
        %7527 = vmatprep.subr.mxu0 0.0
        %7528 = vmatpush2.msra.mxu0 0.0
        %7529 = vmatprep.subr.mxu0 0.0
        %7530 = vmatpush2.msra.mxu0 0.0
        %7531 = vmatprep.subr.mxu0 0.0
        %7532 = vmatpush2.msra.mxu0 0.0
        %7533 = vmatprep.subr.mxu0 0.0
        %7534 = vmatpush2.msra.mxu0 0.0
        %7535 = vmatprep.subr.mxu0 0.0
        %7536 = vmatpush2.msra.mxu0 0.0
        %7537 = vmatprep.subr.mxu0 0.0
        %7538 = vmatpush2.msra.mxu0 0.0
        %7539 = vmatprep.subr.mxu0 0.0
        %7540 = vmatpush2.msra.mxu0 0.0
        %7541 = vmatprep.subr.mxu0 0.0
        %7542 = vmatpush2.msra.mxu0 0.0
        %7543 = vmatprep.mubr.f32.mxu0 0.0
        %7544 = vmatmul.mubr.f32.gmra.mxu0 %v7477
        %v7545 = vpop.f32.mrf.mxu0
        %v7546 = vadd.f32 0.0, %v7545
        %v7547 = vpop.f32.mrf.mxu0
        %7548 = vdwg.mxu0
        %v7550 = vsel %vm5371, %v5717, 0
        %7552 = vmatprep.subr.mxu0 0.0
        %7553 = vmatpush1.msra.mxu0 0.0
        %7554 = vmatprep.subr.mxu0 0.0
        %7555 = vmatpush1.msra.mxu0 0.0
        %7556 = vmatprep.subr.mxu0 0.0
        %7557 = vmatpush1.msra.mxu0 0.0
        %7558 = vmatprep.subr.mxu0 0.0
        %7559 = vmatpush1.msra.mxu0 0.0
        %7560 = vmatprep.subr.mxu0 0.0
        %7561 = vmatpush1.msra.mxu0 0.0
        %7562 = vmatprep.subr.mxu0 0.0
        %7563 = vmatpush1.msra.mxu0 0.0
        %7564 = vmatprep.subr.mxu0 0.0
        %7565 = vmatpush1.msra.mxu0 0.0
        %7566 = vmatprep.subr.mxu0 0.0
        %7567 = vmatpush1.msra.mxu0 0.0
        %7568 = vmatprep.subr.mxu0 0.0
        %7569 = vmatpush1.msra.mxu0 0.0
        %7570 = vmatprep.subr.mxu0 0.0
        %7571 = vmatpush1.msra.mxu0 0.0
        %7572 = vmatprep.subr.mxu0 0.0
        %7573 = vmatpush1.msra.mxu0 0.0
        %7574 = vmatprep.subr.mxu0 0.0
        %7575 = vmatpush1.msra.mxu0 0.0
        %7576 = vmatprep.subr.mxu0 0.0
        %7577 = vmatpush1.msra.mxu0 0.0
        %7578 = vmatprep.subr.mxu0 0.0
        %7579 = vmatpush1.msra.mxu0 0.0
        %7580 = vmatprep.subr.mxu0 0.0
        %7581 = vmatpush1.msra.mxu0 0.0
        %7582 = vmatprep.subr.mxu0 0.0
        %7583 = vmatpush1.msra.mxu0 %v2918
        %7584 = vmatprep.subr.mxu0 0.0
        %7585 = vmatpush2.msra.mxu0 0.0
        %7586 = vmatprep.subr.mxu0 0.0
        %7587 = vmatpush2.msra.mxu0 0.0
        %7588 = vmatprep.subr.mxu0 0.0
        %7589 = vmatpush2.msra.mxu0 0.0
        %7590 = vmatprep.subr.mxu0 0.0
        %7591 = vmatpush2.msra.mxu0 0.0
        %7592 = vmatprep.subr.mxu0 0.0
        %7593 = vmatpush2.msra.mxu0 0.0
        %7594 = vmatprep.subr.mxu0 0.0
        %7595 = vmatpush2.msra.mxu0 0.0
        %7596 = vmatprep.subr.mxu0 0.0
        %7597 = vmatpush2.msra.mxu0 0.0
        %7598 = vmatprep.subr.mxu0 0.0
        %7599 = vmatpush2.msra.mxu0 0.0
        %7600 = vmatprep.subr.mxu0 0.0
        %7601 = vmatpush2.msra.mxu0 0.0
        %7602 = vmatprep.subr.mxu0 0.0
        %7603 = vmatpush2.msra.mxu0 0.0
        %7604 = vmatprep.subr.mxu0 0.0
        %7605 = vmatpush2.msra.mxu0 0.0
        %7606 = vmatprep.subr.mxu0 0.0
        %7607 = vmatpush2.msra.mxu0 0.0
        %7608 = vmatprep.subr.mxu0 0.0
        %7609 = vmatpush2.msra.mxu0 0.0
        %7610 = vmatprep.subr.mxu0 0.0
        %7611 = vmatpush2.msra.mxu0 0.0
        %7612 = vmatprep.subr.mxu0 0.0
        %7613 = vmatpush2.msra.mxu0 0.0
        %7614 = vmatprep.subr.mxu0 0.0
        %7615 = vmatpush2.msra.mxu0 0.0
        %7616 = vmatprep.mubr.f32.mxu0 0.0
        %7617 = vmatmul.mubr.f32.gmra.mxu0 %v7550
        %v7618 = vpop.f32.mrf.mxu0
        %v7619 = vadd.f32 0.0, %v7618
        %v7620 = vpop.f32.mrf.mxu0
        %7621 = vdwg.mxu0
        %v7623 = vsel %vm5371, %v5718, 0
        %7625 = vmatprep.subr.mxu0 0.0
        %7626 = vmatpush1.msra.mxu0 0.0
        %7627 = vmatprep.subr.mxu0 0.0
        %7628 = vmatpush1.msra.mxu0 0.0
        %7629 = vmatprep.subr.mxu0 0.0
        %7630 = vmatpush1.msra.mxu0 0.0
        %7631 = vmatprep.subr.mxu0 0.0
        %7632 = vmatpush1.msra.mxu0 0.0
        %7633 = vmatprep.subr.mxu0 0.0
        %7634 = vmatpush1.msra.mxu0 0.0
        %7635 = vmatprep.subr.mxu0 0.0
        %7636 = vmatpush1.msra.mxu0 0.0
        %7637 = vmatprep.subr.mxu0 0.0
        %7638 = vmatpush1.msra.mxu0 0.0
        %7639 = vmatprep.subr.mxu0 0.0
        %7640 = vmatpush1.msra.mxu0 0.0
        %7641 = vmatprep.subr.mxu0 0.0
        %7642 = vmatpush1.msra.mxu0 0.0
        %7643 = vmatprep.subr.mxu0 0.0
        %7644 = vmatpush1.msra.mxu0 0.0
        %7645 = vmatprep.subr.mxu0 0.0
        %7646 = vmatpush1.msra.mxu0 0.0
        %7647 = vmatprep.subr.mxu0 0.0
        %7648 = vmatpush1.msra.mxu0 0.0
        %7649 = vmatprep.subr.mxu0 0.0
        %7650 = vmatpush1.msra.mxu0 0.0
        %7651 = vmatprep.subr.mxu0 0.0
        %7652 = vmatpush1.msra.mxu0 0.0
        %7653 = vmatprep.subr.mxu0 0.0
        %7654 = vmatpush1.msra.mxu0 0.0
        %7655 = vmatprep.subr.mxu0 0.0
        %7656 = vmatpush1.msra.mxu0 %v2920
        %7657 = vmatprep.subr.mxu0 0.0
        %7658 = vmatpush2.msra.mxu0 0.0
        %7659 = vmatprep.subr.mxu0 0.0
        %7660 = vmatpush2.msra.mxu0 0.0
        %7661 = vmatprep.subr.mxu0 0.0
        %7662 = vmatpush2.msra.mxu0 0.0
        %7663 = vmatprep.subr.mxu0 0.0
        %7664 = vmatpush2.msra.mxu0 0.0
        %7665 = vmatprep.subr.mxu0 0.0
        %7666 = vmatpush2.msra.mxu0 0.0
        %7667 = vmatprep.subr.mxu0 0.0
        %7668 = vmatpush2.msra.mxu0 0.0
        %7669 = vmatprep.subr.mxu0 0.0
        %7670 = vmatpush2.msra.mxu0 0.0
        %7671 = vmatprep.subr.mxu0 0.0
        %7672 = vmatpush2.msra.mxu0 0.0
        %7673 = vmatprep.subr.mxu0 0.0
        %7674 = vmatpush2.msra.mxu0 0.0
        %7675 = vmatprep.subr.mxu0 0.0
        %7676 = vmatpush2.msra.mxu0 0.0
        %7677 = vmatprep.subr.mxu0 0.0
        %7678 = vmatpush2.msra.mxu0 0.0
        %7679 = vmatprep.subr.mxu0 0.0
        %7680 = vmatpush2.msra.mxu0 0.0
        %7681 = vmatprep.subr.mxu0 0.0
        %7682 = vmatpush2.msra.mxu0 0.0
        %7683 = vmatprep.subr.mxu0 0.0
        %7684 = vmatpush2.msra.mxu0 0.0
        %7685 = vmatprep.subr.mxu0 0.0
        %7686 = vmatpush2.msra.mxu0 0.0
        %7687 = vmatprep.subr.mxu0 0.0
        %7688 = vmatpush2.msra.mxu0 0.0
        %7689 = vmatprep.mubr.f32.mxu0 0.0
        %7690 = vmatmul.mubr.f32.gmra.mxu0 %v7623
        %v7691 = vpop.f32.mrf.mxu0
        %v7692 = vadd.f32 0.0, %v7691
        %v7693 = vpop.f32.mrf.mxu0
        %7694 = vdwg.mxu0
        %v7696 = vsel %vm5371, %v5719, 0
        %7698 = vmatprep.subr.mxu0 0.0
        %7699 = vmatpush1.msra.mxu0 0.0
        %7700 = vmatprep.subr.mxu0 0.0
        %7701 = vmatpush1.msra.mxu0 0.0
        %7702 = vmatprep.subr.mxu0 0.0
        %7703 = vmatpush1.msra.mxu0 0.0
        %7704 = vmatprep.subr.mxu0 0.0
        %7705 = vmatpush1.msra.mxu0 0.0
        %7706 = vmatprep.subr.mxu0 0.0
        %7707 = vmatpush1.msra.mxu0 0.0
        %7708 = vmatprep.subr.mxu0 0.0
        %7709 = vmatpush1.msra.mxu0 0.0
        %7710 = vmatprep.subr.mxu0 0.0
        %7711 = vmatpush1.msra.mxu0 0.0
        %7712 = vmatprep.subr.mxu0 0.0
        %7713 = vmatpush1.msra.mxu0 0.0
        %7714 = vmatprep.subr.mxu0 0.0
        %7715 = vmatpush1.msra.mxu0 0.0
        %7716 = vmatprep.subr.mxu0 0.0
        %7717 = vmatpush1.msra.mxu0 0.0
        %7718 = vmatprep.subr.mxu0 0.0
        %7719 = vmatpush1.msra.mxu0 0.0
        %7720 = vmatprep.subr.mxu0 0.0
        %7721 = vmatpush1.msra.mxu0 0.0
        %7722 = vmatprep.subr.mxu0 0.0
        %7723 = vmatpush1.msra.mxu0 0.0
        %7724 = vmatprep.subr.mxu0 0.0
        %7725 = vmatpush1.msra.mxu0 0.0
        %7726 = vmatprep.subr.mxu0 0.0
        %7727 = vmatpush1.msra.mxu0 0.0
        %7728 = vmatprep.subr.mxu0 0.0
        %7729 = vmatpush1.msra.mxu0 %v2922
        %7730 = vmatprep.subr.mxu0 0.0
        %7731 = vmatpush2.msra.mxu0 0.0
        %7732 = vmatprep.subr.mxu0 0.0
        %7733 = vmatpush2.msra.mxu0 0.0
        %7734 = vmatprep.subr.mxu0 0.0
        %7735 = vmatpush2.msra.mxu0 0.0
        %7736 = vmatprep.subr.mxu0 0.0
        %7737 = vmatpush2.msra.mxu0 0.0
        %7738 = vmatprep.subr.mxu0 0.0
        %7739 = vmatpush2.msra.mxu0 0.0
        %7740 = vmatprep.subr.mxu0 0.0
        %7741 = vmatpush2.msra.mxu0 0.0
        %7742 = vmatprep.subr.mxu0 0.0
        %7743 = vmatpush2.msra.mxu0 0.0
        %7744 = vmatprep.subr.mxu0 0.0
        %7745 = vmatpush2.msra.mxu0 0.0
        %7746 = vmatprep.subr.mxu0 0.0
        %7747 = vmatpush2.msra.mxu0 0.0
        %7748 = vmatprep.subr.mxu0 0.0
        %7749 = vmatpush2.msra.mxu0 0.0
        %7750 = vmatprep.subr.mxu0 0.0
        %7751 = vmatpush2.msra.mxu0 0.0
        %7752 = vmatprep.subr.mxu0 0.0
        %7753 = vmatpush2.msra.mxu0 0.0
        %7754 = vmatprep.subr.mxu0 0.0
        %7755 = vmatpush2.msra.mxu0 0.0
        %7756 = vmatprep.subr.mxu0 0.0
        %7757 = vmatpush2.msra.mxu0 0.0
        %7758 = vmatprep.subr.mxu0 0.0
        %7759 = vmatpush2.msra.mxu0 0.0
        %7760 = vmatprep.subr.mxu0 0.0
        %7761 = vmatpush2.msra.mxu0 0.0
        %7762 = vmatprep.mubr.f32.mxu0 0.0
        %7763 = vmatmul.mubr.f32.gmra.mxu0 %v7696
        %v7764 = vpop.f32.mrf.mxu0
        %v7765 = vadd.f32 0.0, %v7764
        %v7766 = vpop.f32.mrf.mxu0
        %7767 = vdwg.mxu0
        %v7769 = vsel %vm5371, %v5720, 0
        %7771 = vmatprep.subr.mxu0 0.0
        %7772 = vmatpush1.msra.mxu0 0.0
        %7773 = vmatprep.subr.mxu0 0.0
        %7774 = vmatpush1.msra.mxu0 0.0
        %7775 = vmatprep.subr.mxu0 0.0
        %7776 = vmatpush1.msra.mxu0 0.0
        %7777 = vmatprep.subr.mxu0 0.0
        %7778 = vmatpush1.msra.mxu0 0.0
        %7779 = vmatprep.subr.mxu0 0.0
        %7780 = vmatpush1.msra.mxu0 0.0
        %7781 = vmatprep.subr.mxu0 0.0
        %7782 = vmatpush1.msra.mxu0 0.0
        %7783 = vmatprep.subr.mxu0 0.0
        %7784 = vmatpush1.msra.mxu0 0.0
        %7785 = vmatprep.subr.mxu0 0.0
        %7786 = vmatpush1.msra.mxu0 0.0
        %7787 = vmatprep.subr.mxu0 0.0
        %7788 = vmatpush1.msra.mxu0 0.0
        %7789 = vmatprep.subr.mxu0 0.0
        %7790 = vmatpush1.msra.mxu0 0.0
        %7791 = vmatprep.subr.mxu0 0.0
        %7792 = vmatpush1.msra.mxu0 0.0
        %7793 = vmatprep.subr.mxu0 0.0
        %7794 = vmatpush1.msra.mxu0 0.0
        %7795 = vmatprep.subr.mxu0 0.0
        %7796 = vmatpush1.msra.mxu0 0.0
        %7797 = vmatprep.subr.mxu0 0.0
        %7798 = vmatpush1.msra.mxu0 0.0
        %7799 = vmatprep.subr.mxu0 0.0
        %7800 = vmatpush1.msra.mxu0 0.0
        %7801 = vmatprep.subr.mxu0 0.0
        %7802 = vmatpush1.msra.mxu0 %v2924
        %7803 = vmatprep.subr.mxu0 0.0
        %7804 = vmatpush2.msra.mxu0 0.0
        %7805 = vmatprep.subr.mxu0 0.0
        %7806 = vmatpush2.msra.mxu0 0.0
        %7807 = vmatprep.subr.mxu0 0.0
        %7808 = vmatpush2.msra.mxu0 0.0
        %7809 = vmatprep.subr.mxu0 0.0
        %7810 = vmatpush2.msra.mxu0 0.0
        %7811 = vmatprep.subr.mxu0 0.0
        %7812 = vmatpush2.msra.mxu0 0.0
        %7813 = vmatprep.subr.mxu0 0.0
        %7814 = vmatpush2.msra.mxu0 0.0
        %7815 = vmatprep.subr.mxu0 0.0
        %7816 = vmatpush2.msra.mxu0 0.0
        %7817 = vmatprep.subr.mxu0 0.0
        %7818 = vmatpush2.msra.mxu0 0.0
        %7819 = vmatprep.subr.mxu0 0.0
        %7820 = vmatpush2.msra.mxu0 0.0
        %7821 = vmatprep.subr.mxu0 0.0
        %7822 = vmatpush2.msra.mxu0 0.0
        %7823 = vmatprep.subr.mxu0 0.0
        %7824 = vmatpush2.msra.mxu0 0.0
        %7825 = vmatprep.subr.mxu0 0.0
        %7826 = vmatpush2.msra.mxu0 0.0
        %7827 = vmatprep.subr.mxu0 0.0
        %7828 = vmatpush2.msra.mxu0 0.0
        %7829 = vmatprep.subr.mxu0 0.0
        %7830 = vmatpush2.msra.mxu0 0.0
        %7831 = vmatprep.subr.mxu0 0.0
        %7832 = vmatpush2.msra.mxu0 0.0
        %7833 = vmatprep.subr.mxu0 0.0
        %7834 = vmatpush2.msra.mxu0 0.0
        %7835 = vmatprep.mubr.f32.mxu0 0.0
        %7836 = vmatmul.mubr.f32.gmra.mxu0 %v7769
        %v7837 = vpop.f32.mrf.mxu0
        %v7838 = vadd.f32 0.0, %v7837
        %v7839 = vpop.f32.mrf.mxu0
        %7840 = vdwg.mxu0
        %v7842 = vsel %vm5371, %v5721, 0
        %7844 = vmatprep.subr.mxu0 0.0
        %7845 = vmatpush1.msra.mxu0 0.0
        %7846 = vmatprep.subr.mxu0 0.0
        %7847 = vmatpush1.msra.mxu0 0.0
        %7848 = vmatprep.subr.mxu0 0.0
        %7849 = vmatpush1.msra.mxu0 0.0
        %7850 = vmatprep.subr.mxu0 0.0
        %7851 = vmatpush1.msra.mxu0 0.0
        %7852 = vmatprep.subr.mxu0 0.0
        %7853 = vmatpush1.msra.mxu0 0.0
        %7854 = vmatprep.subr.mxu0 0.0
        %7855 = vmatpush1.msra.mxu0 0.0
        %7856 = vmatprep.subr.mxu0 0.0
        %7857 = vmatpush1.msra.mxu0 0.0
        %7858 = vmatprep.subr.mxu0 0.0
        %7859 = vmatpush1.msra.mxu0 0.0
        %7860 = vmatprep.subr.mxu0 0.0
        %7861 = vmatpush1.msra.mxu0 0.0
        %7862 = vmatprep.subr.mxu0 0.0
        %7863 = vmatpush1.msra.mxu0 0.0
        %7864 = vmatprep.subr.mxu0 0.0
        %7865 = vmatpush1.msra.mxu0 0.0
        %7866 = vmatprep.subr.mxu0 0.0
        %7867 = vmatpush1.msra.mxu0 0.0
        %7868 = vmatprep.subr.mxu0 0.0
        %7869 = vmatpush1.msra.mxu0 0.0
        %7870 = vmatprep.subr.mxu0 0.0
        %7871 = vmatpush1.msra.mxu0 0.0
        %7872 = vmatprep.subr.mxu0 0.0
        %7873 = vmatpush1.msra.mxu0 0.0
        %7874 = vmatprep.subr.mxu0 0.0
        %7875 = vmatpush1.msra.mxu0 %v2926
        %7876 = vmatprep.subr.mxu0 0.0
        %7877 = vmatpush2.msra.mxu0 0.0
        %7878 = vmatprep.subr.mxu0 0.0
        %7879 = vmatpush2.msra.mxu0 0.0
        %7880 = vmatprep.subr.mxu0 0.0
        %7881 = vmatpush2.msra.mxu0 0.0
        %7882 = vmatprep.subr.mxu0 0.0
        %7883 = vmatpush2.msra.mxu0 0.0
        %7884 = vmatprep.subr.mxu0 0.0
        %7885 = vmatpush2.msra.mxu0 0.0
        %7886 = vmatprep.subr.mxu0 0.0
        %7887 = vmatpush2.msra.mxu0 0.0
        %7888 = vmatprep.subr.mxu0 0.0
        %7889 = vmatpush2.msra.mxu0 0.0
        %7890 = vmatprep.subr.mxu0 0.0
        %7891 = vmatpush2.msra.mxu0 0.0
        %7892 = vmatprep.subr.mxu0 0.0
        %7893 = vmatpush2.msra.mxu0 0.0
        %7894 = vmatprep.subr.mxu0 0.0
        %7895 = vmatpush2.msra.mxu0 0.0
        %7896 = vmatprep.subr.mxu0 0.0
        %7897 = vmatpush2.msra.mxu0 0.0
        %7898 = vmatprep.subr.mxu0 0.0
        %7899 = vmatpush2.msra.mxu0 0.0
        %7900 = vmatprep.subr.mxu0 0.0
        %7901 = vmatpush2.msra.mxu0 0.0
        %7902 = vmatprep.subr.mxu0 0.0
        %7903 = vmatpush2.msra.mxu0 0.0
        %7904 = vmatprep.subr.mxu0 0.0
        %7905 = vmatpush2.msra.mxu0 0.0
        %7906 = vmatprep.subr.mxu0 0.0
        %7907 = vmatpush2.msra.mxu0 0.0
        %7908 = vmatprep.mubr.f32.mxu0 0.0
        %7909 = vmatmul.mubr.f32.gmra.mxu0 %v7842
        %v7910 = vpop.f32.mrf.mxu0
        %v7911 = vadd.f32 0.0, %v7910
        %v7912 = vpop.f32.mrf.mxu0
        %7913 = vdwg.mxu0
        %v7915 = vsel %vm5371, %v5722, 0
        %7917 = vmatprep.subr.mxu0 0.0
        %7918 = vmatpush1.msra.mxu0 0.0
        %7919 = vmatprep.subr.mxu0 0.0
        %7920 = vmatpush1.msra.mxu0 0.0
        %7921 = vmatprep.subr.mxu0 0.0
        %7922 = vmatpush1.msra.mxu0 0.0
        %7923 = vmatprep.subr.mxu0 0.0
        %7924 = vmatpush1.msra.mxu0 0.0
        %7925 = vmatprep.subr.mxu0 0.0
        %7926 = vmatpush1.msra.mxu0 0.0
        %7927 = vmatprep.subr.mxu0 0.0
        %7928 = vmatpush1.msra.mxu0 0.0
        %7929 = vmatprep.subr.mxu0 0.0
        %7930 = vmatpush1.msra.mxu0 0.0
        %7931 = vmatprep.subr.mxu0 0.0
        %7932 = vmatpush1.msra.mxu0 0.0
        %7933 = vmatprep.subr.mxu0 0.0
        %7934 = vmatpush1.msra.mxu0 0.0
        %7935 = vmatprep.subr.mxu0 0.0
        %7936 = vmatpush1.msra.mxu0 0.0
        %7937 = vmatprep.subr.mxu0 0.0
        %7938 = vmatpush1.msra.mxu0 0.0
        %7939 = vmatprep.subr.mxu0 0.0
        %7940 = vmatpush1.msra.mxu0 0.0
        %7941 = vmatprep.subr.mxu0 0.0
        %7942 = vmatpush1.msra.mxu0 0.0
        %7943 = vmatprep.subr.mxu0 0.0
        %7944 = vmatpush1.msra.mxu0 0.0
        %7945 = vmatprep.subr.mxu0 0.0
        %7946 = vmatpush1.msra.mxu0 0.0
        %7947 = vmatprep.subr.mxu0 0.0
        %7948 = vmatpush1.msra.mxu0 %v2928
        %7949 = vmatprep.subr.mxu0 0.0
        %7950 = vmatpush2.msra.mxu0 0.0
        %7951 = vmatprep.subr.mxu0 0.0
        %7952 = vmatpush2.msra.mxu0 0.0
        %7953 = vmatprep.subr.mxu0 0.0
        %7954 = vmatpush2.msra.mxu0 0.0
        %7955 = vmatprep.subr.mxu0 0.0
        %7956 = vmatpush2.msra.mxu0 0.0
        %7957 = vmatprep.subr.mxu0 0.0
        %7958 = vmatpush2.msra.mxu0 0.0
        %7959 = vmatprep.subr.mxu0 0.0
        %7960 = vmatpush2.msra.mxu0 0.0
        %7961 = vmatprep.subr.mxu0 0.0
        %7962 = vmatpush2.msra.mxu0 0.0
        %7963 = vmatprep.subr.mxu0 0.0
        %7964 = vmatpush2.msra.mxu0 0.0
        %7965 = vmatprep.subr.mxu0 0.0
        %7966 = vmatpush2.msra.mxu0 0.0
        %7967 = vmatprep.subr.mxu0 0.0
        %7968 = vmatpush2.msra.mxu0 0.0
        %7969 = vmatprep.subr.mxu0 0.0
        %7970 = vmatpush2.msra.mxu0 0.0
        %7971 = vmatprep.subr.mxu0 0.0
        %7972 = vmatpush2.msra.mxu0 0.0
        %7973 = vmatprep.subr.mxu0 0.0
        %7974 = vmatpush2.msra.mxu0 0.0
        %7975 = vmatprep.subr.mxu0 0.0
        %7976 = vmatpush2.msra.mxu0 0.0
        %7977 = vmatprep.subr.mxu0 0.0
        %7978 = vmatpush2.msra.mxu0 0.0
        %7979 = vmatprep.subr.mxu0 0.0
        %7980 = vmatpush2.msra.mxu0 0.0
        %7981 = vmatprep.mubr.f32.mxu0 0.0
        %7982 = vmatmul.mubr.f32.gmra.mxu0 %v7915
        %v7983 = vpop.f32.mrf.mxu0
        %v7984 = vadd.f32 0.0, %v7983
        %v7985 = vpop.f32.mrf.mxu0
        %7986 = vdwg.mxu0
        %v7988 = vsel %vm5371, %v5723, 0
        %7990 = vmatprep.subr.mxu0 0.0
        %7991 = vmatpush1.msra.mxu0 0.0
        %7992 = vmatprep.subr.mxu0 0.0
        %7993 = vmatpush1.msra.mxu0 0.0
        %7994 = vmatprep.subr.mxu0 0.0
        %7995 = vmatpush1.msra.mxu0 0.0
        %7996 = vmatprep.subr.mxu0 0.0
        %7997 = vmatpush1.msra.mxu0 0.0
        %7998 = vmatprep.subr.mxu0 0.0
        %7999 = vmatpush1.msra.mxu0 0.0
        %8000 = vmatprep.subr.mxu0 0.0
        %8001 = vmatpush1.msra.mxu0 0.0
        %8002 = vmatprep.subr.mxu0 0.0
        %8003 = vmatpush1.msra.mxu0 0.0
        %8004 = vmatprep.subr.mxu0 0.0
        %8005 = vmatpush1.msra.mxu0 0.0
        %8006 = vmatprep.subr.mxu0 0.0
        %8007 = vmatpush1.msra.mxu0 0.0
        %8008 = vmatprep.subr.mxu0 0.0
        %8009 = vmatpush1.msra.mxu0 0.0
        %8010 = vmatprep.subr.mxu0 0.0
        %8011 = vmatpush1.msra.mxu0 0.0
        %8012 = vmatprep.subr.mxu0 0.0
        %8013 = vmatpush1.msra.mxu0 0.0
        %8014 = vmatprep.subr.mxu0 0.0
        %8015 = vmatpush1.msra.mxu0 0.0
        %8016 = vmatprep.subr.mxu0 0.0
        %8017 = vmatpush1.msra.mxu0 0.0
        %8018 = vmatprep.subr.mxu0 0.0
        %8019 = vmatpush1.msra.mxu0 0.0
        %8020 = vmatprep.subr.mxu0 0.0
        %8021 = vmatpush1.msra.mxu0 %v2930
        %8022 = vmatprep.subr.mxu0 0.0
        %8023 = vmatpush2.msra.mxu0 0.0
        %8024 = vmatprep.subr.mxu0 0.0
        %8025 = vmatpush2.msra.mxu0 0.0
        %8026 = vmatprep.subr.mxu0 0.0
        %8027 = vmatpush2.msra.mxu0 0.0
        %8028 = vmatprep.subr.mxu0 0.0
        %8029 = vmatpush2.msra.mxu0 0.0
        %8030 = vmatprep.subr.mxu0 0.0
        %8031 = vmatpush2.msra.mxu0 0.0
        %8032 = vmatprep.subr.mxu0 0.0
        %8033 = vmatpush2.msra.mxu0 0.0
        %8034 = vmatprep.subr.mxu0 0.0
        %8035 = vmatpush2.msra.mxu0 0.0
        %8036 = vmatprep.subr.mxu0 0.0
        %8037 = vmatpush2.msra.mxu0 0.0
        %8038 = vmatprep.subr.mxu0 0.0
        %8039 = vmatpush2.msra.mxu0 0.0
        %8040 = vmatprep.subr.mxu0 0.0
        %8041 = vmatpush2.msra.mxu0 0.0
        %8042 = vmatprep.subr.mxu0 0.0
        %8043 = vmatpush2.msra.mxu0 0.0
        %8044 = vmatprep.subr.mxu0 0.0
        %8045 = vmatpush2.msra.mxu0 0.0
        %8046 = vmatprep.subr.mxu0 0.0
        %8047 = vmatpush2.msra.mxu0 0.0
        %8048 = vmatprep.subr.mxu0 0.0
        %8049 = vmatpush2.msra.mxu0 0.0
        %8050 = vmatprep.subr.mxu0 0.0
        %8051 = vmatpush2.msra.mxu0 0.0
        %8052 = vmatprep.subr.mxu0 0.0
        %8053 = vmatpush2.msra.mxu0 0.0
        %8054 = vmatprep.mubr.f32.mxu0 0.0
        %8055 = vmatmul.mubr.f32.gmra.mxu0 %v7988
        %v8056 = vpop.f32.mrf.mxu0
        %v8057 = vadd.f32 0.0, %v8056
        %v8058 = vpop.f32.mrf.mxu0
        %8059 = vdwg.mxu0
        %8068 = vrot.lane.b32.xlu0 %v6378, 16
        %v8069 = vpop.permute.xlu0 %8068
        %8070 = vrot.lane.b32.xlu0 %v6451, 16
        %v8071 = vpop.permute.xlu0 %8070
        %8072 = vrot.lane.b32.xlu0 %v6524, 16
        %v8073 = vpop.permute.xlu0 %8072
        %8074 = vrot.lane.b32.xlu0 %v6597, 16
        %v8075 = vpop.permute.xlu0 %8074
        %8076 = vrot.lane.b32.xlu0 %v6670, 16
        %v8077 = vpop.permute.xlu0 %8076
        %8078 = vrot.lane.b32.xlu0 %v6743, 16
        %v8079 = vpop.permute.xlu0 %8078
        %8080 = vrot.lane.b32.xlu0 %v6816, 16
        %v8081 = vpop.permute.xlu0 %8080
        %8082 = vrot.lane.b32.xlu0 %v6889, 16
        %v8083 = vpop.permute.xlu0 %8082
        %8100 = vrot.lane.b32.xlu0 %v6962, 32
        %v8101 = vpop.permute.xlu0 %8100
        %8102 = vrot.lane.b32.xlu0 %v7035, 32
        %v8103 = vpop.permute.xlu0 %8102
        %8104 = vrot.lane.b32.xlu0 %v7108, 32
        %v8105 = vpop.permute.xlu0 %8104
        %8106 = vrot.lane.b32.xlu0 %v7181, 32
        %v8107 = vpop.permute.xlu0 %8106
        %8108 = vrot.lane.b32.xlu0 %v7254, 32
        %v8109 = vpop.permute.xlu0 %8108
        %8110 = vrot.lane.b32.xlu0 %v7327, 32
        %v8111 = vpop.permute.xlu0 %8110
        %8112 = vrot.lane.b32.xlu0 %v7400, 32
        %v8113 = vpop.permute.xlu0 %8112
        %8114 = vrot.lane.b32.xlu0 %v7473, 32
        %v8115 = vpop.permute.xlu0 %8114
        %8132 = vrot.lane.b32.xlu0 %v7546, 48
        %v8133 = vpop.permute.xlu0 %8132
        %8134 = vrot.lane.b32.xlu0 %v7619, 48
        %v8135 = vpop.permute.xlu0 %8134
        %8136 = vrot.lane.b32.xlu0 %v7692, 48
        %v8137 = vpop.permute.xlu0 %8136
        %8138 = vrot.lane.b32.xlu0 %v7765, 48
        %v8139 = vpop.permute.xlu0 %8138
        %8140 = vrot.lane.b32.xlu0 %v7838, 48
        %v8141 = vpop.permute.xlu0 %8140
        %8142 = vrot.lane.b32.xlu0 %v7911, 48
        %v8143 = vpop.permute.xlu0 %8142
        %8144 = vrot.lane.b32.xlu0 %v7984, 48
        %v8145 = vpop.permute.xlu0 %8144
        %8146 = vrot.lane.b32.xlu0 %v8057, 48
        %v8147 = vpop.permute.xlu0 %8146
        %v8156 = vsel %vm743, %v5794, %v8069
        %v8157 = vsel %vm743, %v5867, %v8071
        %v8158 = vsel %vm743, %v5940, %v8073
        %v8159 = vsel %vm743, %v6013, %v8075
        %v8160 = vsel %vm743, %v6086, %v8077
        %v8161 = vsel %vm743, %v6159, %v8079
        %v8162 = vsel %vm743, %v6232, %v8081
        %v8163 = vsel %vm743, %v6305, %v8083
        %vm8164 = vcmask 261120
        %v8165 = vsel %vm8164, %v8156, %v8101
        %v8166 = vsel %vm8164, %v8157, %v8103
        %v8167 = vsel %vm8164, %v8158, %v8105
        %v8168 = vsel %vm8164, %v8159, %v8107
        %v8169 = vsel %vm8164, %v8160, %v8109
        %v8170 = vsel %vm8164, %v8161, %v8111
        %v8171 = vsel %vm8164, %v8162, %v8113
        %v8172 = vsel %vm8164, %v8163, %v8115
        %vm8173 = vcmask 392192
        %v8174 = vsel %vm8173, %v8165, %v8133
        %v8175 = vsel %vm8173, %v8166, %v8135
        %v8176 = vsel %vm8173, %v8167, %v8137
        %v8177 = vsel %vm8173, %v8168, %v8139
        %v8178 = vsel %vm8173, %v8169, %v8141
        %v8179 = vsel %vm8173, %v8170, %v8143
        %v8180 = vsel %vm8173, %v8171, %v8145
        %v8181 = vsel %vm8173, %v8172, %v8147
        %v8182 = vpack.c.bf16 %v8175, %v8174
        %v8183 = vpack.c.bf16 %v8177, %v8176
        %v8184 = vpack.c.bf16 %v8179, %v8178
        %v8185 = vpack.c.bf16 %v8181, %v8180
        %v8186 = vld [vmem:[%s7] sm:$0xf]
        %v8187 = vld [vmem:[%s7 + $0x4] sm:$0xf]
        %v8188 = vld [vmem:[%s7 + $0x8] sm:$0xf]
        %v8189 = vld [vmem:[%s7 + $0xc] sm:$0xf]
        %v8190 = vld [vmem:[%s7 + $0x10] sm:$0xf]
        %v8191 = vld [vmem:[%s7 + $0x14] sm:$0xf]
        %v8192 = vld [vmem:[%s7 + $0x18] sm:$0xf]
        %v8193 = vld [vmem:[%s7 + $0x1c] sm:$0xf]
        %v8194 = vld [vmem:[%s8] sm:$0x1]
        %v8196 = vlaneseq
        %v8197 = vshrl.u32 %v8196, 7
        %v8198 = vsub.s32 0, %v8197
        %v8199 = vrot.slane %v8194, %v8198
        %v8209 = vunpack.c.l.b16 %v8186
        %v8210 = vunpack.c.l.b16 %v8187
        %v8211 = vunpack.c.l.b16 %v8188
        %v8212 = vunpack.c.l.b16 %v8189
        %v8213 = vunpack.c.l.b16 %v8190
        %v8214 = vunpack.c.l.b16 %v8191
        %v8215 = vunpack.c.l.b16 %v8192
        %v8216 = vunpack.c.l.b16 %v8193
        %v8217 = vpack.c.b16 %v8210, %v8209
        %v8218 = vpack.c.b16 %v8212, %v8211
        %v8219 = vpack.c.b16 %v8214, %v8213
        %v8220 = vpack.c.b16 %v8216, %v8215
        %v8226 = vsel %vm958, %v8182, 0
        %v8229 = vsel %vm958, %v8183, 0
        %v8232 = vsel %vm958, %v8184, 0
        %v8235 = vsel %vm958, %v8185, 0
        %8237 = vmatprep.subr.bf16.mxu0 0
        %8238 = vmatpush1.bf16.msra.mxu0 0
        %8239 = vmatprep.subr.bf16.mxu0 0
        %8240 = vmatpush1.bf16.msra.mxu0 0
        %8241 = vmatprep.subr.bf16.mxu0 0
        %8242 = vmatpush1.bf16.msra.mxu0 0
        %8243 = vmatprep.subr.bf16.mxu0 0
        %8244 = vmatpush1.bf16.msra.mxu0 0
        %8245 = vmatprep.subr.bf16.mxu0 0
        %8246 = vmatpush1.bf16.msra.mxu0 %v8220
        %8247 = vmatprep.subr.bf16.mxu0 0
        %8248 = vmatpush1.bf16.msra.mxu0 %v8219
        %8249 = vmatprep.subr.bf16.mxu0 0
        %8250 = vmatpush1.bf16.msra.mxu0 %v8218
        %8251 = vmatprep.subr.bf16.mxu0 0
        %8252 = vmatpush1.bf16.msra.mxu0 %v8217
        %8253 = vmatprep.subr.bf16.mxu0 0
        %8254 = vmatpush2.bf16.msra.mxu0 0
        %8255 = vmatprep.subr.bf16.mxu0 0
        %8256 = vmatpush2.bf16.msra.mxu0 0
        %8257 = vmatprep.subr.bf16.mxu0 0
        %8258 = vmatpush2.bf16.msra.mxu0 0
        %8259 = vmatprep.subr.bf16.mxu0 0
        %8260 = vmatpush2.bf16.msra.mxu0 0
        %8261 = vmatprep.subr.bf16.mxu0 0
        %8262 = vmatpush2.bf16.msra.mxu0 0
        %8263 = vmatprep.subr.bf16.mxu0 0
        %8264 = vmatpush2.bf16.msra.mxu0 0
        %8265 = vmatprep.subr.bf16.mxu0 0
        %8266 = vmatpush2.bf16.msra.mxu0 0
        %8267 = vmatprep.subr.bf16.mxu0 0
        %8268 = vmatpush2.bf16.msra.mxu0 0
        %8269 = vmatprep.mubr.bf16.mxu0 0
        %8270 = vmatmul.mubr.bf16.gmra.mxu0 %v8226
        %v8271 = vpop.f32.mrf.mxu0
        %v8272 = vadd.f32 %v8199, %v8271
        %v8273 = vpop.f32.mrf.mxu0
        %v8274 = vpop.f32.mrf.mxu0
        %v8275 = vadd.f32 %v8199, %v8274
        %v8276 = vpop.f32.mrf.mxu0
        %8277 = vmatprep.mubr.bf16.mxu0 0
        %8278 = vmatmul.mubr.bf16.gmra.mxu0 %v8229
        %v8279 = vpop.f32.mrf.mxu0
        %v8280 = vadd.f32 %v8199, %v8279
        %v8281 = vpop.f32.mrf.mxu0
        %v8282 = vpop.f32.mrf.mxu0
        %v8283 = vadd.f32 %v8199, %v8282
        %v8284 = vpop.f32.mrf.mxu0
        %8285 = vmatprep.mubr.bf16.mxu0 0
        %8286 = vmatmul.mubr.bf16.gmra.mxu0 %v8232
        %v8287 = vpop.f32.mrf.mxu0
        %v8288 = vadd.f32 %v8199, %v8287
        %v8289 = vpop.f32.mrf.mxu0
        %v8290 = vpop.f32.mrf.mxu0
        %v8291 = vadd.f32 %v8199, %v8290
        %v8292 = vpop.f32.mrf.mxu0
        %8293 = vmatprep.mubr.bf16.mxu0 0
        %8294 = vmatmul.mubr.bf16.gmra.mxu0 %v8235
        %v8295 = vpop.f32.mrf.mxu0
        %v8296 = vadd.f32 %v8199, %v8295
        %v8297 = vpop.f32.mrf.mxu0
        %v8298 = vpop.f32.mrf.mxu0
        %v8299 = vadd.f32 %v8199, %v8298
        %v8300 = vpop.f32.mrf.mxu0
        %8301 = vdwg.mxu0
        %v8302 = vld [vmem:[%s9] sm:$0xff]
        %v8303 = vld [vmem:[%s9 + $0x8] sm:$0xff]
        %v8304 = vld [vmem:[%s9 + $0x10] sm:$0xff]
        %v8305 = vld [vmem:[%s9 + $0x18] sm:$0xff]
        %v8306 = vld [vmem:[%s9 + $0x20] sm:$0xff]
        %v8307 = vld [vmem:[%s9 + $0x28] sm:$0xff]
        %v8308 = vld [vmem:[%s9 + $0x30] sm:$0xff]
        %v8309 = vld [vmem:[%s9 + $0x38] sm:$0xff]
        %v8310 = vld [vmem:[%s10] sm:$0xff]
        %v8311 = vld [vmem:[%s10 + $0x8] sm:$0xff]
        %v8312 = vld [vmem:[%s10 + $0x10] sm:$0xff]
        %v8313 = vld [vmem:[%s10 + $0x18] sm:$0xff]
        %v8314 = vld [vmem:[%s10 + $0x20] sm:$0xff]
        %v8315 = vld [vmem:[%s10 + $0x28] sm:$0xff]
        %v8316 = vld [vmem:[%s10 + $0x30] sm:$0xff]
        %v8317 = vld [vmem:[%s10 + $0x38] sm:$0xff]
        %v8318 = vld [vmem:[#allocation7] sm:$0x3]
        %v8319 = vpack.c.bf16 %v8275, %v8272
        %v8320 = vpack.c.bf16 %v8283, %v8280
        %v8321 = vpack.c.bf16 %v8291, %v8288
        %v8322 = vpack.c.bf16 %v8299, %v8296
        %v8324 = vlaneseq
        %v8325 = vshrl.u32 %v8324, 7
        %v8326 = vsub.s32 0, %v8325
        %v8327 = vrot.slane %v8318, %v8326
        %v8328 = vlaneseq
        %v8329 = vshrl.u32 %v8328, 7
        %v8330 = vsub.s32 1, %v8329
        %v8331 = vrot.slane %v8318, %v8330
        %v8342 = vunpack.c.l.b16 %v8302
        %v8343 = vunpack.c.h.b16 %v8302
        %v8344 = vunpack.c.l.b16 %v8303
        %v8345 = vunpack.c.h.b16 %v8303
        %v8346 = vunpack.c.l.b16 %v8304
        %v8347 = vunpack.c.h.b16 %v8304
        %v8348 = vunpack.c.l.b16 %v8305
        %v8349 = vunpack.c.h.b16 %v8305
        %v8350 = vunpack.c.l.b16 %v8306
        %v8351 = vunpack.c.h.b16 %v8306
        %v8352 = vunpack.c.l.b16 %v8307
        %v8353 = vunpack.c.h.b16 %v8307
        %v8354 = vunpack.c.l.b16 %v8308
        %v8355 = vunpack.c.h.b16 %v8308
        %v8356 = vunpack.c.l.b16 %v8309
        %v8357 = vunpack.c.h.b16 %v8309
        %v8358 = vpack.c.b16 %v8344, %v8342
        %v8359 = vpack.c.b16 %v8345, %v8343
        %v8360 = vpack.c.b16 %v8348, %v8346
        %v8361 = vpack.c.b16 %v8349, %v8347
        %v8362 = vpack.c.b16 %v8352, %v8350
        %v8363 = vpack.c.b16 %v8353, %v8351
        %v8364 = vpack.c.b16 %v8356, %v8354
        %v8365 = vpack.c.b16 %v8357, %v8355
        %v8375 = vsel %vm958, %v8319, 0
        %v8378 = vsel %vm958, %v8320, 0
        %v8381 = vsel %vm958, %v8321, 0
        %v8384 = vsel %vm958, %v8322, 0
        %8386 = vmatprep.subr.bf16.mxu0 0
        %8387 = vmatpush1.bf16.msra.mxu0 0
        %8388 = vmatprep.subr.bf16.mxu0 0
        %8389 = vmatpush1.bf16.msra.mxu0 0
        %8390 = vmatprep.subr.bf16.mxu0 0
        %8391 = vmatpush1.bf16.msra.mxu0 0
        %8392 = vmatprep.subr.bf16.mxu0 0
        %8393 = vmatpush1.bf16.msra.mxu0 0
        %8394 = vmatprep.subr.bf16.mxu0 %v8365
        %8395 = vmatpush1.bf16.msra.mxu0 %v8364
        %8396 = vmatprep.subr.bf16.mxu0 %v8363
        %8397 = vmatpush1.bf16.msra.mxu0 %v8362
        %8398 = vmatprep.subr.bf16.mxu0 %v8361
        %8399 = vmatpush1.bf16.msra.mxu0 %v8360
        %8400 = vmatprep.subr.bf16.mxu0 %v8359
        %8401 = vmatpush1.bf16.msra.mxu0 %v8358
        %8402 = vmatprep.subr.bf16.mxu0 0
        %8403 = vmatpush2.bf16.msra.mxu0 0
        %8404 = vmatprep.subr.bf16.mxu0 0
        %8405 = vmatpush2.bf16.msra.mxu0 0
        %8406 = vmatprep.subr.bf16.mxu0 0
        %8407 = vmatpush2.bf16.msra.mxu0 0
        %8408 = vmatprep.subr.bf16.mxu0 0
        %8409 = vmatpush2.bf16.msra.mxu0 0
        %8410 = vmatprep.subr.bf16.mxu0 0
        %8411 = vmatpush2.bf16.msra.mxu0 0
        %8412 = vmatprep.subr.bf16.mxu0 0
        %8413 = vmatpush2.bf16.msra.mxu0 0
        %8414 = vmatprep.subr.bf16.mxu0 0
        %8415 = vmatpush2.bf16.msra.mxu0 0
        %8416 = vmatprep.subr.bf16.mxu0 0
        %8417 = vmatpush2.bf16.msra.mxu0 0
        %8418 = vmatprep.mubr.bf16.mxu0 0
        %8419 = vmatmul.mubr.bf16.gmra.mxu0 %v8375
        %v8420 = vpop.f32.mrf.mxu0
        %v8421 = vadd.f32 %v8327, %v8420
        %v8422 = vpop.f32.mrf.mxu0
        %v8423 = vadd.f32 %v8331, %v8422
        %v8424 = vpop.f32.mrf.mxu0
        %v8425 = vadd.f32 %v8327, %v8424
        %v8426 = vpop.f32.mrf.mxu0
        %v8427 = vadd.f32 %v8331, %v8426
        %8428 = vmatprep.mubr.bf16.mxu0 0
        %8429 = vmatmul.mubr.bf16.gmra.mxu0 %v8378
        %v8430 = vpop.f32.mrf.mxu0
        %v8431 = vadd.f32 %v8327, %v8430
        %v8432 = vpop.f32.mrf.mxu0
        %v8433 = vadd.f32 %v8331, %v8432
        %v8434 = vpop.f32.mrf.mxu0
        %v8435 = vadd.f32 %v8327, %v8434
        %v8436 = vpop.f32.mrf.mxu0
        %v8437 = vadd.f32 %v8331, %v8436
        %8438 = vmatprep.mubr.bf16.mxu0 0
        %8439 = vmatmul.mubr.bf16.gmra.mxu0 %v8381
        %v8440 = vpop.f32.mrf.mxu0
        %v8441 = vadd.f32 %v8327, %v8440
        %v8442 = vpop.f32.mrf.mxu0
        %v8443 = vadd.f32 %v8331, %v8442
        %v8444 = vpop.f32.mrf.mxu0
        %v8445 = vadd.f32 %v8327, %v8444
        %v8446 = vpop.f32.mrf.mxu0
        %v8447 = vadd.f32 %v8331, %v8446
        %8448 = vmatprep.mubr.bf16.mxu0 0
        %8449 = vmatmul.mubr.bf16.gmra.mxu0 %v8384
        %v8450 = vpop.f32.mrf.mxu0
        %v8451 = vadd.f32 %v8327, %v8450
        %v8452 = vpop.f32.mrf.mxu0
        %v8453 = vadd.f32 %v8331, %v8452
        %v8454 = vpop.f32.mrf.mxu0
        %v8455 = vadd.f32 %v8327, %v8454
        %v8456 = vpop.f32.mrf.mxu0
        %v8457 = vadd.f32 %v8331, %v8456
        %8458 = vdwg.mxu0
        %v8475 = vrot.slane %v8425, 7
        %v8476 = vsel %vm850, %v8475, %v8421
        %v8477 = vrot.slane %v8431, 6
        %v8478 = vsel %vm853, %v8477, %v8476
        %v8479 = vrot.slane %v8435, 5
        %v8480 = vsel %vm856, %v8479, %v8478
        %v8481 = vrot.slane %v8441, 4
        %v8482 = vsel %vm859, %v8481, %v8480
        %v8483 = vrot.slane %v8445, 3
        %v8484 = vsel %vm862, %v8483, %v8482
        %v8485 = vrot.slane %v8451, 2
        %v8486 = vsel %vm865, %v8485, %v8484
        %v8487 = vrot.slane %v8455, 1
        %v8488 = vsel %vm868, %v8487, %v8486
        %v8489 = vrot.slane %v8427, 7
        %v8490 = vsel %vm850, %v8489, %v8423
        %v8491 = vrot.slane %v8433, 6
        %v8492 = vsel %vm853, %v8491, %v8490
        %v8493 = vrot.slane %v8437, 5
        %v8494 = vsel %vm856, %v8493, %v8492
        %v8495 = vrot.slane %v8443, 4
        %v8496 = vsel %vm859, %v8495, %v8494
        %v8497 = vrot.slane %v8447, 3
        %v8498 = vsel %vm862, %v8497, %v8496
        %v8499 = vrot.slane %v8453, 2
        %v8500 = vsel %vm865, %v8499, %v8498
        %v8501 = vrot.slane %v8457, 1
        %v8502 = vsel %vm868, %v8501, %v8500
        %v8505 = vrot.slane %v8421, 7
        %v8506 = vrot.slane %v8425, 6
        %v8507 = vsel %vm850, %v8506, %v8505
        %v8508 = vrot.slane %v8431, 5
        %v8509 = vsel %vm853, %v8508, %v8507
        %v8510 = vrot.slane %v8435, 4
        %v8511 = vsel %vm856, %v8510, %v8509
        %v8512 = vrot.slane %v8441, 3
        %v8513 = vsel %vm859, %v8512, %v8511
        %v8514 = vrot.slane %v8445, 2
        %v8515 = vsel %vm862, %v8514, %v8513
        %v8516 = vrot.slane %v8451, 1
        %v8517 = vsel %vm865, %v8516, %v8515
        %v8518 = vsel %vm868, %v8455, %v8517
        %v8519 = vrot.slane %v8423, 7
        %v8520 = vrot.slane %v8427, 6
        %v8521 = vsel %vm850, %v8520, %v8519
        %v8522 = vrot.slane %v8433, 5
        %v8523 = vsel %vm853, %v8522, %v8521
        %v8524 = vrot.slane %v8437, 4
        %v8525 = vsel %vm856, %v8524, %v8523
        %v8526 = vrot.slane %v8443, 3
        %v8527 = vsel %vm859, %v8526, %v8525
        %v8528 = vrot.slane %v8447, 2
        %v8529 = vsel %vm862, %v8528, %v8527
        %v8530 = vrot.slane %v8453, 1
        %v8531 = vsel %vm865, %v8530, %v8529
        %v8532 = vsel %vm868, %v8457, %v8531
        %v8535 = vsel %vm831, %v8488, %v8518
        %v8536 = vsel %vm832, %v8502, %v8532
        %v8545 = vunpack.c.l.b16 %v8310
        %v8546 = vunpack.c.h.b16 %v8310
        %v8547 = vunpack.c.l.b16 %v8311
        %v8548 = vunpack.c.h.b16 %v8311
        %v8549 = vunpack.c.l.b16 %v8312
        %v8550 = vunpack.c.h.b16 %v8312
        %v8551 = vunpack.c.l.b16 %v8313
        %v8552 = vunpack.c.h.b16 %v8313
        %v8553 = vunpack.c.l.b16 %v8314
        %v8554 = vunpack.c.h.b16 %v8314
        %v8555 = vunpack.c.l.b16 %v8315
        %v8556 = vunpack.c.h.b16 %v8315
        %v8557 = vunpack.c.l.b16 %v8316
        %v8558 = vunpack.c.h.b16 %v8316
        %v8559 = vunpack.c.l.b16 %v8317
        %v8560 = vunpack.c.h.b16 %v8317
        %v8561 = vpack.c.b16 %v8547, %v8545
        %v8562 = vpack.c.b16 %v8548, %v8546
        %v8563 = vpack.c.b16 %v8551, %v8549
        %v8564 = vpack.c.b16 %v8552, %v8550
        %v8565 = vpack.c.b16 %v8555, %v8553
        %v8566 = vpack.c.b16 %v8556, %v8554
        %v8567 = vpack.c.b16 %v8559, %v8557
        %v8568 = vpack.c.b16 %v8560, %v8558
        %8577 = vmatprep.subr.bf16.mxu0 0
        %8578 = vmatpush1.bf16.msra.mxu0 0
        %8579 = vmatprep.subr.bf16.mxu0 0
        %8580 = vmatpush1.bf16.msra.mxu0 0
        %8581 = vmatprep.subr.bf16.mxu0 0
        %8582 = vmatpush1.bf16.msra.mxu0 0
        %8583 = vmatprep.subr.bf16.mxu0 0
        %8584 = vmatpush1.bf16.msra.mxu0 0
        %8585 = vmatprep.subr.bf16.mxu0 %v8568
        %8586 = vmatpush1.bf16.msra.mxu0 %v8567
        %8587 = vmatprep.subr.bf16.mxu0 %v8566
        %8588 = vmatpush1.bf16.msra.mxu0 %v8565
        %8589 = vmatprep.subr.bf16.mxu0 %v8564
        %8590 = vmatpush1.bf16.msra.mxu0 %v8563
        %8591 = vmatprep.subr.bf16.mxu0 %v8562
        %8592 = vmatpush1.bf16.msra.mxu0 %v8561
        %8593 = vmatprep.subr.bf16.mxu0 0
        %8594 = vmatpush2.bf16.msra.mxu0 0
        %8595 = vmatprep.subr.bf16.mxu0 0
        %8596 = vmatpush2.bf16.msra.mxu0 0
        %8597 = vmatprep.subr.bf16.mxu0 0
        %8598 = vmatpush2.bf16.msra.mxu0 0
        %8599 = vmatprep.subr.bf16.mxu0 0
        %8600 = vmatpush2.bf16.msra.mxu0 0
        %8601 = vmatprep.subr.bf16.mxu0 0
        %8602 = vmatpush2.bf16.msra.mxu0 0
        %8603 = vmatprep.subr.bf16.mxu0 0
        %8604 = vmatpush2.bf16.msra.mxu0 0
        %8605 = vmatprep.subr.bf16.mxu0 0
        %8606 = vmatpush2.bf16.msra.mxu0 0
        %8607 = vmatprep.subr.bf16.mxu0 0
        %8608 = vmatpush2.bf16.msra.mxu0 0
        %8609 = vmatprep.mubr.bf16.mxu0 0
        %8610 = vmatmul.mubr.bf16.gmra.mxu0 %v960
        %v8611 = vpop.f32.mrf.mxu0
        %v8612 = vadd.f32 0.0, %v8611
        %v8613 = vpop.f32.mrf.mxu0
        %v8614 = vadd.f32 0.0, %v8613
        %v8615 = vpop.f32.mrf.mxu0
        %v8616 = vpop.f32.mrf.mxu0
        %8617 = vdwg.mxu0
        %v8618 = vadd.f32 %v8535, %v8612
        %v8619 = vadd.f32 %v8536, %v8614
        %v8620 = vxor.u32 %v8618, 2147483648
        %v8621 = vxor.u32 %v8619, 2147483648
        %v8622 = vmul.f32 %v8620, 1.442695
        %v8623 = vpow.pop %v8622
        %v8624 = vmul.f32 %v8621, 1.442695
        %v8625 = vpow.pop %v8624
        %v8626 = vadd.f32 %v8623, 1.0
        %v8627 = vadd.f32 %v8625, 1.0
        %v8628 = vrcp.pop %v8626
        %v8629 = vmul.f32 1.0, %v8628
        %v8630 = vrcp.pop %v8627
        %v8631 = vmul.f32 1.0, %v8630
        %v8632 = vtanh.pop %v8619
        %v8633 = vmul.f32 %v8629, 0.0
        %v8634 = vmul.f32 %v8629, %v8632
        %8636 = vrot.lane.b32.xlu0 %v8634, 64
        %v8637 = vpop.permute.xlu0 %8636
        %v8639 = vadd.f32 %v8633, %v8637
        %v8640 = vtanh.pop %v8639
        %v8641 = vmul.f32 %v8631, %v8640
        %v8642 = vrot.slane %v8421, 1
        %v8643 = vsel %vm850, %v8425, %v8642
        %v8644 = vrot.slane %v8431, 7
        %v8645 = vsel %vm853, %v8644, %v8643
        %v8646 = vrot.slane %v8435, 6
        %v8647 = vsel %vm856, %v8646, %v8645
        %v8648 = vrot.slane %v8441, 5
        %v8649 = vsel %vm859, %v8648, %v8647
        %v8650 = vrot.slane %v8445, 4
        %v8651 = vsel %vm862, %v8650, %v8649
        %v8652 = vrot.slane %v8451, 3
        %v8653 = vsel %vm865, %v8652, %v8651
        %v8654 = vrot.slane %v8455, 2
        %v8655 = vsel %vm868, %v8654, %v8653
        %v8656 = vrot.slane %v8423, 1
        %v8657 = vsel %vm850, %v8427, %v8656
        %v8658 = vrot.slane %v8433, 7
        %v8659 = vsel %vm853, %v8658, %v8657
        %v8660 = vrot.slane %v8437, 6
        %v8661 = vsel %vm856, %v8660, %v8659
        %v8662 = vrot.slane %v8443, 5
        %v8663 = vsel %vm859, %v8662, %v8661
        %v8664 = vrot.slane %v8447, 4
        %v8665 = vsel %vm862, %v8664, %v8663
        %v8666 = vrot.slane %v8453, 3
        %v8667 = vsel %vm865, %v8666, %v8665
        %v8668 = vrot.slane %v8457, 2
        %v8669 = vsel %vm868, %v8668, %v8667
        %v8672 = vrot.slane %v8421, 6
        %v8673 = vrot.slane %v8425, 5
        %v8674 = vsel %vm850, %v8673, %v8672
        %v8675 = vrot.slane %v8431, 4
        %v8676 = vsel %vm853, %v8675, %v8674
        %v8677 = vrot.slane %v8435, 3
        %v8678 = vsel %vm856, %v8677, %v8676
        %v8679 = vrot.slane %v8441, 2
        %v8680 = vsel %vm859, %v8679, %v8678
        %v8681 = vrot.slane %v8445, 1
        %v8682 = vsel %vm862, %v8681, %v8680
        %v8683 = vsel %vm865, %v8451, %v8682
        %v8684 = vrot.slane %v8455, 7
        %v8685 = vsel %vm868, %v8684, %v8683
        %v8686 = vrot.slane %v8423, 6
        %v8687 = vrot.slane %v8427, 5
        %v8688 = vsel %vm850, %v8687, %v8686
        %v8689 = vrot.slane %v8433, 4
        %v8690 = vsel %vm853, %v8689, %v8688
        %v8691 = vrot.slane %v8437, 3
        %v8692 = vsel %vm856, %v8691, %v8690
        %v8693 = vrot.slane %v8443, 2
        %v8694 = vsel %vm859, %v8693, %v8692
        %v8695 = vrot.slane %v8447, 1
        %v8696 = vsel %vm862, %v8695, %v8694
        %v8697 = vsel %vm865, %v8453, %v8696
        %v8698 = vrot.slane %v8457, 7
        %v8699 = vsel %vm868, %v8698, %v8697
        %v8702 = vsel %vm831, %v8655, %v8685
        %v8703 = vsel %vm832, %v8669, %v8699
        %v8704 = vpack.c.bf16 %v8641, %v8641
        %8706 = vrot.lane.b32.xlu0 %v8704, 64
        %v8707 = vpop.permute.xlu0 %8706
        %v8709 = vsel %vm958, %v8707, 0
        %8711 = vmatprep.subr.bf16.mxu0 0
        %8712 = vmatpush1.bf16.msra.mxu0 0
        %8713 = vmatprep.subr.bf16.mxu0 0
        %8714 = vmatpush1.bf16.msra.mxu0 0
        %8715 = vmatprep.subr.bf16.mxu0 0
        %8716 = vmatpush1.bf16.msra.mxu0 0
        %8717 = vmatprep.subr.bf16.mxu0 0
        %8718 = vmatpush1.bf16.msra.mxu0 0
        %8719 = vmatprep.subr.bf16.mxu0 %v8568
        %8720 = vmatpush1.bf16.msra.mxu0 %v8567
        %8721 = vmatprep.subr.bf16.mxu0 %v8566
        %8722 = vmatpush1.bf16.msra.mxu0 %v8565
        %8723 = vmatprep.subr.bf16.mxu0 %v8564
        %8724 = vmatpush1.bf16.msra.mxu0 %v8563
        %8725 = vmatprep.subr.bf16.mxu0 %v8562
        %8726 = vmatpush1.bf16.msra.mxu0 %v8561
        %8727 = vmatprep.subr.bf16.mxu0 0
        %8728 = vmatpush2.bf16.msra.mxu0 0
        %8729 = vmatprep.subr.bf16.mxu0 0
        %8730 = vmatpush2.bf16.msra.mxu0 0
        %8731 = vmatprep.subr.bf16.mxu0 0
        %8732 = vmatpush2.bf16.msra.mxu0 0
        %8733 = vmatprep.subr.bf16.mxu0 0
        %8734 = vmatpush2.bf16.msra.mxu0 0
        %8735 = vmatprep.subr.bf16.mxu0 0
        %8736 = vmatpush2.bf16.msra.mxu0 0
        %8737 = vmatprep.subr.bf16.mxu0 0
        %8738 = vmatpush2.bf16.msra.mxu0 0
        %8739 = vmatprep.subr.bf16.mxu0 0
        %8740 = vmatpush2.bf16.msra.mxu0 0
        %8741 = vmatprep.subr.bf16.mxu0 0
        %8742 = vmatpush2.bf16.msra.mxu0 0
        %8743 = vmatprep.mubr.bf16.mxu0 0
        %8744 = vmatmul.mubr.bf16.gmra.mxu0 %v8709
        %v8745 = vpop.f32.mrf.mxu0
        %v8746 = vadd.f32 0.0, %v8745
        %v8747 = vpop.f32.mrf.mxu0
        %v8748 = vadd.f32 0.0, %v8747
        %v8749 = vpop.f32.mrf.mxu0
        %v8750 = vpop.f32.mrf.mxu0
        %8751 = vdwg.mxu0
        %v8752 = vadd.f32 %v8702, %v8746
        %v8753 = vadd.f32 %v8703, %v8748
        %v8754 = vxor.u32 %v8752, 2147483648
        %v8755 = vxor.u32 %v8753, 2147483648
        %v8756 = vmul.f32 %v8754, 1.442695
        %v8757 = vpow.pop %v8756
        %v8758 = vmul.f32 %v8755, 1.442695
        %v8759 = vpow.pop %v8758
        %v8760 = vadd.f32 %v8757, 1.0
        %v8761 = vadd.f32 %v8759, 1.0
        %v8762 = vrcp.pop %v8760
        %v8763 = vmul.f32 1.0, %v8762
        %v8764 = vrcp.pop %v8761
        %v8765 = vmul.f32 1.0, %v8764
        %v8766 = vtanh.pop %v8753
        %v8767 = vmul.f32 %v8763, %v8639
        %v8768 = vmul.f32 %v8763, %v8766
        %8770 = vrot.lane.b32.xlu0 %v8768, 64
        %v8771 = vpop.permute.xlu0 %8770
        %v8773 = vadd.f32 %v8767, %v8771
        %v8774 = vtanh.pop %v8773
        %v8775 = vmul.f32 %v8765, %v8774
        %v8776 = vrot.slane %v8421, 2
        %v8777 = vrot.slane %v8425, 1
        %v8778 = vsel %vm850, %v8777, %v8776
        %v8779 = vsel %vm853, %v8431, %v8778
        %v8780 = vrot.slane %v8435, 7
        %v8781 = vsel %vm856, %v8780, %v8779
        %v8782 = vrot.slane %v8441, 6
        %v8783 = vsel %vm859, %v8782, %v8781
        %v8784 = vrot.slane %v8445, 5
        %v8785 = vsel %vm862, %v8784, %v8783
        %v8786 = vrot.slane %v8451, 4
        %v8787 = vsel %vm865, %v8786, %v8785
        %v8788 = vrot.slane %v8455, 3
        %v8789 = vsel %vm868, %v8788, %v8787
        %v8790 = vrot.slane %v8423, 2
        %v8791 = vrot.slane %v8427, 1
        %v8792 = vsel %vm850, %v8791, %v8790
        %v8793 = vsel %vm853, %v8433, %v8792
        %v8794 = vrot.slane %v8437, 7
        %v8795 = vsel %vm856, %v8794, %v8793
        %v8796 = vrot.slane %v8443, 6
        %v8797 = vsel %vm859, %v8796, %v8795
        %v8798 = vrot.slane %v8447, 5
        %v8799 = vsel %vm862, %v8798, %v8797
        %v8800 = vrot.slane %v8453, 4
        %v8801 = vsel %vm865, %v8800, %v8799
        %v8802 = vrot.slane %v8457, 3
        %v8803 = vsel %vm868, %v8802, %v8801
        %v8806 = vrot.slane %v8421, 5
        %v8807 = vrot.slane %v8425, 4
        %v8808 = vsel %vm850, %v8807, %v8806
        %v8809 = vrot.slane %v8431, 3
        %v8810 = vsel %vm853, %v8809, %v8808
        %v8811 = vrot.slane %v8435, 2
        %v8812 = vsel %vm856, %v8811, %v8810
        %v8813 = vrot.slane %v8441, 1
        %v8814 = vsel %vm859, %v8813, %v8812
        %v8815 = vsel %vm862, %v8445, %v8814
        %v8816 = vrot.slane %v8451, 7
        %v8817 = vsel %vm865, %v8816, %v8815
        %v8818 = vrot.slane %v8455, 6
        %v8819 = vsel %vm868, %v8818, %v8817
        %v8820 = vrot.slane %v8423, 5
        %v8821 = vrot.slane %v8427, 4
        %v8822 = vsel %vm850, %v8821, %v8820
        %v8823 = vrot.slane %v8433, 3
        %v8824 = vsel %vm853, %v8823, %v8822
        %v8825 = vrot.slane %v8437, 2
        %v8826 = vsel %vm856, %v8825, %v8824
        %v8827 = vrot.slane %v8443, 1
        %v8828 = vsel %vm859, %v8827, %v8826
        %v8829 = vsel %vm862, %v8447, %v8828
        %v8830 = vrot.slane %v8453, 7
        %v8831 = vsel %vm865, %v8830, %v8829
        %v8832 = vrot.slane %v8457, 6
        %v8833 = vsel %vm868, %v8832, %v8831
        %v8836 = vsel %vm831, %v8789, %v8819
        %v8837 = vsel %vm832, %v8803, %v8833
        %v8838 = vpack.c.bf16 %v8775, %v8775
        %8840 = vrot.lane.b32.xlu0 %v8838, 64
        %v8841 = vpop.permute.xlu0 %8840
        %v8843 = vsel %vm958, %v8841, 0
        %8845 = vmatprep.subr.bf16.mxu0 0
        %8846 = vmatpush1.bf16.msra.mxu0 0
        %8847 = vmatprep.subr.bf16.mxu0 0
        %8848 = vmatpush1.bf16.msra.mxu0 0
        %8849 = vmatprep.subr.bf16.mxu0 0
        %8850 = vmatpush1.bf16.msra.mxu0 0
        %8851 = vmatprep.subr.bf16.mxu0 0
        %8852 = vmatpush1.bf16.msra.mxu0 0
        %8853 = vmatprep.subr.bf16.mxu0 %v8568
        %8854 = vmatpush1.bf16.msra.mxu0 %v8567
        %8855 = vmatprep.subr.bf16.mxu0 %v8566
        %8856 = vmatpush1.bf16.msra.mxu0 %v8565
        %8857 = vmatprep.subr.bf16.mxu0 %v8564
        %8858 = vmatpush1.bf16.msra.mxu0 %v8563
        %8859 = vmatprep.subr.bf16.mxu0 %v8562
        %8860 = vmatpush1.bf16.msra.mxu0 %v8561
        %8861 = vmatprep.subr.bf16.mxu0 0
        %8862 = vmatpush2.bf16.msra.mxu0 0
        %8863 = vmatprep.subr.bf16.mxu0 0
        %8864 = vmatpush2.bf16.msra.mxu0 0
        %8865 = vmatprep.subr.bf16.mxu0 0
        %8866 = vmatpush2.bf16.msra.mxu0 0
        %8867 = vmatprep.subr.bf16.mxu0 0
        %8868 = vmatpush2.bf16.msra.mxu0 0
        %8869 = vmatprep.subr.bf16.mxu0 0
        %8870 = vmatpush2.bf16.msra.mxu0 0
        %8871 = vmatprep.subr.bf16.mxu0 0
        %8872 = vmatpush2.bf16.msra.mxu0 0
        %8873 = vmatprep.subr.bf16.mxu0 0
        %8874 = vmatpush2.bf16.msra.mxu0 0
        %8875 = vmatprep.subr.bf16.mxu0 0
        %8876 = vmatpush2.bf16.msra.mxu0 0
        %8877 = vmatprep.mubr.bf16.mxu0 0
        %8878 = vmatmul.mubr.bf16.gmra.mxu0 %v8843
        %v8879 = vpop.f32.mrf.mxu0
        %v8880 = vadd.f32 0.0, %v8879
        %v8881 = vpop.f32.mrf.mxu0
        %v8882 = vadd.f32 0.0, %v8881
        %v8883 = vpop.f32.mrf.mxu0
        %v8884 = vpop.f32.mrf.mxu0
        %8885 = vdwg.mxu0
        %v8886 = vadd.f32 %v8836, %v8880
        %v8887 = vadd.f32 %v8837, %v8882
        %v8888 = vxor.u32 %v8886, 2147483648
        %v8889 = vxor.u32 %v8887, 2147483648
        %v8890 = vmul.f32 %v8888, 1.442695
        %v8891 = vpow.pop %v8890
        %v8892 = vmul.f32 %v8889, 1.442695
        %v8893 = vpow.pop %v8892
        %v8894 = vadd.f32 %v8891, 1.0
        %v8895 = vadd.f32 %v8893, 1.0
        %v8896 = vrcp.pop %v8894
        %v8897 = vmul.f32 1.0, %v8896
        %v8898 = vrcp.pop %v8895
        %v8899 = vmul.f32 1.0, %v8898
        %v8900 = vtanh.pop %v8887
        %v8901 = vmul.f32 %v8897, %v8773
        %v8902 = vmul.f32 %v8897, %v8900
        %8904 = vrot.lane.b32.xlu0 %v8902, 64
        %v8905 = vpop.permute.xlu0 %8904
        %v8907 = vadd.f32 %v8901, %v8905
        %v8908 = vtanh.pop %v8907
        %v8909 = vmul.f32 %v8899, %v8908
        %v8910 = vrot.slane %v8421, 3
        %v8911 = vrot.slane %v8425, 2
        %v8912 = vsel %vm850, %v8911, %v8910
        %v8913 = vrot.slane %v8431, 1
        %v8914 = vsel %vm853, %v8913, %v8912
        %v8915 = vsel %vm856, %v8435, %v8914
        %v8916 = vrot.slane %v8441, 7
        %v8917 = vsel %vm859, %v8916, %v8915
        %v8918 = vrot.slane %v8445, 6
        %v8919 = vsel %vm862, %v8918, %v8917
        %v8920 = vrot.slane %v8451, 5
        %v8921 = vsel %vm865, %v8920, %v8919
        %v8922 = vrot.slane %v8455, 4
        %v8923 = vsel %vm868, %v8922, %v8921
        %v8924 = vrot.slane %v8423, 3
        %v8925 = vrot.slane %v8427, 2
        %v8926 = vsel %vm850, %v8925, %v8924
        %v8927 = vrot.slane %v8433, 1
        %v8928 = vsel %vm853, %v8927, %v8926
        %v8929 = vsel %vm856, %v8437, %v8928
        %v8930 = vrot.slane %v8443, 7
        %v8931 = vsel %vm859, %v8930, %v8929
        %v8932 = vrot.slane %v8447, 6
        %v8933 = vsel %vm862, %v8932, %v8931
        %v8934 = vrot.slane %v8453, 5
        %v8935 = vsel %vm865, %v8934, %v8933
        %v8936 = vrot.slane %v8457, 4
        %v8937 = vsel %vm868, %v8936, %v8935
        %v8940 = vrot.slane %v8421, 4
        %v8941 = vrot.slane %v8425, 3
        %v8942 = vsel %vm850, %v8941, %v8940
        %v8943 = vrot.slane %v8431, 2
        %v8944 = vsel %vm853, %v8943, %v8942
        %v8945 = vrot.slane %v8435, 1
        %v8946 = vsel %vm856, %v8945, %v8944
        %v8947 = vsel %vm859, %v8441, %v8946
        %v8948 = vrot.slane %v8445, 7
        %v8949 = vsel %vm862, %v8948, %v8947
        %v8950 = vrot.slane %v8451, 6
        %v8951 = vsel %vm865, %v8950, %v8949
        %v8952 = vrot.slane %v8455, 5
        %v8953 = vsel %vm868, %v8952, %v8951
        %v8954 = vrot.slane %v8423, 4
        %v8955 = vrot.slane %v8427, 3
        %v8956 = vsel %vm850, %v8955, %v8954
        %v8957 = vrot.slane %v8433, 2
        %v8958 = vsel %vm853, %v8957, %v8956
        %v8959 = vrot.slane %v8437, 1
        %v8960 = vsel %vm856, %v8959, %v8958
        %v8961 = vsel %vm859, %v8443, %v8960
        %v8962 = vrot.slane %v8447, 7
        %v8963 = vsel %vm862, %v8962, %v8961
        %v8964 = vrot.slane %v8453, 6
        %v8965 = vsel %vm865, %v8964, %v8963
        %v8966 = vrot.slane %v8457, 5
        %v8967 = vsel %vm868, %v8966, %v8965
        %v8970 = vsel %vm831, %v8923, %v8953
        %v8971 = vsel %vm832, %v8937, %v8967
        %v8972 = vpack.c.bf16 %v8909, %v8909
        %8974 = vrot.lane.b32.xlu0 %v8972, 64
        %v8975 = vpop.permute.xlu0 %8974
        %v8977 = vsel %vm958, %v8975, 0
        %8979 = vmatprep.subr.bf16.mxu0 0
        %8980 = vmatpush1.bf16.msra.mxu0 0
        %8981 = vmatprep.subr.bf16.mxu0 0
        %8982 = vmatpush1.bf16.msra.mxu0 0
        %8983 = vmatprep.subr.bf16.mxu0 0
        %8984 = vmatpush1.bf16.msra.mxu0 0
        %8985 = vmatprep.subr.bf16.mxu0 0
        %8986 = vmatpush1.bf16.msra.mxu0 0
        %8987 = vmatprep.subr.bf16.mxu0 %v8568
        %8988 = vmatpush1.bf16.msra.mxu0 %v8567
        %8989 = vmatprep.subr.bf16.mxu0 %v8566
        %8990 = vmatpush1.bf16.msra.mxu0 %v8565
        %8991 = vmatprep.subr.bf16.mxu0 %v8564
        %8992 = vmatpush1.bf16.msra.mxu0 %v8563
        %8993 = vmatprep.subr.bf16.mxu0 %v8562
        %8994 = vmatpush1.bf16.msra.mxu0 %v8561
        %8995 = vmatprep.subr.bf16.mxu0 0
        %8996 = vmatpush2.bf16.msra.mxu0 0
        %8997 = vmatprep.subr.bf16.mxu0 0
        %8998 = vmatpush2.bf16.msra.mxu0 0
        %8999 = vmatprep.subr.bf16.mxu0 0
        %9000 = vmatpush2.bf16.msra.mxu0 0
        %9001 = vmatprep.subr.bf16.mxu0 0
        %9002 = vmatpush2.bf16.msra.mxu0 0
        %9003 = vmatprep.subr.bf16.mxu0 0
        %9004 = vmatpush2.bf16.msra.mxu0 0
        %9005 = vmatprep.subr.bf16.mxu0 0
        %9006 = vmatpush2.bf16.msra.mxu0 0
        %9007 = vmatprep.subr.bf16.mxu0 0
        %9008 = vmatpush2.bf16.msra.mxu0 0
        %9009 = vmatprep.subr.bf16.mxu0 0
        %9010 = vmatpush2.bf16.msra.mxu0 0
        %9011 = vmatprep.mubr.bf16.mxu0 0
        %9012 = vmatmul.mubr.bf16.gmra.mxu0 %v8977
        %v9013 = vpop.f32.mrf.mxu0
        %v9014 = vadd.f32 0.0, %v9013
        %v9015 = vpop.f32.mrf.mxu0
        %v9016 = vadd.f32 0.0, %v9015
        %v9017 = vpop.f32.mrf.mxu0
        %v9018 = vpop.f32.mrf.mxu0
        %9019 = vdwg.mxu0
        %v9020 = vadd.f32 %v8970, %v9014
        %v9021 = vadd.f32 %v8971, %v9016
        %v9022 = vxor.u32 %v9020, 2147483648
        %v9023 = vxor.u32 %v9021, 2147483648
        %v9024 = vmul.f32 %v9022, 1.442695
        %v9025 = vpow.pop %v9024
        %v9026 = vmul.f32 %v9023, 1.442695
        %v9027 = vpow.pop %v9026
        %v9028 = vadd.f32 %v9025, 1.0
        %v9029 = vadd.f32 %v9027, 1.0
        %v9030 = vrcp.pop %v9028
        %v9031 = vmul.f32 1.0, %v9030
        %v9032 = vrcp.pop %v9029
        %v9033 = vmul.f32 1.0, %v9032
        %v9034 = vtanh.pop %v9021
        %v9035 = vmul.f32 %v9031, %v8907
        %v9036 = vmul.f32 %v9031, %v9034
        %9038 = vrot.lane.b32.xlu0 %v9036, 64
        %v9039 = vpop.permute.xlu0 %9038
        %v9041 = vadd.f32 %v9035, %v9039
        %v9042 = vtanh.pop %v9041
        %v9043 = vmul.f32 %v9033, %v9042
        %v9044 = vsel %vm831, %v8953, %v8923
        %v9045 = vsel %vm832, %v8967, %v8937
        %v9046 = vpack.c.bf16 %v9043, %v9043
        %9048 = vrot.lane.b32.xlu0 %v9046, 64
        %v9049 = vpop.permute.xlu0 %9048
        %v9051 = vsel %vm958, %v9049, 0
        %9053 = vmatprep.subr.bf16.mxu0 0
        %9054 = vmatpush1.bf16.msra.mxu0 0
        %9055 = vmatprep.subr.bf16.mxu0 0
        %9056 = vmatpush1.bf16.msra.mxu0 0
        %9057 = vmatprep.subr.bf16.mxu0 0
        %9058 = vmatpush1.bf16.msra.mxu0 0
        %9059 = vmatprep.subr.bf16.mxu0 0
        %9060 = vmatpush1.bf16.msra.mxu0 0
        %9061 = vmatprep.subr.bf16.mxu0 %v8568
        %9062 = vmatpush1.bf16.msra.mxu0 %v8567
        %9063 = vmatprep.subr.bf16.mxu0 %v8566
        %9064 = vmatpush1.bf16.msra.mxu0 %v8565
        %9065 = vmatprep.subr.bf16.mxu0 %v8564
        %9066 = vmatpush1.bf16.msra.mxu0 %v8563
        %9067 = vmatprep.subr.bf16.mxu0 %v8562
        %9068 = vmatpush1.bf16.msra.mxu0 %v8561
        %9069 = vmatprep.subr.bf16.mxu0 0
        %9070 = vmatpush2.bf16.msra.mxu0 0
        %9071 = vmatprep.subr.bf16.mxu0 0
        %9072 = vmatpush2.bf16.msra.mxu0 0
        %9073 = vmatprep.subr.bf16.mxu0 0
        %9074 = vmatpush2.bf16.msra.mxu0 0
        %9075 = vmatprep.subr.bf16.mxu0 0
        %9076 = vmatpush2.bf16.msra.mxu0 0
        %9077 = vmatprep.subr.bf16.mxu0 0
        %9078 = vmatpush2.bf16.msra.mxu0 0
        %9079 = vmatprep.subr.bf16.mxu0 0
        %9080 = vmatpush2.bf16.msra.mxu0 0
        %9081 = vmatprep.subr.bf16.mxu0 0
        %9082 = vmatpush2.bf16.msra.mxu0 0
        %9083 = vmatprep.subr.bf16.mxu0 0
        %9084 = vmatpush2.bf16.msra.mxu0 0
        %9085 = vmatprep.mubr.bf16.mxu0 0
        %9086 = vmatmul.mubr.bf16.gmra.mxu0 %v9051
        %v9087 = vpop.f32.mrf.mxu0
        %v9088 = vadd.f32 0.0, %v9087
        %v9089 = vpop.f32.mrf.mxu0
        %v9090 = vadd.f32 0.0, %v9089
        %v9091 = vpop.f32.mrf.mxu0
        %v9092 = vpop.f32.mrf.mxu0
        %9093 = vdwg.mxu0
        %v9094 = vadd.f32 %v9044, %v9088
        %v9095 = vadd.f32 %v9045, %v9090
        %v9096 = vxor.u32 %v9094, 2147483648
        %v9097 = vxor.u32 %v9095, 2147483648
        %v9098 = vmul.f32 %v9096, 1.442695
        %v9099 = vpow.pop %v9098
        %v9100 = vmul.f32 %v9097, 1.442695
        %v9101 = vpow.pop %v9100
        %v9102 = vadd.f32 %v9099, 1.0
        %v9103 = vadd.f32 %v9101, 1.0
        %v9104 = vrcp.pop %v9102
        %v9105 = vmul.f32 1.0, %v9104
        %v9106 = vrcp.pop %v9103
        %v9107 = vmul.f32 1.0, %v9106
        %v9108 = vtanh.pop %v9095
        %v9109 = vmul.f32 %v9105, %v9041
        %v9110 = vmul.f32 %v9105, %v9108
        %9112 = vrot.lane.b32.xlu0 %v9110, 64
        %v9113 = vpop.permute.xlu0 %9112
        %v9115 = vadd.f32 %v9109, %v9113
        %v9116 = vtanh.pop %v9115
        %v9117 = vmul.f32 %v9107, %v9116
        %v9118 = vsel %vm831, %v8819, %v8789
        %v9119 = vsel %vm832, %v8833, %v8803
        %v9120 = vpack.c.bf16 %v9117, %v9117
        %9122 = vrot.lane.b32.xlu0 %v9120, 64
        %v9123 = vpop.permute.xlu0 %9122
        %v9125 = vsel %vm958, %v9123, 0
        %9127 = vmatprep.subr.bf16.mxu0 0
        %9128 = vmatpush1.bf16.msra.mxu0 0
        %9129 = vmatprep.subr.bf16.mxu0 0
        %9130 = vmatpush1.bf16.msra.mxu0 0
        %9131 = vmatprep.subr.bf16.mxu0 0
        %9132 = vmatpush1.bf16.msra.mxu0 0
        %9133 = vmatprep.subr.bf16.mxu0 0
        %9134 = vmatpush1.bf16.msra.mxu0 0
        %9135 = vmatprep.subr.bf16.mxu0 %v8568
        %9136 = vmatpush1.bf16.msra.mxu0 %v8567
        %9137 = vmatprep.subr.bf16.mxu0 %v8566
        %9138 = vmatpush1.bf16.msra.mxu0 %v8565
        %9139 = vmatprep.subr.bf16.mxu0 %v8564
        %9140 = vmatpush1.bf16.msra.mxu0 %v8563
        %9141 = vmatprep.subr.bf16.mxu0 %v8562
        %9142 = vmatpush1.bf16.msra.mxu0 %v8561
        %9143 = vmatprep.subr.bf16.mxu0 0
        %9144 = vmatpush2.bf16.msra.mxu0 0
        %9145 = vmatprep.subr.bf16.mxu0 0
        %9146 = vmatpush2.bf16.msra.mxu0 0
        %9147 = vmatprep.subr.bf16.mxu0 0
        %9148 = vmatpush2.bf16.msra.mxu0 0
        %9149 = vmatprep.subr.bf16.mxu0 0
        %9150 = vmatpush2.bf16.msra.mxu0 0
        %9151 = vmatprep.subr.bf16.mxu0 0
        %9152 = vmatpush2.bf16.msra.mxu0 0
        %9153 = vmatprep.subr.bf16.mxu0 0
        %9154 = vmatpush2.bf16.msra.mxu0 0
        %9155 = vmatprep.subr.bf16.mxu0 0
        %9156 = vmatpush2.bf16.msra.mxu0 0
        %9157 = vmatprep.subr.bf16.mxu0 0
        %9158 = vmatpush2.bf16.msra.mxu0 0
        %9159 = vmatprep.mubr.bf16.mxu0 0
        %9160 = vmatmul.mubr.bf16.gmra.mxu0 %v9125
        %v9161 = vpop.f32.mrf.mxu0
        %v9162 = vadd.f32 0.0, %v9161
        %v9163 = vpop.f32.mrf.mxu0
        %v9164 = vadd.f32 0.0, %v9163
        %v9165 = vpop.f32.mrf.mxu0
        %v9166 = vpop.f32.mrf.mxu0
        %9167 = vdwg.mxu0
        %v9168 = vadd.f32 %v9118, %v9162
        %v9169 = vadd.f32 %v9119, %v9164
        %v9170 = vxor.u32 %v9168, 2147483648
        %v9171 = vxor.u32 %v9169, 2147483648
        %v9172 = vmul.f32 %v9170, 1.442695
        %v9173 = vpow.pop %v9172
        %v9174 = vmul.f32 %v9171, 1.442695
        %v9175 = vpow.pop %v9174
        %v9176 = vadd.f32 %v9173, 1.0
        %v9177 = vadd.f32 %v9175, 1.0
        %v9178 = vrcp.pop %v9176
        %v9179 = vmul.f32 1.0, %v9178
        %v9180 = vrcp.pop %v9177
        %v9181 = vmul.f32 1.0, %v9180
        %v9182 = vtanh.pop %v9169
        %v9183 = vmul.f32 %v9179, %v9115
        %v9184 = vmul.f32 %v9179, %v9182
        %9186 = vrot.lane.b32.xlu0 %v9184, 64
        %v9187 = vpop.permute.xlu0 %9186
        %v9189 = vadd.f32 %v9183, %v9187
        %v9190 = vtanh.pop %v9189
        %v9191 = vmul.f32 %v9181, %v9190
        %v9192 = vsel %vm831, %v8685, %v8655
        %v9193 = vsel %vm832, %v8699, %v8669
        %v9194 = vpack.c.bf16 %v9191, %v9191
        %9196 = vrot.lane.b32.xlu0 %v9194, 64
        %v9197 = vpop.permute.xlu0 %9196
        %v9199 = vsel %vm958, %v9197, 0
        %9201 = vmatprep.subr.bf16.mxu0 0
        %9202 = vmatpush1.bf16.msra.mxu0 0
        %9203 = vmatprep.subr.bf16.mxu0 0
        %9204 = vmatpush1.bf16.msra.mxu0 0
        %9205 = vmatprep.subr.bf16.mxu0 0
        %9206 = vmatpush1.bf16.msra.mxu0 0
        %9207 = vmatprep.subr.bf16.mxu0 0
        %9208 = vmatpush1.bf16.msra.mxu0 0
        %9209 = vmatprep.subr.bf16.mxu0 %v8568
        %9210 = vmatpush1.bf16.msra.mxu0 %v8567
        %9211 = vmatprep.subr.bf16.mxu0 %v8566
        %9212 = vmatpush1.bf16.msra.mxu0 %v8565
        %9213 = vmatprep.subr.bf16.mxu0 %v8564
        %9214 = vmatpush1.bf16.msra.mxu0 %v8563
        %9215 = vmatprep.subr.bf16.mxu0 %v8562
        %9216 = vmatpush1.bf16.msra.mxu0 %v8561
        %9217 = vmatprep.subr.bf16.mxu0 0
        %9218 = vmatpush2.bf16.msra.mxu0 0
        %9219 = vmatprep.subr.bf16.mxu0 0
        %9220 = vmatpush2.bf16.msra.mxu0 0
        %9221 = vmatprep.subr.bf16.mxu0 0
        %9222 = vmatpush2.bf16.msra.mxu0 0
        %9223 = vmatprep.subr.bf16.mxu0 0
        %9224 = vmatpush2.bf16.msra.mxu0 0
        %9225 = vmatprep.subr.bf16.mxu0 0
        %9226 = vmatpush2.bf16.msra.mxu0 0
        %9227 = vmatprep.subr.bf16.mxu0 0
        %9228 = vmatpush2.bf16.msra.mxu0 0
        %9229 = vmatprep.subr.bf16.mxu0 0
        %9230 = vmatpush2.bf16.msra.mxu0 0
        %9231 = vmatprep.subr.bf16.mxu0 0
        %9232 = vmatpush2.bf16.msra.mxu0 0
        %9233 = vmatprep.mubr.bf16.mxu0 0
        %9234 = vmatmul.mubr.bf16.gmra.mxu0 %v9199
        %v9235 = vpop.f32.mrf.mxu0
        %v9236 = vadd.f32 0.0, %v9235
        %v9237 = vpop.f32.mrf.mxu0
        %v9238 = vadd.f32 0.0, %v9237
        %v9239 = vpop.f32.mrf.mxu0
        %v9240 = vpop.f32.mrf.mxu0
        %9241 = vdwg.mxu0
        %v9242 = vadd.f32 %v9192, %v9236
        %v9243 = vadd.f32 %v9193, %v9238
        %v9244 = vxor.u32 %v9242, 2147483648
        %v9245 = vxor.u32 %v9243, 2147483648
        %v9246 = vmul.f32 %v9244, 1.442695
        %v9247 = vpow.pop %v9246
        %v9248 = vmul.f32 %v9245, 1.442695
        %v9249 = vpow.pop %v9248
        %v9250 = vadd.f32 %v9247, 1.0
        %v9251 = vadd.f32 %v9249, 1.0
        %v9252 = vrcp.pop %v9250
        %v9253 = vmul.f32 1.0, %v9252
        %v9254 = vrcp.pop %v9251
        %v9255 = vmul.f32 1.0, %v9254
        %v9256 = vtanh.pop %v9243
        %v9257 = vmul.f32 %v9253, %v9189
        %v9258 = vmul.f32 %v9253, %v9256
        %9260 = vrot.lane.b32.xlu0 %v9258, 64
        %v9261 = vpop.permute.xlu0 %9260
        %v9263 = vadd.f32 %v9257, %v9261
        %v9264 = vtanh.pop %v9263
        %v9265 = vmul.f32 %v9255, %v9264
        %v9266 = vsel %vm831, %v8518, %v8488
        %v9267 = vsel %vm832, %v8532, %v8502
        %v9268 = vpack.c.bf16 %v9265, %v9265
        %9270 = vrot.lane.b32.xlu0 %v9268, 64
        %v9271 = vpop.permute.xlu0 %9270
        %v9273 = vsel %vm958, %v9271, 0
        %9275 = vmatprep.subr.bf16.mxu0 0
        %9276 = vmatpush1.bf16.msra.mxu0 0
        %9277 = vmatprep.subr.bf16.mxu0 0
        %9278 = vmatpush1.bf16.msra.mxu0 0
        %9279 = vmatprep.subr.bf16.mxu0 0
        %9280 = vmatpush1.bf16.msra.mxu0 0
        %9281 = vmatprep.subr.bf16.mxu0 0
        %9282 = vmatpush1.bf16.msra.mxu0 0
        %9283 = vmatprep.subr.bf16.mxu0 %v8568
        %9284 = vmatpush1.bf16.msra.mxu0 %v8567
        %9285 = vmatprep.subr.bf16.mxu0 %v8566
        %9286 = vmatpush1.bf16.msra.mxu0 %v8565
        %9287 = vmatprep.subr.bf16.mxu0 %v8564
        %9288 = vmatpush1.bf16.msra.mxu0 %v8563
        %9289 = vmatprep.subr.bf16.mxu0 %v8562
        %9290 = vmatpush1.bf16.msra.mxu0 %v8561
        %9291 = vmatprep.subr.bf16.mxu0 0
        %9292 = vmatpush2.bf16.msra.mxu0 0
        %9293 = vmatprep.subr.bf16.mxu0 0
        %9294 = vmatpush2.bf16.msra.mxu0 0
        %9295 = vmatprep.subr.bf16.mxu0 0
        %9296 = vmatpush2.bf16.msra.mxu0 0
        %9297 = vmatprep.subr.bf16.mxu0 0
        %9298 = vmatpush2.bf16.msra.mxu0 0
        %9299 = vmatprep.subr.bf16.mxu0 0
        %9300 = vmatpush2.bf16.msra.mxu0 0
        %9301 = vmatprep.subr.bf16.mxu0 0
        %9302 = vmatpush2.bf16.msra.mxu0 0
        %9303 = vmatprep.subr.bf16.mxu0 0
        %9304 = vmatpush2.bf16.msra.mxu0 0
        %9305 = vmatprep.subr.bf16.mxu0 0
        %9306 = vmatpush2.bf16.msra.mxu0 0
        %9307 = vmatprep.mubr.bf16.mxu0 0
        %9308 = vmatmul.mubr.bf16.gmra.mxu0 %v9273
        %v9309 = vpop.f32.mrf.mxu0
        %v9310 = vadd.f32 0.0, %v9309
        %v9311 = vpop.f32.mrf.mxu0
        %v9312 = vadd.f32 0.0, %v9311
        %v9313 = vpop.f32.mrf.mxu0
        %v9314 = vpop.f32.mrf.mxu0
        %9315 = vdwg.mxu0
        %v9316 = vadd.f32 %v9266, %v9310
        %v9317 = vadd.f32 %v9267, %v9312
        %v9318 = vxor.u32 %v9316, 2147483648
        %v9319 = vxor.u32 %v9317, 2147483648
        %v9320 = vmul.f32 %v9318, 1.442695
        %v9321 = vpow.pop %v9320
        %v9322 = vmul.f32 %v9319, 1.442695
        %v9323 = vpow.pop %v9322
        %v9324 = vadd.f32 %v9321, 1.0
        %v9325 = vadd.f32 %v9323, 1.0
        %v9326 = vrcp.pop %v9324
        %v9327 = vmul.f32 1.0, %v9326
        %v9328 = vrcp.pop %v9325
        %v9329 = vmul.f32 1.0, %v9328
        %v9330 = vtanh.pop %v9317
        %v9331 = vmul.f32 %v9327, %v9263
        %v9332 = vmul.f32 %v9327, %v9330
        %9334 = vrot.lane.b32.xlu0 %v9332, 64
        %v9335 = vpop.permute.xlu0 %9334
        %v9337 = vadd.f32 %v9331, %v9335
        %v9338 = vtanh.pop %v9337
        %v9339 = vmul.f32 %v9329, %v9338
        %v9340 = vld [vmem:[%s12] sm:$0xff]
        %v9341 = vld [vmem:[%s12 + $0x8] sm:$0xff]
        %v9342 = vld [vmem:[%s12 + $0x10] sm:$0xff]
        %v9343 = vld [vmem:[%s12 + $0x18] sm:$0xff]
        %v9344 = vld [vmem:[%s12 + $0x20] sm:$0xff]
        %v9345 = vld [vmem:[%s12 + $0x28] sm:$0xff]
        %v9346 = vld [vmem:[%s12 + $0x30] sm:$0xff]
        %v9347 = vld [vmem:[%s12 + $0x38] sm:$0xff]
        %v9348 = vld [vmem:[#allocation2] sm:$0x1]
        %v9350 = vlaneseq
        %v9351 = vshrl.u32 %v9350, 7
        %v9352 = vsub.s32 0, %v9351
        %v9353 = vrot.slane %v9348, %v9352
        %9356 = vrot.lane.b32.xlu0 %v9339, 64
        %v9357 = vpop.permute.xlu0 %9356
        %v9358 = vsel %vm958, %v9357, 0
        %9360 = vmatprep.subr.mxu0 0.0
        %9361 = vmatpush1.msra.mxu0 0.0
        %9362 = vmatprep.subr.mxu0 0.0
        %9363 = vmatpush1.msra.mxu0 0.0
        %9364 = vmatprep.subr.mxu0 0.0
        %9365 = vmatpush1.msra.mxu0 0.0
        %9366 = vmatprep.subr.mxu0 0.0
        %9367 = vmatpush1.msra.mxu0 0.0
        %9368 = vmatprep.subr.mxu0 0.0
        %9369 = vmatpush1.msra.mxu0 0.0
        %9370 = vmatprep.subr.mxu0 0.0
        %9371 = vmatpush1.msra.mxu0 0.0
        %9372 = vmatprep.subr.mxu0 0.0
        %9373 = vmatpush1.msra.mxu0 0.0
        %9374 = vmatprep.subr.mxu0 0.0
        %9375 = vmatpush1.msra.mxu0 0.0
        %9376 = vmatprep.subr.mxu0 0.0
        %9377 = vmatpush1.msra.mxu0 %v9347
        %9378 = vmatprep.subr.mxu0 0.0
        %9379 = vmatpush1.msra.mxu0 %v9346
        %9380 = vmatprep.subr.mxu0 0.0
        %9381 = vmatpush1.msra.mxu0 %v9345
        %9382 = vmatprep.subr.mxu0 0.0
        %9383 = vmatpush1.msra.mxu0 %v9344
        %9384 = vmatprep.subr.mxu0 0.0
        %9385 = vmatpush1.msra.mxu0 %v9343
        %9386 = vmatprep.subr.mxu0 0.0
        %9387 = vmatpush1.msra.mxu0 %v9342
        %9388 = vmatprep.subr.mxu0 0.0
        %9389 = vmatpush1.msra.mxu0 %v9341
        %9390 = vmatprep.subr.mxu0 0.0
        %9391 = vmatpush1.msra.mxu0 %v9340
        %9392 = vmatprep.subr.mxu0 0.0
        %9393 = vmatpush2.msra.mxu0 0.0
        %9394 = vmatprep.subr.mxu0 0.0
        %9395 = vmatpush2.msra.mxu0 0.0
        %9396 = vmatprep.subr.mxu0 0.0
        %9397 = vmatpush2.msra.mxu0 0.0
        %9398 = vmatprep.subr.mxu0 0.0
        %9399 = vmatpush2.msra.mxu0 0.0
        %9400 = vmatprep.subr.mxu0 0.0
        %9401 = vmatpush2.msra.mxu0 0.0
        %9402 = vmatprep.subr.mxu0 0.0
        %9403 = vmatpush2.msra.mxu0 0.0
        %9404 = vmatprep.subr.mxu0 0.0
        %9405 = vmatpush2.msra.mxu0 0.0
        %9406 = vmatprep.subr.mxu0 0.0
        %9407 = vmatpush2.msra.mxu0 0.0
        %9408 = vmatprep.subr.mxu0 0.0
        %9409 = vmatpush2.msra.mxu0 0.0
        %9410 = vmatprep.subr.mxu0 0.0
        %9411 = vmatpush2.msra.mxu0 0.0
        %9412 = vmatprep.subr.mxu0 0.0
        %9413 = vmatpush2.msra.mxu0 0.0
        %9414 = vmatprep.subr.mxu0 0.0
        %9415 = vmatpush2.msra.mxu0 0.0
        %9416 = vmatprep.subr.mxu0 0.0
        %9417 = vmatpush2.msra.mxu0 0.0
        %9418 = vmatprep.subr.mxu0 0.0
        %9419 = vmatpush2.msra.mxu0 0.0
        %9420 = vmatprep.subr.mxu0 0.0
        %9421 = vmatpush2.msra.mxu0 0.0
        %9422 = vmatprep.subr.mxu0 0.0
        %9423 = vmatpush2.msra.mxu0 0.0
        %9424 = vmatprep.mubr.f32.mxu0 0.0
        %9425 = vmatmul.mubr.f32.gmra.mxu0 %v9358
        %v9426 = vpop.f32.mrf.mxu0
        %v9427 = vadd.f32 %v9353, %v9426
        %v9428 = vpop.f32.mrf.mxu0
        %9429 = vdwg.mxu0
        %v9430 = vxor.u32 %v9427, 2147483648
        %v9431 = vmul.f32 %v9430, 1.442695
        %v9432 = vpow.pop %v9431
        %v9433 = vadd.f32 %v9432, 1.0
        %v9434 = vrcp.pop %v9433
        %v9435 = vmul.f32 1.0, %v9434
        %vm9436 = vcmask 7168
        %9437 = vst.msk [vmem:[%s509] sm:$0xff] %vm9436, %v9435
        %p9438 = scmp.lt.s32.totalorder %s29, 1
        %s9439 = scalar_select %p9438, %s29, 1
        %s9440 = smul.addr %s9439, 8
        %s9441 = scalar_lea.vmem %s14, %s9440
        // Predicated region
        $region89: #{attention_model_forward.1} parent=75 // pred_check
          %p9442 = pneg %p346
        $region90: #{attention_model_forward.1} parent=75 // pred_check_branch
          %9444 = sbr.rel (%p9442) target = $region92
        $region91: #{attention_model_forward.1} parent=75 // pred_region
          _
        $region92: #{attention_model_forward.1} parent=75 // pred_fallthru
          _
      $region76: #{attention_model_forward.1} parent=5 // pred_fallthru
        _
      %p9445 = scmp.le.s32.totalorder 2, %s24
      // Predicated region
      $region93: #{attention_model_forward.1} parent=5 // pred_check
        %p9446 = pneg %p9445
      $region94: #{attention_model_forward.1} parent=5 // pred_check_branch
        %9448 = sbr.rel (%p9446) target = $region96
      $region95: #{attention_model_forward.1} parent=5 // pred_region
        %s9449 = ssub.s32 %s24, 2
        // Predicated region
        $region97: #{attention_model_forward.1} parent=95 // pred_check
          %p9450 = pneg %p352
        $region98: #{attention_model_forward.1} parent=95 // pred_check_branch
          %9452 = sbr.rel (%p9450) target = $region100
        $region99: #{attention_model_forward.1} parent=95 // pred_region
          %p9453 = scmp.lt.s32.totalorder %s30, 1
          %s9454 = scalar_select %p9453, %s30, 1
          %s9455 = smul.addr %s9454, 8
          %s9456 = scalar_lea.vmem %s14, %s9455
        $region100: #{attention_model_forward.1} parent=95 // pred_fallthru
          _
      $region96: #{attention_model_forward.1} parent=5 // pred_fallthru
        _
    $region6: #{attention_model_forward.1} parent=1 // loop_footer
      %s28 = sadd.s32 1, %s24
    $region7: #{attention_model_forward.1} parent=1 // loop_footer_branch
      %23 = sbr.rel target = $region3
    $region8: #{attention_model_forward.1} parent=1 // loop_exit
      _
    %9457 = vsyncpa [#allocation4], 1
    %s9458 = scalar_lea.sflag [#allocation4], 1
    %9459 = vsyncpa %s9458, 1
    %9460 = vsyncpa [#allocation6], 1

</llo_original>
